<compile_context>
chip_gen: v6e
topology: v6e:2x2x1
jax: 0.10.0
libtpu: 0.0.40
codegen_flags: <defaults>
</compile_context>

<pallas_src>
import functools

import jax
import jax.numpy as jnp
from jax import lax
from jax.experimental import pallas as pl
from jax.experimental.pallas import tpu as pltpu


# ----------------------------------------------------------------------------
# Kernel: one (batch, row-tile) step of the whole Up block.
# ----------------------------------------------------------------------------
def _up_block_kernel(xc_ref, x1_ref, xh_ref, ut_ref,
                     w1_ref, s1_ref, b1_ref, w2_ref, s2_ref, b2_ref,
                     o_ref, cat_s, mid_s,
                     *, TH, Hc, Wc, Cc, Cs, Cmid, Cout):
    Hf, Wf = 2 * Hc, 2 * Wc
    Cin = Cc + Cs
    h = pl.program_id(1)
    nH = pl.num_programs(1)
    bf16 = cat_s.dtype

    # ---- stage 0: zero only the conv padding columns of the scratch tiles ---
    # Every other scratch element is overwritten below before it is read, so a
    # full-tile clear is unnecessary.
    cat_s[:, :, 0:1] = jnp.zeros((Cin, TH + 4, 1), bf16)
    cat_s[:, :, Wf + 1:Wf + 2] = jnp.zeros((Cin, TH + 4, 1), bf16)
    mid_s[:, :, 0:1] = jnp.zeros((Cmid, TH + 2, 1), bf16)
    mid_s[:, :, Wf + 1:Wf + 2] = jnp.zeros((Cmid, TH + 2, 1), bf16)

    # ---- stage 1: skip connection x1 -> channels [Cc:Cin) of cat_s ----------
    # cat_s row rl <-> global fine row h*TH - 2 + rl, col c <-> global col c-1.
    cat_s[Cc:, 2:TH + 2, 1:Wf + 1] = x1_ref[0].astype(bf16)
    cat_s[Cc:, 0:2, 1:Wf + 1] = xh_ref[0, 0, :, 0:2, :].astype(bf16)        # top halo
    cat_s[Cc:, TH + 2:TH + 4, 1:Wf + 1] = xh_ref[0, 0, :, 2:4, :].astype(bf16)  # bottom

    # ---- stage 2: bilinear 2x upsample of x -> channels [0:Cc) of cat_s -----
    # H direction: fixed (0.25, 0.75) blend on the VPU (f32).
    # W direction: small MXU matmul with the precomputed (Wc, Wf) matrix.
    # Coarse rows are carried across iterations (exactly equivalent to the
    # independent clipped loads, since clip(k)@i == clip(k+1)@(i-1)).
    n_pairs = TH // 2 + 2
    base = h * (TH // 2) - 1                      # coarse row of fine-row pair i=0
    r_prev = xc_ref[0, :, jnp.clip(base - 1, 0, Hc - 1), :]   # (Cc, Wc) f32
    r_cur = xc_ref[0, :, jnp.clip(base, 0, Hc - 1), :]
    for i in range(n_pairs):                      # static unroll (TH/2 + 2 pairs)
        r_next = xc_ref[0, :, jnp.clip(base + i + 1, 0, Hc - 1), :]
        row_e = (0.25 * r_prev + 0.75 * r_cur).astype(bf16)   # fine row 2k
        row_o = (0.75 * r_cur + 0.25 * r_next).astype(bf16)   # fine row 2k + 1
        up_e = jnp.dot(row_e, ut_ref[...], preferred_element_type=jnp.float32)
        up_o = jnp.dot(row_o, ut_ref[...], preferred_element_type=jnp.float32)
        if i == 0:                     # rows -2/-1 are conv zero padding at h == 0
            up_e = jnp.where(h > 0, up_e, 0.0)
            up_o = jnp.where(h > 0, up_o, 0.0)
        if i == n_pairs - 1:           # rows Hf/Hf+1 are zero padding at last tile
            up_e = jnp.where(h < nH - 1, up_e, 0.0)
            up_o = jnp.where(h < nH - 1, up_o, 0.0)
        cat_s[0:Cc, 2 * i, 1:Wf + 1] = up_e.astype(bf16)
        cat_s[0:Cc, 2 * i + 1, 1:Wf + 1] = up_o.astype(bf16)
        r_prev, r_cur = r_cur, r_next

    # ---- stage 3: conv1 3x3 (pad=1) + folded BN + ReLU -> mid_s (bf16) ------
    # One deep-K matmul per output row: (Cmid, 9*Cin) @ (9*Cin, Wf), f32 acc.
    s1 = s1_ref[...]
    b1 = b1_ref[...]

    def conv1_row(t, carry):
        patch = jnp.concatenate(
            [cat_s[:, t + dy, dx:dx + Wf] for dy in range(3) for dx in range(3)],
            axis=0)                                               # (9*Cin, Wf)
        m = jnp.dot(w1_ref[...], patch, preferred_element_type=jnp.float32)
        m = jnp.maximum(m * s1 + b1, 0.0)                         # f32 epilogue
        mid_s[:, t, 1:Wf + 1] = m.astype(bf16)
        return carry

    lax.fori_loop(0, TH + 2, conv1_row, 0, unroll=True)

    # rows outside the image are conv2's zero padding, not conv1 outputs
    @pl.when(h == 0)
    def _():
        mid_s[:, 0:1, :] = jnp.zeros((Cmid, 1, Wf + 2), bf16)

    @pl.when(h == nH - 1)
    def _():
        mid_s[:, TH + 1:TH + 2, :] = jnp.zeros((Cmid, 1, Wf + 2), bf16)

    # ---- stage 4: conv2 3x3 (pad=1) + folded BN + ReLU -> output tile -------
    s2 = s2_ref[...]
    b2 = b2_ref[...]

    def conv2_row(t, carry):
        patch = jnp.concatenate(
            [mid_s[:, t + dy, dx:dx + Wf] for dy in range(3) for dx in range(3)],
            axis=0)                                               # (9*Cmid, Wf)
        o = jnp.dot(w2_ref[...], patch, preferred_element_type=jnp.float32)
        o = jnp.maximum(o * s2 + b2, 0.0)
        o_ref[0, :, t, :] = o.astype(o_ref.dtype)                 # NCHW, W on lanes
        return carry

    lax.fori_loop(0, TH, conv2_row, 0, unroll=True)


# ----------------------------------------------------------------------------
# Host-side helpers
# ----------------------------------------------------------------------------
def _w_upsample_matrix(wc):
    """(Wc, 2*Wc) matrix s.t. row @ U == bilinear 2x along W (align_corners=False)."""
    wf = 2 * wc
    out_idx = jnp.arange(wf, dtype=jnp.float32)
    src = (out_idx + 0.5) / 2.0 - 0.5
    lo = jnp.floor(src)
    frac = src - lo
    lo_i = jnp.clip(lo.astype(jnp.int32), 0, wc - 1)
    hi_i = jnp.clip(lo.astype(jnp.int32) + 1, 0, wc - 1)
    cols = jnp.arange(wc, dtype=jnp.int32)
    u = ((cols[:, None] == lo_i[None, :]).astype(jnp.float32) * (1.0 - frac)[None, :]
         + (cols[:, None] == hi_i[None, :]).astype(jnp.float32) * frac[None, :])
    return u


def up_forward(params, x, x1, *, tile_h=8):
    """Up.forward: conv(cat([upsample2x(x), x1], dim=1)), NCHW in / NCHW out."""
    N, Cc, Hc, Wc = x.shape
    N1, Cs, Hf, Wf = x1.shape
    assert N1 == N and Hf == 2 * Hc and Wf == 2 * Wc
    Cin = Cc + Cs
    Cmid = params["w1"].shape[0]
    Cout = params["w2"].shape[0]
    assert params["w1"].shape == (Cmid, Cin, 3, 3)
    assert params["w2"].shape == (Cout, Cmid, 3, 3)

    TH = tile_h                         # use 16-32 for realistic UNet resolutions
    assert TH % 8 == 0 and Hf % TH == 0, "tile_h must be a multiple of 8 dividing 2*H"
    nH = Hf // TH

    # --- tiny host-side prep: 2-D bf16 weights, interp matrix, skip halos ----
    w1 = jnp.transpose(params["w1"], (0, 2, 3, 1)).reshape(Cmid, 9 * Cin).astype(jnp.bfloat16)
    w2 = jnp.transpose(params["w2"], (0, 2, 3, 1)).reshape(Cout, 9 * Cmid).astype(jnp.bfloat16)
    s1 = params["s1"].reshape(Cmid, 1).astype(jnp.float32)
    b1 = params["b1"].reshape(Cmid, 1).astype(jnp.float32)
    s2 = params["s2"].reshape(Cout, 1).astype(jnp.float32)
    b2 = params["b2"].reshape(Cout, 1).astype(jnp.float32)
    ut = _w_upsample_matrix(Wc).astype(jnp.bfloat16)

    # Per-tile halo rows of the skip tensor (2 above + 2 below; zeros at the
    # image border, i.e. exactly the conv zero padding).  Only 4/TH of x1.
    x1p = jnp.pad(x1, ((0, 0), (0, 0), (2, 2), (0, 0)))
    halo = jnp.stack(
        [jnp.concatenate([x1p[:, :, h * TH:h * TH + 2, :],
                          x1p[:, :, (h + 1) * TH + 2:(h + 1) * TH + 4, :]], axis=2)
         for h in range(nH)], axis=1)                       # (N, nH, Cs, 4, Wf)

    kernel = functools.partial(
        _up_block_kernel, TH=TH, Hc=Hc, Wc=Wc, Cc=Cc, Cs=Cs, Cmid=Cmid, Cout=Cout)

    return pl.pallas_call(
        kernel,
        out_shape=jax.ShapeDtypeStruct((N, Cout, Hf, Wf), x.dtype),
        grid_spec=pltpu.PrefetchScalarGridSpec(
            num_scalar_prefetch=0,
            grid=(N, nH),
            in_specs=[
                pl.BlockSpec((1, Cc, Hc, Wc), lambda n, h: (n, 0, 0, 0)),   # coarse x (reused across h)
                pl.BlockSpec((1, Cs, TH, Wf), lambda n, h: (n, 0, h, 0)),   # skip tile
                pl.BlockSpec((1, 1, Cs, 4, Wf), lambda n, h: (n, h, 0, 0, 0)),  # skip halo rows
                pl.BlockSpec((Wc, Wf), lambda n, h: (0, 0)),                # W-interp matrix
                pl.BlockSpec((Cmid, 9 * Cin), lambda n, h: (0, 0)),         # conv1 weights
                pl.BlockSpec((Cmid, 1), lambda n, h: (0, 0)),               # conv1 BN scale
                pl.BlockSpec((Cmid, 1), lambda n, h: (0, 0)),               # conv1 BN bias
                pl.BlockSpec((Cout, 9 * Cmid), lambda n, h: (0, 0)),        # conv2 weights
                pl.BlockSpec((Cout, 1), lambda n, h: (0, 0)),               # conv2 BN scale
                pl.BlockSpec((Cout, 1), lambda n, h: (0, 0)),               # conv2 BN bias
            ],
            out_specs=pl.BlockSpec((1, Cout, TH, Wf), lambda n, h: (n, 0, h, 0)),
            scratch_shapes=[
                pltpu.VMEM((Cin, TH + 4, Wf + 2), jnp.bfloat16),   # concat tile + halo + pad
                pltpu.VMEM((Cmid, TH + 2, Wf + 2), jnp.bfloat16),  # conv1 output + halo + pad
            ],
        ),
        compiler_params=pltpu.CompilerParams(
            dimension_semantics=("parallel", "parallel"),
            vmem_limit_bytes=64 * 1024 * 1024,   # above v5e/v6e default scoped limits
        ),
    )(x, x1, halo, ut, w1, s1, b1, w2, s2, b2)


# ----------------------------------------------------------------------------
# Pure-JAX reference (same assumed semantics) for a correctness check
# ----------------------------------------------------------------------------
def _upsample2x_bilinear_nchw_ref(x):
    def interleave(a, b, axis):
        stacked = jnp.stack([a, b], axis=axis + 1)
        shape = list(a.shape)
        shape[axis] *= 2
        return stacked.reshape(shape)

    xm = jnp.concatenate([x[:, :, :1], x[:, :, :-1]], axis=2)
    xp = jnp.concatenate([x[:, :, 1:], x[:, :, -1:]], axis=2)
    x = interleave(0.25 * xm + 0.75 * x, 0.75 * x + 0.25 * xp, axis=2)
    xm = jnp.concatenate([x[:, :, :, :1], x[:, :, :, :-1]], axis=3)
    xp = jnp.concatenate([x[:, :, :, 1:], x[:, :, :, -1:]], axis=3)
    x = interleave(0.25 * xm + 0.75 * x, 0.75 * x + 0.25 * xp, axis=3)
    return x


def _conv_bn_relu_ref(x, w, s, b):
    y = lax.conv_general_dilated(x, w, window_strides=(1, 1), padding="SAME",
                                 dimension_numbers=("NCHW", "OIHW", "NCHW"))
    y = y * s[None, :, None, None] + b[None, :, None, None]
    return jnp.maximum(y, 0.0)


def up_forward_reference(params, x, x1):
    up = _upsample2x_bilinear_nchw_ref(x)
    xc = jnp.concatenate([up, x1], axis=1)
    y = _conv_bn_relu_ref(xc, params["w1"], params["s1"], params["b1"])
    return _conv_bn_relu_ref(y, params["w2"], params["s2"], params["b2"])


def init_params(key, c_in, c_out):
    k1, k2, k3, k4, k5, k6 = jax.random.split(key, 6)
    return {
        "w1": 0.1 * jax.random.normal(k1, (c_out, c_in, 3, 3), jnp.float32),
        "s1": 1.0 + 0.1 * jax.random.normal(k2, (c_out,), jnp.float32),   # folded BN
        "b1": 0.1 * jax.random.normal(k3, (c_out,), jnp.float32),
        "w2": 0.1 * jax.random.normal(k4, (c_out, c_out, 3, 3), jnp.float32),
        "s2": 1.0 + 0.1 * jax.random.normal(k5, (c_out,), jnp.float32),
        "b2": 0.1 * jax.random.normal(k6, (c_out,), jnp.float32),
    }


if __name__ == "__main__":
    key = jax.random.PRNGKey(0)
    kx, kx1, kp = jax.random.split(key, 3)

    N = 2
    c_half = 4                  # channels of x and of the skip connection x1
    c_in, c_out = 2 * c_half, 8
    Hc = Wc = 16                # coarse spatial; output is 32 x 32

    x = jax.random.normal(kx, (N, c_half, Hc, Wc), jnp.float32)           # NCHW
    x1 = jax.random.normal(kx1, (N, c_half, 2 * Hc, 2 * Wc), jnp.float32)  # skip

    params = init_params(kp, c_in, c_out)

    fn = jax.jit(functools.partial(up_forward, params, tile_h=8))
    out = jax.block_until_ready(fn(x, x1))
    assert out.shape == (N, c_out, 2 * Hc, 2 * Wc), out.shape
    assert out.dtype == jnp.float32

    ref = jax.block_until_ready(up_forward_reference(params, x, x1))
    err = float(jnp.max(jnp.abs(out - ref)))
    assert err < 5e-2, f"max |err| = {err}"   # bf16 activations/weights in kernel
    print("KERNEL_OK")
</pallas_src>

<mosaic_0001>
module attributes {stable_mosaic.version = 11 : i64} {
  func.func @_up_block_kernel(%arg0: i32, %arg1: i32, %arg2: memref<1x4x16x16xf32, #tpu.memory_space<vmem>>, %arg3: memref<1x4x8x32xf32, #tpu.memory_space<vmem>>, %arg4: memref<1x1x4x4x32xf32, #tpu.memory_space<vmem>>, %arg5: memref<16x32xbf16, #tpu.memory_space<vmem>>, %arg6: memref<8x72xbf16, #tpu.memory_space<vmem>>, %arg7: memref<8x1xf32, #tpu.memory_space<vmem>>, %arg8: memref<8x1xf32, #tpu.memory_space<vmem>>, %arg9: memref<8x72xbf16, #tpu.memory_space<vmem>>, %arg10: memref<8x1xf32, #tpu.memory_space<vmem>>, %arg11: memref<8x1xf32, #tpu.memory_space<vmem>>, %arg12: memref<1x8x8x32xf32, #tpu.memory_space<vmem>>, %arg13: memref<8x12x34xbf16, #tpu.memory_space<vmem>>, %arg14: memref<8x10x34xbf16, #tpu.memory_space<vmem>>) attributes {dimension_semantics = [#tpu.dimension_semantics<parallel>, #tpu.dimension_semantics<parallel>], iteration_bounds = array<i64: 2, 4>, scalar_prefetch = 0 : i64, scratch_operands = 2 : i64, tpu.core_type = #tpu.core_type<tc>, window_params = [{transform_indices = @transform_0, window_bounds = array<i64: 1, 4, 16, 16>}, {transform_indices = @transform_1, window_bounds = array<i64: 1, 4, 8, 32>}, {transform_indices = @transform_2, window_bounds = array<i64: 1, 1, 4, 4, 32>}, {pipeline_mode = #tpu.pipeline_mode<synchronous>, transform_indices = @transform_3, window_bounds = array<i64: 16, 32>}, {pipeline_mode = #tpu.pipeline_mode<synchronous>, transform_indices = @transform_4, window_bounds = array<i64: 8, 72>}, {pipeline_mode = #tpu.pipeline_mode<synchronous>, transform_indices = @transform_5, window_bounds = array<i64: 8, 1>}, {pipeline_mode = #tpu.pipeline_mode<synchronous>, transform_indices = @transform_6, window_bounds = array<i64: 8, 1>}, {pipeline_mode = #tpu.pipeline_mode<synchronous>, transform_indices = @transform_7, window_bounds = array<i64: 8, 72>}, {pipeline_mode = #tpu.pipeline_mode<synchronous>, transform_indices = @transform_8, window_bounds = array<i64: 8, 1>}, {pipeline_mode = #tpu.pipeline_mode<synchronous>, transform_indices = @transform_9, window_bounds = array<i64: 8, 1>}, {transform_indices = @transform_10, window_bounds = array<i64: 1, 8, 8, 32>}]} {
    %cst = arith.constant 0.000000e+00 : bf16
    %0 = vector.broadcast %cst : bf16 to vector<8x12x1xbf16>
    %c0 = arith.constant 0 : index
    %c0_0 = arith.constant 0 : index
    %c0_1 = arith.constant 0 : index
    %1 = vector.load %arg13[%c0, %c0_0, %c0_1] : memref<8x12x34xbf16, #tpu.memory_space<vmem>>, vector<8x12x1xbf16>
    tpu.vector_store %arg13[%c0, %c0_0, %c0_1], %0 {strides = array<i32>} : memref<8x12x34xbf16, #tpu.memory_space<vmem>>, vector<8x12x1xbf16>,
    %cst_2 = arith.constant 0.000000e+00 : bf16
    %2 = vector.broadcast %cst_2 : bf16 to vector<8x12x1xbf16>
    %c0_3 = arith.constant 0 : index
    %c0_4 = arith.constant 0 : index
    %c33 = arith.constant 33 : index
    %3 = vector.load %arg13[%c0_3, %c0_4, %c33] : memref<8x12x34xbf16, #tpu.memory_space<vmem>>, vector<8x12x1xbf16>
    tpu.vector_store %arg13[%c0_3, %c0_4, %c33], %2 {strides = array<i32>} : memref<8x12x34xbf16, #tpu.memory_space<vmem>>, vector<8x12x1xbf16>,
    %cst_5 = arith.constant 0.000000e+00 : bf16
    %4 = vector.broadcast %cst_5 : bf16 to vector<8x10x1xbf16>
    %c0_6 = arith.constant 0 : index
    %c0_7 = arith.constant 0 : index
    %c0_8 = arith.constant 0 : index
    %5 = vector.load %arg14[%c0_6, %c0_7, %c0_8] : memref<8x10x34xbf16, #tpu.memory_space<vmem>>, vector<8x10x1xbf16>
    tpu.vector_store %arg14[%c0_6, %c0_7, %c0_8], %4 {strides = array<i32>} : memref<8x10x34xbf16, #tpu.memory_space<vmem>>, vector<8x10x1xbf16>,
    %cst_9 = arith.constant 0.000000e+00 : bf16
    %6 = vector.broadcast %cst_9 : bf16 to vector<8x10x1xbf16>
    %c0_10 = arith.constant 0 : index
    %c0_11 = arith.constant 0 : index
    %c33_12 = arith.constant 33 : index
    %7 = vector.load %arg14[%c0_10, %c0_11, %c33_12] : memref<8x10x34xbf16, #tpu.memory_space<vmem>>, vector<8x10x1xbf16>
    tpu.vector_store %arg14[%c0_10, %c0_11, %c33_12], %6 {strides = array<i32>} : memref<8x10x34xbf16, #tpu.memory_space<vmem>>, vector<8x10x1xbf16>,
    %c0_13 = arith.constant 0 : index
    %c0_14 = arith.constant 0 : index
    %c0_15 = arith.constant 0 : index
    %c0_16 = arith.constant 0 : index
    %8 = vector.load %arg3[%c0_13, %c0_14, %c0_15, %c0_16] : memref<1x4x8x32xf32, #tpu.memory_space<vmem>>, vector<1x4x8x32xf32>
    %9 = vector.shape_cast %8 : vector<1x4x8x32xf32> to vector<4x8x32xf32>
    %10 = arith.truncf %9 : vector<4x8x32xf32> to vector<4x8x32xbf16>
    %c4 = arith.constant 4 : index
    %c2 = arith.constant 2 : index
    %c1 = arith.constant 1 : index
    %11 = vector.load %arg13[%c4, %c2, %c1] : memref<8x12x34xbf16, #tpu.memory_space<vmem>>, vector<4x8x32xbf16>
    tpu.vector_store %arg13[%c4, %c2, %c1], %10 {strides = array<i32>} : memref<8x12x34xbf16, #tpu.memory_space<vmem>>, vector<4x8x32xbf16>,
    %c0_17 = arith.constant 0 : index
    %c0_18 = arith.constant 0 : index
    %c0_19 = arith.constant 0 : index
    %c0_20 = arith.constant 0 : index
    %c0_21 = arith.constant 0 : index
    %12 = vector.load %arg4[%c0_17, %c0_18, %c0_19, %c0_20, %c0_21] : memref<1x1x4x4x32xf32, #tpu.memory_space<vmem>>, vector<1x1x4x2x32xf32>
    %13 = vector.shape_cast %12 : vector<1x1x4x2x32xf32> to vector<4x2x32xf32>
    %14 = arith.truncf %13 : vector<4x2x32xf32> to vector<4x2x32xbf16>
    %c4_22 = arith.constant 4 : index
    %c0_23 = arith.constant 0 : index
    %c1_24 = arith.constant 1 : index
    %15 = vector.load %arg13[%c4_22, %c0_23, %c1_24] : memref<8x12x34xbf16, #tpu.memory_space<vmem>>, vector<4x2x32xbf16>
    tpu.vector_store %arg13[%c4_22, %c0_23, %c1_24], %14 {strides = array<i32>} : memref<8x12x34xbf16, #tpu.memory_space<vmem>>, vector<4x2x32xbf16>,
    %c0_25 = arith.constant 0 : index
    %c0_26 = arith.constant 0 : index
    %c0_27 = arith.constant 0 : index
    %c2_28 = arith.constant 2 : index
    %c0_29 = arith.constant 0 : index
    %16 = vector.load %arg4[%c0_25, %c0_26, %c0_27, %c2_28, %c0_29] : memref<1x1x4x4x32xf32, #tpu.memory_space<vmem>>, vector<1x1x4x2x32xf32>
    %17 = vector.shape_cast %16 : vector<1x1x4x2x32xf32> to vector<4x2x32xf32>
    %18 = arith.truncf %17 : vector<4x2x32xf32> to vector<4x2x32xbf16>
    %c4_30 = arith.constant 4 : index
    %c10 = arith.constant 10 : index
    %c1_31 = arith.constant 1 : index
    %19 = vector.load %arg13[%c4_30, %c10, %c1_31] : memref<8x12x34xbf16, #tpu.memory_space<vmem>>, vector<4x2x32xbf16>
    tpu.vector_store %arg13[%c4_30, %c10, %c1_31], %18 {strides = array<i32>} : memref<8x12x34xbf16, #tpu.memory_space<vmem>>, vector<4x2x32xbf16>,
    %c4_i32 = arith.constant 4 : i32
    %20 = arith.muli %arg1, %c4_i32 : i32
    %c1_i32 = arith.constant 1 : i32
    %21 = arith.subi %20, %c1_i32 : i32
    %c1_i32_32 = arith.constant 1 : i32
    %22 = arith.subi %21, %c1_i32_32 : i32
    %c0_i32 = arith.constant 0 : i32
    %c15_i32 = arith.constant 15 : i32
    %23 = arith.maxsi %c0_i32, %22 : i32
    %24 = arith.minsi %c15_i32, %23 : i32
    %c0_33 = arith.constant 0 : index
    %c0_34 = arith.constant 0 : index
    %25 = arith.index_cast %24 : i32 to index
    %c0_35 = arith.constant 0 : index
    %26 = vector.load %arg2[%c0_33, %c0_34, %25, %c0_35] : memref<1x4x16x16xf32, #tpu.memory_space<vmem>>, vector<1x4x1x16xf32>
    %27 = vector.shape_cast %26 : vector<1x4x1x16xf32> to vector<4x16xf32>
    %c0_i32_36 = arith.constant 0 : i32
    %c15_i32_37 = arith.constant 15 : i32
    %28 = arith.maxsi %c0_i32_36, %21 : i32
    %29 = arith.minsi %c15_i32_37, %28 : i32
    %c0_38 = arith.constant 0 : index
    %c0_39 = arith.constant 0 : index
    %30 = arith.index_cast %29 : i32 to index
    %c0_40 = arith.constant 0 : index
    %31 = vector.load %arg2[%c0_38, %c0_39, %30, %c0_40] : memref<1x4x16x16xf32, #tpu.memory_space<vmem>>, vector<1x4x1x16xf32>
    %32 = vector.shape_cast %31 : vector<1x4x1x16xf32> to vector<4x16xf32>
    %c0_i32_41 = arith.constant 0 : i32
    %33 = arith.addi %21, %c0_i32_41 : i32
    %c1_i32_42 = arith.constant 1 : i32
    %34 = arith.addi %33, %c1_i32_42 : i32
    %c0_i32_43 = arith.constant 0 : i32
    %c15_i32_44 = arith.constant 15 : i32
    %35 = arith.maxsi %c0_i32_43, %34 : i32
    %36 = arith.minsi %c15_i32_44, %35 : i32
    %c0_45 = arith.constant 0 : index
    %c0_46 = arith.constant 0 : index
    %37 = arith.index_cast %36 : i32 to index
    %c0_47 = arith.constant 0 : index
    %38 = vector.load %arg2[%c0_45, %c0_46, %37, %c0_47] : memref<1x4x16x16xf32, #tpu.memory_space<vmem>>, vector<1x4x1x16xf32>
    %39 = vector.shape_cast %38 : vector<1x4x1x16xf32> to vector<4x16xf32>
    %cst_48 = arith.constant 2.500000e-01 : f32
    %40 = vector.broadcast %cst_48 : f32 to vector<4x16xf32>
    %41 = arith.mulf %40, %27 : vector<4x16xf32>
    %cst_49 = arith.constant 7.500000e-01 : f32
    %42 = vector.broadcast %cst_49 : f32 to vector<4x16xf32>
    %43 = arith.mulf %42, %32 : vector<4x16xf32>
    %44 = arith.addf %41, %43 : vector<4x16xf32>
    %45 = arith.truncf %44 : vector<4x16xf32> to vector<4x16xbf16>
    %cst_50 = arith.constant 7.500000e-01 : f32
    %46 = vector.broadcast %cst_50 : f32 to vector<4x16xf32>
    %47 = arith.mulf %46, %32 : vector<4x16xf32>
    %cst_51 = arith.constant 2.500000e-01 : f32
    %48 = vector.broadcast %cst_51 : f32 to vector<4x16xf32>
    %49 = arith.mulf %48, %39 : vector<4x16xf32>
    %50 = arith.addf %47, %49 : vector<4x16xf32>
    %51 = arith.truncf %50 : vector<4x16xf32> to vector<4x16xbf16>
    %c0_52 = arith.constant 0 : index
    %c0_53 = arith.constant 0 : index
    %52 = vector.load %arg5[%c0_52, %c0_53] : memref<16x32xbf16, #tpu.memory_space<vmem>>, vector<16x32xbf16>
    %cst_54 = arith.constant dense<0.000000e+00> : vector<4x32xf32>
    %53 = tpu.matmul %45, %52, %cst_54 {dimension_numbers = #tpu.dot_dimension_numbers<[1], [0], [0], [1], [0, 0, 1, 1], [], []>} : vector<4x16xbf16>, vector<16x32xbf16>, vector<4x32xf32> -> vector<4x32xf32>
    %c0_55 = arith.constant 0 : index
    %c0_56 = arith.constant 0 : index
    %54 = vector.load %arg5[%c0_55, %c0_56] : memref<16x32xbf16, #tpu.memory_space<vmem>>, vector<16x32xbf16>
    %cst_57 = arith.constant dense<0.000000e+00> : vector<4x32xf32>
    %55 = tpu.matmul %51, %54, %cst_57 {dimension_numbers = #tpu.dot_dimension_numbers<[1], [0], [0], [1], [0, 0, 1, 1], [], []>} : vector<4x16xbf16>, vector<16x32xbf16>, vector<4x32xf32> -> vector<4x32xf32>
    %c0_i32_58 = arith.constant 0 : i32
    %56 = arith.cmpi sgt, %arg1, %c0_i32_58 : i32
    %cst_59 = arith.constant 0.000000e+00 : f32
    %57 = vector.broadcast %cst_59 : f32 to vector<4x32xf32>
    %58 = arith.select %56, %53, %57 : vector<4x32xf32>
    %c0_i32_60 = arith.constant 0 : i32
    %59 = arith.cmpi sgt, %arg1, %c0_i32_60 : i32
    %cst_61 = arith.constant 0.000000e+00 : f32
    %60 = vector.broadcast %cst_61 : f32 to vector<4x32xf32>
    %61 = arith.select %59, %55, %60 : vector<4x32xf32>
    %62 = arith.truncf %58 : vector<4x32xf32> to vector<4x32xbf16>
    %c0_62 = arith.constant 0 : index
    %c0_63 = arith.constant 0 : index
    %c1_64 = arith.constant 1 : index
    %63 = vector.load %arg13[%c0_62, %c0_63, %c1_64] : memref<8x12x34xbf16, #tpu.memory_space<vmem>>, vector<4x1x32xbf16>
    %64 = vector.shape_cast %63 : vector<4x1x32xbf16> to vector<4x32xbf16>
    %65 = vector.shape_cast %62 : vector<4x32xbf16> to vector<4x1x32xbf16>
    tpu.vector_store %arg13[%c0_62, %c0_63, %c1_64], %65 {strides = array<i32>} : memref<8x12x34xbf16, #tpu.memory_space<vmem>>, vector<4x1x32xbf16>,
    %66 = arith.truncf %61 : vector<4x32xf32> to vector<4x32xbf16>
    %c0_65 = arith.constant 0 : index
    %c1_66 = arith.constant 1 : index
    %c1_67 = arith.constant 1 : index
    %67 = vector.load %arg13[%c0_65, %c1_66, %c1_67] : memref<8x12x34xbf16, #tpu.memory_space<vmem>>, vector<4x1x32xbf16>
    %68 = vector.shape_cast %67 : vector<4x1x32xbf16> to vector<4x32xbf16>
    %69 = vector.shape_cast %66 : vector<4x32xbf16> to vector<4x1x32xbf16>
    tpu.vector_store %arg13[%c0_65, %c1_66, %c1_67], %69 {strides = array<i32>} : memref<8x12x34xbf16, #tpu.memory_space<vmem>>, vector<4x1x32xbf16>,
    %c1_i32_68 = arith.constant 1 : i32
    %70 = arith.addi %21, %c1_i32_68 : i32
    %c1_i32_69 = arith.constant 1 : i32
    %71 = arith.addi %70, %c1_i32_69 : i32
    %c0_i32_70 = arith.constant 0 : i32
    %c15_i32_71 = arith.constant 15 : i32
    %72 = arith.maxsi %c0_i32_70, %71 : i32
    %73 = arith.minsi %c15_i32_71, %72 : i32
    %c0_72 = arith.constant 0 : index
    %c0_73 = arith.constant 0 : index
    %74 = arith.index_cast %73 : i32 to index
    %c0_74 = arith.constant 0 : index
    %75 = vector.load %arg2[%c0_72, %c0_73, %74, %c0_74] : memref<1x4x16x16xf32, #tpu.memory_space<vmem>>, vector<1x4x1x16xf32>
    %76 = vector.shape_cast %75 : vector<1x4x1x16xf32> to vector<4x16xf32>
    %cst_75 = arith.constant 2.500000e-01 : f32
    %77 = vector.broadcast %cst_75 : f32 to vector<4x16xf32>
    %78 = arith.mulf %77, %32 : vector<4x16xf32>
    %cst_76 = arith.constant 7.500000e-01 : f32
    %79 = vector.broadcast %cst_76 : f32 to vector<4x16xf32>
    %80 = arith.mulf %79, %39 : vector<4x16xf32>
    %81 = arith.addf %78, %80 : vector<4x16xf32>
    %82 = arith.truncf %81 : vector<4x16xf32> to vector<4x16xbf16>
    %cst_77 = arith.constant 7.500000e-01 : f32
    %83 = vector.broadcast %cst_77 : f32 to vector<4x16xf32>
    %84 = arith.mulf %83, %39 : vector<4x16xf32>
    %cst_78 = arith.constant 2.500000e-01 : f32
    %85 = vector.broadcast %cst_78 : f32 to vector<4x16xf32>
    %86 = arith.mulf %85, %76 : vector<4x16xf32>
    %87 = arith.addf %84, %86 : vector<4x16xf32>
    %88 = arith.truncf %87 : vector<4x16xf32> to vector<4x16xbf16>
    %c0_79 = arith.constant 0 : index
    %c0_80 = arith.constant 0 : index
    %89 = vector.load %arg5[%c0_79, %c0_80] : memref<16x32xbf16, #tpu.memory_space<vmem>>, vector<16x32xbf16>
    %cst_81 = arith.constant dense<0.000000e+00> : vector<4x32xf32>
    %90 = tpu.matmul %82, %89, %cst_81 {dimension_numbers = #tpu.dot_dimension_numbers<[1], [0], [0], [1], [0, 0, 1, 1], [], []>} : vector<4x16xbf16>, vector<16x32xbf16>, vector<4x32xf32> -> vector<4x32xf32>
    %c0_82 = arith.constant 0 : index
    %c0_83 = arith.constant 0 : index
    %91 = vector.load %arg5[%c0_82, %c0_83] : memref<16x32xbf16, #tpu.memory_space<vmem>>, vector<16x32xbf16>
    %cst_84 = arith.constant dense<0.000000e+00> : vector<4x32xf32>
    %92 = tpu.matmul %88, %91, %cst_84 {dimension_numbers = #tpu.dot_dimension_numbers<[1], [0], [0], [1], [0, 0, 1, 1], [], []>} : vector<4x16xbf16>, vector<16x32xbf16>, vector<4x32xf32> -> vector<4x32xf32>
    %93 = arith.truncf %90 : vector<4x32xf32> to vector<4x32xbf16>
    %c0_85 = arith.constant 0 : index
    %c2_86 = arith.constant 2 : index
    %c1_87 = arith.constant 1 : index
    %94 = vector.load %arg13[%c0_85, %c2_86, %c1_87] : memref<8x12x34xbf16, #tpu.memory_space<vmem>>, vector<4x1x32xbf16>
    %95 = vector.shape_cast %94 : vector<4x1x32xbf16> to vector<4x32xbf16>
    %96 = vector.shape_cast %93 : vector<4x32xbf16> to vector<4x1x32xbf16>
    tpu.vector_store %arg13[%c0_85, %c2_86, %c1_87], %96 {strides = array<i32>} : memref<8x12x34xbf16, #tpu.memory_space<vmem>>, vector<4x1x32xbf16>,
    %97 = arith.truncf %92 : vector<4x32xf32> to vector<4x32xbf16>
    %c0_88 = arith.constant 0 : index
    %c3 = arith.constant 3 : index
    %c1_89 = arith.constant 1 : index
    %98 = vector.load %arg13[%c0_88, %c3, %c1_89] : memref<8x12x34xbf16, #tpu.memory_space<vmem>>, vector<4x1x32xbf16>
    %99 = vector.shape_cast %98 : vector<4x1x32xbf16> to vector<4x32xbf16>
    %100 = vector.shape_cast %97 : vector<4x32xbf16> to vector<4x1x32xbf16>
    tpu.vector_store %arg13[%c0_88, %c3, %c1_89], %100 {strides = array<i32>} : memref<8x12x34xbf16, #tpu.memory_space<vmem>>, vector<4x1x32xbf16>,
    %c2_i32 = arith.constant 2 : i32
    %101 = arith.addi %21, %c2_i32 : i32
    %c1_i32_90 = arith.constant 1 : i32
    %102 = arith.addi %101, %c1_i32_90 : i32
    %c0_i32_91 = arith.constant 0 : i32
    %c15_i32_92 = arith.constant 15 : i32
    %103 = arith.maxsi %c0_i32_91, %102 : i32
    %104 = arith.minsi %c15_i32_92, %103 : i32
    %c0_93 = arith.constant 0 : index
    %c0_94 = arith.constant 0 : index
    %105 = arith.index_cast %104 : i32 to index
    %c0_95 = arith.constant 0 : index
    %106 = vector.load %arg2[%c0_93, %c0_94, %105, %c0_95] : memref<1x4x16x16xf32, #tpu.memory_space<vmem>>, vector<1x4x1x16xf32>
    %107 = vector.shape_cast %106 : vector<1x4x1x16xf32> to vector<4x16xf32>
    %cst_96 = arith.constant 2.500000e-01 : f32
    %108 = vector.broadcast %cst_96 : f32 to vector<4x16xf32>
    %109 = arith.mulf %108, %39 : vector<4x16xf32>
    %cst_97 = arith.constant 7.500000e-01 : f32
    %110 = vector.broadcast %cst_97 : f32 to vector<4x16xf32>
    %111 = arith.mulf %110, %76 : vector<4x16xf32>
    %112 = arith.addf %109, %111 : vector<4x16xf32>
    %113 = arith.truncf %112 : vector<4x16xf32> to vector<4x16xbf16>
    %cst_98 = arith.constant 7.500000e-01 : f32
    %114 = vector.broadcast %cst_98 : f32 to vector<4x16xf32>
    %115 = arith.mulf %114, %76 : vector<4x16xf32>
    %cst_99 = arith.constant 2.500000e-01 : f32
    %116 = vector.broadcast %cst_99 : f32 to vector<4x16xf32>
    %117 = arith.mulf %116, %107 : vector<4x16xf32>
    %118 = arith.addf %115, %117 : vector<4x16xf32>
    %119 = arith.truncf %118 : vector<4x16xf32> to vector<4x16xbf16>
    %c0_100 = arith.constant 0 : index
    %c0_101 = arith.constant 0 : index
    %120 = vector.load %arg5[%c0_100, %c0_101] : memref<16x32xbf16, #tpu.memory_space<vmem>>, vector<16x32xbf16>
    %cst_102 = arith.constant dense<0.000000e+00> : vector<4x32xf32>
    %121 = tpu.matmul %113, %120, %cst_102 {dimension_numbers = #tpu.dot_dimension_numbers<[1], [0], [0], [1], [0, 0, 1, 1], [], []>} : vector<4x16xbf16>, vector<16x32xbf16>, vector<4x32xf32> -> vector<4x32xf32>
    %c0_103 = arith.constant 0 : index
    %c0_104 = arith.constant 0 : index
    %122 = vector.load %arg5[%c0_103, %c0_104] : memref<16x32xbf16, #tpu.memory_space<vmem>>, vector<16x32xbf16>
    %cst_105 = arith.constant dense<0.000000e+00> : vector<4x32xf32>
    %123 = tpu.matmul %119, %122, %cst_105 {dimension_numbers = #tpu.dot_dimension_numbers<[1], [0], [0], [1], [0, 0, 1, 1], [], []>} : vector<4x16xbf16>, vector<16x32xbf16>, vector<4x32xf32> -> vector<4x32xf32>
    %124 = arith.truncf %121 : vector<4x32xf32> to vector<4x32xbf16>
    %c0_106 = arith.constant 0 : index
    %c4_107 = arith.constant 4 : index
    %c1_108 = arith.constant 1 : index
    %125 = vector.load %arg13[%c0_106, %c4_107, %c1_108] : memref<8x12x34xbf16, #tpu.memory_space<vmem>>, vector<4x1x32xbf16>
    %126 = vector.shape_cast %125 : vector<4x1x32xbf16> to vector<4x32xbf16>
    %127 = vector.shape_cast %124 : vector<4x32xbf16> to vector<4x1x32xbf16>
    tpu.vector_store %arg13[%c0_106, %c4_107, %c1_108], %127 {strides = array<i32>} : memref<8x12x34xbf16, #tpu.memory_space<vmem>>, vector<4x1x32xbf16>,
    %128 = arith.truncf %123 : vector<4x32xf32> to vector<4x32xbf16>
    %c0_109 = arith.constant 0 : index
    %c5 = arith.constant 5 : index
    %c1_110 = arith.constant 1 : index
    %129 = vector.load %arg13[%c0_109, %c5, %c1_110] : memref<8x12x34xbf16, #tpu.memory_space<vmem>>, vector<4x1x32xbf16>
    %130 = vector.shape_cast %129 : vector<4x1x32xbf16> to vector<4x32xbf16>
    %131 = vector.shape_cast %128 : vector<4x32xbf16> to vector<4x1x32xbf16>
    tpu.vector_store %arg13[%c0_109, %c5, %c1_110], %131 {strides = array<i32>} : memref<8x12x34xbf16, #tpu.memory_space<vmem>>, vector<4x1x32xbf16>,
    %c3_i32 = arith.constant 3 : i32
    %132 = arith.addi %21, %c3_i32 : i32
    %c1_i32_111 = arith.constant 1 : i32
    %133 = arith.addi %132, %c1_i32_111 : i32
    %c0_i32_112 = arith.constant 0 : i32
    %c15_i32_113 = arith.constant 15 : i32
    %134 = arith.maxsi %c0_i32_112, %133 : i32
    %135 = arith.minsi %c15_i32_113, %134 : i32
    %c0_114 = arith.constant 0 : index
    %c0_115 = arith.constant 0 : index
    %136 = arith.index_cast %135 : i32 to index
    %c0_116 = arith.constant 0 : index
    %137 = vector.load %arg2[%c0_114, %c0_115, %136, %c0_116] : memref<1x4x16x16xf32, #tpu.memory_space<vmem>>, vector<1x4x1x16xf32>
    %138 = vector.shape_cast %137 : vector<1x4x1x16xf32> to vector<4x16xf32>
    %cst_117 = arith.constant 2.500000e-01 : f32
    %139 = vector.broadcast %cst_117 : f32 to vector<4x16xf32>
    %140 = arith.mulf %139, %76 : vector<4x16xf32>
    %cst_118 = arith.constant 7.500000e-01 : f32
    %141 = vector.broadcast %cst_118 : f32 to vector<4x16xf32>
    %142 = arith.mulf %141, %107 : vector<4x16xf32>
    %143 = arith.addf %140, %142 : vector<4x16xf32>
    %144 = arith.truncf %143 : vector<4x16xf32> to vector<4x16xbf16>
    %cst_119 = arith.constant 7.500000e-01 : f32
    %145 = vector.broadcast %cst_119 : f32 to vector<4x16xf32>
    %146 = arith.mulf %145, %107 : vector<4x16xf32>
    %cst_120 = arith.constant 2.500000e-01 : f32
    %147 = vector.broadcast %cst_120 : f32 to vector<4x16xf32>
    %148 = arith.mulf %147, %138 : vector<4x16xf32>
    %149 = arith.addf %146, %148 : vector<4x16xf32>
    %150 = arith.truncf %149 : vector<4x16xf32> to vector<4x16xbf16>
    %c0_121 = arith.constant 0 : index
    %c0_122 = arith.constant 0 : index
    %151 = vector.load %arg5[%c0_121, %c0_122] : memref<16x32xbf16, #tpu.memory_space<vmem>>, vector<16x32xbf16>
    %cst_123 = arith.constant dense<0.000000e+00> : vector<4x32xf32>
    %152 = tpu.matmul %144, %151, %cst_123 {dimension_numbers = #tpu.dot_dimension_numbers<[1], [0], [0], [1], [0, 0, 1, 1], [], []>} : vector<4x16xbf16>, vector<16x32xbf16>, vector<4x32xf32> -> vector<4x32xf32>
    %c0_124 = arith.constant 0 : index
    %c0_125 = arith.constant 0 : index
    %153 = vector.load %arg5[%c0_124, %c0_125] : memref<16x32xbf16, #tpu.memory_space<vmem>>, vector<16x32xbf16>
    %cst_126 = arith.constant dense<0.000000e+00> : vector<4x32xf32>
    %154 = tpu.matmul %150, %153, %cst_126 {dimension_numbers = #tpu.dot_dimension_numbers<[1], [0], [0], [1], [0, 0, 1, 1], [], []>} : vector<4x16xbf16>, vector<16x32xbf16>, vector<4x32xf32> -> vector<4x32xf32>
    %155 = arith.truncf %152 : vector<4x32xf32> to vector<4x32xbf16>
    %c0_127 = arith.constant 0 : index
    %c6 = arith.constant 6 : index
    %c1_128 = arith.constant 1 : index
    %156 = vector.load %arg13[%c0_127, %c6, %c1_128] : memref<8x12x34xbf16, #tpu.memory_space<vmem>>, vector<4x1x32xbf16>
    %157 = vector.shape_cast %156 : vector<4x1x32xbf16> to vector<4x32xbf16>
    %158 = vector.shape_cast %155 : vector<4x32xbf16> to vector<4x1x32xbf16>
    tpu.vector_store %arg13[%c0_127, %c6, %c1_128], %158 {strides = array<i32>} : memref<8x12x34xbf16, #tpu.memory_space<vmem>>, vector<4x1x32xbf16>,
    %159 = arith.truncf %154 : vector<4x32xf32> to vector<4x32xbf16>
    %c0_129 = arith.constant 0 : index
    %c7 = arith.constant 7 : index
    %c1_130 = arith.constant 1 : index
    %160 = vector.load %arg13[%c0_129, %c7, %c1_130] : memref<8x12x34xbf16, #tpu.memory_space<vmem>>, vector<4x1x32xbf16>
    %161 = vector.shape_cast %160 : vector<4x1x32xbf16> to vector<4x32xbf16>
    %162 = vector.shape_cast %159 : vector<4x32xbf16> to vector<4x1x32xbf16>
    tpu.vector_store %arg13[%c0_129, %c7, %c1_130], %162 {strides = array<i32>} : memref<8x12x34xbf16, #tpu.memory_space<vmem>>, vector<4x1x32xbf16>,
    %c4_i32_131 = arith.constant 4 : i32
    %163 = arith.addi %21, %c4_i32_131 : i32
    %c1_i32_132 = arith.constant 1 : i32
    %164 = arith.addi %163, %c1_i32_132 : i32
    %c0_i32_133 = arith.constant 0 : i32
    %c15_i32_134 = arith.constant 15 : i32
    %165 = arith.maxsi %c0_i32_133, %164 : i32
    %166 = arith.minsi %c15_i32_134, %165 : i32
    %c0_135 = arith.constant 0 : index
    %c0_136 = arith.constant 0 : index
    %167 = arith.index_cast %166 : i32 to index
    %c0_137 = arith.constant 0 : index
    %168 = vector.load %arg2[%c0_135, %c0_136, %167, %c0_137] : memref<1x4x16x16xf32, #tpu.memory_space<vmem>>, vector<1x4x1x16xf32>
    %169 = vector.shape_cast %168 : vector<1x4x1x16xf32> to vector<4x16xf32>
    %cst_138 = arith.constant 2.500000e-01 : f32
    %170 = vector.broadcast %cst_138 : f32 to vector<4x16xf32>
    %171 = arith.mulf %170, %107 : vector<4x16xf32>
    %cst_139 = arith.constant 7.500000e-01 : f32
    %172 = vector.broadcast %cst_139 : f32 to vector<4x16xf32>
    %173 = arith.mulf %172, %138 : vector<4x16xf32>
    %174 = arith.addf %171, %173 : vector<4x16xf32>
    %175 = arith.truncf %174 : vector<4x16xf32> to vector<4x16xbf16>
    %cst_140 = arith.constant 7.500000e-01 : f32
    %176 = vector.broadcast %cst_140 : f32 to vector<4x16xf32>
    %177 = arith.mulf %176, %138 : vector<4x16xf32>
    %cst_141 = arith.constant 2.500000e-01 : f32
    %178 = vector.broadcast %cst_141 : f32 to vector<4x16xf32>
    %179 = arith.mulf %178, %169 : vector<4x16xf32>
    %180 = arith.addf %177, %179 : vector<4x16xf32>
    %181 = arith.truncf %180 : vector<4x16xf32> to vector<4x16xbf16>
    %c0_142 = arith.constant 0 : index
    %c0_143 = arith.constant 0 : index
    %182 = vector.load %arg5[%c0_142, %c0_143] : memref<16x32xbf16, #tpu.memory_space<vmem>>, vector<16x32xbf16>
    %cst_144 = arith.constant dense<0.000000e+00> : vector<4x32xf32>
    %183 = tpu.matmul %175, %182, %cst_144 {dimension_numbers = #tpu.dot_dimension_numbers<[1], [0], [0], [1], [0, 0, 1, 1], [], []>} : vector<4x16xbf16>, vector<16x32xbf16>, vector<4x32xf32> -> vector<4x32xf32>
    %c0_145 = arith.constant 0 : index
    %c0_146 = arith.constant 0 : index
    %184 = vector.load %arg5[%c0_145, %c0_146] : memref<16x32xbf16, #tpu.memory_space<vmem>>, vector<16x32xbf16>
    %cst_147 = arith.constant dense<0.000000e+00> : vector<4x32xf32>
    %185 = tpu.matmul %181, %184, %cst_147 {dimension_numbers = #tpu.dot_dimension_numbers<[1], [0], [0], [1], [0, 0, 1, 1], [], []>} : vector<4x16xbf16>, vector<16x32xbf16>, vector<4x32xf32> -> vector<4x32xf32>
    %186 = arith.truncf %183 : vector<4x32xf32> to vector<4x32xbf16>
    %c0_148 = arith.constant 0 : index
    %c8 = arith.constant 8 : index
    %c1_149 = arith.constant 1 : index
    %187 = vector.load %arg13[%c0_148, %c8, %c1_149] : memref<8x12x34xbf16, #tpu.memory_space<vmem>>, vector<4x1x32xbf16>
    %188 = vector.shape_cast %187 : vector<4x1x32xbf16> to vector<4x32xbf16>
    %189 = vector.shape_cast %186 : vector<4x32xbf16> to vector<4x1x32xbf16>
    tpu.vector_store %arg13[%c0_148, %c8, %c1_149], %189 {strides = array<i32>} : memref<8x12x34xbf16, #tpu.memory_space<vmem>>, vector<4x1x32xbf16>,
    %190 = arith.truncf %185 : vector<4x32xf32> to vector<4x32xbf16>
    %c0_150 = arith.constant 0 : index
    %c9 = arith.constant 9 : index
    %c1_151 = arith.constant 1 : index
    %191 = vector.load %arg13[%c0_150, %c9, %c1_151] : memref<8x12x34xbf16, #tpu.memory_space<vmem>>, vector<4x1x32xbf16>
    %192 = vector.shape_cast %191 : vector<4x1x32xbf16> to vector<4x32xbf16>
    %193 = vector.shape_cast %190 : vector<4x32xbf16> to vector<4x1x32xbf16>
    tpu.vector_store %arg13[%c0_150, %c9, %c1_151], %193 {strides = array<i32>} : memref<8x12x34xbf16, #tpu.memory_space<vmem>>, vector<4x1x32xbf16>,
    %c5_i32 = arith.constant 5 : i32
    %194 = arith.addi %21, %c5_i32 : i32
    %c1_i32_152 = arith.constant 1 : i32
    %195 = arith.addi %194, %c1_i32_152 : i32
    %c0_i32_153 = arith.constant 0 : i32
    %c15_i32_154 = arith.constant 15 : i32
    %196 = arith.maxsi %c0_i32_153, %195 : i32
    %197 = arith.minsi %c15_i32_154, %196 : i32
    %c0_155 = arith.constant 0 : index
    %c0_156 = arith.constant 0 : index
    %198 = arith.index_cast %197 : i32 to index
    %c0_157 = arith.constant 0 : index
    %199 = vector.load %arg2[%c0_155, %c0_156, %198, %c0_157] : memref<1x4x16x16xf32, #tpu.memory_space<vmem>>, vector<1x4x1x16xf32>
    %200 = vector.shape_cast %199 : vector<1x4x1x16xf32> to vector<4x16xf32>
    %cst_158 = arith.constant 2.500000e-01 : f32
    %201 = vector.broadcast %cst_158 : f32 to vector<4x16xf32>
    %202 = arith.mulf %201, %138 : vector<4x16xf32>
    %cst_159 = arith.constant 7.500000e-01 : f32
    %203 = vector.broadcast %cst_159 : f32 to vector<4x16xf32>
    %204 = arith.mulf %203, %169 : vector<4x16xf32>
    %205 = arith.addf %202, %204 : vector<4x16xf32>
    %206 = arith.truncf %205 : vector<4x16xf32> to vector<4x16xbf16>
    %cst_160 = arith.constant 7.500000e-01 : f32
    %207 = vector.broadcast %cst_160 : f32 to vector<4x16xf32>
    %208 = arith.mulf %207, %169 : vector<4x16xf32>
    %cst_161 = arith.constant 2.500000e-01 : f32
    %209 = vector.broadcast %cst_161 : f32 to vector<4x16xf32>
    %210 = arith.mulf %209, %200 : vector<4x16xf32>
    %211 = arith.addf %208, %210 : vector<4x16xf32>
    %212 = arith.truncf %211 : vector<4x16xf32> to vector<4x16xbf16>
    %c0_162 = arith.constant 0 : index
    %c0_163 = arith.constant 0 : index
    %213 = vector.load %arg5[%c0_162, %c0_163] : memref<16x32xbf16, #tpu.memory_space<vmem>>, vector<16x32xbf16>
    %cst_164 = arith.constant dense<0.000000e+00> : vector<4x32xf32>
    %214 = tpu.matmul %206, %213, %cst_164 {dimension_numbers = #tpu.dot_dimension_numbers<[1], [0], [0], [1], [0, 0, 1, 1], [], []>} : vector<4x16xbf16>, vector<16x32xbf16>, vector<4x32xf32> -> vector<4x32xf32>
    %c0_165 = arith.constant 0 : index
    %c0_166 = arith.constant 0 : index
    %215 = vector.load %arg5[%c0_165, %c0_166] : memref<16x32xbf16, #tpu.memory_space<vmem>>, vector<16x32xbf16>
    %cst_167 = arith.constant dense<0.000000e+00> : vector<4x32xf32>
    %216 = tpu.matmul %212, %215, %cst_167 {dimension_numbers = #tpu.dot_dimension_numbers<[1], [0], [0], [1], [0, 0, 1, 1], [], []>} : vector<4x16xbf16>, vector<16x32xbf16>, vector<4x32xf32> -> vector<4x32xf32>
    %c3_i32_168 = arith.constant 3 : i32
    %217 = arith.cmpi slt, %arg1, %c3_i32_168 : i32
    %cst_169 = arith.constant 0.000000e+00 : f32
    %218 = vector.broadcast %cst_169 : f32 to vector<4x32xf32>
    %219 = arith.select %217, %214, %218 : vector<4x32xf32>
    %c3_i32_170 = arith.constant 3 : i32
    %220 = arith.cmpi slt, %arg1, %c3_i32_170 : i32
    %cst_171 = arith.constant 0.000000e+00 : f32
    %221 = vector.broadcast %cst_171 : f32 to vector<4x32xf32>
    %222 = arith.select %220, %216, %221 : vector<4x32xf32>
    %223 = arith.truncf %219 : vector<4x32xf32> to vector<4x32xbf16>
    %c0_172 = arith.constant 0 : index
    %c10_173 = arith.constant 10 : index
    %c1_174 = arith.constant 1 : index
    %224 = vector.load %arg13[%c0_172, %c10_173, %c1_174] : memref<8x12x34xbf16, #tpu.memory_space<vmem>>, vector<4x1x32xbf16>
    %225 = vector.shape_cast %224 : vector<4x1x32xbf16> to vector<4x32xbf16>
    %226 = vector.shape_cast %223 : vector<4x32xbf16> to vector<4x1x32xbf16>
    tpu.vector_store %arg13[%c0_172, %c10_173, %c1_174], %226 {strides = array<i32>} : memref<8x12x34xbf16, #tpu.memory_space<vmem>>, vector<4x1x32xbf16>,
    %227 = arith.truncf %222 : vector<4x32xf32> to vector<4x32xbf16>
    %c0_175 = arith.constant 0 : index
    %c11 = arith.constant 11 : index
    %c1_176 = arith.constant 1 : index
    %228 = vector.load %arg13[%c0_175, %c11, %c1_176] : memref<8x12x34xbf16, #tpu.memory_space<vmem>>, vector<4x1x32xbf16>
    %229 = vector.shape_cast %228 : vector<4x1x32xbf16> to vector<4x32xbf16>
    %230 = vector.shape_cast %227 : vector<4x32xbf16> to vector<4x1x32xbf16>
    tpu.vector_store %arg13[%c0_175, %c11, %c1_176], %230 {strides = array<i32>} : memref<8x12x34xbf16, #tpu.memory_space<vmem>>, vector<4x1x32xbf16>,
    %c0_177 = arith.constant 0 : index
    %c0_178 = arith.constant 0 : index
    %231 = vector.load %arg7[%c0_177, %c0_178] : memref<8x1xf32, #tpu.memory_space<vmem>>, vector<8x1xf32>
    %c0_179 = arith.constant 0 : index
    %c0_180 = arith.constant 0 : index
    %232 = vector.load %arg8[%c0_179, %c0_180] : memref<8x1xf32, #tpu.memory_space<vmem>>, vector<8x1xf32>
    %c0_i32_181 = arith.constant 0 : i32
    %c0_i32_182 = arith.constant 0 : i32
    %233 = arith.addi %c0_i32_181, %c0_i32_182 : i32
    %c0_183 = arith.constant 0 : index
    %234 = arith.index_cast %233 : i32 to index
    %c0_184 = arith.constant 0 : index
    %235 = vector.load %arg13[%c0_183, %234, %c0_184] : memref<8x12x34xbf16, #tpu.memory_space<vmem>>, vector<8x1x32xbf16>
    %236 = vector.shape_cast %235 : vector<8x1x32xbf16> to vector<8x32xbf16>
    %c0_i32_185 = arith.constant 0 : i32
    %237 = arith.addi %c0_i32_181, %c0_i32_185 : i32
    %c0_186 = arith.constant 0 : index
    %238 = arith.index_cast %237 : i32 to index
    %c1_187 = arith.constant 1 : index
    %239 = vector.load %arg13[%c0_186, %238, %c1_187] : memref<8x12x34xbf16, #tpu.memory_space<vmem>>, vector<8x1x32xbf16>
    %240 = vector.shape_cast %239 : vector<8x1x32xbf16> to vector<8x32xbf16>
    %c0_i32_188 = arith.constant 0 : i32
    %241 = arith.addi %c0_i32_181, %c0_i32_188 : i32
    %c0_189 = arith.constant 0 : index
    %242 = arith.index_cast %241 : i32 to index
    %c2_190 = arith.constant 2 : index
    %243 = vector.load %arg13[%c0_189, %242, %c2_190] : memref<8x12x34xbf16, #tpu.memory_space<vmem>>, vector<8x1x32xbf16>
    %244 = vector.shape_cast %243 : vector<8x1x32xbf16> to vector<8x32xbf16>
    %c1_i32_191 = arith.constant 1 : i32
    %245 = arith.addi %c0_i32_181, %c1_i32_191 : i32
    %c0_192 = arith.constant 0 : index
    %246 = arith.index_cast %245 : i32 to index
    %c0_193 = arith.constant 0 : index
    %247 = vector.load %arg13[%c0_192, %246, %c0_193] : memref<8x12x34xbf16, #tpu.memory_space<vmem>>, vector<8x1x32xbf16>
    %248 = vector.shape_cast %247 : vector<8x1x32xbf16> to vector<8x32xbf16>
    %c1_i32_194 = arith.constant 1 : i32
    %249 = arith.addi %c0_i32_181, %c1_i32_194 : i32
    %c0_195 = arith.constant 0 : index
    %250 = arith.index_cast %249 : i32 to index
    %c1_196 = arith.constant 1 : index
    %251 = vector.load %arg13[%c0_195, %250, %c1_196] : memref<8x12x34xbf16, #tpu.memory_space<vmem>>, vector<8x1x32xbf16>
    %252 = vector.shape_cast %251 : vector<8x1x32xbf16> to vector<8x32xbf16>
    %c1_i32_197 = arith.constant 1 : i32
    %253 = arith.addi %c0_i32_181, %c1_i32_197 : i32
    %c0_198 = arith.constant 0 : index
    %254 = arith.index_cast %253 : i32 to index
    %c2_199 = arith.constant 2 : index
    %255 = vector.load %arg13[%c0_198, %254, %c2_199] : memref<8x12x34xbf16, #tpu.memory_space<vmem>>, vector<8x1x32xbf16>
    %256 = vector.shape_cast %255 : vector<8x1x32xbf16> to vector<8x32xbf16>
    %c2_i32_200 = arith.constant 2 : i32
    %257 = arith.addi %c0_i32_181, %c2_i32_200 : i32
    %c0_201 = arith.constant 0 : index
    %258 = arith.index_cast %257 : i32 to index
    %c0_202 = arith.constant 0 : index
    %259 = vector.load %arg13[%c0_201, %258, %c0_202] : memref<8x12x34xbf16, #tpu.memory_space<vmem>>, vector<8x1x32xbf16>
    %260 = vector.shape_cast %259 : vector<8x1x32xbf16> to vector<8x32xbf16>
    %c2_i32_203 = arith.constant 2 : i32
    %261 = arith.addi %c0_i32_181, %c2_i32_203 : i32
    %c0_204 = arith.constant 0 : index
    %262 = arith.index_cast %261 : i32 to index
    %c1_205 = arith.constant 1 : index
    %263 = vector.load %arg13[%c0_204, %262, %c1_205] : memref<8x12x34xbf16, #tpu.memory_space<vmem>>, vector<8x1x32xbf16>
    %264 = vector.shape_cast %263 : vector<8x1x32xbf16> to vector<8x32xbf16>
    %c2_i32_206 = arith.constant 2 : i32
    %265 = arith.addi %c0_i32_181, %c2_i32_206 : i32
    %c0_207 = arith.constant 0 : index
    %266 = arith.index_cast %265 : i32 to index
    %c2_208 = arith.constant 2 : index
    %267 = vector.load %arg13[%c0_207, %266, %c2_208] : memref<8x12x34xbf16, #tpu.memory_space<vmem>>, vector<8x1x32xbf16>
    %268 = vector.shape_cast %267 : vector<8x1x32xbf16> to vector<8x32xbf16>
    %269 = tpu.concatenate %236, %240, %244, %248, %252, %256, %260, %264, %268 in 0 : vector<8x32xbf16>, vector<8x32xbf16>, vector<8x32xbf16>, vector<8x32xbf16>, vector<8x32xbf16>, vector<8x32xbf16>, vector<8x32xbf16>, vector<8x32xbf16>, vector<8x32xbf16> -> vector<72x32xbf16>
    %c0_209 = arith.constant 0 : index
    %c0_210 = arith.constant 0 : index
    %270 = vector.load %arg6[%c0_209, %c0_210] : memref<8x72xbf16, #tpu.memory_space<vmem>>, vector<8x72xbf16>
    %cst_211 = arith.constant dense<0.000000e+00> : vector<8x32xf32>
    %271 = tpu.matmul %270, %269, %cst_211 {dimension_numbers = #tpu.dot_dimension_numbers<[1], [0], [0], [1], [0, 0, 1, 1], [], []>} : vector<8x72xbf16>, vector<72x32xbf16>, vector<8x32xf32> -> vector<8x32xf32>
    %272 = vector.broadcast %231 : vector<8x1xf32> to vector<8x32xf32>
    %273 = arith.mulf %271, %272 : vector<8x32xf32>
    %274 = vector.broadcast %232 : vector<8x1xf32> to vector<8x32xf32>
    %275 = arith.addf %273, %274 : vector<8x32xf32>
    %cst_212 = arith.constant 0.000000e+00 : f32
    %276 = vector.broadcast %cst_212 : f32 to vector<8x32xf32>
    %277 = arith.maximumf %275, %276 : vector<8x32xf32>
    %278 = arith.truncf %277 : vector<8x32xf32> to vector<8x32xbf16>
    %c0_213 = arith.constant 0 : index
    %279 = arith.index_cast %c0_i32_181 : i32 to index
    %c1_214 = arith.constant 1 : index
    %280 = vector.load %arg14[%c0_213, %279, %c1_214] : memref<8x10x34xbf16, #tpu.memory_space<vmem>>, vector<8x1x32xbf16>
    %281 = vector.shape_cast %280 : vector<8x1x32xbf16> to vector<8x32xbf16>
    %282 = vector.shape_cast %278 : vector<8x32xbf16> to vector<8x1x32xbf16>
    tpu.vector_store %arg14[%c0_213, %279, %c1_214], %282 {strides = array<i32>} : memref<8x10x34xbf16, #tpu.memory_space<vmem>>, vector<8x1x32xbf16>,
    %c1_i32_215 = arith.constant 1 : i32
    %c0_i32_216 = arith.constant 0 : i32
    %283 = arith.addi %c1_i32_215, %c0_i32_216 : i32
    %c0_217 = arith.constant 0 : index
    %284 = arith.index_cast %283 : i32 to index
    %c0_218 = arith.constant 0 : index
    %285 = vector.load %arg13[%c0_217, %284, %c0_218] : memref<8x12x34xbf16, #tpu.memory_space<vmem>>, vector<8x1x32xbf16>
    %286 = vector.shape_cast %285 : vector<8x1x32xbf16> to vector<8x32xbf16>
    %c0_i32_219 = arith.constant 0 : i32
    %287 = arith.addi %c1_i32_215, %c0_i32_219 : i32
    %c0_220 = arith.constant 0 : index
    %288 = arith.index_cast %287 : i32 to index
    %c1_221 = arith.constant 1 : index
    %289 = vector.load %arg13[%c0_220, %288, %c1_221] : memref<8x12x34xbf16, #tpu.memory_space<vmem>>, vector<8x1x32xbf16>
    %290 = vector.shape_cast %289 : vector<8x1x32xbf16> to vector<8x32xbf16>
    %c0_i32_222 = arith.constant 0 : i32
    %291 = arith.addi %c1_i32_215, %c0_i32_222 : i32
    %c0_223 = arith.constant 0 : index
    %292 = arith.index_cast %291 : i32 to index
    %c2_224 = arith.constant 2 : index
    %293 = vector.load %arg13[%c0_223, %292, %c2_224] : memref<8x12x34xbf16, #tpu.memory_space<vmem>>, vector<8x1x32xbf16>
    %294 = vector.shape_cast %293 : vector<8x1x32xbf16> to vector<8x32xbf16>
    %c1_i32_225 = arith.constant 1 : i32
    %295 = arith.addi %c1_i32_215, %c1_i32_225 : i32
    %c0_226 = arith.constant 0 : index
    %296 = arith.index_cast %295 : i32 to index
    %c0_227 = arith.constant 0 : index
    %297 = vector.load %arg13[%c0_226, %296, %c0_227] : memref<8x12x34xbf16, #tpu.memory_space<vmem>>, vector<8x1x32xbf16>
    %298 = vector.shape_cast %297 : vector<8x1x32xbf16> to vector<8x32xbf16>
    %c1_i32_228 = arith.constant 1 : i32
    %299 = arith.addi %c1_i32_215, %c1_i32_228 : i32
    %c0_229 = arith.constant 0 : index
    %300 = arith.index_cast %299 : i32 to index
    %c1_230 = arith.constant 1 : index
    %301 = vector.load %arg13[%c0_229, %300, %c1_230] : memref<8x12x34xbf16, #tpu.memory_space<vmem>>, vector<8x1x32xbf16>
    %302 = vector.shape_cast %301 : vector<8x1x32xbf16> to vector<8x32xbf16>
    %c1_i32_231 = arith.constant 1 : i32
    %303 = arith.addi %c1_i32_215, %c1_i32_231 : i32
    %c0_232 = arith.constant 0 : index
    %304 = arith.index_cast %303 : i32 to index
    %c2_233 = arith.constant 2 : index
    %305 = vector.load %arg13[%c0_232, %304, %c2_233] : memref<8x12x34xbf16, #tpu.memory_space<vmem>>, vector<8x1x32xbf16>
    %306 = vector.shape_cast %305 : vector<8x1x32xbf16> to vector<8x32xbf16>
    %c2_i32_234 = arith.constant 2 : i32
    %307 = arith.addi %c1_i32_215, %c2_i32_234 : i32
    %c0_235 = arith.constant 0 : index
    %308 = arith.index_cast %307 : i32 to index
    %c0_236 = arith.constant 0 : index
    %309 = vector.load %arg13[%c0_235, %308, %c0_236] : memref<8x12x34xbf16, #tpu.memory_space<vmem>>, vector<8x1x32xbf16>
    %310 = vector.shape_cast %309 : vector<8x1x32xbf16> to vector<8x32xbf16>
    %c2_i32_237 = arith.constant 2 : i32
    %311 = arith.addi %c1_i32_215, %c2_i32_237 : i32
    %c0_238 = arith.constant 0 : index
    %312 = arith.index_cast %311 : i32 to index
    %c1_239 = arith.constant 1 : index
    %313 = vector.load %arg13[%c0_238, %312, %c1_239] : memref<8x12x34xbf16, #tpu.memory_space<vmem>>, vector<8x1x32xbf16>
    %314 = vector.shape_cast %313 : vector<8x1x32xbf16> to vector<8x32xbf16>
    %c2_i32_240 = arith.constant 2 : i32
    %315 = arith.addi %c1_i32_215, %c2_i32_240 : i32
    %c0_241 = arith.constant 0 : index
    %316 = arith.index_cast %315 : i32 to index
    %c2_242 = arith.constant 2 : index
    %317 = vector.load %arg13[%c0_241, %316, %c2_242] : memref<8x12x34xbf16, #tpu.memory_space<vmem>>, vector<8x1x32xbf16>
    %318 = vector.shape_cast %317 : vector<8x1x32xbf16> to vector<8x32xbf16>
    %319 = tpu.concatenate %286, %290, %294, %298, %302, %306, %310, %314, %318 in 0 : vector<8x32xbf16>, vector<8x32xbf16>, vector<8x32xbf16>, vector<8x32xbf16>, vector<8x32xbf16>, vector<8x32xbf16>, vector<8x32xbf16>, vector<8x32xbf16>, vector<8x32xbf16> -> vector<72x32xbf16>
    %c0_243 = arith.constant 0 : index
    %c0_244 = arith.constant 0 : index
    %320 = vector.load %arg6[%c0_243, %c0_244] : memref<8x72xbf16, #tpu.memory_space<vmem>>, vector<8x72xbf16>
    %cst_245 = arith.constant dense<0.000000e+00> : vector<8x32xf32>
    %321 = tpu.matmul %320, %319, %cst_245 {dimension_numbers = #tpu.dot_dimension_numbers<[1], [0], [0], [1], [0, 0, 1, 1], [], []>} : vector<8x72xbf16>, vector<72x32xbf16>, vector<8x32xf32> -> vector<8x32xf32>
    %322 = vector.broadcast %231 : vector<8x1xf32> to vector<8x32xf32>
    %323 = arith.mulf %321, %322 : vector<8x32xf32>
    %324 = vector.broadcast %232 : vector<8x1xf32> to vector<8x32xf32>
    %325 = arith.addf %323, %324 : vector<8x32xf32>
    %cst_246 = arith.constant 0.000000e+00 : f32
    %326 = vector.broadcast %cst_246 : f32 to vector<8x32xf32>
    %327 = arith.maximumf %325, %326 : vector<8x32xf32>
    %328 = arith.truncf %327 : vector<8x32xf32> to vector<8x32xbf16>
    %c0_247 = arith.constant 0 : index
    %329 = arith.index_cast %c1_i32_215 : i32 to index
    %c1_248 = arith.constant 1 : index
    %330 = vector.load %arg14[%c0_247, %329, %c1_248] : memref<8x10x34xbf16, #tpu.memory_space<vmem>>, vector<8x1x32xbf16>
    %331 = vector.shape_cast %330 : vector<8x1x32xbf16> to vector<8x32xbf16>
    %332 = vector.shape_cast %328 : vector<8x32xbf16> to vector<8x1x32xbf16>
    tpu.vector_store %arg14[%c0_247, %329, %c1_248], %332 {strides = array<i32>} : memref<8x10x34xbf16, #tpu.memory_space<vmem>>, vector<8x1x32xbf16>,
    %c2_i32_249 = arith.constant 2 : i32
    %c0_i32_250 = arith.constant 0 : i32
    %333 = arith.addi %c2_i32_249, %c0_i32_250 : i32
    %c0_251 = arith.constant 0 : index
    %334 = arith.index_cast %333 : i32 to index
    %c0_252 = arith.constant 0 : index
    %335 = vector.load %arg13[%c0_251, %334, %c0_252] : memref<8x12x34xbf16, #tpu.memory_space<vmem>>, vector<8x1x32xbf16>
    %336 = vector.shape_cast %335 : vector<8x1x32xbf16> to vector<8x32xbf16>
    %c0_i32_253 = arith.constant 0 : i32
    %337 = arith.addi %c2_i32_249, %c0_i32_253 : i32
    %c0_254 = arith.constant 0 : index
    %338 = arith.index_cast %337 : i32 to index
    %c1_255 = arith.constant 1 : index
    %339 = vector.load %arg13[%c0_254, %338, %c1_255] : memref<8x12x34xbf16, #tpu.memory_space<vmem>>, vector<8x1x32xbf16>
    %340 = vector.shape_cast %339 : vector<8x1x32xbf16> to vector<8x32xbf16>
    %c0_i32_256 = arith.constant 0 : i32
    %341 = arith.addi %c2_i32_249, %c0_i32_256 : i32
    %c0_257 = arith.constant 0 : index
    %342 = arith.index_cast %341 : i32 to index
    %c2_258 = arith.constant 2 : index
    %343 = vector.load %arg13[%c0_257, %342, %c2_258] : memref<8x12x34xbf16, #tpu.memory_space<vmem>>, vector<8x1x32xbf16>
    %344 = vector.shape_cast %343 : vector<8x1x32xbf16> to vector<8x32xbf16>
    %c1_i32_259 = arith.constant 1 : i32
    %345 = arith.addi %c2_i32_249, %c1_i32_259 : i32
    %c0_260 = arith.constant 0 : index
    %346 = arith.index_cast %345 : i32 to index
    %c0_261 = arith.constant 0 : index
    %347 = vector.load %arg13[%c0_260, %346, %c0_261] : memref<8x12x34xbf16, #tpu.memory_space<vmem>>, vector<8x1x32xbf16>
    %348 = vector.shape_cast %347 : vector<8x1x32xbf16> to vector<8x32xbf16>
    %c1_i32_262 = arith.constant 1 : i32
    %349 = arith.addi %c2_i32_249, %c1_i32_262 : i32
    %c0_263 = arith.constant 0 : index
    %350 = arith.index_cast %349 : i32 to index
    %c1_264 = arith.constant 1 : index
    %351 = vector.load %arg13[%c0_263, %350, %c1_264] : memref<8x12x34xbf16, #tpu.memory_space<vmem>>, vector<8x1x32xbf16>
    %352 = vector.shape_cast %351 : vector<8x1x32xbf16> to vector<8x32xbf16>
    %c1_i32_265 = arith.constant 1 : i32
    %353 = arith.addi %c2_i32_249, %c1_i32_265 : i32
    %c0_266 = arith.constant 0 : index
    %354 = arith.index_cast %353 : i32 to index
    %c2_267 = arith.constant 2 : index
    %355 = vector.load %arg13[%c0_266, %354, %c2_267] : memref<8x12x34xbf16, #tpu.memory_space<vmem>>, vector<8x1x32xbf16>
    %356 = vector.shape_cast %355 : vector<8x1x32xbf16> to vector<8x32xbf16>
    %c2_i32_268 = arith.constant 2 : i32
    %357 = arith.addi %c2_i32_249, %c2_i32_268 : i32
    %c0_269 = arith.constant 0 : index
    %358 = arith.index_cast %357 : i32 to index
    %c0_270 = arith.constant 0 : index
    %359 = vector.load %arg13[%c0_269, %358, %c0_270] : memref<8x12x34xbf16, #tpu.memory_space<vmem>>, vector<8x1x32xbf16>
    %360 = vector.shape_cast %359 : vector<8x1x32xbf16> to vector<8x32xbf16>
    %c2_i32_271 = arith.constant 2 : i32
    %361 = arith.addi %c2_i32_249, %c2_i32_271 : i32
    %c0_272 = arith.constant 0 : index
    %362 = arith.index_cast %361 : i32 to index
    %c1_273 = arith.constant 1 : index
    %363 = vector.load %arg13[%c0_272, %362, %c1_273] : memref<8x12x34xbf16, #tpu.memory_space<vmem>>, vector<8x1x32xbf16>
    %364 = vector.shape_cast %363 : vector<8x1x32xbf16> to vector<8x32xbf16>
    %c2_i32_274 = arith.constant 2 : i32
    %365 = arith.addi %c2_i32_249, %c2_i32_274 : i32
    %c0_275 = arith.constant 0 : index
    %366 = arith.index_cast %365 : i32 to index
    %c2_276 = arith.constant 2 : index
    %367 = vector.load %arg13[%c0_275, %366, %c2_276] : memref<8x12x34xbf16, #tpu.memory_space<vmem>>, vector<8x1x32xbf16>
    %368 = vector.shape_cast %367 : vector<8x1x32xbf16> to vector<8x32xbf16>
    %369 = tpu.concatenate %336, %340, %344, %348, %352, %356, %360, %364, %368 in 0 : vector<8x32xbf16>, vector<8x32xbf16>, vector<8x32xbf16>, vector<8x32xbf16>, vector<8x32xbf16>, vector<8x32xbf16>, vector<8x32xbf16>, vector<8x32xbf16>, vector<8x32xbf16> -> vector<72x32xbf16>
    %c0_277 = arith.constant 0 : index
    %c0_278 = arith.constant 0 : index
    %370 = vector.load %arg6[%c0_277, %c0_278] : memref<8x72xbf16, #tpu.memory_space<vmem>>, vector<8x72xbf16>
    %cst_279 = arith.constant dense<0.000000e+00> : vector<8x32xf32>
    %371 = tpu.matmul %370, %369, %cst_279 {dimension_numbers = #tpu.dot_dimension_numbers<[1], [0], [0], [1], [0, 0, 1, 1], [], []>} : vector<8x72xbf16>, vector<72x32xbf16>, vector<8x32xf32> -> vector<8x32xf32>
    %372 = vector.broadcast %231 : vector<8x1xf32> to vector<8x32xf32>
    %373 = arith.mulf %371, %372 : vector<8x32xf32>
    %374 = vector.broadcast %232 : vector<8x1xf32> to vector<8x32xf32>
    %375 = arith.addf %373, %374 : vector<8x32xf32>
    %cst_280 = arith.constant 0.000000e+00 : f32
    %376 = vector.broadcast %cst_280 : f32 to vector<8x32xf32>
    %377 = arith.maximumf %375, %376 : vector<8x32xf32>
    %378 = arith.truncf %377 : vector<8x32xf32> to vector<8x32xbf16>
    %c0_281 = arith.constant 0 : index
    %379 = arith.index_cast %c2_i32_249 : i32 to index
    %c1_282 = arith.constant 1 : index
    %380 = vector.load %arg14[%c0_281, %379, %c1_282] : memref<8x10x34xbf16, #tpu.memory_space<vmem>>, vector<8x1x32xbf16>
    %381 = vector.shape_cast %380 : vector<8x1x32xbf16> to vector<8x32xbf16>
    %382 = vector.shape_cast %378 : vector<8x32xbf16> to vector<8x1x32xbf16>
    tpu.vector_store %arg14[%c0_281, %379, %c1_282], %382 {strides = array<i32>} : memref<8x10x34xbf16, #tpu.memory_space<vmem>>, vector<8x1x32xbf16>,
    %c3_i32_283 = arith.constant 3 : i32
    %c0_i32_284 = arith.constant 0 : i32
    %383 = arith.addi %c3_i32_283, %c0_i32_284 : i32
    %c0_285 = arith.constant 0 : index
    %384 = arith.index_cast %383 : i32 to index
    %c0_286 = arith.constant 0 : index
    %385 = vector.load %arg13[%c0_285, %384, %c0_286] : memref<8x12x34xbf16, #tpu.memory_space<vmem>>, vector<8x1x32xbf16>
    %386 = vector.shape_cast %385 : vector<8x1x32xbf16> to vector<8x32xbf16>
    %c0_i32_287 = arith.constant 0 : i32
    %387 = arith.addi %c3_i32_283, %c0_i32_287 : i32
    %c0_288 = arith.constant 0 : index
    %388 = arith.index_cast %387 : i32 to index
    %c1_289 = arith.constant 1 : index
    %389 = vector.load %arg13[%c0_288, %388, %c1_289] : memref<8x12x34xbf16, #tpu.memory_space<vmem>>, vector<8x1x32xbf16>
    %390 = vector.shape_cast %389 : vector<8x1x32xbf16> to vector<8x32xbf16>
    %c0_i32_290 = arith.constant 0 : i32
    %391 = arith.addi %c3_i32_283, %c0_i32_290 : i32
    %c0_291 = arith.constant 0 : index
    %392 = arith.index_cast %391 : i32 to index
    %c2_292 = arith.constant 2 : index
    %393 = vector.load %arg13[%c0_291, %392, %c2_292] : memref<8x12x34xbf16, #tpu.memory_space<vmem>>, vector<8x1x32xbf16>
    %394 = vector.shape_cast %393 : vector<8x1x32xbf16> to vector<8x32xbf16>
    %c1_i32_293 = arith.constant 1 : i32
    %395 = arith.addi %c3_i32_283, %c1_i32_293 : i32
    %c0_294 = arith.constant 0 : index
    %396 = arith.index_cast %395 : i32 to index
    %c0_295 = arith.constant 0 : index
    %397 = vector.load %arg13[%c0_294, %396, %c0_295] : memref<8x12x34xbf16, #tpu.memory_space<vmem>>, vector<8x1x32xbf16>
    %398 = vector.shape_cast %397 : vector<8x1x32xbf16> to vector<8x32xbf16>
    %c1_i32_296 = arith.constant 1 : i32
    %399 = arith.addi %c3_i32_283, %c1_i32_296 : i32
    %c0_297 = arith.constant 0 : index
    %400 = arith.index_cast %399 : i32 to index
    %c1_298 = arith.constant 1 : index
    %401 = vector.load %arg13[%c0_297, %400, %c1_298] : memref<8x12x34xbf16, #tpu.memory_space<vmem>>, vector<8x1x32xbf16>
    %402 = vector.shape_cast %401 : vector<8x1x32xbf16> to vector<8x32xbf16>
    %c1_i32_299 = arith.constant 1 : i32
    %403 = arith.addi %c3_i32_283, %c1_i32_299 : i32
    %c0_300 = arith.constant 0 : index
    %404 = arith.index_cast %403 : i32 to index
    %c2_301 = arith.constant 2 : index
    %405 = vector.load %arg13[%c0_300, %404, %c2_301] : memref<8x12x34xbf16, #tpu.memory_space<vmem>>, vector<8x1x32xbf16>
    %406 = vector.shape_cast %405 : vector<8x1x32xbf16> to vector<8x32xbf16>
    %c2_i32_302 = arith.constant 2 : i32
    %407 = arith.addi %c3_i32_283, %c2_i32_302 : i32
    %c0_303 = arith.constant 0 : index
    %408 = arith.index_cast %407 : i32 to index
    %c0_304 = arith.constant 0 : index
    %409 = vector.load %arg13[%c0_303, %408, %c0_304] : memref<8x12x34xbf16, #tpu.memory_space<vmem>>, vector<8x1x32xbf16>
    %410 = vector.shape_cast %409 : vector<8x1x32xbf16> to vector<8x32xbf16>
    %c2_i32_305 = arith.constant 2 : i32
    %411 = arith.addi %c3_i32_283, %c2_i32_305 : i32
    %c0_306 = arith.constant 0 : index
    %412 = arith.index_cast %411 : i32 to index
    %c1_307 = arith.constant 1 : index
    %413 = vector.load %arg13[%c0_306, %412, %c1_307] : memref<8x12x34xbf16, #tpu.memory_space<vmem>>, vector<8x1x32xbf16>
    %414 = vector.shape_cast %413 : vector<8x1x32xbf16> to vector<8x32xbf16>
    %c2_i32_308 = arith.constant 2 : i32
    %415 = arith.addi %c3_i32_283, %c2_i32_308 : i32
    %c0_309 = arith.constant 0 : index
    %416 = arith.index_cast %415 : i32 to index
    %c2_310 = arith.constant 2 : index
    %417 = vector.load %arg13[%c0_309, %416, %c2_310] : memref<8x12x34xbf16, #tpu.memory_space<vmem>>, vector<8x1x32xbf16>
    %418 = vector.shape_cast %417 : vector<8x1x32xbf16> to vector<8x32xbf16>
    %419 = tpu.concatenate %386, %390, %394, %398, %402, %406, %410, %414, %418 in 0 : vector<8x32xbf16>, vector<8x32xbf16>, vector<8x32xbf16>, vector<8x32xbf16>, vector<8x32xbf16>, vector<8x32xbf16>, vector<8x32xbf16>, vector<8x32xbf16>, vector<8x32xbf16> -> vector<72x32xbf16>
    %c0_311 = arith.constant 0 : index
    %c0_312 = arith.constant 0 : index
    %420 = vector.load %arg6[%c0_311, %c0_312] : memref<8x72xbf16, #tpu.memory_space<vmem>>, vector<8x72xbf16>
    %cst_313 = arith.constant dense<0.000000e+00> : vector<8x32xf32>
    %421 = tpu.matmul %420, %419, %cst_313 {dimension_numbers = #tpu.dot_dimension_numbers<[1], [0], [0], [1], [0, 0, 1, 1], [], []>} : vector<8x72xbf16>, vector<72x32xbf16>, vector<8x32xf32> -> vector<8x32xf32>
    %422 = vector.broadcast %231 : vector<8x1xf32> to vector<8x32xf32>
    %423 = arith.mulf %421, %422 : vector<8x32xf32>
    %424 = vector.broadcast %232 : vector<8x1xf32> to vector<8x32xf32>
    %425 = arith.addf %423, %424 : vector<8x32xf32>
    %cst_314 = arith.constant 0.000000e+00 : f32
    %426 = vector.broadcast %cst_314 : f32 to vector<8x32xf32>
    %427 = arith.maximumf %425, %426 : vector<8x32xf32>
    %428 = arith.truncf %427 : vector<8x32xf32> to vector<8x32xbf16>
    %c0_315 = arith.constant 0 : index
    %429 = arith.index_cast %c3_i32_283 : i32 to index
    %c1_316 = arith.constant 1 : index
    %430 = vector.load %arg14[%c0_315, %429, %c1_316] : memref<8x10x34xbf16, #tpu.memory_space<vmem>>, vector<8x1x32xbf16>
    %431 = vector.shape_cast %430 : vector<8x1x32xbf16> to vector<8x32xbf16>
    %432 = vector.shape_cast %428 : vector<8x32xbf16> to vector<8x1x32xbf16>
    tpu.vector_store %arg14[%c0_315, %429, %c1_316], %432 {strides = array<i32>} : memref<8x10x34xbf16, #tpu.memory_space<vmem>>, vector<8x1x32xbf16>,
    %c4_i32_317 = arith.constant 4 : i32
    %c0_i32_318 = arith.constant 0 : i32
    %433 = arith.addi %c4_i32_317, %c0_i32_318 : i32
    %c0_319 = arith.constant 0 : index
    %434 = arith.index_cast %433 : i32 to index
    %c0_320 = arith.constant 0 : index
    %435 = vector.load %arg13[%c0_319, %434, %c0_320] : memref<8x12x34xbf16, #tpu.memory_space<vmem>>, vector<8x1x32xbf16>
    %436 = vector.shape_cast %435 : vector<8x1x32xbf16> to vector<8x32xbf16>
    %c0_i32_321 = arith.constant 0 : i32
    %437 = arith.addi %c4_i32_317, %c0_i32_321 : i32
    %c0_322 = arith.constant 0 : index
    %438 = arith.index_cast %437 : i32 to index
    %c1_323 = arith.constant 1 : index
    %439 = vector.load %arg13[%c0_322, %438, %c1_323] : memref<8x12x34xbf16, #tpu.memory_space<vmem>>, vector<8x1x32xbf16>
    %440 = vector.shape_cast %439 : vector<8x1x32xbf16> to vector<8x32xbf16>
    %c0_i32_324 = arith.constant 0 : i32
    %441 = arith.addi %c4_i32_317, %c0_i32_324 : i32
    %c0_325 = arith.constant 0 : index
    %442 = arith.index_cast %441 : i32 to index
    %c2_326 = arith.constant 2 : index
    %443 = vector.load %arg13[%c0_325, %442, %c2_326] : memref<8x12x34xbf16, #tpu.memory_space<vmem>>, vector<8x1x32xbf16>
    %444 = vector.shape_cast %443 : vector<8x1x32xbf16> to vector<8x32xbf16>
    %c1_i32_327 = arith.constant 1 : i32
    %445 = arith.addi %c4_i32_317, %c1_i32_327 : i32
    %c0_328 = arith.constant 0 : index
    %446 = arith.index_cast %445 : i32 to index
    %c0_329 = arith.constant 0 : index
    %447 = vector.load %arg13[%c0_328, %446, %c0_329] : memref<8x12x34xbf16, #tpu.memory_space<vmem>>, vector<8x1x32xbf16>
    %448 = vector.shape_cast %447 : vector<8x1x32xbf16> to vector<8x32xbf16>
    %c1_i32_330 = arith.constant 1 : i32
    %449 = arith.addi %c4_i32_317, %c1_i32_330 : i32
    %c0_331 = arith.constant 0 : index
    %450 = arith.index_cast %449 : i32 to index
    %c1_332 = arith.constant 1 : index
    %451 = vector.load %arg13[%c0_331, %450, %c1_332] : memref<8x12x34xbf16, #tpu.memory_space<vmem>>, vector<8x1x32xbf16>
    %452 = vector.shape_cast %451 : vector<8x1x32xbf16> to vector<8x32xbf16>
    %c1_i32_333 = arith.constant 1 : i32
    %453 = arith.addi %c4_i32_317, %c1_i32_333 : i32
    %c0_334 = arith.constant 0 : index
    %454 = arith.index_cast %453 : i32 to index
    %c2_335 = arith.constant 2 : index
    %455 = vector.load %arg13[%c0_334, %454, %c2_335] : memref<8x12x34xbf16, #tpu.memory_space<vmem>>, vector<8x1x32xbf16>
    %456 = vector.shape_cast %455 : vector<8x1x32xbf16> to vector<8x32xbf16>
    %c2_i32_336 = arith.constant 2 : i32
    %457 = arith.addi %c4_i32_317, %c2_i32_336 : i32
    %c0_337 = arith.constant 0 : index
    %458 = arith.index_cast %457 : i32 to index
    %c0_338 = arith.constant 0 : index
    %459 = vector.load %arg13[%c0_337, %458, %c0_338] : memref<8x12x34xbf16, #tpu.memory_space<vmem>>, vector<8x1x32xbf16>
    %460 = vector.shape_cast %459 : vector<8x1x32xbf16> to vector<8x32xbf16>
    %c2_i32_339 = arith.constant 2 : i32
    %461 = arith.addi %c4_i32_317, %c2_i32_339 : i32
    %c0_340 = arith.constant 0 : index
    %462 = arith.index_cast %461 : i32 to index
    %c1_341 = arith.constant 1 : index
    %463 = vector.load %arg13[%c0_340, %462, %c1_341] : memref<8x12x34xbf16, #tpu.memory_space<vmem>>, vector<8x1x32xbf16>
    %464 = vector.shape_cast %463 : vector<8x1x32xbf16> to vector<8x32xbf16>
    %c2_i32_342 = arith.constant 2 : i32
    %465 = arith.addi %c4_i32_317, %c2_i32_342 : i32
    %c0_343 = arith.constant 0 : index
    %466 = arith.index_cast %465 : i32 to index
    %c2_344 = arith.constant 2 : index
    %467 = vector.load %arg13[%c0_343, %466, %c2_344] : memref<8x12x34xbf16, #tpu.memory_space<vmem>>, vector<8x1x32xbf16>
    %468 = vector.shape_cast %467 : vector<8x1x32xbf16> to vector<8x32xbf16>
    %469 = tpu.concatenate %436, %440, %444, %448, %452, %456, %460, %464, %468 in 0 : vector<8x32xbf16>, vector<8x32xbf16>, vector<8x32xbf16>, vector<8x32xbf16>, vector<8x32xbf16>, vector<8x32xbf16>, vector<8x32xbf16>, vector<8x32xbf16>, vector<8x32xbf16> -> vector<72x32xbf16>
    %c0_345 = arith.constant 0 : index
    %c0_346 = arith.constant 0 : index
    %470 = vector.load %arg6[%c0_345, %c0_346] : memref<8x72xbf16, #tpu.memory_space<vmem>>, vector<8x72xbf16>
    %cst_347 = arith.constant dense<0.000000e+00> : vector<8x32xf32>
    %471 = tpu.matmul %470, %469, %cst_347 {dimension_numbers = #tpu.dot_dimension_numbers<[1], [0], [0], [1], [0, 0, 1, 1], [], []>} : vector<8x72xbf16>, vector<72x32xbf16>, vector<8x32xf32> -> vector<8x32xf32>
    %472 = vector.broadcast %231 : vector<8x1xf32> to vector<8x32xf32>
    %473 = arith.mulf %471, %472 : vector<8x32xf32>
    %474 = vector.broadcast %232 : vector<8x1xf32> to vector<8x32xf32>
    %475 = arith.addf %473, %474 : vector<8x32xf32>
    %cst_348 = arith.constant 0.000000e+00 : f32
    %476 = vector.broadcast %cst_348 : f32 to vector<8x32xf32>
    %477 = arith.maximumf %475, %476 : vector<8x32xf32>
    %478 = arith.truncf %477 : vector<8x32xf32> to vector<8x32xbf16>
    %c0_349 = arith.constant 0 : index
    %479 = arith.index_cast %c4_i32_317 : i32 to index
    %c1_350 = arith.constant 1 : index
    %480 = vector.load %arg14[%c0_349, %479, %c1_350] : memref<8x10x34xbf16, #tpu.memory_space<vmem>>, vector<8x1x32xbf16>
    %481 = vector.shape_cast %480 : vector<8x1x32xbf16> to vector<8x32xbf16>
    %482 = vector.shape_cast %478 : vector<8x32xbf16> to vector<8x1x32xbf16>
    tpu.vector_store %arg14[%c0_349, %479, %c1_350], %482 {strides = array<i32>} : memref<8x10x34xbf16, #tpu.memory_space<vmem>>, vector<8x1x32xbf16>,
    %c5_i32_351 = arith.constant 5 : i32
    %c0_i32_352 = arith.constant 0 : i32
    %483 = arith.addi %c5_i32_351, %c0_i32_352 : i32
    %c0_353 = arith.constant 0 : index
    %484 = arith.index_cast %483 : i32 to index
    %c0_354 = arith.constant 0 : index
    %485 = vector.load %arg13[%c0_353, %484, %c0_354] : memref<8x12x34xbf16, #tpu.memory_space<vmem>>, vector<8x1x32xbf16>
    %486 = vector.shape_cast %485 : vector<8x1x32xbf16> to vector<8x32xbf16>
    %c0_i32_355 = arith.constant 0 : i32
    %487 = arith.addi %c5_i32_351, %c0_i32_355 : i32
    %c0_356 = arith.constant 0 : index
    %488 = arith.index_cast %487 : i32 to index
    %c1_357 = arith.constant 1 : index
    %489 = vector.load %arg13[%c0_356, %488, %c1_357] : memref<8x12x34xbf16, #tpu.memory_space<vmem>>, vector<8x1x32xbf16>
    %490 = vector.shape_cast %489 : vector<8x1x32xbf16> to vector<8x32xbf16>
    %c0_i32_358 = arith.constant 0 : i32
    %491 = arith.addi %c5_i32_351, %c0_i32_358 : i32
    %c0_359 = arith.constant 0 : index
    %492 = arith.index_cast %491 : i32 to index
    %c2_360 = arith.constant 2 : index
    %493 = vector.load %arg13[%c0_359, %492, %c2_360] : memref<8x12x34xbf16, #tpu.memory_space<vmem>>, vector<8x1x32xbf16>
    %494 = vector.shape_cast %493 : vector<8x1x32xbf16> to vector<8x32xbf16>
    %c1_i32_361 = arith.constant 1 : i32
    %495 = arith.addi %c5_i32_351, %c1_i32_361 : i32
    %c0_362 = arith.constant 0 : index
    %496 = arith.index_cast %495 : i32 to index
    %c0_363 = arith.constant 0 : index
    %497 = vector.load %arg13[%c0_362, %496, %c0_363] : memref<8x12x34xbf16, #tpu.memory_space<vmem>>, vector<8x1x32xbf16>
    %498 = vector.shape_cast %497 : vector<8x1x32xbf16> to vector<8x32xbf16>
    %c1_i32_364 = arith.constant 1 : i32
    %499 = arith.addi %c5_i32_351, %c1_i32_364 : i32
    %c0_365 = arith.constant 0 : index
    %500 = arith.index_cast %499 : i32 to index
    %c1_366 = arith.constant 1 : index
    %501 = vector.load %arg13[%c0_365, %500, %c1_366] : memref<8x12x34xbf16, #tpu.memory_space<vmem>>, vector<8x1x32xbf16>
    %502 = vector.shape_cast %501 : vector<8x1x32xbf16> to vector<8x32xbf16>
    %c1_i32_367 = arith.constant 1 : i32
    %503 = arith.addi %c5_i32_351, %c1_i32_367 : i32
    %c0_368 = arith.constant 0 : index
    %504 = arith.index_cast %503 : i32 to index
    %c2_369 = arith.constant 2 : index
    %505 = vector.load %arg13[%c0_368, %504, %c2_369] : memref<8x12x34xbf16, #tpu.memory_space<vmem>>, vector<8x1x32xbf16>
    %506 = vector.shape_cast %505 : vector<8x1x32xbf16> to vector<8x32xbf16>
    %c2_i32_370 = arith.constant 2 : i32
    %507 = arith.addi %c5_i32_351, %c2_i32_370 : i32
    %c0_371 = arith.constant 0 : index
    %508 = arith.index_cast %507 : i32 to index
    %c0_372 = arith.constant 0 : index
    %509 = vector.load %arg13[%c0_371, %508, %c0_372] : memref<8x12x34xbf16, #tpu.memory_space<vmem>>, vector<8x1x32xbf16>
    %510 = vector.shape_cast %509 : vector<8x1x32xbf16> to vector<8x32xbf16>
    %c2_i32_373 = arith.constant 2 : i32
    %511 = arith.addi %c5_i32_351, %c2_i32_373 : i32
    %c0_374 = arith.constant 0 : index
    %512 = arith.index_cast %511 : i32 to index
    %c1_375 = arith.constant 1 : index
    %513 = vector.load %arg13[%c0_374, %512, %c1_375] : memref<8x12x34xbf16, #tpu.memory_space<vmem>>, vector<8x1x32xbf16>
    %514 = vector.shape_cast %513 : vector<8x1x32xbf16> to vector<8x32xbf16>
    %c2_i32_376 = arith.constant 2 : i32
    %515 = arith.addi %c5_i32_351, %c2_i32_376 : i32
    %c0_377 = arith.constant 0 : index
    %516 = arith.index_cast %515 : i32 to index
    %c2_378 = arith.constant 2 : index
    %517 = vector.load %arg13[%c0_377, %516, %c2_378] : memref<8x12x34xbf16, #tpu.memory_space<vmem>>, vector<8x1x32xbf16>
    %518 = vector.shape_cast %517 : vector<8x1x32xbf16> to vector<8x32xbf16>
    %519 = tpu.concatenate %486, %490, %494, %498, %502, %506, %510, %514, %518 in 0 : vector<8x32xbf16>, vector<8x32xbf16>, vector<8x32xbf16>, vector<8x32xbf16>, vector<8x32xbf16>, vector<8x32xbf16>, vector<8x32xbf16>, vector<8x32xbf16>, vector<8x32xbf16> -> vector<72x32xbf16>
    %c0_379 = arith.constant 0 : index
    %c0_380 = arith.constant 0 : index
    %520 = vector.load %arg6[%c0_379, %c0_380] : memref<8x72xbf16, #tpu.memory_space<vmem>>, vector<8x72xbf16>
    %cst_381 = arith.constant dense<0.000000e+00> : vector<8x32xf32>
    %521 = tpu.matmul %520, %519, %cst_381 {dimension_numbers = #tpu.dot_dimension_numbers<[1], [0], [0], [1], [0, 0, 1, 1], [], []>} : vector<8x72xbf16>, vector<72x32xbf16>, vector<8x32xf32> -> vector<8x32xf32>
    %522 = vector.broadcast %231 : vector<8x1xf32> to vector<8x32xf32>
    %523 = arith.mulf %521, %522 : vector<8x32xf32>
    %524 = vector.broadcast %232 : vector<8x1xf32> to vector<8x32xf32>
    %525 = arith.addf %523, %524 : vector<8x32xf32>
    %cst_382 = arith.constant 0.000000e+00 : f32
    %526 = vector.broadcast %cst_382 : f32 to vector<8x32xf32>
    %527 = arith.maximumf %525, %526 : vector<8x32xf32>
    %528 = arith.truncf %527 : vector<8x32xf32> to vector<8x32xbf16>
    %c0_383 = arith.constant 0 : index
    %529 = arith.index_cast %c5_i32_351 : i32 to index
    %c1_384 = arith.constant 1 : index
    %530 = vector.load %arg14[%c0_383, %529, %c1_384] : memref<8x10x34xbf16, #tpu.memory_space<vmem>>, vector<8x1x32xbf16>
    %531 = vector.shape_cast %530 : vector<8x1x32xbf16> to vector<8x32xbf16>
    %532 = vector.shape_cast %528 : vector<8x32xbf16> to vector<8x1x32xbf16>
    tpu.vector_store %arg14[%c0_383, %529, %c1_384], %532 {strides = array<i32>} : memref<8x10x34xbf16, #tpu.memory_space<vmem>>, vector<8x1x32xbf16>,
    %c6_i32 = arith.constant 6 : i32
    %c0_i32_385 = arith.constant 0 : i32
    %533 = arith.addi %c6_i32, %c0_i32_385 : i32
    %c0_386 = arith.constant 0 : index
    %534 = arith.index_cast %533 : i32 to index
    %c0_387 = arith.constant 0 : index
    %535 = vector.load %arg13[%c0_386, %534, %c0_387] : memref<8x12x34xbf16, #tpu.memory_space<vmem>>, vector<8x1x32xbf16>
    %536 = vector.shape_cast %535 : vector<8x1x32xbf16> to vector<8x32xbf16>
    %c0_i32_388 = arith.constant 0 : i32
    %537 = arith.addi %c6_i32, %c0_i32_388 : i32
    %c0_389 = arith.constant 0 : index
    %538 = arith.index_cast %537 : i32 to index
    %c1_390 = arith.constant 1 : index
    %539 = vector.load %arg13[%c0_389, %538, %c1_390] : memref<8x12x34xbf16, #tpu.memory_space<vmem>>, vector<8x1x32xbf16>
    %540 = vector.shape_cast %539 : vector<8x1x32xbf16> to vector<8x32xbf16>
    %c0_i32_391 = arith.constant 0 : i32
    %541 = arith.addi %c6_i32, %c0_i32_391 : i32
    %c0_392 = arith.constant 0 : index
    %542 = arith.index_cast %541 : i32 to index
    %c2_393 = arith.constant 2 : index
    %543 = vector.load %arg13[%c0_392, %542, %c2_393] : memref<8x12x34xbf16, #tpu.memory_space<vmem>>, vector<8x1x32xbf16>
    %544 = vector.shape_cast %543 : vector<8x1x32xbf16> to vector<8x32xbf16>
    %c1_i32_394 = arith.constant 1 : i32
    %545 = arith.addi %c6_i32, %c1_i32_394 : i32
    %c0_395 = arith.constant 0 : index
    %546 = arith.index_cast %545 : i32 to index
    %c0_396 = arith.constant 0 : index
    %547 = vector.load %arg13[%c0_395, %546, %c0_396] : memref<8x12x34xbf16, #tpu.memory_space<vmem>>, vector<8x1x32xbf16>
    %548 = vector.shape_cast %547 : vector<8x1x32xbf16> to vector<8x32xbf16>
    %c1_i32_397 = arith.constant 1 : i32
    %549 = arith.addi %c6_i32, %c1_i32_397 : i32
    %c0_398 = arith.constant 0 : index
    %550 = arith.index_cast %549 : i32 to index
    %c1_399 = arith.constant 1 : index
    %551 = vector.load %arg13[%c0_398, %550, %c1_399] : memref<8x12x34xbf16, #tpu.memory_space<vmem>>, vector<8x1x32xbf16>
    %552 = vector.shape_cast %551 : vector<8x1x32xbf16> to vector<8x32xbf16>
    %c1_i32_400 = arith.constant 1 : i32
    %553 = arith.addi %c6_i32, %c1_i32_400 : i32
    %c0_401 = arith.constant 0 : index
    %554 = arith.index_cast %553 : i32 to index
    %c2_402 = arith.constant 2 : index
    %555 = vector.load %arg13[%c0_401, %554, %c2_402] : memref<8x12x34xbf16, #tpu.memory_space<vmem>>, vector<8x1x32xbf16>
    %556 = vector.shape_cast %555 : vector<8x1x32xbf16> to vector<8x32xbf16>
    %c2_i32_403 = arith.constant 2 : i32
    %557 = arith.addi %c6_i32, %c2_i32_403 : i32
    %c0_404 = arith.constant 0 : index
    %558 = arith.index_cast %557 : i32 to index
    %c0_405 = arith.constant 0 : index
    %559 = vector.load %arg13[%c0_404, %558, %c0_405] : memref<8x12x34xbf16, #tpu.memory_space<vmem>>, vector<8x1x32xbf16>
    %560 = vector.shape_cast %559 : vector<8x1x32xbf16> to vector<8x32xbf16>
    %c2_i32_406 = arith.constant 2 : i32
    %561 = arith.addi %c6_i32, %c2_i32_406 : i32
    %c0_407 = arith.constant 0 : index
    %562 = arith.index_cast %561 : i32 to index
    %c1_408 = arith.constant 1 : index
    %563 = vector.load %arg13[%c0_407, %562, %c1_408] : memref<8x12x34xbf16, #tpu.memory_space<vmem>>, vector<8x1x32xbf16>
    %564 = vector.shape_cast %563 : vector<8x1x32xbf16> to vector<8x32xbf16>
    %c2_i32_409 = arith.constant 2 : i32
    %565 = arith.addi %c6_i32, %c2_i32_409 : i32
    %c0_410 = arith.constant 0 : index
    %566 = arith.index_cast %565 : i32 to index
    %c2_411 = arith.constant 2 : index
    %567 = vector.load %arg13[%c0_410, %566, %c2_411] : memref<8x12x34xbf16, #tpu.memory_space<vmem>>, vector<8x1x32xbf16>
    %568 = vector.shape_cast %567 : vector<8x1x32xbf16> to vector<8x32xbf16>
    %569 = tpu.concatenate %536, %540, %544, %548, %552, %556, %560, %564, %568 in 0 : vector<8x32xbf16>, vector<8x32xbf16>, vector<8x32xbf16>, vector<8x32xbf16>, vector<8x32xbf16>, vector<8x32xbf16>, vector<8x32xbf16>, vector<8x32xbf16>, vector<8x32xbf16> -> vector<72x32xbf16>
    %c0_412 = arith.constant 0 : index
    %c0_413 = arith.constant 0 : index
    %570 = vector.load %arg6[%c0_412, %c0_413] : memref<8x72xbf16, #tpu.memory_space<vmem>>, vector<8x72xbf16>
    %cst_414 = arith.constant dense<0.000000e+00> : vector<8x32xf32>
    %571 = tpu.matmul %570, %569, %cst_414 {dimension_numbers = #tpu.dot_dimension_numbers<[1], [0], [0], [1], [0, 0, 1, 1], [], []>} : vector<8x72xbf16>, vector<72x32xbf16>, vector<8x32xf32> -> vector<8x32xf32>
    %572 = vector.broadcast %231 : vector<8x1xf32> to vector<8x32xf32>
    %573 = arith.mulf %571, %572 : vector<8x32xf32>
    %574 = vector.broadcast %232 : vector<8x1xf32> to vector<8x32xf32>
    %575 = arith.addf %573, %574 : vector<8x32xf32>
    %cst_415 = arith.constant 0.000000e+00 : f32
    %576 = vector.broadcast %cst_415 : f32 to vector<8x32xf32>
    %577 = arith.maximumf %575, %576 : vector<8x32xf32>
    %578 = arith.truncf %577 : vector<8x32xf32> to vector<8x32xbf16>
    %c0_416 = arith.constant 0 : index
    %579 = arith.index_cast %c6_i32 : i32 to index
    %c1_417 = arith.constant 1 : index
    %580 = vector.load %arg14[%c0_416, %579, %c1_417] : memref<8x10x34xbf16, #tpu.memory_space<vmem>>, vector<8x1x32xbf16>
    %581 = vector.shape_cast %580 : vector<8x1x32xbf16> to vector<8x32xbf16>
    %582 = vector.shape_cast %578 : vector<8x32xbf16> to vector<8x1x32xbf16>
    tpu.vector_store %arg14[%c0_416, %579, %c1_417], %582 {strides = array<i32>} : memref<8x10x34xbf16, #tpu.memory_space<vmem>>, vector<8x1x32xbf16>,
    %c7_i32 = arith.constant 7 : i32
    %c0_i32_418 = arith.constant 0 : i32
    %583 = arith.addi %c7_i32, %c0_i32_418 : i32
    %c0_419 = arith.constant 0 : index
    %584 = arith.index_cast %583 : i32 to index
    %c0_420 = arith.constant 0 : index
    %585 = vector.load %arg13[%c0_419, %584, %c0_420] : memref<8x12x34xbf16, #tpu.memory_space<vmem>>, vector<8x1x32xbf16>
    %586 = vector.shape_cast %585 : vector<8x1x32xbf16> to vector<8x32xbf16>
    %c0_i32_421 = arith.constant 0 : i32
    %587 = arith.addi %c7_i32, %c0_i32_421 : i32
    %c0_422 = arith.constant 0 : index
    %588 = arith.index_cast %587 : i32 to index
    %c1_423 = arith.constant 1 : index
    %589 = vector.load %arg13[%c0_422, %588, %c1_423] : memref<8x12x34xbf16, #tpu.memory_space<vmem>>, vector<8x1x32xbf16>
    %590 = vector.shape_cast %589 : vector<8x1x32xbf16> to vector<8x32xbf16>
    %c0_i32_424 = arith.constant 0 : i32
    %591 = arith.addi %c7_i32, %c0_i32_424 : i32
    %c0_425 = arith.constant 0 : index
    %592 = arith.index_cast %591 : i32 to index
    %c2_426 = arith.constant 2 : index
    %593 = vector.load %arg13[%c0_425, %592, %c2_426] : memref<8x12x34xbf16, #tpu.memory_space<vmem>>, vector<8x1x32xbf16>
    %594 = vector.shape_cast %593 : vector<8x1x32xbf16> to vector<8x32xbf16>
    %c1_i32_427 = arith.constant 1 : i32
    %595 = arith.addi %c7_i32, %c1_i32_427 : i32
    %c0_428 = arith.constant 0 : index
    %596 = arith.index_cast %595 : i32 to index
    %c0_429 = arith.constant 0 : index
    %597 = vector.load %arg13[%c0_428, %596, %c0_429] : memref<8x12x34xbf16, #tpu.memory_space<vmem>>, vector<8x1x32xbf16>
    %598 = vector.shape_cast %597 : vector<8x1x32xbf16> to vector<8x32xbf16>
    %c1_i32_430 = arith.constant 1 : i32
    %599 = arith.addi %c7_i32, %c1_i32_430 : i32
    %c0_431 = arith.constant 0 : index
    %600 = arith.index_cast %599 : i32 to index
    %c1_432 = arith.constant 1 : index
    %601 = vector.load %arg13[%c0_431, %600, %c1_432] : memref<8x12x34xbf16, #tpu.memory_space<vmem>>, vector<8x1x32xbf16>
    %602 = vector.shape_cast %601 : vector<8x1x32xbf16> to vector<8x32xbf16>
    %c1_i32_433 = arith.constant 1 : i32
    %603 = arith.addi %c7_i32, %c1_i32_433 : i32
    %c0_434 = arith.constant 0 : index
    %604 = arith.index_cast %603 : i32 to index
    %c2_435 = arith.constant 2 : index
    %605 = vector.load %arg13[%c0_434, %604, %c2_435] : memref<8x12x34xbf16, #tpu.memory_space<vmem>>, vector<8x1x32xbf16>
    %606 = vector.shape_cast %605 : vector<8x1x32xbf16> to vector<8x32xbf16>
    %c2_i32_436 = arith.constant 2 : i32
    %607 = arith.addi %c7_i32, %c2_i32_436 : i32
    %c0_437 = arith.constant 0 : index
    %608 = arith.index_cast %607 : i32 to index
    %c0_438 = arith.constant 0 : index
    %609 = vector.load %arg13[%c0_437, %608, %c0_438] : memref<8x12x34xbf16, #tpu.memory_space<vmem>>, vector<8x1x32xbf16>
    %610 = vector.shape_cast %609 : vector<8x1x32xbf16> to vector<8x32xbf16>
    %c2_i32_439 = arith.constant 2 : i32
    %611 = arith.addi %c7_i32, %c2_i32_439 : i32
    %c0_440 = arith.constant 0 : index
    %612 = arith.index_cast %611 : i32 to index
    %c1_441 = arith.constant 1 : index
    %613 = vector.load %arg13[%c0_440, %612, %c1_441] : memref<8x12x34xbf16, #tpu.memory_space<vmem>>, vector<8x1x32xbf16>
    %614 = vector.shape_cast %613 : vector<8x1x32xbf16> to vector<8x32xbf16>
    %c2_i32_442 = arith.constant 2 : i32
    %615 = arith.addi %c7_i32, %c2_i32_442 : i32
    %c0_443 = arith.constant 0 : index
    %616 = arith.index_cast %615 : i32 to index
    %c2_444 = arith.constant 2 : index
    %617 = vector.load %arg13[%c0_443, %616, %c2_444] : memref<8x12x34xbf16, #tpu.memory_space<vmem>>, vector<8x1x32xbf16>
    %618 = vector.shape_cast %617 : vector<8x1x32xbf16> to vector<8x32xbf16>
    %619 = tpu.concatenate %586, %590, %594, %598, %602, %606, %610, %614, %618 in 0 : vector<8x32xbf16>, vector<8x32xbf16>, vector<8x32xbf16>, vector<8x32xbf16>, vector<8x32xbf16>, vector<8x32xbf16>, vector<8x32xbf16>, vector<8x32xbf16>, vector<8x32xbf16> -> vector<72x32xbf16>
    %c0_445 = arith.constant 0 : index
    %c0_446 = arith.constant 0 : index
    %620 = vector.load %arg6[%c0_445, %c0_446] : memref<8x72xbf16, #tpu.memory_space<vmem>>, vector<8x72xbf16>
    %cst_447 = arith.constant dense<0.000000e+00> : vector<8x32xf32>
    %621 = tpu.matmul %620, %619, %cst_447 {dimension_numbers = #tpu.dot_dimension_numbers<[1], [0], [0], [1], [0, 0, 1, 1], [], []>} : vector<8x72xbf16>, vector<72x32xbf16>, vector<8x32xf32> -> vector<8x32xf32>
    %622 = vector.broadcast %231 : vector<8x1xf32> to vector<8x32xf32>
    %623 = arith.mulf %621, %622 : vector<8x32xf32>
    %624 = vector.broadcast %232 : vector<8x1xf32> to vector<8x32xf32>
    %625 = arith.addf %623, %624 : vector<8x32xf32>
    %cst_448 = arith.constant 0.000000e+00 : f32
    %626 = vector.broadcast %cst_448 : f32 to vector<8x32xf32>
    %627 = arith.maximumf %625, %626 : vector<8x32xf32>
    %628 = arith.truncf %627 : vector<8x32xf32> to vector<8x32xbf16>
    %c0_449 = arith.constant 0 : index
    %629 = arith.index_cast %c7_i32 : i32 to index
    %c1_450 = arith.constant 1 : index
    %630 = vector.load %arg14[%c0_449, %629, %c1_450] : memref<8x10x34xbf16, #tpu.memory_space<vmem>>, vector<8x1x32xbf16>
    %631 = vector.shape_cast %630 : vector<8x1x32xbf16> to vector<8x32xbf16>
    %632 = vector.shape_cast %628 : vector<8x32xbf16> to vector<8x1x32xbf16>
    tpu.vector_store %arg14[%c0_449, %629, %c1_450], %632 {strides = array<i32>} : memref<8x10x34xbf16, #tpu.memory_space<vmem>>, vector<8x1x32xbf16>,
    %c8_i32 = arith.constant 8 : i32
    %c0_i32_451 = arith.constant 0 : i32
    %633 = arith.addi %c8_i32, %c0_i32_451 : i32
    %c0_452 = arith.constant 0 : index
    %634 = arith.index_cast %633 : i32 to index
    %c0_453 = arith.constant 0 : index
    %635 = vector.load %arg13[%c0_452, %634, %c0_453] : memref<8x12x34xbf16, #tpu.memory_space<vmem>>, vector<8x1x32xbf16>
    %636 = vector.shape_cast %635 : vector<8x1x32xbf16> to vector<8x32xbf16>
    %c0_i32_454 = arith.constant 0 : i32
    %637 = arith.addi %c8_i32, %c0_i32_454 : i32
    %c0_455 = arith.constant 0 : index
    %638 = arith.index_cast %637 : i32 to index
    %c1_456 = arith.constant 1 : index
    %639 = vector.load %arg13[%c0_455, %638, %c1_456] : memref<8x12x34xbf16, #tpu.memory_space<vmem>>, vector<8x1x32xbf16>
    %640 = vector.shape_cast %639 : vector<8x1x32xbf16> to vector<8x32xbf16>
    %c0_i32_457 = arith.constant 0 : i32
    %641 = arith.addi %c8_i32, %c0_i32_457 : i32
    %c0_458 = arith.constant 0 : index
    %642 = arith.index_cast %641 : i32 to index
    %c2_459 = arith.constant 2 : index
    %643 = vector.load %arg13[%c0_458, %642, %c2_459] : memref<8x12x34xbf16, #tpu.memory_space<vmem>>, vector<8x1x32xbf16>
    %644 = vector.shape_cast %643 : vector<8x1x32xbf16> to vector<8x32xbf16>
    %c1_i32_460 = arith.constant 1 : i32
    %645 = arith.addi %c8_i32, %c1_i32_460 : i32
    %c0_461 = arith.constant 0 : index
    %646 = arith.index_cast %645 : i32 to index
    %c0_462 = arith.constant 0 : index
    %647 = vector.load %arg13[%c0_461, %646, %c0_462] : memref<8x12x34xbf16, #tpu.memory_space<vmem>>, vector<8x1x32xbf16>
    %648 = vector.shape_cast %647 : vector<8x1x32xbf16> to vector<8x32xbf16>
    %c1_i32_463 = arith.constant 1 : i32
    %649 = arith.addi %c8_i32, %c1_i32_463 : i32
    %c0_464 = arith.constant 0 : index
    %650 = arith.index_cast %649 : i32 to index
    %c1_465 = arith.constant 1 : index
    %651 = vector.load %arg13[%c0_464, %650, %c1_465] : memref<8x12x34xbf16, #tpu.memory_space<vmem>>, vector<8x1x32xbf16>
    %652 = vector.shape_cast %651 : vector<8x1x32xbf16> to vector<8x32xbf16>
    %c1_i32_466 = arith.constant 1 : i32
    %653 = arith.addi %c8_i32, %c1_i32_466 : i32
    %c0_467 = arith.constant 0 : index
    %654 = arith.index_cast %653 : i32 to index
    %c2_468 = arith.constant 2 : index
    %655 = vector.load %arg13[%c0_467, %654, %c2_468] : memref<8x12x34xbf16, #tpu.memory_space<vmem>>, vector<8x1x32xbf16>
    %656 = vector.shape_cast %655 : vector<8x1x32xbf16> to vector<8x32xbf16>
    %c2_i32_469 = arith.constant 2 : i32
    %657 = arith.addi %c8_i32, %c2_i32_469 : i32
    %c0_470 = arith.constant 0 : index
    %658 = arith.index_cast %657 : i32 to index
    %c0_471 = arith.constant 0 : index
    %659 = vector.load %arg13[%c0_470, %658, %c0_471] : memref<8x12x34xbf16, #tpu.memory_space<vmem>>, vector<8x1x32xbf16>
    %660 = vector.shape_cast %659 : vector<8x1x32xbf16> to vector<8x32xbf16>
    %c2_i32_472 = arith.constant 2 : i32
    %661 = arith.addi %c8_i32, %c2_i32_472 : i32
    %c0_473 = arith.constant 0 : index
    %662 = arith.index_cast %661 : i32 to index
    %c1_474 = arith.constant 1 : index
    %663 = vector.load %arg13[%c0_473, %662, %c1_474] : memref<8x12x34xbf16, #tpu.memory_space<vmem>>, vector<8x1x32xbf16>
    %664 = vector.shape_cast %663 : vector<8x1x32xbf16> to vector<8x32xbf16>
    %c2_i32_475 = arith.constant 2 : i32
    %665 = arith.addi %c8_i32, %c2_i32_475 : i32
    %c0_476 = arith.constant 0 : index
    %666 = arith.index_cast %665 : i32 to index
    %c2_477 = arith.constant 2 : index
    %667 = vector.load %arg13[%c0_476, %666, %c2_477] : memref<8x12x34xbf16, #tpu.memory_space<vmem>>, vector<8x1x32xbf16>
    %668 = vector.shape_cast %667 : vector<8x1x32xbf16> to vector<8x32xbf16>
    %669 = tpu.concatenate %636, %640, %644, %648, %652, %656, %660, %664, %668 in 0 : vector<8x32xbf16>, vector<8x32xbf16>, vector<8x32xbf16>, vector<8x32xbf16>, vector<8x32xbf16>, vector<8x32xbf16>, vector<8x32xbf16>, vector<8x32xbf16>, vector<8x32xbf16> -> vector<72x32xbf16>
    %c0_478 = arith.constant 0 : index
    %c0_479 = arith.constant 0 : index
    %670 = vector.load %arg6[%c0_478, %c0_479] : memref<8x72xbf16, #tpu.memory_space<vmem>>, vector<8x72xbf16>
    %cst_480 = arith.constant dense<0.000000e+00> : vector<8x32xf32>
    %671 = tpu.matmul %670, %669, %cst_480 {dimension_numbers = #tpu.dot_dimension_numbers<[1], [0], [0], [1], [0, 0, 1, 1], [], []>} : vector<8x72xbf16>, vector<72x32xbf16>, vector<8x32xf32> -> vector<8x32xf32>
    %672 = vector.broadcast %231 : vector<8x1xf32> to vector<8x32xf32>
    %673 = arith.mulf %671, %672 : vector<8x32xf32>
    %674 = vector.broadcast %232 : vector<8x1xf32> to vector<8x32xf32>
    %675 = arith.addf %673, %674 : vector<8x32xf32>
    %cst_481 = arith.constant 0.000000e+00 : f32
    %676 = vector.broadcast %cst_481 : f32 to vector<8x32xf32>
    %677 = arith.maximumf %675, %676 : vector<8x32xf32>
    %678 = arith.truncf %677 : vector<8x32xf32> to vector<8x32xbf16>
    %c0_482 = arith.constant 0 : index
    %679 = arith.index_cast %c8_i32 : i32 to index
    %c1_483 = arith.constant 1 : index
    %680 = vector.load %arg14[%c0_482, %679, %c1_483] : memref<8x10x34xbf16, #tpu.memory_space<vmem>>, vector<8x1x32xbf16>
    %681 = vector.shape_cast %680 : vector<8x1x32xbf16> to vector<8x32xbf16>
    %682 = vector.shape_cast %678 : vector<8x32xbf16> to vector<8x1x32xbf16>
    tpu.vector_store %arg14[%c0_482, %679, %c1_483], %682 {strides = array<i32>} : memref<8x10x34xbf16, #tpu.memory_space<vmem>>, vector<8x1x32xbf16>,
    %c9_i32 = arith.constant 9 : i32
    %c0_i32_484 = arith.constant 0 : i32
    %683 = arith.addi %c9_i32, %c0_i32_484 : i32
    %c0_485 = arith.constant 0 : index
    %684 = arith.index_cast %683 : i32 to index
    %c0_486 = arith.constant 0 : index
    %685 = vector.load %arg13[%c0_485, %684, %c0_486] : memref<8x12x34xbf16, #tpu.memory_space<vmem>>, vector<8x1x32xbf16>
    %686 = vector.shape_cast %685 : vector<8x1x32xbf16> to vector<8x32xbf16>
    %c0_i32_487 = arith.constant 0 : i32
    %687 = arith.addi %c9_i32, %c0_i32_487 : i32
    %c0_488 = arith.constant 0 : index
    %688 = arith.index_cast %687 : i32 to index
    %c1_489 = arith.constant 1 : index
    %689 = vector.load %arg13[%c0_488, %688, %c1_489] : memref<8x12x34xbf16, #tpu.memory_space<vmem>>, vector<8x1x32xbf16>
    %690 = vector.shape_cast %689 : vector<8x1x32xbf16> to vector<8x32xbf16>
    %c0_i32_490 = arith.constant 0 : i32
    %691 = arith.addi %c9_i32, %c0_i32_490 : i32
    %c0_491 = arith.constant 0 : index
    %692 = arith.index_cast %691 : i32 to index
    %c2_492 = arith.constant 2 : index
    %693 = vector.load %arg13[%c0_491, %692, %c2_492] : memref<8x12x34xbf16, #tpu.memory_space<vmem>>, vector<8x1x32xbf16>
    %694 = vector.shape_cast %693 : vector<8x1x32xbf16> to vector<8x32xbf16>
    %c1_i32_493 = arith.constant 1 : i32
    %695 = arith.addi %c9_i32, %c1_i32_493 : i32
    %c0_494 = arith.constant 0 : index
    %696 = arith.index_cast %695 : i32 to index
    %c0_495 = arith.constant 0 : index
    %697 = vector.load %arg13[%c0_494, %696, %c0_495] : memref<8x12x34xbf16, #tpu.memory_space<vmem>>, vector<8x1x32xbf16>
    %698 = vector.shape_cast %697 : vector<8x1x32xbf16> to vector<8x32xbf16>
    %c1_i32_496 = arith.constant 1 : i32
    %699 = arith.addi %c9_i32, %c1_i32_496 : i32
    %c0_497 = arith.constant 0 : index
    %700 = arith.index_cast %699 : i32 to index
    %c1_498 = arith.constant 1 : index
    %701 = vector.load %arg13[%c0_497, %700, %c1_498] : memref<8x12x34xbf16, #tpu.memory_space<vmem>>, vector<8x1x32xbf16>
    %702 = vector.shape_cast %701 : vector<8x1x32xbf16> to vector<8x32xbf16>
    %c1_i32_499 = arith.constant 1 : i32
    %703 = arith.addi %c9_i32, %c1_i32_499 : i32
    %c0_500 = arith.constant 0 : index
    %704 = arith.index_cast %703 : i32 to index
    %c2_501 = arith.constant 2 : index
    %705 = vector.load %arg13[%c0_500, %704, %c2_501] : memref<8x12x34xbf16, #tpu.memory_space<vmem>>, vector<8x1x32xbf16>
    %706 = vector.shape_cast %705 : vector<8x1x32xbf16> to vector<8x32xbf16>
    %c2_i32_502 = arith.constant 2 : i32
    %707 = arith.addi %c9_i32, %c2_i32_502 : i32
    %c0_503 = arith.constant 0 : index
    %708 = arith.index_cast %707 : i32 to index
    %c0_504 = arith.constant 0 : index
    %709 = vector.load %arg13[%c0_503, %708, %c0_504] : memref<8x12x34xbf16, #tpu.memory_space<vmem>>, vector<8x1x32xbf16>
    %710 = vector.shape_cast %709 : vector<8x1x32xbf16> to vector<8x32xbf16>
    %c2_i32_505 = arith.constant 2 : i32
    %711 = arith.addi %c9_i32, %c2_i32_505 : i32
    %c0_506 = arith.constant 0 : index
    %712 = arith.index_cast %711 : i32 to index
    %c1_507 = arith.constant 1 : index
    %713 = vector.load %arg13[%c0_506, %712, %c1_507] : memref<8x12x34xbf16, #tpu.memory_space<vmem>>, vector<8x1x32xbf16>
    %714 = vector.shape_cast %713 : vector<8x1x32xbf16> to vector<8x32xbf16>
    %c2_i32_508 = arith.constant 2 : i32
    %715 = arith.addi %c9_i32, %c2_i32_508 : i32
    %c0_509 = arith.constant 0 : index
    %716 = arith.index_cast %715 : i32 to index
    %c2_510 = arith.constant 2 : index
    %717 = vector.load %arg13[%c0_509, %716, %c2_510] : memref<8x12x34xbf16, #tpu.memory_space<vmem>>, vector<8x1x32xbf16>
    %718 = vector.shape_cast %717 : vector<8x1x32xbf16> to vector<8x32xbf16>
    %719 = tpu.concatenate %686, %690, %694, %698, %702, %706, %710, %714, %718 in 0 : vector<8x32xbf16>, vector<8x32xbf16>, vector<8x32xbf16>, vector<8x32xbf16>, vector<8x32xbf16>, vector<8x32xbf16>, vector<8x32xbf16>, vector<8x32xbf16>, vector<8x32xbf16> -> vector<72x32xbf16>
    %c0_511 = arith.constant 0 : index
    %c0_512 = arith.constant 0 : index
    %720 = vector.load %arg6[%c0_511, %c0_512] : memref<8x72xbf16, #tpu.memory_space<vmem>>, vector<8x72xbf16>
    %cst_513 = arith.constant dense<0.000000e+00> : vector<8x32xf32>
    %721 = tpu.matmul %720, %719, %cst_513 {dimension_numbers = #tpu.dot_dimension_numbers<[1], [0], [0], [1], [0, 0, 1, 1], [], []>} : vector<8x72xbf16>, vector<72x32xbf16>, vector<8x32xf32> -> vector<8x32xf32>
    %722 = vector.broadcast %231 : vector<8x1xf32> to vector<8x32xf32>
    %723 = arith.mulf %721, %722 : vector<8x32xf32>
    %724 = vector.broadcast %232 : vector<8x1xf32> to vector<8x32xf32>
    %725 = arith.addf %723, %724 : vector<8x32xf32>
    %cst_514 = arith.constant 0.000000e+00 : f32
    %726 = vector.broadcast %cst_514 : f32 to vector<8x32xf32>
    %727 = arith.maximumf %725, %726 : vector<8x32xf32>
    %728 = arith.truncf %727 : vector<8x32xf32> to vector<8x32xbf16>
    %c0_515 = arith.constant 0 : index
    %729 = arith.index_cast %c9_i32 : i32 to index
    %c1_516 = arith.constant 1 : index
    %730 = vector.load %arg14[%c0_515, %729, %c1_516] : memref<8x10x34xbf16, #tpu.memory_space<vmem>>, vector<8x1x32xbf16>
    %731 = vector.shape_cast %730 : vector<8x1x32xbf16> to vector<8x32xbf16>
    %732 = vector.shape_cast %728 : vector<8x32xbf16> to vector<8x1x32xbf16>
    tpu.vector_store %arg14[%c0_515, %729, %c1_516], %732 {strides = array<i32>} : memref<8x10x34xbf16, #tpu.memory_space<vmem>>, vector<8x1x32xbf16>,
    %c10_i32 = arith.constant 10 : i32
    %c0_i32_517 = arith.constant 0 : i32
    %733 = arith.cmpi eq, %arg1, %c0_i32_517 : i32
    %734 = arith.extui %733 : i1 to i32
    %c0_i32_518 = arith.constant 0 : i32
    %735 = arith.cmpi ne, %734, %c0_i32_518 : i32
    scf.if %735 {
      %cst_806 = arith.constant 0.000000e+00 : bf16
      %1133 = vector.broadcast %cst_806 : bf16 to vector<8x1x34xbf16>
      %c0_807 = arith.constant 0 : index
      %c0_808 = arith.constant 0 : index
      %c0_809 = arith.constant 0 : index
      %1134 = vector.load %arg14[%c0_807, %c0_808, %c0_809] : memref<8x10x34xbf16, #tpu.memory_space<vmem>>, vector<8x1x34xbf16>
      tpu.vector_store %arg14[%c0_807, %c0_808, %c0_809], %1133 {strides = array<i32>} : memref<8x10x34xbf16, #tpu.memory_space<vmem>>, vector<8x1x34xbf16>,
    } else {
    }
    %c3_i32_519 = arith.constant 3 : i32
    %736 = arith.cmpi eq, %arg1, %c3_i32_519 : i32
    %737 = arith.extui %736 : i1 to i32
    %c0_i32_520 = arith.constant 0 : i32
    %738 = arith.cmpi ne, %737, %c0_i32_520 : i32
    scf.if %738 {
      %cst_806 = arith.constant 0.000000e+00 : bf16
      %1133 = vector.broadcast %cst_806 : bf16 to vector<8x1x34xbf16>
      %c0_807 = arith.constant 0 : index
      %c9_808 = arith.constant 9 : index
      %c0_809 = arith.constant 0 : index
      %1134 = vector.load %arg14[%c0_807, %c9_808, %c0_809] : memref<8x10x34xbf16, #tpu.memory_space<vmem>>, vector<8x1x34xbf16>
      tpu.vector_store %arg14[%c0_807, %c9_808, %c0_809], %1133 {strides = array<i32>} : memref<8x10x34xbf16, #tpu.memory_space<vmem>>, vector<8x1x34xbf16>,
    } else {
    }
    %c0_521 = arith.constant 0 : index
    %c0_522 = arith.constant 0 : index
    %739 = vector.load %arg10[%c0_521, %c0_522] : memref<8x1xf32, #tpu.memory_space<vmem>>, vector<8x1xf32>
    %c0_523 = arith.constant 0 : index
    %c0_524 = arith.constant 0 : index
    %740 = vector.load %arg11[%c0_523, %c0_524] : memref<8x1xf32, #tpu.memory_space<vmem>>, vector<8x1xf32>
    %c0_i32_525 = arith.constant 0 : i32
    %c0_i32_526 = arith.constant 0 : i32
    %741 = arith.addi %c0_i32_525, %c0_i32_526 : i32
    %c0_527 = arith.constant 0 : index
    %742 = arith.index_cast %741 : i32 to index
    %c0_528 = arith.constant 0 : index
    %743 = vector.load %arg14[%c0_527, %742, %c0_528] : memref<8x10x34xbf16, #tpu.memory_space<vmem>>, vector<8x1x32xbf16>
    %744 = vector.shape_cast %743 : vector<8x1x32xbf16> to vector<8x32xbf16>
    %c0_i32_529 = arith.constant 0 : i32
    %745 = arith.addi %c0_i32_525, %c0_i32_529 : i32
    %c0_530 = arith.constant 0 : index
    %746 = arith.index_cast %745 : i32 to index
    %c1_531 = arith.constant 1 : index
    %747 = vector.load %arg14[%c0_530, %746, %c1_531] : memref<8x10x34xbf16, #tpu.memory_space<vmem>>, vector<8x1x32xbf16>
    %748 = vector.shape_cast %747 : vector<8x1x32xbf16> to vector<8x32xbf16>
    %c0_i32_532 = arith.constant 0 : i32
    %749 = arith.addi %c0_i32_525, %c0_i32_532 : i32
    %c0_533 = arith.constant 0 : index
    %750 = arith.index_cast %749 : i32 to index
    %c2_534 = arith.constant 2 : index
    %751 = vector.load %arg14[%c0_533, %750, %c2_534] : memref<8x10x34xbf16, #tpu.memory_space<vmem>>, vector<8x1x32xbf16>
    %752 = vector.shape_cast %751 : vector<8x1x32xbf16> to vector<8x32xbf16>
    %c1_i32_535 = arith.constant 1 : i32
    %753 = arith.addi %c0_i32_525, %c1_i32_535 : i32
    %c0_536 = arith.constant 0 : index
    %754 = arith.index_cast %753 : i32 to index
    %c0_537 = arith.constant 0 : index
    %755 = vector.load %arg14[%c0_536, %754, %c0_537] : memref<8x10x34xbf16, #tpu.memory_space<vmem>>, vector<8x1x32xbf16>
    %756 = vector.shape_cast %755 : vector<8x1x32xbf16> to vector<8x32xbf16>
    %c1_i32_538 = arith.constant 1 : i32
    %757 = arith.addi %c0_i32_525, %c1_i32_538 : i32
    %c0_539 = arith.constant 0 : index
    %758 = arith.index_cast %757 : i32 to index
    %c1_540 = arith.constant 1 : index
    %759 = vector.load %arg14[%c0_539, %758, %c1_540] : memref<8x10x34xbf16, #tpu.memory_space<vmem>>, vector<8x1x32xbf16>
    %760 = vector.shape_cast %759 : vector<8x1x32xbf16> to vector<8x32xbf16>
    %c1_i32_541 = arith.constant 1 : i32
    %761 = arith.addi %c0_i32_525, %c1_i32_541 : i32
    %c0_542 = arith.constant 0 : index
    %762 = arith.index_cast %761 : i32 to index
    %c2_543 = arith.constant 2 : index
    %763 = vector.load %arg14[%c0_542, %762, %c2_543] : memref<8x10x34xbf16, #tpu.memory_space<vmem>>, vector<8x1x32xbf16>
    %764 = vector.shape_cast %763 : vector<8x1x32xbf16> to vector<8x32xbf16>
    %c2_i32_544 = arith.constant 2 : i32
    %765 = arith.addi %c0_i32_525, %c2_i32_544 : i32
    %c0_545 = arith.constant 0 : index
    %766 = arith.index_cast %765 : i32 to index
    %c0_546 = arith.constant 0 : index
    %767 = vector.load %arg14[%c0_545, %766, %c0_546] : memref<8x10x34xbf16, #tpu.memory_space<vmem>>, vector<8x1x32xbf16>
    %768 = vector.shape_cast %767 : vector<8x1x32xbf16> to vector<8x32xbf16>
    %c2_i32_547 = arith.constant 2 : i32
    %769 = arith.addi %c0_i32_525, %c2_i32_547 : i32
    %c0_548 = arith.constant 0 : index
    %770 = arith.index_cast %769 : i32 to index
    %c1_549 = arith.constant 1 : index
    %771 = vector.load %arg14[%c0_548, %770, %c1_549] : memref<8x10x34xbf16, #tpu.memory_space<vmem>>, vector<8x1x32xbf16>
    %772 = vector.shape_cast %771 : vector<8x1x32xbf16> to vector<8x32xbf16>
    %c2_i32_550 = arith.constant 2 : i32
    %773 = arith.addi %c0_i32_525, %c2_i32_550 : i32
    %c0_551 = arith.constant 0 : index
    %774 = arith.index_cast %773 : i32 to index
    %c2_552 = arith.constant 2 : index
    %775 = vector.load %arg14[%c0_551, %774, %c2_552] : memref<8x10x34xbf16, #tpu.memory_space<vmem>>, vector<8x1x32xbf16>
    %776 = vector.shape_cast %775 : vector<8x1x32xbf16> to vector<8x32xbf16>
    %777 = tpu.concatenate %744, %748, %752, %756, %760, %764, %768, %772, %776 in 0 : vector<8x32xbf16>, vector<8x32xbf16>, vector<8x32xbf16>, vector<8x32xbf16>, vector<8x32xbf16>, vector<8x32xbf16>, vector<8x32xbf16>, vector<8x32xbf16>, vector<8x32xbf16> -> vector<72x32xbf16>
    %c0_553 = arith.constant 0 : index
    %c0_554 = arith.constant 0 : index
    %778 = vector.load %arg9[%c0_553, %c0_554] : memref<8x72xbf16, #tpu.memory_space<vmem>>, vector<8x72xbf16>
    %cst_555 = arith.constant dense<0.000000e+00> : vector<8x32xf32>
    %779 = tpu.matmul %778, %777, %cst_555 {dimension_numbers = #tpu.dot_dimension_numbers<[1], [0], [0], [1], [0, 0, 1, 1], [], []>} : vector<8x72xbf16>, vector<72x32xbf16>, vector<8x32xf32> -> vector<8x32xf32>
    %780 = vector.broadcast %739 : vector<8x1xf32> to vector<8x32xf32>
    %781 = arith.mulf %779, %780 : vector<8x32xf32>
    %782 = vector.broadcast %740 : vector<8x1xf32> to vector<8x32xf32>
    %783 = arith.addf %781, %782 : vector<8x32xf32>
    %cst_556 = arith.constant 0.000000e+00 : f32
    %784 = vector.broadcast %cst_556 : f32 to vector<8x32xf32>
    %785 = arith.maximumf %783, %784 : vector<8x32xf32>
    %c0_557 = arith.constant 0 : index
    %c0_558 = arith.constant 0 : index
    %786 = arith.index_cast %c0_i32_525 : i32 to index
    %c0_559 = arith.constant 0 : index
    %787 = vector.load %arg12[%c0_557, %c0_558, %786, %c0_559] : memref<1x8x8x32xf32, #tpu.memory_space<vmem>>, vector<1x8x1x32xf32>
    %788 = vector.shape_cast %787 : vector<1x8x1x32xf32> to vector<8x32xf32>
    %789 = vector.shape_cast %785 : vector<8x32xf32> to vector<1x8x1x32xf32>
    tpu.vector_store %arg12[%c0_557, %c0_558, %786, %c0_559], %789 {strides = array<i32>} : memref<1x8x8x32xf32, #tpu.memory_space<vmem>>, vector<1x8x1x32xf32>,
    %c1_i32_560 = arith.constant 1 : i32
    %c0_i32_561 = arith.constant 0 : i32
    %790 = arith.addi %c1_i32_560, %c0_i32_561 : i32
    %c0_562 = arith.constant 0 : index
    %791 = arith.index_cast %790 : i32 to index
    %c0_563 = arith.constant 0 : index
    %792 = vector.load %arg14[%c0_562, %791, %c0_563] : memref<8x10x34xbf16, #tpu.memory_space<vmem>>, vector<8x1x32xbf16>
    %793 = vector.shape_cast %792 : vector<8x1x32xbf16> to vector<8x32xbf16>
    %c0_i32_564 = arith.constant 0 : i32
    %794 = arith.addi %c1_i32_560, %c0_i32_564 : i32
    %c0_565 = arith.constant 0 : index
    %795 = arith.index_cast %794 : i32 to index
    %c1_566 = arith.constant 1 : index
    %796 = vector.load %arg14[%c0_565, %795, %c1_566] : memref<8x10x34xbf16, #tpu.memory_space<vmem>>, vector<8x1x32xbf16>
    %797 = vector.shape_cast %796 : vector<8x1x32xbf16> to vector<8x32xbf16>
    %c0_i32_567 = arith.constant 0 : i32
    %798 = arith.addi %c1_i32_560, %c0_i32_567 : i32
    %c0_568 = arith.constant 0 : index
    %799 = arith.index_cast %798 : i32 to index
    %c2_569 = arith.constant 2 : index
    %800 = vector.load %arg14[%c0_568, %799, %c2_569] : memref<8x10x34xbf16, #tpu.memory_space<vmem>>, vector<8x1x32xbf16>
    %801 = vector.shape_cast %800 : vector<8x1x32xbf16> to vector<8x32xbf16>
    %c1_i32_570 = arith.constant 1 : i32
    %802 = arith.addi %c1_i32_560, %c1_i32_570 : i32
    %c0_571 = arith.constant 0 : index
    %803 = arith.index_cast %802 : i32 to index
    %c0_572 = arith.constant 0 : index
    %804 = vector.load %arg14[%c0_571, %803, %c0_572] : memref<8x10x34xbf16, #tpu.memory_space<vmem>>, vector<8x1x32xbf16>
    %805 = vector.shape_cast %804 : vector<8x1x32xbf16> to vector<8x32xbf16>
    %c1_i32_573 = arith.constant 1 : i32
    %806 = arith.addi %c1_i32_560, %c1_i32_573 : i32
    %c0_574 = arith.constant 0 : index
    %807 = arith.index_cast %806 : i32 to index
    %c1_575 = arith.constant 1 : index
    %808 = vector.load %arg14[%c0_574, %807, %c1_575] : memref<8x10x34xbf16, #tpu.memory_space<vmem>>, vector<8x1x32xbf16>
    %809 = vector.shape_cast %808 : vector<8x1x32xbf16> to vector<8x32xbf16>
    %c1_i32_576 = arith.constant 1 : i32
    %810 = arith.addi %c1_i32_560, %c1_i32_576 : i32
    %c0_577 = arith.constant 0 : index
    %811 = arith.index_cast %810 : i32 to index
    %c2_578 = arith.constant 2 : index
    %812 = vector.load %arg14[%c0_577, %811, %c2_578] : memref<8x10x34xbf16, #tpu.memory_space<vmem>>, vector<8x1x32xbf16>
    %813 = vector.shape_cast %812 : vector<8x1x32xbf16> to vector<8x32xbf16>
    %c2_i32_579 = arith.constant 2 : i32
    %814 = arith.addi %c1_i32_560, %c2_i32_579 : i32
    %c0_580 = arith.constant 0 : index
    %815 = arith.index_cast %814 : i32 to index
    %c0_581 = arith.constant 0 : index
    %816 = vector.load %arg14[%c0_580, %815, %c0_581] : memref<8x10x34xbf16, #tpu.memory_space<vmem>>, vector<8x1x32xbf16>
    %817 = vector.shape_cast %816 : vector<8x1x32xbf16> to vector<8x32xbf16>
    %c2_i32_582 = arith.constant 2 : i32
    %818 = arith.addi %c1_i32_560, %c2_i32_582 : i32
    %c0_583 = arith.constant 0 : index
    %819 = arith.index_cast %818 : i32 to index
    %c1_584 = arith.constant 1 : index
    %820 = vector.load %arg14[%c0_583, %819, %c1_584] : memref<8x10x34xbf16, #tpu.memory_space<vmem>>, vector<8x1x32xbf16>
    %821 = vector.shape_cast %820 : vector<8x1x32xbf16> to vector<8x32xbf16>
    %c2_i32_585 = arith.constant 2 : i32
    %822 = arith.addi %c1_i32_560, %c2_i32_585 : i32
    %c0_586 = arith.constant 0 : index
    %823 = arith.index_cast %822 : i32 to index
    %c2_587 = arith.constant 2 : index
    %824 = vector.load %arg14[%c0_586, %823, %c2_587] : memref<8x10x34xbf16, #tpu.memory_space<vmem>>, vector<8x1x32xbf16>
    %825 = vector.shape_cast %824 : vector<8x1x32xbf16> to vector<8x32xbf16>
    %826 = tpu.concatenate %793, %797, %801, %805, %809, %813, %817, %821, %825 in 0 : vector<8x32xbf16>, vector<8x32xbf16>, vector<8x32xbf16>, vector<8x32xbf16>, vector<8x32xbf16>, vector<8x32xbf16>, vector<8x32xbf16>, vector<8x32xbf16>, vector<8x32xbf16> -> vector<72x32xbf16>
    %c0_588 = arith.constant 0 : index
    %c0_589 = arith.constant 0 : index
    %827 = vector.load %arg9[%c0_588, %c0_589] : memref<8x72xbf16, #tpu.memory_space<vmem>>, vector<8x72xbf16>
    %cst_590 = arith.constant dense<0.000000e+00> : vector<8x32xf32>
    %828 = tpu.matmul %827, %826, %cst_590 {dimension_numbers = #tpu.dot_dimension_numbers<[1], [0], [0], [1], [0, 0, 1, 1], [], []>} : vector<8x72xbf16>, vector<72x32xbf16>, vector<8x32xf32> -> vector<8x32xf32>
    %829 = vector.broadcast %739 : vector<8x1xf32> to vector<8x32xf32>
    %830 = arith.mulf %828, %829 : vector<8x32xf32>
    %831 = vector.broadcast %740 : vector<8x1xf32> to vector<8x32xf32>
    %832 = arith.addf %830, %831 : vector<8x32xf32>
    %cst_591 = arith.constant 0.000000e+00 : f32
    %833 = vector.broadcast %cst_591 : f32 to vector<8x32xf32>
    %834 = arith.maximumf %832, %833 : vector<8x32xf32>
    %c0_592 = arith.constant 0 : index
    %c0_593 = arith.constant 0 : index
    %835 = arith.index_cast %c1_i32_560 : i32 to index
    %c0_594 = arith.constant 0 : index
    %836 = vector.load %arg12[%c0_592, %c0_593, %835, %c0_594] : memref<1x8x8x32xf32, #tpu.memory_space<vmem>>, vector<1x8x1x32xf32>
    %837 = vector.shape_cast %836 : vector<1x8x1x32xf32> to vector<8x32xf32>
    %838 = vector.shape_cast %834 : vector<8x32xf32> to vector<1x8x1x32xf32>
    tpu.vector_store %arg12[%c0_592, %c0_593, %835, %c0_594], %838 {strides = array<i32>} : memref<1x8x8x32xf32, #tpu.memory_space<vmem>>, vector<1x8x1x32xf32>,
    %c2_i32_595 = arith.constant 2 : i32
    %c0_i32_596 = arith.constant 0 : i32
    %839 = arith.addi %c2_i32_595, %c0_i32_596 : i32
    %c0_597 = arith.constant 0 : index
    %840 = arith.index_cast %839 : i32 to index
    %c0_598 = arith.constant 0 : index
    %841 = vector.load %arg14[%c0_597, %840, %c0_598] : memref<8x10x34xbf16, #tpu.memory_space<vmem>>, vector<8x1x32xbf16>
    %842 = vector.shape_cast %841 : vector<8x1x32xbf16> to vector<8x32xbf16>
    %c0_i32_599 = arith.constant 0 : i32
    %843 = arith.addi %c2_i32_595, %c0_i32_599 : i32
    %c0_600 = arith.constant 0 : index
    %844 = arith.index_cast %843 : i32 to index
    %c1_601 = arith.constant 1 : index
    %845 = vector.load %arg14[%c0_600, %844, %c1_601] : memref<8x10x34xbf16, #tpu.memory_space<vmem>>, vector<8x1x32xbf16>
    %846 = vector.shape_cast %845 : vector<8x1x32xbf16> to vector<8x32xbf16>
    %c0_i32_602 = arith.constant 0 : i32
    %847 = arith.addi %c2_i32_595, %c0_i32_602 : i32
    %c0_603 = arith.constant 0 : index
    %848 = arith.index_cast %847 : i32 to index
    %c2_604 = arith.constant 2 : index
    %849 = vector.load %arg14[%c0_603, %848, %c2_604] : memref<8x10x34xbf16, #tpu.memory_space<vmem>>, vector<8x1x32xbf16>
    %850 = vector.shape_cast %849 : vector<8x1x32xbf16> to vector<8x32xbf16>
    %c1_i32_605 = arith.constant 1 : i32
    %851 = arith.addi %c2_i32_595, %c1_i32_605 : i32
    %c0_606 = arith.constant 0 : index
    %852 = arith.index_cast %851 : i32 to index
    %c0_607 = arith.constant 0 : index
    %853 = vector.load %arg14[%c0_606, %852, %c0_607] : memref<8x10x34xbf16, #tpu.memory_space<vmem>>, vector<8x1x32xbf16>
    %854 = vector.shape_cast %853 : vector<8x1x32xbf16> to vector<8x32xbf16>
    %c1_i32_608 = arith.constant 1 : i32
    %855 = arith.addi %c2_i32_595, %c1_i32_608 : i32
    %c0_609 = arith.constant 0 : index
    %856 = arith.index_cast %855 : i32 to index
    %c1_610 = arith.constant 1 : index
    %857 = vector.load %arg14[%c0_609, %856, %c1_610] : memref<8x10x34xbf16, #tpu.memory_space<vmem>>, vector<8x1x32xbf16>
    %858 = vector.shape_cast %857 : vector<8x1x32xbf16> to vector<8x32xbf16>
    %c1_i32_611 = arith.constant 1 : i32
    %859 = arith.addi %c2_i32_595, %c1_i32_611 : i32
    %c0_612 = arith.constant 0 : index
    %860 = arith.index_cast %859 : i32 to index
    %c2_613 = arith.constant 2 : index
    %861 = vector.load %arg14[%c0_612, %860, %c2_613] : memref<8x10x34xbf16, #tpu.memory_space<vmem>>, vector<8x1x32xbf16>
    %862 = vector.shape_cast %861 : vector<8x1x32xbf16> to vector<8x32xbf16>
    %c2_i32_614 = arith.constant 2 : i32
    %863 = arith.addi %c2_i32_595, %c2_i32_614 : i32
    %c0_615 = arith.constant 0 : index
    %864 = arith.index_cast %863 : i32 to index
    %c0_616 = arith.constant 0 : index
    %865 = vector.load %arg14[%c0_615, %864, %c0_616] : memref<8x10x34xbf16, #tpu.memory_space<vmem>>, vector<8x1x32xbf16>
    %866 = vector.shape_cast %865 : vector<8x1x32xbf16> to vector<8x32xbf16>
    %c2_i32_617 = arith.constant 2 : i32
    %867 = arith.addi %c2_i32_595, %c2_i32_617 : i32
    %c0_618 = arith.constant 0 : index
    %868 = arith.index_cast %867 : i32 to index
    %c1_619 = arith.constant 1 : index
    %869 = vector.load %arg14[%c0_618, %868, %c1_619] : memref<8x10x34xbf16, #tpu.memory_space<vmem>>, vector<8x1x32xbf16>
    %870 = vector.shape_cast %869 : vector<8x1x32xbf16> to vector<8x32xbf16>
    %c2_i32_620 = arith.constant 2 : i32
    %871 = arith.addi %c2_i32_595, %c2_i32_620 : i32
    %c0_621 = arith.constant 0 : index
    %872 = arith.index_cast %871 : i32 to index
    %c2_622 = arith.constant 2 : index
    %873 = vector.load %arg14[%c0_621, %872, %c2_622] : memref<8x10x34xbf16, #tpu.memory_space<vmem>>, vector<8x1x32xbf16>
    %874 = vector.shape_cast %873 : vector<8x1x32xbf16> to vector<8x32xbf16>
    %875 = tpu.concatenate %842, %846, %850, %854, %858, %862, %866, %870, %874 in 0 : vector<8x32xbf16>, vector<8x32xbf16>, vector<8x32xbf16>, vector<8x32xbf16>, vector<8x32xbf16>, vector<8x32xbf16>, vector<8x32xbf16>, vector<8x32xbf16>, vector<8x32xbf16> -> vector<72x32xbf16>
    %c0_623 = arith.constant 0 : index
    %c0_624 = arith.constant 0 : index
    %876 = vector.load %arg9[%c0_623, %c0_624] : memref<8x72xbf16, #tpu.memory_space<vmem>>, vector<8x72xbf16>
    %cst_625 = arith.constant dense<0.000000e+00> : vector<8x32xf32>
    %877 = tpu.matmul %876, %875, %cst_625 {dimension_numbers = #tpu.dot_dimension_numbers<[1], [0], [0], [1], [0, 0, 1, 1], [], []>} : vector<8x72xbf16>, vector<72x32xbf16>, vector<8x32xf32> -> vector<8x32xf32>
    %878 = vector.broadcast %739 : vector<8x1xf32> to vector<8x32xf32>
    %879 = arith.mulf %877, %878 : vector<8x32xf32>
    %880 = vector.broadcast %740 : vector<8x1xf32> to vector<8x32xf32>
    %881 = arith.addf %879, %880 : vector<8x32xf32>
    %cst_626 = arith.constant 0.000000e+00 : f32
    %882 = vector.broadcast %cst_626 : f32 to vector<8x32xf32>
    %883 = arith.maximumf %881, %882 : vector<8x32xf32>
    %c0_627 = arith.constant 0 : index
    %c0_628 = arith.constant 0 : index
    %884 = arith.index_cast %c2_i32_595 : i32 to index
    %c0_629 = arith.constant 0 : index
    %885 = vector.load %arg12[%c0_627, %c0_628, %884, %c0_629] : memref<1x8x8x32xf32, #tpu.memory_space<vmem>>, vector<1x8x1x32xf32>
    %886 = vector.shape_cast %885 : vector<1x8x1x32xf32> to vector<8x32xf32>
    %887 = vector.shape_cast %883 : vector<8x32xf32> to vector<1x8x1x32xf32>
    tpu.vector_store %arg12[%c0_627, %c0_628, %884, %c0_629], %887 {strides = array<i32>} : memref<1x8x8x32xf32, #tpu.memory_space<vmem>>, vector<1x8x1x32xf32>,
    %c3_i32_630 = arith.constant 3 : i32
    %c0_i32_631 = arith.constant 0 : i32
    %888 = arith.addi %c3_i32_630, %c0_i32_631 : i32
    %c0_632 = arith.constant 0 : index
    %889 = arith.index_cast %888 : i32 to index
    %c0_633 = arith.constant 0 : index
    %890 = vector.load %arg14[%c0_632, %889, %c0_633] : memref<8x10x34xbf16, #tpu.memory_space<vmem>>, vector<8x1x32xbf16>
    %891 = vector.shape_cast %890 : vector<8x1x32xbf16> to vector<8x32xbf16>
    %c0_i32_634 = arith.constant 0 : i32
    %892 = arith.addi %c3_i32_630, %c0_i32_634 : i32
    %c0_635 = arith.constant 0 : index
    %893 = arith.index_cast %892 : i32 to index
    %c1_636 = arith.constant 1 : index
    %894 = vector.load %arg14[%c0_635, %893, %c1_636] : memref<8x10x34xbf16, #tpu.memory_space<vmem>>, vector<8x1x32xbf16>
    %895 = vector.shape_cast %894 : vector<8x1x32xbf16> to vector<8x32xbf16>
    %c0_i32_637 = arith.constant 0 : i32
    %896 = arith.addi %c3_i32_630, %c0_i32_637 : i32
    %c0_638 = arith.constant 0 : index
    %897 = arith.index_cast %896 : i32 to index
    %c2_639 = arith.constant 2 : index
    %898 = vector.load %arg14[%c0_638, %897, %c2_639] : memref<8x10x34xbf16, #tpu.memory_space<vmem>>, vector<8x1x32xbf16>
    %899 = vector.shape_cast %898 : vector<8x1x32xbf16> to vector<8x32xbf16>
    %c1_i32_640 = arith.constant 1 : i32
    %900 = arith.addi %c3_i32_630, %c1_i32_640 : i32
    %c0_641 = arith.constant 0 : index
    %901 = arith.index_cast %900 : i32 to index
    %c0_642 = arith.constant 0 : index
    %902 = vector.load %arg14[%c0_641, %901, %c0_642] : memref<8x10x34xbf16, #tpu.memory_space<vmem>>, vector<8x1x32xbf16>
    %903 = vector.shape_cast %902 : vector<8x1x32xbf16> to vector<8x32xbf16>
    %c1_i32_643 = arith.constant 1 : i32
    %904 = arith.addi %c3_i32_630, %c1_i32_643 : i32
    %c0_644 = arith.constant 0 : index
    %905 = arith.index_cast %904 : i32 to index
    %c1_645 = arith.constant 1 : index
    %906 = vector.load %arg14[%c0_644, %905, %c1_645] : memref<8x10x34xbf16, #tpu.memory_space<vmem>>, vector<8x1x32xbf16>
    %907 = vector.shape_cast %906 : vector<8x1x32xbf16> to vector<8x32xbf16>
    %c1_i32_646 = arith.constant 1 : i32
    %908 = arith.addi %c3_i32_630, %c1_i32_646 : i32
    %c0_647 = arith.constant 0 : index
    %909 = arith.index_cast %908 : i32 to index
    %c2_648 = arith.constant 2 : index
    %910 = vector.load %arg14[%c0_647, %909, %c2_648] : memref<8x10x34xbf16, #tpu.memory_space<vmem>>, vector<8x1x32xbf16>
    %911 = vector.shape_cast %910 : vector<8x1x32xbf16> to vector<8x32xbf16>
    %c2_i32_649 = arith.constant 2 : i32
    %912 = arith.addi %c3_i32_630, %c2_i32_649 : i32
    %c0_650 = arith.constant 0 : index
    %913 = arith.index_cast %912 : i32 to index
    %c0_651 = arith.constant 0 : index
    %914 = vector.load %arg14[%c0_650, %913, %c0_651] : memref<8x10x34xbf16, #tpu.memory_space<vmem>>, vector<8x1x32xbf16>
    %915 = vector.shape_cast %914 : vector<8x1x32xbf16> to vector<8x32xbf16>
    %c2_i32_652 = arith.constant 2 : i32
    %916 = arith.addi %c3_i32_630, %c2_i32_652 : i32
    %c0_653 = arith.constant 0 : index
    %917 = arith.index_cast %916 : i32 to index
    %c1_654 = arith.constant 1 : index
    %918 = vector.load %arg14[%c0_653, %917, %c1_654] : memref<8x10x34xbf16, #tpu.memory_space<vmem>>, vector<8x1x32xbf16>
    %919 = vector.shape_cast %918 : vector<8x1x32xbf16> to vector<8x32xbf16>
    %c2_i32_655 = arith.constant 2 : i32
    %920 = arith.addi %c3_i32_630, %c2_i32_655 : i32
    %c0_656 = arith.constant 0 : index
    %921 = arith.index_cast %920 : i32 to index
    %c2_657 = arith.constant 2 : index
    %922 = vector.load %arg14[%c0_656, %921, %c2_657] : memref<8x10x34xbf16, #tpu.memory_space<vmem>>, vector<8x1x32xbf16>
    %923 = vector.shape_cast %922 : vector<8x1x32xbf16> to vector<8x32xbf16>
    %924 = tpu.concatenate %891, %895, %899, %903, %907, %911, %915, %919, %923 in 0 : vector<8x32xbf16>, vector<8x32xbf16>, vector<8x32xbf16>, vector<8x32xbf16>, vector<8x32xbf16>, vector<8x32xbf16>, vector<8x32xbf16>, vector<8x32xbf16>, vector<8x32xbf16> -> vector<72x32xbf16>
    %c0_658 = arith.constant 0 : index
    %c0_659 = arith.constant 0 : index
    %925 = vector.load %arg9[%c0_658, %c0_659] : memref<8x72xbf16, #tpu.memory_space<vmem>>, vector<8x72xbf16>
    %cst_660 = arith.constant dense<0.000000e+00> : vector<8x32xf32>
    %926 = tpu.matmul %925, %924, %cst_660 {dimension_numbers = #tpu.dot_dimension_numbers<[1], [0], [0], [1], [0, 0, 1, 1], [], []>} : vector<8x72xbf16>, vector<72x32xbf16>, vector<8x32xf32> -> vector<8x32xf32>
    %927 = vector.broadcast %739 : vector<8x1xf32> to vector<8x32xf32>
    %928 = arith.mulf %926, %927 : vector<8x32xf32>
    %929 = vector.broadcast %740 : vector<8x1xf32> to vector<8x32xf32>
    %930 = arith.addf %928, %929 : vector<8x32xf32>
    %cst_661 = arith.constant 0.000000e+00 : f32
    %931 = vector.broadcast %cst_661 : f32 to vector<8x32xf32>
    %932 = arith.maximumf %930, %931 : vector<8x32xf32>
    %c0_662 = arith.constant 0 : index
    %c0_663 = arith.constant 0 : index
    %933 = arith.index_cast %c3_i32_630 : i32 to index
    %c0_664 = arith.constant 0 : index
    %934 = vector.load %arg12[%c0_662, %c0_663, %933, %c0_664] : memref<1x8x8x32xf32, #tpu.memory_space<vmem>>, vector<1x8x1x32xf32>
    %935 = vector.shape_cast %934 : vector<1x8x1x32xf32> to vector<8x32xf32>
    %936 = vector.shape_cast %932 : vector<8x32xf32> to vector<1x8x1x32xf32>
    tpu.vector_store %arg12[%c0_662, %c0_663, %933, %c0_664], %936 {strides = array<i32>} : memref<1x8x8x32xf32, #tpu.memory_space<vmem>>, vector<1x8x1x32xf32>,
    %c4_i32_665 = arith.constant 4 : i32
    %c0_i32_666 = arith.constant 0 : i32
    %937 = arith.addi %c4_i32_665, %c0_i32_666 : i32
    %c0_667 = arith.constant 0 : index
    %938 = arith.index_cast %937 : i32 to index
    %c0_668 = arith.constant 0 : index
    %939 = vector.load %arg14[%c0_667, %938, %c0_668] : memref<8x10x34xbf16, #tpu.memory_space<vmem>>, vector<8x1x32xbf16>
    %940 = vector.shape_cast %939 : vector<8x1x32xbf16> to vector<8x32xbf16>
    %c0_i32_669 = arith.constant 0 : i32
    %941 = arith.addi %c4_i32_665, %c0_i32_669 : i32
    %c0_670 = arith.constant 0 : index
    %942 = arith.index_cast %941 : i32 to index
    %c1_671 = arith.constant 1 : index
    %943 = vector.load %arg14[%c0_670, %942, %c1_671] : memref<8x10x34xbf16, #tpu.memory_space<vmem>>, vector<8x1x32xbf16>
    %944 = vector.shape_cast %943 : vector<8x1x32xbf16> to vector<8x32xbf16>
    %c0_i32_672 = arith.constant 0 : i32
    %945 = arith.addi %c4_i32_665, %c0_i32_672 : i32
    %c0_673 = arith.constant 0 : index
    %946 = arith.index_cast %945 : i32 to index
    %c2_674 = arith.constant 2 : index
    %947 = vector.load %arg14[%c0_673, %946, %c2_674] : memref<8x10x34xbf16, #tpu.memory_space<vmem>>, vector<8x1x32xbf16>
    %948 = vector.shape_cast %947 : vector<8x1x32xbf16> to vector<8x32xbf16>
    %c1_i32_675 = arith.constant 1 : i32
    %949 = arith.addi %c4_i32_665, %c1_i32_675 : i32
    %c0_676 = arith.constant 0 : index
    %950 = arith.index_cast %949 : i32 to index
    %c0_677 = arith.constant 0 : index
    %951 = vector.load %arg14[%c0_676, %950, %c0_677] : memref<8x10x34xbf16, #tpu.memory_space<vmem>>, vector<8x1x32xbf16>
    %952 = vector.shape_cast %951 : vector<8x1x32xbf16> to vector<8x32xbf16>
    %c1_i32_678 = arith.constant 1 : i32
    %953 = arith.addi %c4_i32_665, %c1_i32_678 : i32
    %c0_679 = arith.constant 0 : index
    %954 = arith.index_cast %953 : i32 to index
    %c1_680 = arith.constant 1 : index
    %955 = vector.load %arg14[%c0_679, %954, %c1_680] : memref<8x10x34xbf16, #tpu.memory_space<vmem>>, vector<8x1x32xbf16>
    %956 = vector.shape_cast %955 : vector<8x1x32xbf16> to vector<8x32xbf16>
    %c1_i32_681 = arith.constant 1 : i32
    %957 = arith.addi %c4_i32_665, %c1_i32_681 : i32
    %c0_682 = arith.constant 0 : index
    %958 = arith.index_cast %957 : i32 to index
    %c2_683 = arith.constant 2 : index
    %959 = vector.load %arg14[%c0_682, %958, %c2_683] : memref<8x10x34xbf16, #tpu.memory_space<vmem>>, vector<8x1x32xbf16>
    %960 = vector.shape_cast %959 : vector<8x1x32xbf16> to vector<8x32xbf16>
    %c2_i32_684 = arith.constant 2 : i32
    %961 = arith.addi %c4_i32_665, %c2_i32_684 : i32
    %c0_685 = arith.constant 0 : index
    %962 = arith.index_cast %961 : i32 to index
    %c0_686 = arith.constant 0 : index
    %963 = vector.load %arg14[%c0_685, %962, %c0_686] : memref<8x10x34xbf16, #tpu.memory_space<vmem>>, vector<8x1x32xbf16>
    %964 = vector.shape_cast %963 : vector<8x1x32xbf16> to vector<8x32xbf16>
    %c2_i32_687 = arith.constant 2 : i32
    %965 = arith.addi %c4_i32_665, %c2_i32_687 : i32
    %c0_688 = arith.constant 0 : index
    %966 = arith.index_cast %965 : i32 to index
    %c1_689 = arith.constant 1 : index
    %967 = vector.load %arg14[%c0_688, %966, %c1_689] : memref<8x10x34xbf16, #tpu.memory_space<vmem>>, vector<8x1x32xbf16>
    %968 = vector.shape_cast %967 : vector<8x1x32xbf16> to vector<8x32xbf16>
    %c2_i32_690 = arith.constant 2 : i32
    %969 = arith.addi %c4_i32_665, %c2_i32_690 : i32
    %c0_691 = arith.constant 0 : index
    %970 = arith.index_cast %969 : i32 to index
    %c2_692 = arith.constant 2 : index
    %971 = vector.load %arg14[%c0_691, %970, %c2_692] : memref<8x10x34xbf16, #tpu.memory_space<vmem>>, vector<8x1x32xbf16>
    %972 = vector.shape_cast %971 : vector<8x1x32xbf16> to vector<8x32xbf16>
    %973 = tpu.concatenate %940, %944, %948, %952, %956, %960, %964, %968, %972 in 0 : vector<8x32xbf16>, vector<8x32xbf16>, vector<8x32xbf16>, vector<8x32xbf16>, vector<8x32xbf16>, vector<8x32xbf16>, vector<8x32xbf16>, vector<8x32xbf16>, vector<8x32xbf16> -> vector<72x32xbf16>
    %c0_693 = arith.constant 0 : index
    %c0_694 = arith.constant 0 : index
    %974 = vector.load %arg9[%c0_693, %c0_694] : memref<8x72xbf16, #tpu.memory_space<vmem>>, vector<8x72xbf16>
    %cst_695 = arith.constant dense<0.000000e+00> : vector<8x32xf32>
    %975 = tpu.matmul %974, %973, %cst_695 {dimension_numbers = #tpu.dot_dimension_numbers<[1], [0], [0], [1], [0, 0, 1, 1], [], []>} : vector<8x72xbf16>, vector<72x32xbf16>, vector<8x32xf32> -> vector<8x32xf32>
    %976 = vector.broadcast %739 : vector<8x1xf32> to vector<8x32xf32>
    %977 = arith.mulf %975, %976 : vector<8x32xf32>
    %978 = vector.broadcast %740 : vector<8x1xf32> to vector<8x32xf32>
    %979 = arith.addf %977, %978 : vector<8x32xf32>
    %cst_696 = arith.constant 0.000000e+00 : f32
    %980 = vector.broadcast %cst_696 : f32 to vector<8x32xf32>
    %981 = arith.maximumf %979, %980 : vector<8x32xf32>
    %c0_697 = arith.constant 0 : index
    %c0_698 = arith.constant 0 : index
    %982 = arith.index_cast %c4_i32_665 : i32 to index
    %c0_699 = arith.constant 0 : index
    %983 = vector.load %arg12[%c0_697, %c0_698, %982, %c0_699] : memref<1x8x8x32xf32, #tpu.memory_space<vmem>>, vector<1x8x1x32xf32>
    %984 = vector.shape_cast %983 : vector<1x8x1x32xf32> to vector<8x32xf32>
    %985 = vector.shape_cast %981 : vector<8x32xf32> to vector<1x8x1x32xf32>
    tpu.vector_store %arg12[%c0_697, %c0_698, %982, %c0_699], %985 {strides = array<i32>} : memref<1x8x8x32xf32, #tpu.memory_space<vmem>>, vector<1x8x1x32xf32>,
    %c5_i32_700 = arith.constant 5 : i32
    %c0_i32_701 = arith.constant 0 : i32
    %986 = arith.addi %c5_i32_700, %c0_i32_701 : i32
    %c0_702 = arith.constant 0 : index
    %987 = arith.index_cast %986 : i32 to index
    %c0_703 = arith.constant 0 : index
    %988 = vector.load %arg14[%c0_702, %987, %c0_703] : memref<8x10x34xbf16, #tpu.memory_space<vmem>>, vector<8x1x32xbf16>
    %989 = vector.shape_cast %988 : vector<8x1x32xbf16> to vector<8x32xbf16>
    %c0_i32_704 = arith.constant 0 : i32
    %990 = arith.addi %c5_i32_700, %c0_i32_704 : i32
    %c0_705 = arith.constant 0 : index
    %991 = arith.index_cast %990 : i32 to index
    %c1_706 = arith.constant 1 : index
    %992 = vector.load %arg14[%c0_705, %991, %c1_706] : memref<8x10x34xbf16, #tpu.memory_space<vmem>>, vector<8x1x32xbf16>
    %993 = vector.shape_cast %992 : vector<8x1x32xbf16> to vector<8x32xbf16>
    %c0_i32_707 = arith.constant 0 : i32
    %994 = arith.addi %c5_i32_700, %c0_i32_707 : i32
    %c0_708 = arith.constant 0 : index
    %995 = arith.index_cast %994 : i32 to index
    %c2_709 = arith.constant 2 : index
    %996 = vector.load %arg14[%c0_708, %995, %c2_709] : memref<8x10x34xbf16, #tpu.memory_space<vmem>>, vector<8x1x32xbf16>
    %997 = vector.shape_cast %996 : vector<8x1x32xbf16> to vector<8x32xbf16>
    %c1_i32_710 = arith.constant 1 : i32
    %998 = arith.addi %c5_i32_700, %c1_i32_710 : i32
    %c0_711 = arith.constant 0 : index
    %999 = arith.index_cast %998 : i32 to index
    %c0_712 = arith.constant 0 : index
    %1000 = vector.load %arg14[%c0_711, %999, %c0_712] : memref<8x10x34xbf16, #tpu.memory_space<vmem>>, vector<8x1x32xbf16>
    %1001 = vector.shape_cast %1000 : vector<8x1x32xbf16> to vector<8x32xbf16>
    %c1_i32_713 = arith.constant 1 : i32
    %1002 = arith.addi %c5_i32_700, %c1_i32_713 : i32
    %c0_714 = arith.constant 0 : index
    %1003 = arith.index_cast %1002 : i32 to index
    %c1_715 = arith.constant 1 : index
    %1004 = vector.load %arg14[%c0_714, %1003, %c1_715] : memref<8x10x34xbf16, #tpu.memory_space<vmem>>, vector<8x1x32xbf16>
    %1005 = vector.shape_cast %1004 : vector<8x1x32xbf16> to vector<8x32xbf16>
    %c1_i32_716 = arith.constant 1 : i32
    %1006 = arith.addi %c5_i32_700, %c1_i32_716 : i32
    %c0_717 = arith.constant 0 : index
    %1007 = arith.index_cast %1006 : i32 to index
    %c2_718 = arith.constant 2 : index
    %1008 = vector.load %arg14[%c0_717, %1007, %c2_718] : memref<8x10x34xbf16, #tpu.memory_space<vmem>>, vector<8x1x32xbf16>
    %1009 = vector.shape_cast %1008 : vector<8x1x32xbf16> to vector<8x32xbf16>
    %c2_i32_719 = arith.constant 2 : i32
    %1010 = arith.addi %c5_i32_700, %c2_i32_719 : i32
    %c0_720 = arith.constant 0 : index
    %1011 = arith.index_cast %1010 : i32 to index
    %c0_721 = arith.constant 0 : index
    %1012 = vector.load %arg14[%c0_720, %1011, %c0_721] : memref<8x10x34xbf16, #tpu.memory_space<vmem>>, vector<8x1x32xbf16>
    %1013 = vector.shape_cast %1012 : vector<8x1x32xbf16> to vector<8x32xbf16>
    %c2_i32_722 = arith.constant 2 : i32
    %1014 = arith.addi %c5_i32_700, %c2_i32_722 : i32
    %c0_723 = arith.constant 0 : index
    %1015 = arith.index_cast %1014 : i32 to index
    %c1_724 = arith.constant 1 : index
    %1016 = vector.load %arg14[%c0_723, %1015, %c1_724] : memref<8x10x34xbf16, #tpu.memory_space<vmem>>, vector<8x1x32xbf16>
    %1017 = vector.shape_cast %1016 : vector<8x1x32xbf16> to vector<8x32xbf16>
    %c2_i32_725 = arith.constant 2 : i32
    %1018 = arith.addi %c5_i32_700, %c2_i32_725 : i32
    %c0_726 = arith.constant 0 : index
    %1019 = arith.index_cast %1018 : i32 to index
    %c2_727 = arith.constant 2 : index
    %1020 = vector.load %arg14[%c0_726, %1019, %c2_727] : memref<8x10x34xbf16, #tpu.memory_space<vmem>>, vector<8x1x32xbf16>
    %1021 = vector.shape_cast %1020 : vector<8x1x32xbf16> to vector<8x32xbf16>
    %1022 = tpu.concatenate %989, %993, %997, %1001, %1005, %1009, %1013, %1017, %1021 in 0 : vector<8x32xbf16>, vector<8x32xbf16>, vector<8x32xbf16>, vector<8x32xbf16>, vector<8x32xbf16>, vector<8x32xbf16>, vector<8x32xbf16>, vector<8x32xbf16>, vector<8x32xbf16> -> vector<72x32xbf16>
    %c0_728 = arith.constant 0 : index
    %c0_729 = arith.constant 0 : index
    %1023 = vector.load %arg9[%c0_728, %c0_729] : memref<8x72xbf16, #tpu.memory_space<vmem>>, vector<8x72xbf16>
    %cst_730 = arith.constant dense<0.000000e+00> : vector<8x32xf32>
    %1024 = tpu.matmul %1023, %1022, %cst_730 {dimension_numbers = #tpu.dot_dimension_numbers<[1], [0], [0], [1], [0, 0, 1, 1], [], []>} : vector<8x72xbf16>, vector<72x32xbf16>, vector<8x32xf32> -> vector<8x32xf32>
    %1025 = vector.broadcast %739 : vector<8x1xf32> to vector<8x32xf32>
    %1026 = arith.mulf %1024, %1025 : vector<8x32xf32>
    %1027 = vector.broadcast %740 : vector<8x1xf32> to vector<8x32xf32>
    %1028 = arith.addf %1026, %1027 : vector<8x32xf32>
    %cst_731 = arith.constant 0.000000e+00 : f32
    %1029 = vector.broadcast %cst_731 : f32 to vector<8x32xf32>
    %1030 = arith.maximumf %1028, %1029 : vector<8x32xf32>
    %c0_732 = arith.constant 0 : index
    %c0_733 = arith.constant 0 : index
    %1031 = arith.index_cast %c5_i32_700 : i32 to index
    %c0_734 = arith.constant 0 : index
    %1032 = vector.load %arg12[%c0_732, %c0_733, %1031, %c0_734] : memref<1x8x8x32xf32, #tpu.memory_space<vmem>>, vector<1x8x1x32xf32>
    %1033 = vector.shape_cast %1032 : vector<1x8x1x32xf32> to vector<8x32xf32>
    %1034 = vector.shape_cast %1030 : vector<8x32xf32> to vector<1x8x1x32xf32>
    tpu.vector_store %arg12[%c0_732, %c0_733, %1031, %c0_734], %1034 {strides = array<i32>} : memref<1x8x8x32xf32, #tpu.memory_space<vmem>>, vector<1x8x1x32xf32>,
    %c6_i32_735 = arith.constant 6 : i32
    %c0_i32_736 = arith.constant 0 : i32
    %1035 = arith.addi %c6_i32_735, %c0_i32_736 : i32
    %c0_737 = arith.constant 0 : index
    %1036 = arith.index_cast %1035 : i32 to index
    %c0_738 = arith.constant 0 : index
    %1037 = vector.load %arg14[%c0_737, %1036, %c0_738] : memref<8x10x34xbf16, #tpu.memory_space<vmem>>, vector<8x1x32xbf16>
    %1038 = vector.shape_cast %1037 : vector<8x1x32xbf16> to vector<8x32xbf16>
    %c0_i32_739 = arith.constant 0 : i32
    %1039 = arith.addi %c6_i32_735, %c0_i32_739 : i32
    %c0_740 = arith.constant 0 : index
    %1040 = arith.index_cast %1039 : i32 to index
    %c1_741 = arith.constant 1 : index
    %1041 = vector.load %arg14[%c0_740, %1040, %c1_741] : memref<8x10x34xbf16, #tpu.memory_space<vmem>>, vector<8x1x32xbf16>
    %1042 = vector.shape_cast %1041 : vector<8x1x32xbf16> to vector<8x32xbf16>
    %c0_i32_742 = arith.constant 0 : i32
    %1043 = arith.addi %c6_i32_735, %c0_i32_742 : i32
    %c0_743 = arith.constant 0 : index
    %1044 = arith.index_cast %1043 : i32 to index
    %c2_744 = arith.constant 2 : index
    %1045 = vector.load %arg14[%c0_743, %1044, %c2_744] : memref<8x10x34xbf16, #tpu.memory_space<vmem>>, vector<8x1x32xbf16>
    %1046 = vector.shape_cast %1045 : vector<8x1x32xbf16> to vector<8x32xbf16>
    %c1_i32_745 = arith.constant 1 : i32
    %1047 = arith.addi %c6_i32_735, %c1_i32_745 : i32
    %c0_746 = arith.constant 0 : index
    %1048 = arith.index_cast %1047 : i32 to index
    %c0_747 = arith.constant 0 : index
    %1049 = vector.load %arg14[%c0_746, %1048, %c0_747] : memref<8x10x34xbf16, #tpu.memory_space<vmem>>, vector<8x1x32xbf16>
    %1050 = vector.shape_cast %1049 : vector<8x1x32xbf16> to vector<8x32xbf16>
    %c1_i32_748 = arith.constant 1 : i32
    %1051 = arith.addi %c6_i32_735, %c1_i32_748 : i32
    %c0_749 = arith.constant 0 : index
    %1052 = arith.index_cast %1051 : i32 to index
    %c1_750 = arith.constant 1 : index
    %1053 = vector.load %arg14[%c0_749, %1052, %c1_750] : memref<8x10x34xbf16, #tpu.memory_space<vmem>>, vector<8x1x32xbf16>
    %1054 = vector.shape_cast %1053 : vector<8x1x32xbf16> to vector<8x32xbf16>
    %c1_i32_751 = arith.constant 1 : i32
    %1055 = arith.addi %c6_i32_735, %c1_i32_751 : i32
    %c0_752 = arith.constant 0 : index
    %1056 = arith.index_cast %1055 : i32 to index
    %c2_753 = arith.constant 2 : index
    %1057 = vector.load %arg14[%c0_752, %1056, %c2_753] : memref<8x10x34xbf16, #tpu.memory_space<vmem>>, vector<8x1x32xbf16>
    %1058 = vector.shape_cast %1057 : vector<8x1x32xbf16> to vector<8x32xbf16>
    %c2_i32_754 = arith.constant 2 : i32
    %1059 = arith.addi %c6_i32_735, %c2_i32_754 : i32
    %c0_755 = arith.constant 0 : index
    %1060 = arith.index_cast %1059 : i32 to index
    %c0_756 = arith.constant 0 : index
    %1061 = vector.load %arg14[%c0_755, %1060, %c0_756] : memref<8x10x34xbf16, #tpu.memory_space<vmem>>, vector<8x1x32xbf16>
    %1062 = vector.shape_cast %1061 : vector<8x1x32xbf16> to vector<8x32xbf16>
    %c2_i32_757 = arith.constant 2 : i32
    %1063 = arith.addi %c6_i32_735, %c2_i32_757 : i32
    %c0_758 = arith.constant 0 : index
    %1064 = arith.index_cast %1063 : i32 to index
    %c1_759 = arith.constant 1 : index
    %1065 = vector.load %arg14[%c0_758, %1064, %c1_759] : memref<8x10x34xbf16, #tpu.memory_space<vmem>>, vector<8x1x32xbf16>
    %1066 = vector.shape_cast %1065 : vector<8x1x32xbf16> to vector<8x32xbf16>
    %c2_i32_760 = arith.constant 2 : i32
    %1067 = arith.addi %c6_i32_735, %c2_i32_760 : i32
    %c0_761 = arith.constant 0 : index
    %1068 = arith.index_cast %1067 : i32 to index
    %c2_762 = arith.constant 2 : index
    %1069 = vector.load %arg14[%c0_761, %1068, %c2_762] : memref<8x10x34xbf16, #tpu.memory_space<vmem>>, vector<8x1x32xbf16>
    %1070 = vector.shape_cast %1069 : vector<8x1x32xbf16> to vector<8x32xbf16>
    %1071 = tpu.concatenate %1038, %1042, %1046, %1050, %1054, %1058, %1062, %1066, %1070 in 0 : vector<8x32xbf16>, vector<8x32xbf16>, vector<8x32xbf16>, vector<8x32xbf16>, vector<8x32xbf16>, vector<8x32xbf16>, vector<8x32xbf16>, vector<8x32xbf16>, vector<8x32xbf16> -> vector<72x32xbf16>
    %c0_763 = arith.constant 0 : index
    %c0_764 = arith.constant 0 : index
    %1072 = vector.load %arg9[%c0_763, %c0_764] : memref<8x72xbf16, #tpu.memory_space<vmem>>, vector<8x72xbf16>
    %cst_765 = arith.constant dense<0.000000e+00> : vector<8x32xf32>
    %1073 = tpu.matmul %1072, %1071, %cst_765 {dimension_numbers = #tpu.dot_dimension_numbers<[1], [0], [0], [1], [0, 0, 1, 1], [], []>} : vector<8x72xbf16>, vector<72x32xbf16>, vector<8x32xf32> -> vector<8x32xf32>
    %1074 = vector.broadcast %739 : vector<8x1xf32> to vector<8x32xf32>
    %1075 = arith.mulf %1073, %1074 : vector<8x32xf32>
    %1076 = vector.broadcast %740 : vector<8x1xf32> to vector<8x32xf32>
    %1077 = arith.addf %1075, %1076 : vector<8x32xf32>
    %cst_766 = arith.constant 0.000000e+00 : f32
    %1078 = vector.broadcast %cst_766 : f32 to vector<8x32xf32>
    %1079 = arith.maximumf %1077, %1078 : vector<8x32xf32>
    %c0_767 = arith.constant 0 : index
    %c0_768 = arith.constant 0 : index
    %1080 = arith.index_cast %c6_i32_735 : i32 to index
    %c0_769 = arith.constant 0 : index
    %1081 = vector.load %arg12[%c0_767, %c0_768, %1080, %c0_769] : memref<1x8x8x32xf32, #tpu.memory_space<vmem>>, vector<1x8x1x32xf32>
    %1082 = vector.shape_cast %1081 : vector<1x8x1x32xf32> to vector<8x32xf32>
    %1083 = vector.shape_cast %1079 : vector<8x32xf32> to vector<1x8x1x32xf32>
    tpu.vector_store %arg12[%c0_767, %c0_768, %1080, %c0_769], %1083 {strides = array<i32>} : memref<1x8x8x32xf32, #tpu.memory_space<vmem>>, vector<1x8x1x32xf32>,
    %c7_i32_770 = arith.constant 7 : i32
    %c0_i32_771 = arith.constant 0 : i32
    %1084 = arith.addi %c7_i32_770, %c0_i32_771 : i32
    %c0_772 = arith.constant 0 : index
    %1085 = arith.index_cast %1084 : i32 to index
    %c0_773 = arith.constant 0 : index
    %1086 = vector.load %arg14[%c0_772, %1085, %c0_773] : memref<8x10x34xbf16, #tpu.memory_space<vmem>>, vector<8x1x32xbf16>
    %1087 = vector.shape_cast %1086 : vector<8x1x32xbf16> to vector<8x32xbf16>
    %c0_i32_774 = arith.constant 0 : i32
    %1088 = arith.addi %c7_i32_770, %c0_i32_774 : i32
    %c0_775 = arith.constant 0 : index
    %1089 = arith.index_cast %1088 : i32 to index
    %c1_776 = arith.constant 1 : index
    %1090 = vector.load %arg14[%c0_775, %1089, %c1_776] : memref<8x10x34xbf16, #tpu.memory_space<vmem>>, vector<8x1x32xbf16>
    %1091 = vector.shape_cast %1090 : vector<8x1x32xbf16> to vector<8x32xbf16>
    %c0_i32_777 = arith.constant 0 : i32
    %1092 = arith.addi %c7_i32_770, %c0_i32_777 : i32
    %c0_778 = arith.constant 0 : index
    %1093 = arith.index_cast %1092 : i32 to index
    %c2_779 = arith.constant 2 : index
    %1094 = vector.load %arg14[%c0_778, %1093, %c2_779] : memref<8x10x34xbf16, #tpu.memory_space<vmem>>, vector<8x1x32xbf16>
    %1095 = vector.shape_cast %1094 : vector<8x1x32xbf16> to vector<8x32xbf16>
    %c1_i32_780 = arith.constant 1 : i32
    %1096 = arith.addi %c7_i32_770, %c1_i32_780 : i32
    %c0_781 = arith.constant 0 : index
    %1097 = arith.index_cast %1096 : i32 to index
    %c0_782 = arith.constant 0 : index
    %1098 = vector.load %arg14[%c0_781, %1097, %c0_782] : memref<8x10x34xbf16, #tpu.memory_space<vmem>>, vector<8x1x32xbf16>
    %1099 = vector.shape_cast %1098 : vector<8x1x32xbf16> to vector<8x32xbf16>
    %c1_i32_783 = arith.constant 1 : i32
    %1100 = arith.addi %c7_i32_770, %c1_i32_783 : i32
    %c0_784 = arith.constant 0 : index
    %1101 = arith.index_cast %1100 : i32 to index
    %c1_785 = arith.constant 1 : index
    %1102 = vector.load %arg14[%c0_784, %1101, %c1_785] : memref<8x10x34xbf16, #tpu.memory_space<vmem>>, vector<8x1x32xbf16>
    %1103 = vector.shape_cast %1102 : vector<8x1x32xbf16> to vector<8x32xbf16>
    %c1_i32_786 = arith.constant 1 : i32
    %1104 = arith.addi %c7_i32_770, %c1_i32_786 : i32
    %c0_787 = arith.constant 0 : index
    %1105 = arith.index_cast %1104 : i32 to index
    %c2_788 = arith.constant 2 : index
    %1106 = vector.load %arg14[%c0_787, %1105, %c2_788] : memref<8x10x34xbf16, #tpu.memory_space<vmem>>, vector<8x1x32xbf16>
    %1107 = vector.shape_cast %1106 : vector<8x1x32xbf16> to vector<8x32xbf16>
    %c2_i32_789 = arith.constant 2 : i32
    %1108 = arith.addi %c7_i32_770, %c2_i32_789 : i32
    %c0_790 = arith.constant 0 : index
    %1109 = arith.index_cast %1108 : i32 to index
    %c0_791 = arith.constant 0 : index
    %1110 = vector.load %arg14[%c0_790, %1109, %c0_791] : memref<8x10x34xbf16, #tpu.memory_space<vmem>>, vector<8x1x32xbf16>
    %1111 = vector.shape_cast %1110 : vector<8x1x32xbf16> to vector<8x32xbf16>
    %c2_i32_792 = arith.constant 2 : i32
    %1112 = arith.addi %c7_i32_770, %c2_i32_792 : i32
    %c0_793 = arith.constant 0 : index
    %1113 = arith.index_cast %1112 : i32 to index
    %c1_794 = arith.constant 1 : index
    %1114 = vector.load %arg14[%c0_793, %1113, %c1_794] : memref<8x10x34xbf16, #tpu.memory_space<vmem>>, vector<8x1x32xbf16>
    %1115 = vector.shape_cast %1114 : vector<8x1x32xbf16> to vector<8x32xbf16>
    %c2_i32_795 = arith.constant 2 : i32
    %1116 = arith.addi %c7_i32_770, %c2_i32_795 : i32
    %c0_796 = arith.constant 0 : index
    %1117 = arith.index_cast %1116 : i32 to index
    %c2_797 = arith.constant 2 : index
    %1118 = vector.load %arg14[%c0_796, %1117, %c2_797] : memref<8x10x34xbf16, #tpu.memory_space<vmem>>, vector<8x1x32xbf16>
    %1119 = vector.shape_cast %1118 : vector<8x1x32xbf16> to vector<8x32xbf16>
    %1120 = tpu.concatenate %1087, %1091, %1095, %1099, %1103, %1107, %1111, %1115, %1119 in 0 : vector<8x32xbf16>, vector<8x32xbf16>, vector<8x32xbf16>, vector<8x32xbf16>, vector<8x32xbf16>, vector<8x32xbf16>, vector<8x32xbf16>, vector<8x32xbf16>, vector<8x32xbf16> -> vector<72x32xbf16>
    %c0_798 = arith.constant 0 : index
    %c0_799 = arith.constant 0 : index
    %1121 = vector.load %arg9[%c0_798, %c0_799] : memref<8x72xbf16, #tpu.memory_space<vmem>>, vector<8x72xbf16>
    %cst_800 = arith.constant dense<0.000000e+00> : vector<8x32xf32>
    %1122 = tpu.matmul %1121, %1120, %cst_800 {dimension_numbers = #tpu.dot_dimension_numbers<[1], [0], [0], [1], [0, 0, 1, 1], [], []>} : vector<8x72xbf16>, vector<72x32xbf16>, vector<8x32xf32> -> vector<8x32xf32>
    %1123 = vector.broadcast %739 : vector<8x1xf32> to vector<8x32xf32>
    %1124 = arith.mulf %1122, %1123 : vector<8x32xf32>
    %1125 = vector.broadcast %740 : vector<8x1xf32> to vector<8x32xf32>
    %1126 = arith.addf %1124, %1125 : vector<8x32xf32>
    %cst_801 = arith.constant 0.000000e+00 : f32
    %1127 = vector.broadcast %cst_801 : f32 to vector<8x32xf32>
    %1128 = arith.maximumf %1126, %1127 : vector<8x32xf32>
    %c0_802 = arith.constant 0 : index
    %c0_803 = arith.constant 0 : index
    %1129 = arith.index_cast %c7_i32_770 : i32 to index
    %c0_804 = arith.constant 0 : index
    %1130 = vector.load %arg12[%c0_802, %c0_803, %1129, %c0_804] : memref<1x8x8x32xf32, #tpu.memory_space<vmem>>, vector<1x8x1x32xf32>
    %1131 = vector.shape_cast %1130 : vector<1x8x1x32xf32> to vector<8x32xf32>
    %1132 = vector.shape_cast %1128 : vector<8x32xf32> to vector<1x8x1x32xf32>
    tpu.vector_store %arg12[%c0_802, %c0_803, %1129, %c0_804], %1132 {strides = array<i32>} : memref<1x8x8x32xf32, #tpu.memory_space<vmem>>, vector<1x8x1x32xf32>,
    %c8_i32_805 = arith.constant 8 : i32
    return
  }
  func.func @transform_0(%arg0: i32, %arg1: i32) -> (i32, i32, i32, i32) {
    %c0_i32 = arith.constant 0 : i32
    %c0_i32_0 = arith.constant 0 : i32
    %c0_i32_1 = arith.constant 0 : i32
    %c0_i32_2 = arith.constant 0 : i32
    return %arg0, %c0_i32, %c0_i32_0, %c0_i32_1 : i32, i32, i32, i32
  }
  func.func @transform_1(%arg0: i32, %arg1: i32) -> (i32, i32, i32, i32) {
    %c0_i32 = arith.constant 0 : i32
    %c0_i32_0 = arith.constant 0 : i32
    %c0_i32_1 = arith.constant 0 : i32
    return %arg0, %c0_i32, %arg1, %c0_i32_0 : i32, i32, i32, i32
  }
  func.func @transform_2(%arg0: i32, %arg1: i32) -> (i32, i32, i32, i32, i32) {
    %c0_i32 = arith.constant 0 : i32
    %c0_i32_0 = arith.constant 0 : i32
    %c0_i32_1 = arith.constant 0 : i32
    %c0_i32_2 = arith.constant 0 : i32
    return %arg0, %arg1, %c0_i32, %c0_i32_0, %c0_i32_1 : i32, i32, i32, i32, i32
  }
  func.func @transform_3(%arg0: i32, %arg1: i32) -> (i32, i32) {
    %c0_i32 = arith.constant 0 : i32
    %c0_i32_0 = arith.constant 0 : i32
    %c0_i32_1 = arith.constant 0 : i32
    return %c0_i32, %c0_i32_0 : i32, i32
  }
  func.func @transform_4(%arg0: i32, %arg1: i32) -> (i32, i32) {
    %c0_i32 = arith.constant 0 : i32
    %c0_i32_0 = arith.constant 0 : i32
    %c0_i32_1 = arith.constant 0 : i32
    return %c0_i32, %c0_i32_0 : i32, i32
  }
  func.func @transform_5(%arg0: i32, %arg1: i32) -> (i32, i32) {
    %c0_i32 = arith.constant 0 : i32
    %c0_i32_0 = arith.constant 0 : i32
    %c0_i32_1 = arith.constant 0 : i32
    return %c0_i32, %c0_i32_0 : i32, i32
  }
  func.func @transform_6(%arg0: i32, %arg1: i32) -> (i32, i32) {
    %c0_i32 = arith.constant 0 : i32
    %c0_i32_0 = arith.constant 0 : i32
    %c0_i32_1 = arith.constant 0 : i32
    return %c0_i32, %c0_i32_0 : i32, i32
  }
  func.func @transform_7(%arg0: i32, %arg1: i32) -> (i32, i32) {
    %c0_i32 = arith.constant 0 : i32
    %c0_i32_0 = arith.constant 0 : i32
    %c0_i32_1 = arith.constant 0 : i32
    return %c0_i32, %c0_i32_0 : i32, i32
  }
  func.func @transform_8(%arg0: i32, %arg1: i32) -> (i32, i32) {
    %c0_i32 = arith.constant 0 : i32
    %c0_i32_0 = arith.constant 0 : i32
    %c0_i32_1 = arith.constant 0 : i32
    return %c0_i32, %c0_i32_0 : i32, i32
  }
  func.func @transform_9(%arg0: i32, %arg1: i32) -> (i32, i32) {
    %c0_i32 = arith.constant 0 : i32
    %c0_i32_0 = arith.constant 0 : i32
    %c0_i32_1 = arith.constant 0 : i32
    return %c0_i32, %c0_i32_0 : i32, i32
  }
  func.func @transform_10(%arg0: i32, %arg1: i32) -> (i32, i32, i32, i32) {
    %c0_i32 = arith.constant 0 : i32
    %c0_i32_0 = arith.constant 0 : i32
    %c0_i32_1 = arith.constant 0 : i32
    return %arg0, %c0_i32, %arg1, %c0_i32_0 : i32, i32, i32, i32
  }
}

</mosaic_0001>

<llo_original>
// kernel: up_forward.1
$region0: #{up_forward.1}
  #allocation0 [shape = 'u32[]', space=smem, size = 0x4, offset = 0x4, fixed_abs, tag = 'smem constant byte address 0x4 - core index']
  #allocation1 [shape = 'u32[144,128]{1,0:T(1,128)}', space=vmem, size = 0x12000, scoped, tag = 'internal scratch']
  #allocation2 [shape = 'bf16[8,12,34]{2,1,0:T(8,128)(2,1)}', space=vmem, size = 0x8000, scoped, tag = 'scratch operand']
  #allocation3 [shape = 'bf16[8,10,34]{2,1,0:T(8,128)(2,1)}', space=vmem, size = 0x8000, scoped, tag = 'scratch operand']
  %s0 = inlined_call_operand.vmem [shape: f32[2,4,16,16], index: 0, kind: input, shape index: {}]
  %s1 = inlined_call_operand.vmem [shape: f32[2,4,32,32], index: 1, kind: input, shape index: {}]
  %s2 = inlined_call_operand.vmem [shape: f32[2,4,4,4,32], index: 2, kind: input, shape index: {}]
  %s3 = inlined_call_operand.vmem [shape: bf16[16,32], index: 3, kind: input, shape index: {}]
  %s4 = inlined_call_operand.vmem [shape: bf16[8,72], index: 4, kind: input, shape index: {}]
  %s5 = inlined_call_operand.vmem [shape: f32[8,1], index: 5, kind: input, shape index: {}]
  %s6 = inlined_call_operand.vmem [shape: f32[8,1], index: 6, kind: input, shape index: {}]
  %s7 = inlined_call_operand.vmem [shape: bf16[8,72], index: 7, kind: input, shape index: {}]
  %s8 = inlined_call_operand.vmem [shape: f32[8,1], index: 8, kind: input, shape index: {}]
  %s9 = inlined_call_operand.vmem [shape: f32[8,1], index: 9, kind: input, shape index: {}]
  %s10 = inlined_call_operand.hbm [shape: f32[2,8,32,32], index: 10, kind: output, shape index: {}]
  %s11 = sld [smem:[#allocation0]]
  $region119: #{up_forward.1} parent=0
    _
  %s13 = ssub.s32 1, %s11
  %s14 = scalar_select 0, %s13, %s11
  $region1: #{up_forward.1} parent=0
    #allocation4 [shape = 'u8[32768]{0}', space=vmem, size = 0x8000, scoped, tag = 'input window, operand 1']
    #allocation5 [shape = 'u8[65536]{0}', space=vmem, size = 0x10000, scoped, tag = 'output window, operand 0']
    #allocation6 [shape = 's32[2]{0}', space=sflag, size = 0x8, scoped, tag = 'scoped memory for up_forward.1']
    %15 = vsyncpa [#allocation6], 0
    %s16 = scalar_lea.sflag [#allocation6], 1
    %17 = vsyncpa %s16, 0
    loop: start=0, step=1, limit=10
    $region2: #{up_forward.1} parent=1 // loop_pre_header
      _
    $region3: #{up_forward.1} parent=1 // loop_header
      %s19 = sphi 0, %s23
      %p20 = scmp.ge.s32.totalorder %s19, 10
      %s26 = sphi 0, %s38
      %s27 = sphi 0, %s34
      %s28 = sphi 0, %s26
      %s29 = sphi 0, %s27
      %s30 = sphi 0, %s28
      %s31 = sphi 0, %s29
      %s41 = sphi 0, %s43
      %s44 = sphi 0, %s41
      %s45 = sphi 0, %s44
      %s61 = sphi 0, %s45
      %s69 = sphi 0, %s71
      %s72 = sphi 0, %s69
      %s73 = sphi 0, %s72
      %s89 = sphi 0, %s73
      %s97 = sphi 0, %s99
      %s100 = sphi 0, %s97
      %s101 = sphi 0, %s100
      %s117 = sphi 0, %s101
      %s121 = sphi 0, %s121
      %s123 = sphi 0, %s121
      %s124 = sphi 0, %s123
      %s138 = sphi 0, %s124
      %s142 = sphi 0, %s142
      %s144 = sphi 0, %s142
      %s145 = sphi 0, %s144
      %s159 = sphi 0, %s145
      %s163 = sphi 0, %s163
      %s165 = sphi 0, %s163
      %s166 = sphi 0, %s165
      %s180 = sphi 0, %s166
      %s184 = sphi 0, %s184
      %s186 = sphi 0, %s184
      %s187 = sphi 0, %s186
      %s201 = sphi 0, %s187
      %s205 = sphi 0, %s205
      %s207 = sphi 0, %s205
      %s208 = sphi 0, %s207
      %s222 = sphi 0, %s208
      %s226 = sphi 0, %s226
      %s228 = sphi 0, %s226
      %s229 = sphi 0, %s228
      %s243 = sphi 0, %s229
      %s247 = sphi 0, %s247
      %s249 = sphi 0, %s247
      %s250 = sphi 0, %s249
      %s264 = sphi 0, %s250
      %s272 = sphi 0, %s274
      %s275 = sphi 0, %s272
      %s276 = sphi 0, %s275
      %s292 = sphi 0, %s276
    $region4: #{up_forward.1} parent=1 // loop_header_branch
      %22 = sbr.rel (%p20) target = $region8
    $region5: #{up_forward.1} parent=1 // loop_body
      %s24 = ssub.s32 %s19, 1
      %s25 = ssub.s32 %s19, 2
      %s32 = sadd.s32 1, %s27
      %p33 = scmp.ge.s32.totalorder %s32, 4
      %s34 = scalar_select %p33, 0, %s32
      %s35 = sadd.s32 1, %s26
      %s36 = scalar_select %p33, %s35, %s26
      %p37 = scmp.ge.s32.totalorder %s36, 2
      %s38 = scalar_select %p37, 0, %s36
      %s39 = ssub.s32 %s26, %s38
      %p40 = scmp.eq.s32.totalorder %s39, 0
      %s42 = sadd.s32 %s41, 1
      %s43 = scalar_select %p40, %s41, %s42
      %p46 = pneg %p40
      %p47 = scmp.eq.s32.totalorder %s19, 7
      %p48 = por %p46, %p47
      %p49 = scmp.ne.s32.totalorder %s41, %s44
      %p50 = scmp.eq.s32.totalorder %s19, 0
      %p51 = por %p49, %p50
      %p52 = scmp.ne.s32.totalorder %s41, %s44
      %p53 = scmp.eq.s32.totalorder %s24, 7
      %p54 = por %p52, %p53
      %p55 = scmp.ne.s32.totalorder %s44, %s45
      %p56 = scmp.eq.s32.totalorder %s24, 0
      %p57 = por %p55, %p56
      %p58 = scmp.ne.s32.totalorder %s44, %s45
      %p59 = scmp.eq.s32.totalorder %s25, 7
      %p60 = por %p58, %p59
      %p62 = scmp.ne.s32.totalorder %s45, %s61
      %p63 = scmp.eq.s32.totalorder %s25, 0
      %p64 = por %p62, %p63
      %s65 = ssub.s32 %s26, %s38
      %s66 = ssub.s32 %s27, %s34
      %s67 = sor.u32 %s65, %s66
      %p68 = scmp.eq.s32.totalorder %s67, 0
      %s70 = sadd.s32 %s69, 1
      %s71 = scalar_select %p68, %s69, %s70
      %p74 = pneg %p68
      %p75 = scmp.eq.s32.totalorder %s19, 7
      %p76 = por %p74, %p75
      %p77 = scmp.ne.s32.totalorder %s69, %s72
      %p78 = scmp.eq.s32.totalorder %s19, 0
      %p79 = por %p77, %p78
      %p80 = scmp.ne.s32.totalorder %s69, %s72
      %p81 = scmp.eq.s32.totalorder %s24, 7
      %p82 = por %p80, %p81
      %p83 = scmp.ne.s32.totalorder %s72, %s73
      %p84 = scmp.eq.s32.totalorder %s24, 0
      %p85 = por %p83, %p84
      %p86 = scmp.ne.s32.totalorder %s72, %s73
      %p87 = scmp.eq.s32.totalorder %s25, 7
      %p88 = por %p86, %p87
      %p90 = scmp.ne.s32.totalorder %s73, %s89
      %p91 = scmp.eq.s32.totalorder %s25, 0
      %p92 = por %p90, %p91
      %s93 = ssub.s32 %s26, %s38
      %s94 = ssub.s32 %s27, %s34
      %s95 = sor.u32 %s93, %s94
      %p96 = scmp.eq.s32.totalorder %s95, 0
      %s98 = sadd.s32 %s97, 1
      %s99 = scalar_select %p96, %s97, %s98
      %p102 = pneg %p96
      %p103 = scmp.eq.s32.totalorder %s19, 7
      %p104 = por %p102, %p103
      %p105 = scmp.ne.s32.totalorder %s97, %s100
      %p106 = scmp.eq.s32.totalorder %s19, 0
      %p107 = por %p105, %p106
      %p108 = scmp.ne.s32.totalorder %s97, %s100
      %p109 = scmp.eq.s32.totalorder %s24, 7
      %p110 = por %p108, %p109
      %p111 = scmp.ne.s32.totalorder %s100, %s101
      %p112 = scmp.eq.s32.totalorder %s24, 0
      %p113 = por %p111, %p112
      %p114 = scmp.ne.s32.totalorder %s100, %s101
      %p115 = scmp.eq.s32.totalorder %s25, 7
      %p116 = por %p114, %p115
      %p118 = scmp.ne.s32.totalorder %s101, %s117
      %p119 = scmp.eq.s32.totalorder %s25, 0
      %p120 = por %p118, %p119
      %s122 = sadd.s32 %s121, 1
      %p125 = scmp.eq.s32.totalorder %s19, 7
      %p126 = scmp.ne.s32.totalorder %s121, %s123
      %p127 = scmp.eq.s32.totalorder %s19, 0
      %p128 = por %p126, %p127
      %p129 = scmp.ne.s32.totalorder %s121, %s123
      %p130 = scmp.eq.s32.totalorder %s24, 7
      %p131 = por %p129, %p130
      %p132 = scmp.ne.s32.totalorder %s123, %s124
      %p133 = scmp.eq.s32.totalorder %s24, 0
      %p134 = por %p132, %p133
      %p135 = scmp.ne.s32.totalorder %s123, %s124
      %p136 = scmp.eq.s32.totalorder %s25, 7
      %p137 = por %p135, %p136
      %p139 = scmp.ne.s32.totalorder %s124, %s138
      %p140 = scmp.eq.s32.totalorder %s25, 0
      %p141 = por %p139, %p140
      %s143 = sadd.s32 %s142, 1
      %p146 = scmp.eq.s32.totalorder %s19, 7
      %p147 = scmp.ne.s32.totalorder %s142, %s144
      %p148 = scmp.eq.s32.totalorder %s19, 0
      %p149 = por %p147, %p148
      %p150 = scmp.ne.s32.totalorder %s142, %s144
      %p151 = scmp.eq.s32.totalorder %s24, 7
      %p152 = por %p150, %p151
      %p153 = scmp.ne.s32.totalorder %s144, %s145
      %p154 = scmp.eq.s32.totalorder %s24, 0
      %p155 = por %p153, %p154
      %p156 = scmp.ne.s32.totalorder %s144, %s145
      %p157 = scmp.eq.s32.totalorder %s25, 7
      %p158 = por %p156, %p157
      %p160 = scmp.ne.s32.totalorder %s145, %s159
      %p161 = scmp.eq.s32.totalorder %s25, 0
      %p162 = por %p160, %p161
      %s164 = sadd.s32 %s163, 1
      %p167 = scmp.eq.s32.totalorder %s19, 7
      %p168 = scmp.ne.s32.totalorder %s163, %s165
      %p169 = scmp.eq.s32.totalorder %s19, 0
      %p170 = por %p168, %p169
      %p171 = scmp.ne.s32.totalorder %s163, %s165
      %p172 = scmp.eq.s32.totalorder %s24, 7
      %p173 = por %p171, %p172
      %p174 = scmp.ne.s32.totalorder %s165, %s166
      %p175 = scmp.eq.s32.totalorder %s24, 0
      %p176 = por %p174, %p175
      %p177 = scmp.ne.s32.totalorder %s165, %s166
      %p178 = scmp.eq.s32.totalorder %s25, 7
      %p179 = por %p177, %p178
      %p181 = scmp.ne.s32.totalorder %s166, %s180
      %p182 = scmp.eq.s32.totalorder %s25, 0
      %p183 = por %p181, %p182
      %s185 = sadd.s32 %s184, 1
      %p188 = scmp.eq.s32.totalorder %s19, 7
      %p189 = scmp.ne.s32.totalorder %s184, %s186
      %p190 = scmp.eq.s32.totalorder %s19, 0
      %p191 = por %p189, %p190
      %p192 = scmp.ne.s32.totalorder %s184, %s186
      %p193 = scmp.eq.s32.totalorder %s24, 7
      %p194 = por %p192, %p193
      %p195 = scmp.ne.s32.totalorder %s186, %s187
      %p196 = scmp.eq.s32.totalorder %s24, 0
      %p197 = por %p195, %p196
      %p198 = scmp.ne.s32.totalorder %s186, %s187
      %p199 = scmp.eq.s32.totalorder %s25, 7
      %p200 = por %p198, %p199
      %p202 = scmp.ne.s32.totalorder %s187, %s201
      %p203 = scmp.eq.s32.totalorder %s25, 0
      %p204 = por %p202, %p203
      %s206 = sadd.s32 %s205, 1
      %p209 = scmp.eq.s32.totalorder %s19, 7
      %p210 = scmp.ne.s32.totalorder %s205, %s207
      %p211 = scmp.eq.s32.totalorder %s19, 0
      %p212 = por %p210, %p211
      %p213 = scmp.ne.s32.totalorder %s205, %s207
      %p214 = scmp.eq.s32.totalorder %s24, 7
      %p215 = por %p213, %p214
      %p216 = scmp.ne.s32.totalorder %s207, %s208
      %p217 = scmp.eq.s32.totalorder %s24, 0
      %p218 = por %p216, %p217
      %p219 = scmp.ne.s32.totalorder %s207, %s208
      %p220 = scmp.eq.s32.totalorder %s25, 7
      %p221 = por %p219, %p220
      %p223 = scmp.ne.s32.totalorder %s208, %s222
      %p224 = scmp.eq.s32.totalorder %s25, 0
      %p225 = por %p223, %p224
      %s227 = sadd.s32 %s226, 1
      %p230 = scmp.eq.s32.totalorder %s19, 7
      %p231 = scmp.ne.s32.totalorder %s226, %s228
      %p232 = scmp.eq.s32.totalorder %s19, 0
      %p233 = por %p231, %p232
      %p234 = scmp.ne.s32.totalorder %s226, %s228
      %p235 = scmp.eq.s32.totalorder %s24, 7
      %p236 = por %p234, %p235
      %p237 = scmp.ne.s32.totalorder %s228, %s229
      %p238 = scmp.eq.s32.totalorder %s24, 0
      %p239 = por %p237, %p238
      %p240 = scmp.ne.s32.totalorder %s228, %s229
      %p241 = scmp.eq.s32.totalorder %s25, 7
      %p242 = por %p240, %p241
      %p244 = scmp.ne.s32.totalorder %s229, %s243
      %p245 = scmp.eq.s32.totalorder %s25, 0
      %p246 = por %p244, %p245
      %s248 = sadd.s32 %s247, 1
      %p251 = scmp.eq.s32.totalorder %s19, 7
      %p252 = scmp.ne.s32.totalorder %s247, %s249
      %p253 = scmp.eq.s32.totalorder %s19, 0
      %p254 = por %p252, %p253
      %p255 = scmp.ne.s32.totalorder %s247, %s249
      %p256 = scmp.eq.s32.totalorder %s24, 7
      %p257 = por %p255, %p256
      %p258 = scmp.ne.s32.totalorder %s249, %s250
      %p259 = scmp.eq.s32.totalorder %s24, 0
      %p260 = por %p258, %p259
      %p261 = scmp.ne.s32.totalorder %s249, %s250
      %p262 = scmp.eq.s32.totalorder %s25, 7
      %p263 = por %p261, %p262
      %p265 = scmp.ne.s32.totalorder %s250, %s264
      %p266 = scmp.eq.s32.totalorder %s25, 0
      %p267 = por %p265, %p266
      %s268 = ssub.s32 %s26, %s38
      %s269 = ssub.s32 %s27, %s34
      %s270 = sor.u32 %s268, %s269
      %p271 = scmp.eq.s32.totalorder %s270, 0
      %s273 = sadd.s32 %s272, 1
      %s274 = scalar_select %p271, %s272, %s273
      %p277 = pneg %p271
      %p278 = scmp.eq.s32.totalorder %s19, 7
      %p279 = por %p277, %p278
      %p280 = scmp.ne.s32.totalorder %s272, %s275
      %p281 = scmp.eq.s32.totalorder %s19, 0
      %p282 = por %p280, %p281
      %p283 = scmp.ne.s32.totalorder %s272, %s275
      %p284 = scmp.eq.s32.totalorder %s24, 7
      %p285 = por %p283, %p284
      %p286 = scmp.ne.s32.totalorder %s275, %s276
      %p287 = scmp.eq.s32.totalorder %s24, 0
      %p288 = por %p286, %p287
      %p289 = scmp.ne.s32.totalorder %s275, %s276
      %p290 = scmp.eq.s32.totalorder %s25, 7
      %p291 = por %p289, %p290
      %p293 = scmp.ne.s32.totalorder %s276, %s292
      %p294 = scmp.eq.s32.totalorder %s25, 0
      %p295 = por %p293, %p294
      %p296 = scmp.le.s32.totalorder 1, %s19
      %p297 = scmp.lt.s32.totalorder %s19, 9
      %p298 = pnand %p296, %p297
      %p299 = pneg %p298
      // Predicated region
      $region9: #{up_forward.1} parent=5 // pred_check
        _
      $region10: #{up_forward.1} parent=5 // pred_check_branch
        %301 = sbr.rel (%p298) target = $region12
      $region11: #{up_forward.1} parent=5 // pred_region
        %s302 = ssub.s32 %s19, 1
        // Predicated region
        $region13: #{up_forward.1} parent=11 // pred_check
          %p303 = pneg %p134
        $region14: #{up_forward.1} parent=11 // pred_check_branch
          %305 = sbr.rel (%p303) target = $region16
        $region15: #{up_forward.1} parent=11 // pred_region
          _
        $region16: #{up_forward.1} parent=11 // pred_fallthru
          _
        // Predicated region
        $region17: #{up_forward.1} parent=11 // pred_check
          %p306 = pneg %p155
        $region18: #{up_forward.1} parent=11 // pred_check_branch
          %308 = sbr.rel (%p306) target = $region20
        $region19: #{up_forward.1} parent=11 // pred_region
          _
        $region20: #{up_forward.1} parent=11 // pred_fallthru
          _
        // Predicated region
        $region21: #{up_forward.1} parent=11 // pred_check
          %p309 = pneg %p176
        $region22: #{up_forward.1} parent=11 // pred_check_branch
          %311 = sbr.rel (%p309) target = $region24
        $region23: #{up_forward.1} parent=11 // pred_region
          _
        $region24: #{up_forward.1} parent=11 // pred_fallthru
          _
        // Predicated region
        $region25: #{up_forward.1} parent=11 // pred_check
          %p312 = pneg %p197
        $region26: #{up_forward.1} parent=11 // pred_check_branch
          %314 = sbr.rel (%p312) target = $region28
        $region27: #{up_forward.1} parent=11 // pred_region
          _
        $region28: #{up_forward.1} parent=11 // pred_fallthru
          _
        // Predicated region
        $region29: #{up_forward.1} parent=11 // pred_check
          %p315 = pneg %p218
        $region30: #{up_forward.1} parent=11 // pred_check_branch
          %317 = sbr.rel (%p315) target = $region32
        $region31: #{up_forward.1} parent=11 // pred_region
          _
        $region32: #{up_forward.1} parent=11 // pred_fallthru
          _
        // Predicated region
        $region33: #{up_forward.1} parent=11 // pred_check
          %p318 = pneg %p239
        $region34: #{up_forward.1} parent=11 // pred_check_branch
          %320 = sbr.rel (%p318) target = $region36
        $region35: #{up_forward.1} parent=11 // pred_region
          _
        $region36: #{up_forward.1} parent=11 // pred_fallthru
          _
        // Predicated region
        $region37: #{up_forward.1} parent=11 // pred_check
          %p321 = pneg %p260
        $region38: #{up_forward.1} parent=11 // pred_check_branch
          %323 = sbr.rel (%p321) target = $region40
        $region39: #{up_forward.1} parent=11 // pred_region
          _
        $region40: #{up_forward.1} parent=11 // pred_fallthru
          _
      $region12: #{up_forward.1} parent=5 // pred_fallthru
        _
      %p324 = scmp.lt.s32.totalorder %s19, 8
      // Predicated region
      $region41: #{up_forward.1} parent=5 // pred_check
        %p325 = pneg %p324
      $region42: #{up_forward.1} parent=5 // pred_check_branch
        %327 = sbr.rel (%p325) target = $region44
      $region43: #{up_forward.1} parent=5 // pred_region
        // Predicated region
        $region45: #{up_forward.1} parent=43 // pred_check
          %p328 = pneg %p51
        $region46: #{up_forward.1} parent=43 // pred_check_branch
          %330 = sbr.rel (%p328) target = $region48
        $region47: #{up_forward.1} parent=43 // pred_region
          %p331 = scmp.lt.s32.totalorder %s26, 1
          %s332 = scalar_select %p331, %s26, 1
          %s333 = smul.addr %s332, 8
          %s334 = smul.addr %s333, 8
          %s335 = scalar_lea.vmem %s0, %s334
        $region48: #{up_forward.1} parent=43 // pred_fallthru
          _
        // Predicated region
        $region49: #{up_forward.1} parent=43 // pred_check
          %p336 = pneg %p79
        $region50: #{up_forward.1} parent=43 // pred_check_branch
          %338 = sbr.rel (%p336) target = $region52
        $region51: #{up_forward.1} parent=43 // pred_region
          %s339 = sand.u32 %s69, 1
          %s340 = sand.u32 %s69, 1
          %s341 = smul.addr %s340, 32
          %s342 = scalar_lea.vmem [#allocation4], %s341
          %s343 = smul.addr %s26, 16
          %s344 = sadd.s32 %s27, %s343
          %s345 = smul.addr %s344, 8
          %s346 = scalar_lea.vmem %s1, %s345
          // Predicated region
          $region53: #{up_forward.1} parent=51 // pred_check
            _
          $region54: #{up_forward.1} parent=51 // pred_check_branch
            %348 = sbr.rel (0) target = $region56
          $region55: #{up_forward.1} parent=51 // pred_region
            // Predicated region
            $region57: #{up_forward.1} parent=55 // pred_check
              _
            $region58: #{up_forward.1} parent=55 // pred_check_branch
              %350 = sbr.rel (0) target = $region60
            $region59: #{up_forward.1} parent=55 // pred_region
              // Predicated region
              $region72: #{up_forward.1} parent=59 // pred_check
                _
              $region73: #{up_forward.1} parent=59 // pred_check_branch
                %372 = sbr.rel (0) target = $region75
              $region74: #{up_forward.1} parent=59 // pred_region
                loop: start=0, step=1, limit=1
                $region76: #{up_forward.1} parent=74 // loop_pre_header
                  _
                $region77: #{up_forward.1} parent=74 // loop_header
                  %s374 = sphi 0, %s378
                  %p375 = scmp.ge.s32.totalorder %s374, 1
                  %s379 = sphi %s346, %s346
                  %s380 = sphi %s342, %s342
                $region78: #{up_forward.1} parent=74 // loop_header_branch
                  %377 = sbr.rel (%p375) target = $region82
                $region79: #{up_forward.1} parent=74 // loop_body
                  %v381 = vld [vmem:[%s379] sm:$0xff]
                  %382 = vst [vmem:[%s380] sm:$0xff] %v381
                  %v383 = vld [vmem:[%s379 + $0x20] sm:$0xff]
                  %384 = vst [vmem:[%s380 + $0x8] sm:$0xff] %v383
                  %v385 = vld [vmem:[%s379 + $0x40] sm:$0xff]
                  %386 = vst [vmem:[%s380 + $0x10] sm:$0xff] %v385
                  %v387 = vld [vmem:[%s379 + $0x60] sm:$0xff]
                  %388 = vst [vmem:[%s380 + $0x18] sm:$0xff] %v387
                $region80: #{up_forward.1} parent=74 // loop_footer
                  %s378 = sadd.s32 1, %s374
                $region81: #{up_forward.1} parent=74 // loop_footer_branch
                  %373 = sbr.rel target = $region77
                $region82: #{up_forward.1} parent=74 // loop_exit
                  _
              $region75: #{up_forward.1} parent=59 // pred_fallthru
                _
              // Predicated region
              $region83: #{up_forward.1} parent=59 // pred_check
                _
              $region84: #{up_forward.1} parent=59 // pred_check_branch
                %390 = sbr.rel target = $region86
              $region85: #{up_forward.1} parent=59 // pred_region
                _
              $region86: #{up_forward.1} parent=59 // pred_fallthru
                _
            $region60: #{up_forward.1} parent=55 // pred_fallthru
              _
            // Predicated region
            $region61: #{up_forward.1} parent=55 // pred_check
              _
            $region62: #{up_forward.1} parent=55 // pred_check_branch
              %352 = sbr.rel target = $region64
            $region63: #{up_forward.1} parent=55 // pred_region
              %s354 = ssub.s32 256, 1
              loop: start=0, step=1, limit=1
              $region65: #{up_forward.1} parent=63 // loop_pre_header
                _
              $region66: #{up_forward.1} parent=63 // loop_header
                %s356 = sphi 0, %s360
                %p357 = scmp.ge.s32.totalorder %s356, 1
                %s361 = sphi %s346, %s346
                %s362 = sphi %s342, %s342
              $region67: #{up_forward.1} parent=63 // loop_header_branch
                %359 = sbr.rel (%p357) target = $region71
              $region68: #{up_forward.1} parent=63 // loop_body
                %v363 = vld [vmem:[%s361] sm:%s354]
                %364 = vst [vmem:[%s362] sm:%s354] %v363
                %v365 = vld [vmem:[%s361 + $0x20] sm:%s354]
                %366 = vst [vmem:[%s362 + $0x8] sm:%s354] %v365
                %v367 = vld [vmem:[%s361 + $0x40] sm:%s354]
                %368 = vst [vmem:[%s362 + $0x10] sm:%s354] %v367
                %v369 = vld [vmem:[%s361 + $0x60] sm:%s354]
                %370 = vst [vmem:[%s362 + $0x18] sm:%s354] %v369
              $region69: #{up_forward.1} parent=63 // loop_footer
                %s360 = sadd.s32 1, %s356
              $region70: #{up_forward.1} parent=63 // loop_footer_branch
                %355 = sbr.rel target = $region66
              $region71: #{up_forward.1} parent=63 // loop_exit
                _
            $region64: #{up_forward.1} parent=55 // pred_fallthru
              _
          $region56: #{up_forward.1} parent=51 // pred_fallthru
            _
          %391 = vnop
        $region52: #{up_forward.1} parent=43 // pred_fallthru
          _
        // Predicated region
        $region87: #{up_forward.1} parent=43 // pred_check
          %p392 = pneg %p107
        $region88: #{up_forward.1} parent=43 // pred_check_branch
          %394 = sbr.rel (%p392) target = $region90
        $region89: #{up_forward.1} parent=43 // pred_region
          %p395 = scmp.lt.s32.totalorder %s26, 1
          %s396 = scalar_select %p395, %s26, 1
          %p397 = scmp.lt.s32.totalorder %s27, 3
          %s398 = scalar_select %p397, %s27, 3
          %s399 = smul.addr %s398, 4
          %s400 = smul.addr %s396, 16
          %s401 = sadd.s32 %s399, %s400
          %s402 = smul.addr %s401, 4
          %s403 = scalar_lea.vmem %s2, %s402
        $region90: #{up_forward.1} parent=43 // pred_fallthru
          _
      $region44: #{up_forward.1} parent=5 // pred_fallthru
        _
      %p404 = scmp.le.s32.totalorder 1, %s19
      %p405 = scmp.lt.s32.totalorder %s19, 9
      %p406 = pnand %p404, %p405
      %p407 = pneg %p406
      // Predicated region
      $region91: #{up_forward.1} parent=5 // pred_check
        _
      $region92: #{up_forward.1} parent=5 // pred_check_branch
        %409 = sbr.rel (%p406) target = $region94
      $region93: #{up_forward.1} parent=5 // pred_region
        %s410 = ssub.s32 %s19, 1
        %s411 = sand.u32 %s72, 1
        %s412 = sand.u32 %s72, 1
        %s413 = smul.addr %s412, 32
        %s414 = scalar_lea.vmem [#allocation4], %s413
        // Predicated region
        $region95: #{up_forward.1} parent=93 // pred_check
          %p415 = pneg %p85
        $region96: #{up_forward.1} parent=93 // pred_check_branch
          %417 = sbr.rel (%p415) target = $region98
        $region97: #{up_forward.1} parent=93 // pred_region
          _
        $region98: #{up_forward.1} parent=93 // pred_fallthru
          _
        %p418 = scmp.lt.s32.totalorder %s28, 1
        %s419 = scalar_select %p418, %s28, 1
        %s420 = smul.addr %s419, 8
        %s421 = smul.addr %s420, 8
        %s422 = scalar_lea.vmem %s0, %s421
        %p423 = pneg %p57
        %p424 = pneg %p54
        %s425 = sand.u32 %s72, 1
        %s426 = sand.u32 %s72, 1
        %s427 = smul.addr %s426, 32
        %s428 = scalar_lea.vmem [#allocation4], %s427
        %p429 = pneg %p85
        %p430 = pneg %p82
        %p431 = scmp.lt.s32.totalorder %s28, 1
        %s432 = scalar_select %p431, %s28, 1
        %p433 = scmp.lt.s32.totalorder %s29, 3
        %s434 = scalar_select %p433, %s29, 3
        %s435 = smul.addr %s434, 4
        %s436 = smul.addr %s432, 16
        %s437 = sadd.s32 %s435, %s436
        %s438 = smul.addr %s437, 4
        %s439 = scalar_lea.vmem %s2, %s438
        %p440 = pneg %p113
        %p441 = pneg %p110
        %p442 = pneg %p134
        %p443 = pneg %p131
        %p444 = pneg %p155
        %p445 = pneg %p152
        %p446 = pneg %p176
        %p447 = pneg %p173
        %p448 = pneg %p197
        %p449 = pneg %p194
        %p450 = pneg %p218
        %p451 = pneg %p215
        %p452 = pneg %p239
        %p453 = pneg %p236
        %p454 = pneg %p260
        %p455 = pneg %p257
        %p456 = pneg %p288
        %p457 = pneg %p285
        %s458 = sand.u32 %s275, 1
        %s459 = scalar_lea.sflag [#allocation6], %s458
        %s460 = sand.u32 %s275, 1
        %s461 = smul.addr %s460, 64
        %s462 = scalar_lea.vmem [#allocation5], %s461
        %p463 = scmp.lt.s32.totalorder %s28, 1
        %s464 = scalar_select %p463, %s28, 1
        %s465 = smul.addr %s464, 8
        %s466 = smul.addr %s465, 8
        %s467 = scalar_lea.vmem %s0, %s466
        %p468 = scmp.lt.s32.totalorder %s28, 1
        %s469 = scalar_select %p468, %s28, 1
        %p470 = scmp.lt.s32.totalorder %s29, 3
        %s471 = scalar_select %p470, %s29, 3
        %s472 = smul.addr %s471, 4
        %s473 = smul.addr %s469, 16
        %s474 = sadd.s32 %s472, %s473
        %s475 = smul.addr %s474, 4
        %s476 = scalar_lea.vmem %s2, %s475
        %vm478 = vcmask 3072
        %479 = vst.msk [vmem:[#allocation2] sm:$0xf] %vm478, 0
        %vm480 = vcmask 1024
        %481 = vst.msk [vmem:[#allocation2 + $0x4] sm:$0x3] %vm480, 0
        %482 = vst.msk [vmem:[#allocation2 + $0x8] sm:$0xf] %vm478, 0
        %483 = vst.msk [vmem:[#allocation2 + $0xc] sm:$0x3] %vm480, 0
        %484 = vst.msk [vmem:[#allocation2 + $0x10] sm:$0xf] %vm478, 0
        %485 = vst.msk [vmem:[#allocation2 + $0x14] sm:$0x3] %vm480, 0
        %486 = vst.msk [vmem:[#allocation2 + $0x18] sm:$0xf] %vm478, 0
        %487 = vst.msk [vmem:[#allocation2 + $0x1c] sm:$0x3] %vm480, 0
        %488 = vst.msk [vmem:[#allocation2 + $0x20] sm:$0xf] %vm478, 0
        %489 = vst.msk [vmem:[#allocation2 + $0x24] sm:$0x3] %vm480, 0
        %490 = vst.msk [vmem:[#allocation2 + $0x28] sm:$0xf] %vm478, 0
        %491 = vst.msk [vmem:[#allocation2 + $0x2c] sm:$0x3] %vm480, 0
        %492 = vst.msk [vmem:[#allocation2 + $0x30] sm:$0xf] %vm478, 0
        %493 = vst.msk [vmem:[#allocation2 + $0x34] sm:$0x3] %vm480, 0
        %494 = vst.msk [vmem:[#allocation2 + $0x38] sm:$0xf] %vm478, 0
        %495 = vst.msk [vmem:[#allocation2 + $0x3c] sm:$0x3] %vm480, 0
        %vm496 = vcmask 273672
        %497 = vst.msk [vmem:[#allocation2] sm:$0xf] %vm496, 0
        %vm498 = vcmask 271624
        %499 = vst.msk [vmem:[#allocation2 + $0x4] sm:$0x3] %vm498, 0
        %500 = vst.msk [vmem:[#allocation2 + $0x8] sm:$0xf] %vm496, 0
        %501 = vst.msk [vmem:[#allocation2 + $0xc] sm:$0x3] %vm498, 0
        %502 = vst.msk [vmem:[#allocation2 + $0x10] sm:$0xf] %vm496, 0
        %503 = vst.msk [vmem:[#allocation2 + $0x14] sm:$0x3] %vm498, 0
        %504 = vst.msk [vmem:[#allocation2 + $0x18] sm:$0xf] %vm496, 0
        %505 = vst.msk [vmem:[#allocation2 + $0x1c] sm:$0x3] %vm498, 0
        %506 = vst.msk [vmem:[#allocation2 + $0x20] sm:$0xf] %vm496, 0
        %507 = vst.msk [vmem:[#allocation2 + $0x24] sm:$0x3] %vm498, 0
        %508 = vst.msk [vmem:[#allocation2 + $0x28] sm:$0xf] %vm496, 0
        %509 = vst.msk [vmem:[#allocation2 + $0x2c] sm:$0x3] %vm498, 0
        %510 = vst.msk [vmem:[#allocation2 + $0x30] sm:$0xf] %vm496, 0
        %511 = vst.msk [vmem:[#allocation2 + $0x34] sm:$0x3] %vm498, 0
        %512 = vst.msk [vmem:[#allocation2 + $0x38] sm:$0xf] %vm496, 0
        %513 = vst.msk [vmem:[#allocation2 + $0x3c] sm:$0x3] %vm498, 0
        %514 = vst.msk [vmem:[#allocation3] sm:$0xf] %vm478, 0
        %vm515 = vcmask 0
        %516 = vst.msk [vmem:[#allocation3 + $0x4] sm:$0x1] %vm515, 0
        %517 = vst.msk [vmem:[#allocation3 + $0x8] sm:$0xf] %vm478, 0
        %518 = vst.msk [vmem:[#allocation3 + $0xc] sm:$0x1] %vm515, 0
        %519 = vst.msk [vmem:[#allocation3 + $0x10] sm:$0xf] %vm478, 0
        %520 = vst.msk [vmem:[#allocation3 + $0x14] sm:$0x1] %vm515, 0
        %521 = vst.msk [vmem:[#allocation3 + $0x18] sm:$0xf] %vm478, 0
        %522 = vst.msk [vmem:[#allocation3 + $0x1c] sm:$0x1] %vm515, 0
        %523 = vst.msk [vmem:[#allocation3 + $0x20] sm:$0xf] %vm478, 0
        %524 = vst.msk [vmem:[#allocation3 + $0x24] sm:$0x1] %vm515, 0
        %525 = vst.msk [vmem:[#allocation3 + $0x28] sm:$0xf] %vm478, 0
        %526 = vst.msk [vmem:[#allocation3 + $0x2c] sm:$0x1] %vm515, 0
        %527 = vst.msk [vmem:[#allocation3 + $0x30] sm:$0xf] %vm478, 0
        %528 = vst.msk [vmem:[#allocation3 + $0x34] sm:$0x1] %vm515, 0
        %529 = vst.msk [vmem:[#allocation3 + $0x38] sm:$0xf] %vm478, 0
        %530 = vst.msk [vmem:[#allocation3 + $0x3c] sm:$0x1] %vm515, 0
        %531 = vst.msk [vmem:[#allocation3] sm:$0xf] %vm496, 0
        %vm532 = vcmask 270600
        %533 = vst.msk [vmem:[#allocation3 + $0x4] sm:$0x1] %vm532, 0
        %534 = vst.msk [vmem:[#allocation3 + $0x8] sm:$0xf] %vm496, 0
        %535 = vst.msk [vmem:[#allocation3 + $0xc] sm:$0x1] %vm532, 0
        %536 = vst.msk [vmem:[#allocation3 + $0x10] sm:$0xf] %vm496, 0
        %537 = vst.msk [vmem:[#allocation3 + $0x14] sm:$0x1] %vm532, 0
        %538 = vst.msk [vmem:[#allocation3 + $0x18] sm:$0xf] %vm496, 0
        %539 = vst.msk [vmem:[#allocation3 + $0x1c] sm:$0x1] %vm532, 0
        %540 = vst.msk [vmem:[#allocation3 + $0x20] sm:$0xf] %vm496, 0
        %541 = vst.msk [vmem:[#allocation3 + $0x24] sm:$0x1] %vm532, 0
        %542 = vst.msk [vmem:[#allocation3 + $0x28] sm:$0xf] %vm496, 0
        %543 = vst.msk [vmem:[#allocation3 + $0x2c] sm:$0x1] %vm532, 0
        %544 = vst.msk [vmem:[#allocation3 + $0x30] sm:$0xf] %vm496, 0
        %545 = vst.msk [vmem:[#allocation3 + $0x34] sm:$0x1] %vm532, 0
        %546 = vst.msk [vmem:[#allocation3 + $0x38] sm:$0xf] %vm496, 0
        %547 = vst.msk [vmem:[#allocation3 + $0x3c] sm:$0x1] %vm532, 0
        %v548 = vld [vmem:[%s414] sm:$0xff]
        %v549 = vld [vmem:[%s414 + $0x8] sm:$0xff]
        %v550 = vld [vmem:[%s414 + $0x10] sm:$0xff]
        %v551 = vld [vmem:[%s414 + $0x18] sm:$0xff]
        %v552 = vpack.c.bf16 %v548, %v548
        %v553 = vpack.c.bf16 %v549, %v549
        %v554 = vpack.c.bf16 %v550, %v550
        %v555 = vpack.c.bf16 %v551, %v551
        %v560 = vunpack.c.l.b16 %v552
        %v561 = vunpack.c.l.b16 %v553
        %v562 = vunpack.c.l.b16 %v554
        %v563 = vunpack.c.l.b16 %v555
        %v564 = vpack.c.b16 %v560, %v560
        %v565 = vpack.c.b16 %v561, %v561
        %v566 = vpack.c.b16 %v562, %v562
        %v567 = vpack.c.b16 %v563, %v563
        %v568 = vrot.slane %v564, 7
        %v569 = vrot.slane %v568, 4
        %v570 = vrot.slane %v565, 7
        %v571 = vrot.slane %v570, 4
        %v572 = vrot.slane %v566, 7
        %v573 = vrot.slane %v572, 4
        %v574 = vrot.slane %v567, 7
        %v575 = vrot.slane %v574, 4
        %576 = vrot.lane.b32.xlu0 %v568, 1
        %v577 = vpop.permute.xlu0 %576
        %578 = vrot.lane.b32.xlu0 %v569, 1
        %v579 = vpop.permute.xlu0 %578
        %580 = vrot.lane.b32.xlu0 %v570, 1
        %v581 = vpop.permute.xlu0 %580
        %582 = vrot.lane.b32.xlu0 %v571, 1
        %v583 = vpop.permute.xlu0 %582
        %584 = vrot.lane.b32.xlu0 %v572, 1
        %v585 = vpop.permute.xlu0 %584
        %586 = vrot.lane.b32.xlu0 %v573, 1
        %v587 = vpop.permute.xlu0 %586
        %588 = vrot.lane.b32.xlu0 %v574, 1
        %v589 = vpop.permute.xlu0 %588
        %590 = vrot.lane.b32.xlu0 %v575, 1
        %v591 = vpop.permute.xlu0 %590
        %s600 = scalar_lea.vmem [#allocation2], 32
        %vm601 = vcmask 265225
        %602 = vst.msk [vmem:[%s600] sm:$0xe] %vm601, %v577
        %vm603 = vcmask 262152
        %604 = vst.msk [vmem:[%s600 + $0x4] sm:$0x1] %vm603, %v579
        %605 = vst.msk [vmem:[%s600 + $0x8] sm:$0xe] %vm601, %v581
        %606 = vst.msk [vmem:[%s600 + $0xc] sm:$0x1] %vm603, %v583
        %607 = vst.msk [vmem:[%s600 + $0x10] sm:$0xe] %vm601, %v585
        %608 = vst.msk [vmem:[%s600 + $0x14] sm:$0x1] %vm603, %v587
        %609 = vst.msk [vmem:[%s600 + $0x18] sm:$0xe] %vm601, %v589
        %610 = vst.msk [vmem:[%s600 + $0x1c] sm:$0x1] %vm603, %v591
        %v611 = vld [vmem:[%s476] sm:$0x3]
        %v612 = vld [vmem:[%s476 + $0x4] sm:$0x3]
        %v613 = vld [vmem:[%s476 + $0x8] sm:$0x3]
        %v614 = vld [vmem:[%s476 + $0xc] sm:$0x3]
        %v615 = vpack.c.bf16 %v611, %v611
        %v616 = vpack.c.bf16 %v612, %v612
        %v617 = vpack.c.bf16 %v613, %v613
        %v618 = vpack.c.bf16 %v614, %v614
        %v623 = vunpack.c.l.b16 %v615
        %v624 = vunpack.c.l.b16 %v616
        %v625 = vunpack.c.l.b16 %v617
        %v626 = vunpack.c.l.b16 %v618
        %v627 = vpack.c.b16 %v623, %v623
        %v628 = vpack.c.b16 %v624, %v624
        %v629 = vpack.c.b16 %v625, %v625
        %v630 = vpack.c.b16 %v626, %v626
        %631 = vrot.lane.b32.xlu0 %v627, 1
        %v632 = vpop.permute.xlu0 %631
        %633 = vrot.lane.b32.xlu0 %v628, 1
        %v634 = vpop.permute.xlu0 %633
        %635 = vrot.lane.b32.xlu0 %v629, 1
        %v636 = vpop.permute.xlu0 %635
        %637 = vrot.lane.b32.xlu0 %v630, 1
        %v638 = vpop.permute.xlu0 %637
        %643 = vst.msk [vmem:[%s600] sm:$0x1] %vm603, %v632
        %644 = vst.msk [vmem:[%s600 + $0x8] sm:$0x1] %vm603, %v634
        %645 = vst.msk [vmem:[%s600 + $0x10] sm:$0x1] %vm603, %v636
        %646 = vst.msk [vmem:[%s600 + $0x18] sm:$0x1] %vm603, %v638
        %v647 = vld [vmem:[%s476 + $0x2] sm:$0x3]
        %v648 = vld [vmem:[%s476 + $0x6] sm:$0x3]
        %v649 = vld [vmem:[%s476 + $0xa] sm:$0x3]
        %v650 = vld [vmem:[%s476 + $0xe] sm:$0x3]
        %v651 = vpack.c.bf16 %v647, %v647
        %v652 = vpack.c.bf16 %v648, %v648
        %v653 = vpack.c.bf16 %v649, %v649
        %v654 = vpack.c.bf16 %v650, %v650
        %v659 = vunpack.c.l.b16 %v651
        %v660 = vunpack.c.l.b16 %v652
        %v661 = vunpack.c.l.b16 %v653
        %v662 = vunpack.c.l.b16 %v654
        %v663 = vpack.c.b16 %v659, %v659
        %v664 = vpack.c.b16 %v660, %v660
        %v665 = vpack.c.b16 %v661, %v661
        %v666 = vpack.c.b16 %v662, %v662
        %v667 = vrot.slane %v663, 7
        %v668 = vrot.slane %v664, 7
        %v669 = vrot.slane %v665, 7
        %v670 = vrot.slane %v666, 7
        %671 = vrot.lane.b32.xlu0 %v667, 1
        %v672 = vpop.permute.xlu0 %671
        %673 = vrot.lane.b32.xlu0 %v668, 1
        %v674 = vpop.permute.xlu0 %673
        %675 = vrot.lane.b32.xlu0 %v669, 1
        %v676 = vpop.permute.xlu0 %675
        %677 = vrot.lane.b32.xlu0 %v670, 1
        %v678 = vpop.permute.xlu0 %677
        %vm683 = vcmask 263177
        %684 = vst.msk [vmem:[%s600 + $0x4] sm:$0x2] %vm683, %v672
        %685 = vst.msk [vmem:[%s600 + $0xc] sm:$0x2] %vm683, %v674
        %686 = vst.msk [vmem:[%s600 + $0x14] sm:$0x2] %vm683, %v676
        %687 = vst.msk [vmem:[%s600 + $0x1c] sm:$0x2] %vm683, %v678
        %s688 = smul.u32 %s29, 4
        %s689 = ssub.s32 %s688, 1
        %s690 = ssub.s32 %s688, 2
        %p691 = scmp.gt.s32.totalorder %s690, 0
        %s692 = scalar_select %p691, %s690, 0
        %p693 = scmp.lt.s32.totalorder %s692, 15
        %s694 = scalar_select %p693, %s692, 15
        %s695 = scalar_lea.vmem %s467, %s694
        %v696 = vld [vmem:[%s695] sm:$0x1]
        %v697 = vld [vmem:[%s695 + $0x10] sm:$0x1]
        %v698 = vld [vmem:[%s695 + $0x20] sm:$0x1]
        %v699 = vld [vmem:[%s695 + $0x30] sm:$0x1]
        %p700 = scmp.gt.s32.totalorder %s689, 0
        %s701 = scalar_select %p700, %s689, 0
        %p702 = scmp.lt.s32.totalorder %s701, 15
        %s703 = scalar_select %p702, %s701, 15
        %s704 = scalar_lea.vmem %s467, %s703
        %v705 = vld [vmem:[%s704] sm:$0x1]
        %v706 = vld [vmem:[%s704 + $0x10] sm:$0x1]
        %v707 = vld [vmem:[%s704 + $0x20] sm:$0x1]
        %v708 = vld [vmem:[%s704 + $0x30] sm:$0x1]
        %p709 = scmp.gt.s32.totalorder %s688, 0
        %s710 = scalar_select %p709, %s688, 0
        %p711 = scmp.lt.s32.totalorder %s710, 15
        %s712 = scalar_select %p711, %s710, 15
        %s713 = scalar_lea.vmem %s467, %s712
        %v714 = vld [vmem:[%s713] sm:$0x1]
        %v715 = vld [vmem:[%s713 + $0x10] sm:$0x1]
        %v716 = vld [vmem:[%s713 + $0x20] sm:$0x1]
        %v717 = vld [vmem:[%s713 + $0x30] sm:$0x1]
        %v718 = vmul.f32 %v696, 0.25
        %v719 = vmul.f32 %v697, 0.25
        %v720 = vmul.f32 %v698, 0.25
        %v721 = vmul.f32 %v699, 0.25
        %v722 = vmul.f32 %v705, 0.75
        %v723 = vmul.f32 %v706, 0.75
        %v724 = vmul.f32 %v707, 0.75
        %v725 = vmul.f32 %v708, 0.75
        %v726 = vadd.f32 %v718, %v722
        %v727 = vadd.f32 %v719, %v723
        %v728 = vadd.f32 %v720, %v724
        %v729 = vadd.f32 %v721, %v725
        %v730 = vpack.c.bf16 %v726, %v726
        %v731 = vpack.c.bf16 %v727, %v727
        %v732 = vpack.c.bf16 %v728, %v728
        %v733 = vpack.c.bf16 %v729, %v729
        %v734 = vmul.f32 %v714, 0.25
        %v735 = vmul.f32 %v715, 0.25
        %v736 = vmul.f32 %v716, 0.25
        %v737 = vmul.f32 %v717, 0.25
        %v738 = vadd.f32 %v722, %v734
        %v739 = vadd.f32 %v723, %v735
        %v740 = vadd.f32 %v724, %v736
        %v741 = vadd.f32 %v725, %v737
        %v742 = vpack.c.bf16 %v738, %v738
        %v743 = vpack.c.bf16 %v739, %v739
        %v744 = vpack.c.bf16 %v740, %v740
        %v745 = vpack.c.bf16 %v741, %v741
        %v746 = vld [vmem:[%s3] sm:$0xf]
        %v747 = vld [vmem:[%s3 + $0x4] sm:$0xf]
        %v752 = vunpack.c.l.b16 %v730
        %v753 = vunpack.c.l.b16 %v731
        %v754 = vunpack.c.l.b16 %v732
        %v755 = vunpack.c.l.b16 %v733
        %v756 = vrot.slane %v753, 7
        %vm757 = vcmask 1041409
        %v758 = vsel %vm757, %v756, %v752
        %v759 = vrot.slane %v754, 6
        %vm760 = vcmask 1042434
        %v761 = vsel %vm760, %v759, %v758
        %v762 = vrot.slane %v755, 5
        %vm763 = vcmask 1043459
        %v764 = vsel %vm763, %v762, %v761
        %v765 = vpack.c.b16 %v764, %v764
        %v768 = vunpack.c.l.b16 %v746
        %v769 = vunpack.c.l.b16 %v747
        %v770 = vpack.c.b16 %v769, %v768
        %vm772 = vcmask 130048
        %v774 = vsel %vm772, %v765, 0
        %776 = vmatprep.subr.bf16.mxu0 0
        %777 = vmatpush1.bf16.msra.mxu0 0
        %778 = vmatprep.subr.bf16.mxu0 0
        %779 = vmatpush1.bf16.msra.mxu0 0
        %780 = vmatprep.subr.bf16.mxu0 0
        %781 = vmatpush1.bf16.msra.mxu0 0
        %782 = vmatprep.subr.bf16.mxu0 0
        %783 = vmatpush1.bf16.msra.mxu0 0
        %784 = vmatprep.subr.bf16.mxu0 0
        %785 = vmatpush1.bf16.msra.mxu0 0
        %786 = vmatprep.subr.bf16.mxu0 0
        %787 = vmatpush1.bf16.msra.mxu0 0
        %788 = vmatprep.subr.bf16.mxu0 0
        %789 = vmatpush1.bf16.msra.mxu0 0
        %790 = vmatprep.subr.bf16.mxu0 0
        %791 = vmatpush1.bf16.msra.mxu0 %v770
        %792 = vmatprep.subr.bf16.mxu0 0
        %793 = vmatpush2.bf16.msra.mxu0 0
        %794 = vmatprep.subr.bf16.mxu0 0
        %795 = vmatpush2.bf16.msra.mxu0 0
        %796 = vmatprep.subr.bf16.mxu0 0
        %797 = vmatpush2.bf16.msra.mxu0 0
        %798 = vmatprep.subr.bf16.mxu0 0
        %799 = vmatpush2.bf16.msra.mxu0 0
        %800 = vmatprep.subr.bf16.mxu0 0
        %801 = vmatpush2.bf16.msra.mxu0 0
        %802 = vmatprep.subr.bf16.mxu0 0
        %803 = vmatpush2.bf16.msra.mxu0 0
        %804 = vmatprep.subr.bf16.mxu0 0
        %805 = vmatpush2.bf16.msra.mxu0 0
        %806 = vmatprep.subr.bf16.mxu0 0
        %807 = vmatpush2.bf16.msra.mxu0 0
        %808 = vmatprep.mubr.bf16.mxu0 0
        %809 = vmatmul.mubr.bf16.gmra.mxu0 %v774
        %v810 = vpop.f32.mrf.mxu0
        %v811 = vadd.f32 0.0, %v810
        %v812 = vpop.f32.mrf.mxu0
        %v813 = vpop.f32.mrf.mxu0
        %v814 = vpop.f32.mrf.mxu0
        %815 = vdwg.mxu0
        %v820 = vunpack.c.l.b16 %v742
        %v821 = vunpack.c.l.b16 %v743
        %v822 = vunpack.c.l.b16 %v744
        %v823 = vunpack.c.l.b16 %v745
        %v824 = vrot.slane %v821, 7
        %v825 = vsel %vm757, %v824, %v820
        %v826 = vrot.slane %v822, 6
        %v827 = vsel %vm760, %v826, %v825
        %v828 = vrot.slane %v823, 5
        %v829 = vsel %vm763, %v828, %v827
        %v830 = vpack.c.b16 %v829, %v829
        %v832 = vsel %vm772, %v830, 0
        %834 = vmatprep.subr.bf16.mxu0 0
        %835 = vmatpush1.bf16.msra.mxu0 0
        %836 = vmatprep.subr.bf16.mxu0 0
        %837 = vmatpush1.bf16.msra.mxu0 0
        %838 = vmatprep.subr.bf16.mxu0 0
        %839 = vmatpush1.bf16.msra.mxu0 0
        %840 = vmatprep.subr.bf16.mxu0 0
        %841 = vmatpush1.bf16.msra.mxu0 0
        %842 = vmatprep.subr.bf16.mxu0 0
        %843 = vmatpush1.bf16.msra.mxu0 0
        %844 = vmatprep.subr.bf16.mxu0 0
        %845 = vmatpush1.bf16.msra.mxu0 0
        %846 = vmatprep.subr.bf16.mxu0 0
        %847 = vmatpush1.bf16.msra.mxu0 0
        %848 = vmatprep.subr.bf16.mxu0 0
        %849 = vmatpush1.bf16.msra.mxu0 %v770
        %850 = vmatprep.subr.bf16.mxu0 0
        %851 = vmatpush2.bf16.msra.mxu0 0
        %852 = vmatprep.subr.bf16.mxu0 0
        %853 = vmatpush2.bf16.msra.mxu0 0
        %854 = vmatprep.subr.bf16.mxu0 0
        %855 = vmatpush2.bf16.msra.mxu0 0
        %856 = vmatprep.subr.bf16.mxu0 0
        %857 = vmatpush2.bf16.msra.mxu0 0
        %858 = vmatprep.subr.bf16.mxu0 0
        %859 = vmatpush2.bf16.msra.mxu0 0
        %860 = vmatprep.subr.bf16.mxu0 0
        %861 = vmatpush2.bf16.msra.mxu0 0
        %862 = vmatprep.subr.bf16.mxu0 0
        %863 = vmatpush2.bf16.msra.mxu0 0
        %864 = vmatprep.subr.bf16.mxu0 0
        %865 = vmatpush2.bf16.msra.mxu0 0
        %866 = vmatprep.mubr.bf16.mxu0 0
        %867 = vmatmul.mubr.bf16.gmra.mxu0 %v832
        %v868 = vpop.f32.mrf.mxu0
        %v869 = vadd.f32 0.0, %v868
        %v870 = vpop.f32.mrf.mxu0
        %v871 = vpop.f32.mrf.mxu0
        %v872 = vpop.f32.mrf.mxu0
        %873 = vdwg.mxu0
        %p874 = scmp.gt.s32.totalorder %s29, 0
        %s875 = scalar_select %p874, 1, 0
        %v876 = vstv %s875
        %vm877 = vcmp.eq.s32.totalorder %v876, 1
        %v878 = vsel %vm877, %v811, 0.0
        %v879 = vsel %vm877, %v869, 0.0
        %v880 = vpack.c.bf16 %v878, %v878
        %v883 = vunpack.c.l.s4 1966171168
        %v884 = vunpack.c.0.s8 %v883
        %v885 = vlaneseq
        %v886 = vshrl.u32 %v885, 7
        %v887 = vsub.s32 %v884, %v886
        %v888 = vrot.slane %v880, %v887
        %v889 = vcombine.high %v888, %v888
        %v891 = vunpack.c.l.s4 1966171168
        %v892 = vunpack.c.0.s8 %v891
        %v893 = vlaneseq
        %v894 = vshrl.u32 %v893, 7
        %v895 = vsub.s32 %v892, %v894
        %v896 = vrot.slane %v888, %v895
        %v898 = vunpack.c.l.s4 1966171168
        %v899 = vunpack.c.0.s8 %v898
        %v900 = vlaneseq
        %v901 = vshrl.u32 %v900, 7
        %v902 = vsub.s32 %v899, %v901
        %v903 = vrot.slane %v889, %v902
        %v904 = vunpack.i.l.s16 %v896
        %v905 = vunpack.i.h.s16 %v896
        %v906 = vunpack.i.l.s16 %v903
        %v907 = vunpack.i.h.s16 %v903
        %v908 = vpack.i.b16 %v904, %v904
        %v909 = vpack.i.b16 %v905, %v905
        %v910 = vpack.i.b16 %v906, %v906
        %v911 = vpack.i.b16 %v907, %v907
        %v913 = vunpack.c.l.s4 286326784
        %v914 = vunpack.c.0.s8 %v913
        %v915 = vlaneseq
        %v916 = vshrl.u32 %v915, 7
        %v917 = vsub.s32 %v914, %v916
        %v918 = vrot.slane %v908, %v917
        %v920 = vunpack.c.l.s4 286326784
        %v921 = vunpack.c.0.s8 %v920
        %v922 = vlaneseq
        %v923 = vshrl.u32 %v922, 7
        %v924 = vsub.s32 %v921, %v923
        %v925 = vrot.slane %v909, %v924
        %v927 = vunpack.c.l.s4 286326784
        %v928 = vunpack.c.0.s8 %v927
        %v929 = vlaneseq
        %v930 = vshrl.u32 %v929, 7
        %v931 = vsub.s32 %v928, %v930
        %v932 = vrot.slane %v910, %v931
        %v934 = vunpack.c.l.s4 286326784
        %v935 = vunpack.c.0.s8 %v934
        %v936 = vlaneseq
        %v937 = vshrl.u32 %v936, 7
        %v938 = vsub.s32 %v935, %v937
        %v939 = vrot.slane %v911, %v938
        %940 = vrot.lane.b32.xlu0 %v918, 1
        %v941 = vpop.permute.xlu0 %940
        %942 = vrot.lane.b32.xlu0 %v925, 1
        %v943 = vpop.permute.xlu0 %942
        %944 = vrot.lane.b32.xlu0 %v932, 1
        %v945 = vpop.permute.xlu0 %944
        %946 = vrot.lane.b32.xlu0 %v939, 1
        %v947 = vpop.permute.xlu0 %946
        %vm952 = vcmask 262152
        %vm953 = vsmask.f32 256
        %vm954 = vmand %vm952, %vm953
        %v955 = vld [vmem:[#allocation2] sm:$0x1]
        %v956 = vsel %vm954, %v941, %v955
        %957 = vst [vmem:[#allocation2] sm:$0x1] %v956
        %v958 = vld [vmem:[#allocation2 + $0x8] sm:$0x1]
        %v959 = vsel %vm954, %v943, %v958
        %960 = vst [vmem:[#allocation2 + $0x8] sm:$0x1] %v959
        %v961 = vld [vmem:[#allocation2 + $0x10] sm:$0x1]
        %v962 = vsel %vm954, %v945, %v961
        %963 = vst [vmem:[#allocation2 + $0x10] sm:$0x1] %v962
        %v964 = vld [vmem:[#allocation2 + $0x18] sm:$0x1]
        %v965 = vsel %vm954, %v947, %v964
        %966 = vst [vmem:[#allocation2 + $0x18] sm:$0x1] %v965
        %v967 = vpack.c.bf16 %v879, %v879
        %v970 = vunpack.c.l.s4 1966171168
        %v971 = vunpack.c.0.s8 %v970
        %v972 = vlaneseq
        %v973 = vshrl.u32 %v972, 7
        %v974 = vsub.s32 %v971, %v973
        %v975 = vrot.slane %v967, %v974
        %v976 = vcombine.high %v975, %v975
        %v978 = vunpack.c.l.s4 1966171168
        %v979 = vunpack.c.0.s8 %v978
        %v980 = vlaneseq
        %v981 = vshrl.u32 %v980, 7
        %v982 = vsub.s32 %v979, %v981
        %v983 = vrot.slane %v975, %v982
        %v985 = vunpack.c.l.s4 1966171168
        %v986 = vunpack.c.0.s8 %v985
        %v987 = vlaneseq
        %v988 = vshrl.u32 %v987, 7
        %v989 = vsub.s32 %v986, %v988
        %v990 = vrot.slane %v976, %v989
        %v991 = vunpack.i.l.s16 %v983
        %v992 = vunpack.i.h.s16 %v983
        %v993 = vunpack.i.l.s16 %v990
        %v994 = vunpack.i.h.s16 %v990
        %v995 = vpack.i.b16 %v991, %v991
        %v996 = vpack.i.b16 %v992, %v992
        %v997 = vpack.i.b16 %v993, %v993
        %v998 = vpack.i.b16 %v994, %v994
        %v1000 = vunpack.c.l.s4 286326784
        %v1001 = vunpack.c.0.s8 %v1000
        %v1002 = vlaneseq
        %v1003 = vshrl.u32 %v1002, 7
        %v1004 = vsub.s32 %v1001, %v1003
        %v1005 = vrot.slane %v995, %v1004
        %v1007 = vunpack.c.l.s4 286326784
        %v1008 = vunpack.c.0.s8 %v1007
        %v1009 = vlaneseq
        %v1010 = vshrl.u32 %v1009, 7
        %v1011 = vsub.s32 %v1008, %v1010
        %v1012 = vrot.slane %v996, %v1011
        %v1014 = vunpack.c.l.s4 286326784
        %v1015 = vunpack.c.0.s8 %v1014
        %v1016 = vlaneseq
        %v1017 = vshrl.u32 %v1016, 7
        %v1018 = vsub.s32 %v1015, %v1017
        %v1019 = vrot.slane %v997, %v1018
        %v1021 = vunpack.c.l.s4 286326784
        %v1022 = vunpack.c.0.s8 %v1021
        %v1023 = vlaneseq
        %v1024 = vshrl.u32 %v1023, 7
        %v1025 = vsub.s32 %v1022, %v1024
        %v1026 = vrot.slane %v998, %v1025
        %1027 = vrot.lane.b32.xlu0 %v1005, 1
        %v1028 = vpop.permute.xlu0 %1027
        %1029 = vrot.lane.b32.xlu0 %v1012, 1
        %v1030 = vpop.permute.xlu0 %1029
        %1031 = vrot.lane.b32.xlu0 %v1019, 1
        %v1032 = vpop.permute.xlu0 %1031
        %1033 = vrot.lane.b32.xlu0 %v1026, 1
        %v1034 = vpop.permute.xlu0 %1033
        %vm1039 = vsmask.f32 7938
        %vm1040 = vmand %vm952, %vm1039
        %v1041 = vld [vmem:[#allocation2] sm:$0x1]
        %v1042 = vsel %vm1040, %v1028, %v1041
        %1043 = vst [vmem:[#allocation2] sm:$0x1] %v1042
        %v1044 = vld [vmem:[#allocation2 + $0x8] sm:$0x1]
        %v1045 = vsel %vm1040, %v1030, %v1044
        %1046 = vst [vmem:[#allocation2 + $0x8] sm:$0x1] %v1045
        %v1047 = vld [vmem:[#allocation2 + $0x10] sm:$0x1]
        %v1048 = vsel %vm1040, %v1032, %v1047
        %1049 = vst [vmem:[#allocation2 + $0x10] sm:$0x1] %v1048
        %v1050 = vld [vmem:[#allocation2 + $0x18] sm:$0x1]
        %v1051 = vsel %vm1040, %v1034, %v1050
        %1052 = vst [vmem:[#allocation2 + $0x18] sm:$0x1] %v1051
        %s1053 = sadd.s32 %s688, 1
        %p1054 = scmp.gt.s32.totalorder %s1053, 0
        %s1055 = scalar_select %p1054, %s1053, 0
        %p1056 = scmp.lt.s32.totalorder %s1055, 15
        %s1057 = scalar_select %p1056, %s1055, 15
        %s1058 = scalar_lea.vmem %s467, %s1057
        %v1059 = vld [vmem:[%s1058] sm:$0x1]
        %v1060 = vld [vmem:[%s1058 + $0x10] sm:$0x1]
        %v1061 = vld [vmem:[%s1058 + $0x20] sm:$0x1]
        %v1062 = vld [vmem:[%s1058 + $0x30] sm:$0x1]
        %v1063 = vmul.f32 %v705, 0.25
        %v1064 = vmul.f32 %v706, 0.25
        %v1065 = vmul.f32 %v707, 0.25
        %v1066 = vmul.f32 %v708, 0.25
        %v1067 = vmul.f32 %v714, 0.75
        %v1068 = vmul.f32 %v715, 0.75
        %v1069 = vmul.f32 %v716, 0.75
        %v1070 = vmul.f32 %v717, 0.75
        %v1071 = vadd.f32 %v1063, %v1067
        %v1072 = vadd.f32 %v1064, %v1068
        %v1073 = vadd.f32 %v1065, %v1069
        %v1074 = vadd.f32 %v1066, %v1070
        %v1075 = vpack.c.bf16 %v1071, %v1071
        %v1076 = vpack.c.bf16 %v1072, %v1072
        %v1077 = vpack.c.bf16 %v1073, %v1073
        %v1078 = vpack.c.bf16 %v1074, %v1074
        %v1079 = vmul.f32 %v1059, 0.25
        %v1080 = vmul.f32 %v1060, 0.25
        %v1081 = vmul.f32 %v1061, 0.25
        %v1082 = vmul.f32 %v1062, 0.25
        %v1083 = vadd.f32 %v1067, %v1079
        %v1084 = vadd.f32 %v1068, %v1080
        %v1085 = vadd.f32 %v1069, %v1081
        %v1086 = vadd.f32 %v1070, %v1082
        %v1087 = vpack.c.bf16 %v1083, %v1083
        %v1088 = vpack.c.bf16 %v1084, %v1084
        %v1089 = vpack.c.bf16 %v1085, %v1085
        %v1090 = vpack.c.bf16 %v1086, %v1086
        %v1091 = vld [vmem:[%s3] sm:$0xf]
        %v1092 = vld [vmem:[%s3 + $0x4] sm:$0xf]
        %v1097 = vunpack.c.l.b16 %v1075
        %v1098 = vunpack.c.l.b16 %v1076
        %v1099 = vunpack.c.l.b16 %v1077
        %v1100 = vunpack.c.l.b16 %v1078
        %v1101 = vrot.slane %v1098, 7
        %v1102 = vsel %vm757, %v1101, %v1097
        %v1103 = vrot.slane %v1099, 6
        %v1104 = vsel %vm760, %v1103, %v1102
        %v1105 = vrot.slane %v1100, 5
        %v1106 = vsel %vm763, %v1105, %v1104
        %v1107 = vpack.c.b16 %v1106, %v1106
        %v1110 = vunpack.c.l.b16 %v1091
        %v1111 = vunpack.c.l.b16 %v1092
        %v1112 = vpack.c.b16 %v1111, %v1110
        %v1115 = vsel %vm772, %v1107, 0
        %1117 = vmatprep.subr.bf16.mxu0 0
        %1118 = vmatpush1.bf16.msra.mxu0 0
        %1119 = vmatprep.subr.bf16.mxu0 0
        %1120 = vmatpush1.bf16.msra.mxu0 0
        %1121 = vmatprep.subr.bf16.mxu0 0
        %1122 = vmatpush1.bf16.msra.mxu0 0
        %1123 = vmatprep.subr.bf16.mxu0 0
        %1124 = vmatpush1.bf16.msra.mxu0 0
        %1125 = vmatprep.subr.bf16.mxu0 0
        %1126 = vmatpush1.bf16.msra.mxu0 0
        %1127 = vmatprep.subr.bf16.mxu0 0
        %1128 = vmatpush1.bf16.msra.mxu0 0
        %1129 = vmatprep.subr.bf16.mxu0 0
        %1130 = vmatpush1.bf16.msra.mxu0 0
        %1131 = vmatprep.subr.bf16.mxu0 0
        %1132 = vmatpush1.bf16.msra.mxu0 %v1112
        %1133 = vmatprep.subr.bf16.mxu0 0
        %1134 = vmatpush2.bf16.msra.mxu0 0
        %1135 = vmatprep.subr.bf16.mxu0 0
        %1136 = vmatpush2.bf16.msra.mxu0 0
        %1137 = vmatprep.subr.bf16.mxu0 0
        %1138 = vmatpush2.bf16.msra.mxu0 0
        %1139 = vmatprep.subr.bf16.mxu0 0
        %1140 = vmatpush2.bf16.msra.mxu0 0
        %1141 = vmatprep.subr.bf16.mxu0 0
        %1142 = vmatpush2.bf16.msra.mxu0 0
        %1143 = vmatprep.subr.bf16.mxu0 0
        %1144 = vmatpush2.bf16.msra.mxu0 0
        %1145 = vmatprep.subr.bf16.mxu0 0
        %1146 = vmatpush2.bf16.msra.mxu0 0
        %1147 = vmatprep.subr.bf16.mxu0 0
        %1148 = vmatpush2.bf16.msra.mxu0 0
        %1149 = vmatprep.mubr.bf16.mxu0 0
        %1150 = vmatmul.mubr.bf16.gmra.mxu0 %v1115
        %v1151 = vpop.f32.mrf.mxu0
        %v1152 = vadd.f32 0.0, %v1151
        %v1153 = vpop.f32.mrf.mxu0
        %v1154 = vpop.f32.mrf.mxu0
        %v1155 = vpop.f32.mrf.mxu0
        %1156 = vdwg.mxu0
        %v1161 = vunpack.c.l.b16 %v1087
        %v1162 = vunpack.c.l.b16 %v1088
        %v1163 = vunpack.c.l.b16 %v1089
        %v1164 = vunpack.c.l.b16 %v1090
        %v1165 = vrot.slane %v1162, 7
        %v1166 = vsel %vm757, %v1165, %v1161
        %v1167 = vrot.slane %v1163, 6
        %v1168 = vsel %vm760, %v1167, %v1166
        %v1169 = vrot.slane %v1164, 5
        %v1170 = vsel %vm763, %v1169, %v1168
        %v1171 = vpack.c.b16 %v1170, %v1170
        %v1173 = vsel %vm772, %v1171, 0
        %1175 = vmatprep.subr.bf16.mxu0 0
        %1176 = vmatpush1.bf16.msra.mxu0 0
        %1177 = vmatprep.subr.bf16.mxu0 0
        %1178 = vmatpush1.bf16.msra.mxu0 0
        %1179 = vmatprep.subr.bf16.mxu0 0
        %1180 = vmatpush1.bf16.msra.mxu0 0
        %1181 = vmatprep.subr.bf16.mxu0 0
        %1182 = vmatpush1.bf16.msra.mxu0 0
        %1183 = vmatprep.subr.bf16.mxu0 0
        %1184 = vmatpush1.bf16.msra.mxu0 0
        %1185 = vmatprep.subr.bf16.mxu0 0
        %1186 = vmatpush1.bf16.msra.mxu0 0
        %1187 = vmatprep.subr.bf16.mxu0 0
        %1188 = vmatpush1.bf16.msra.mxu0 0
        %1189 = vmatprep.subr.bf16.mxu0 0
        %1190 = vmatpush1.bf16.msra.mxu0 %v1112
        %1191 = vmatprep.subr.bf16.mxu0 0
        %1192 = vmatpush2.bf16.msra.mxu0 0
        %1193 = vmatprep.subr.bf16.mxu0 0
        %1194 = vmatpush2.bf16.msra.mxu0 0
        %1195 = vmatprep.subr.bf16.mxu0 0
        %1196 = vmatpush2.bf16.msra.mxu0 0
        %1197 = vmatprep.subr.bf16.mxu0 0
        %1198 = vmatpush2.bf16.msra.mxu0 0
        %1199 = vmatprep.subr.bf16.mxu0 0
        %1200 = vmatpush2.bf16.msra.mxu0 0
        %1201 = vmatprep.subr.bf16.mxu0 0
        %1202 = vmatpush2.bf16.msra.mxu0 0
        %1203 = vmatprep.subr.bf16.mxu0 0
        %1204 = vmatpush2.bf16.msra.mxu0 0
        %1205 = vmatprep.subr.bf16.mxu0 0
        %1206 = vmatpush2.bf16.msra.mxu0 0
        %1207 = vmatprep.mubr.bf16.mxu0 0
        %1208 = vmatmul.mubr.bf16.gmra.mxu0 %v1173
        %v1209 = vpop.f32.mrf.mxu0
        %v1210 = vadd.f32 0.0, %v1209
        %v1211 = vpop.f32.mrf.mxu0
        %v1212 = vpop.f32.mrf.mxu0
        %v1213 = vpop.f32.mrf.mxu0
        %1214 = vdwg.mxu0
        %v1215 = vpack.c.bf16 %v1152, %v1152
        %v1218 = vunpack.c.l.s4 1966171168
        %v1219 = vunpack.c.0.s8 %v1218
        %v1220 = vlaneseq
        %v1221 = vshrl.u32 %v1220, 7
        %v1222 = vsub.s32 %v1219, %v1221
        %v1223 = vrot.slane %v1215, %v1222
        %v1224 = vcombine.high %v1223, %v1223
        %v1226 = vunpack.c.l.s4 1966171168
        %v1227 = vunpack.c.0.s8 %v1226
        %v1228 = vlaneseq
        %v1229 = vshrl.u32 %v1228, 7
        %v1230 = vsub.s32 %v1227, %v1229
        %v1231 = vrot.slane %v1223, %v1230
        %v1233 = vunpack.c.l.s4 1966171168
        %v1234 = vunpack.c.0.s8 %v1233
        %v1235 = vlaneseq
        %v1236 = vshrl.u32 %v1235, 7
        %v1237 = vsub.s32 %v1234, %v1236
        %v1238 = vrot.slane %v1224, %v1237
        %v1239 = vunpack.i.l.s16 %v1231
        %v1240 = vunpack.i.h.s16 %v1231
        %v1241 = vunpack.i.l.s16 %v1238
        %v1242 = vunpack.i.h.s16 %v1238
        %v1243 = vpack.i.b16 %v1239, %v1239
        %v1244 = vpack.i.b16 %v1240, %v1240
        %v1245 = vpack.i.b16 %v1241, %v1241
        %v1246 = vpack.i.b16 %v1242, %v1242
        %v1248 = vunpack.c.l.s4 286326784
        %v1249 = vunpack.c.0.s8 %v1248
        %v1250 = vlaneseq
        %v1251 = vshrl.u32 %v1250, 7
        %v1252 = vsub.s32 %v1249, %v1251
        %v1253 = vrot.slane %v1243, %v1252
        %v1255 = vunpack.c.l.s4 286326784
        %v1256 = vunpack.c.0.s8 %v1255
        %v1257 = vlaneseq
        %v1258 = vshrl.u32 %v1257, 7
        %v1259 = vsub.s32 %v1256, %v1258
        %v1260 = vrot.slane %v1244, %v1259
        %v1262 = vunpack.c.l.s4 286326784
        %v1263 = vunpack.c.0.s8 %v1262
        %v1264 = vlaneseq
        %v1265 = vshrl.u32 %v1264, 7
        %v1266 = vsub.s32 %v1263, %v1265
        %v1267 = vrot.slane %v1245, %v1266
        %v1269 = vunpack.c.l.s4 286326784
        %v1270 = vunpack.c.0.s8 %v1269
        %v1271 = vlaneseq
        %v1272 = vshrl.u32 %v1271, 7
        %v1273 = vsub.s32 %v1270, %v1272
        %v1274 = vrot.slane %v1246, %v1273
        %1275 = vrot.lane.b32.xlu0 %v1253, 1
        %v1276 = vpop.permute.xlu0 %1275
        %1277 = vrot.lane.b32.xlu0 %v1260, 1
        %v1278 = vpop.permute.xlu0 %1277
        %1279 = vrot.lane.b32.xlu0 %v1267, 1
        %v1280 = vpop.permute.xlu0 %1279
        %1281 = vrot.lane.b32.xlu0 %v1274, 1
        %v1282 = vpop.permute.xlu0 %1281
        %vm1287 = vcmask 263177
        %vm1288 = vsmask.f32 1280
        %vm1289 = vmand %vm1287, %vm1288
        %v1290 = vld [vmem:[#allocation2] sm:$0x2]
        %v1291 = vsel %vm1289, %v1276, %v1290
        %1292 = vst [vmem:[#allocation2] sm:$0x2] %v1291
        %v1293 = vld [vmem:[#allocation2 + $0x8] sm:$0x2]
        %v1294 = vsel %vm1289, %v1278, %v1293
        %1295 = vst [vmem:[#allocation2 + $0x8] sm:$0x2] %v1294
        %v1296 = vld [vmem:[#allocation2 + $0x10] sm:$0x2]
        %v1297 = vsel %vm1289, %v1280, %v1296
        %1298 = vst [vmem:[#allocation2 + $0x10] sm:$0x2] %v1297
        %v1299 = vld [vmem:[#allocation2 + $0x18] sm:$0x2]
        %v1300 = vsel %vm1289, %v1282, %v1299
        %1301 = vst [vmem:[#allocation2 + $0x18] sm:$0x2] %v1300
        %v1302 = vpack.c.bf16 %v1210, %v1210
        %v1305 = vunpack.c.l.s4 1966171168
        %v1306 = vunpack.c.0.s8 %v1305
        %v1307 = vlaneseq
        %v1308 = vshrl.u32 %v1307, 7
        %v1309 = vsub.s32 %v1306, %v1308
        %v1310 = vrot.slane %v1302, %v1309
        %v1311 = vcombine.high %v1310, %v1310
        %v1313 = vunpack.c.l.s4 1966171168
        %v1314 = vunpack.c.0.s8 %v1313
        %v1315 = vlaneseq
        %v1316 = vshrl.u32 %v1315, 7
        %v1317 = vsub.s32 %v1314, %v1316
        %v1318 = vrot.slane %v1310, %v1317
        %v1320 = vunpack.c.l.s4 1966171168
        %v1321 = vunpack.c.0.s8 %v1320
        %v1322 = vlaneseq
        %v1323 = vshrl.u32 %v1322, 7
        %v1324 = vsub.s32 %v1321, %v1323
        %v1325 = vrot.slane %v1311, %v1324
        %v1326 = vunpack.i.l.s16 %v1318
        %v1327 = vunpack.i.h.s16 %v1318
        %v1328 = vunpack.i.l.s16 %v1325
        %v1329 = vunpack.i.h.s16 %v1325
        %v1330 = vpack.i.b16 %v1326, %v1326
        %v1331 = vpack.i.b16 %v1327, %v1327
        %v1332 = vpack.i.b16 %v1328, %v1328
        %v1333 = vpack.i.b16 %v1329, %v1329
        %v1335 = vunpack.c.l.s4 286326784
        %v1336 = vunpack.c.0.s8 %v1335
        %v1337 = vlaneseq
        %v1338 = vshrl.u32 %v1337, 7
        %v1339 = vsub.s32 %v1336, %v1338
        %v1340 = vrot.slane %v1330, %v1339
        %v1342 = vunpack.c.l.s4 286326784
        %v1343 = vunpack.c.0.s8 %v1342
        %v1344 = vlaneseq
        %v1345 = vshrl.u32 %v1344, 7
        %v1346 = vsub.s32 %v1343, %v1345
        %v1347 = vrot.slane %v1331, %v1346
        %v1349 = vunpack.c.l.s4 286326784
        %v1350 = vunpack.c.0.s8 %v1349
        %v1351 = vlaneseq
        %v1352 = vshrl.u32 %v1351, 7
        %v1353 = vsub.s32 %v1350, %v1352
        %v1354 = vrot.slane %v1332, %v1353
        %v1356 = vunpack.c.l.s4 286326784
        %v1357 = vunpack.c.0.s8 %v1356
        %v1358 = vlaneseq
        %v1359 = vshrl.u32 %v1358, 7
        %v1360 = vsub.s32 %v1357, %v1359
        %v1361 = vrot.slane %v1333, %v1360
        %1362 = vrot.lane.b32.xlu0 %v1340, 1
        %v1363 = vpop.permute.xlu0 %1362
        %1364 = vrot.lane.b32.xlu0 %v1347, 1
        %v1365 = vpop.permute.xlu0 %1364
        %1366 = vrot.lane.b32.xlu0 %v1354, 1
        %v1367 = vpop.permute.xlu0 %1366
        %1368 = vrot.lane.b32.xlu0 %v1361, 1
        %v1369 = vpop.permute.xlu0 %1368
        %vm1374 = vsmask.f32 7942
        %vm1375 = vmand %vm1287, %vm1374
        %v1376 = vld [vmem:[#allocation2] sm:$0x2]
        %v1377 = vsel %vm1375, %v1363, %v1376
        %1378 = vst [vmem:[#allocation2] sm:$0x2] %v1377
        %v1379 = vld [vmem:[#allocation2 + $0x8] sm:$0x2]
        %v1380 = vsel %vm1375, %v1365, %v1379
        %1381 = vst [vmem:[#allocation2 + $0x8] sm:$0x2] %v1380
        %v1382 = vld [vmem:[#allocation2 + $0x10] sm:$0x2]
        %v1383 = vsel %vm1375, %v1367, %v1382
        %1384 = vst [vmem:[#allocation2 + $0x10] sm:$0x2] %v1383
        %v1385 = vld [vmem:[#allocation2 + $0x18] sm:$0x2]
        %v1386 = vsel %vm1375, %v1369, %v1385
        %1387 = vst [vmem:[#allocation2 + $0x18] sm:$0x2] %v1386
        %s1388 = sadd.s32 %s688, 2
        %p1389 = scmp.gt.s32.totalorder %s1388, 0
        %s1390 = scalar_select %p1389, %s1388, 0
        %p1391 = scmp.lt.s32.totalorder %s1390, 15
        %s1392 = scalar_select %p1391, %s1390, 15
        %s1393 = scalar_lea.vmem %s467, %s1392
        %v1394 = vld [vmem:[%s1393] sm:$0x1]
        %v1395 = vld [vmem:[%s1393 + $0x10] sm:$0x1]
        %v1396 = vld [vmem:[%s1393 + $0x20] sm:$0x1]
        %v1397 = vld [vmem:[%s1393 + $0x30] sm:$0x1]
        %v1398 = vmul.f32 %v1059, 0.75
        %v1399 = vmul.f32 %v1060, 0.75
        %v1400 = vmul.f32 %v1061, 0.75
        %v1401 = vmul.f32 %v1062, 0.75
        %v1402 = vadd.f32 %v734, %v1398
        %v1403 = vadd.f32 %v735, %v1399
        %v1404 = vadd.f32 %v736, %v1400
        %v1405 = vadd.f32 %v737, %v1401
        %v1406 = vpack.c.bf16 %v1402, %v1402
        %v1407 = vpack.c.bf16 %v1403, %v1403
        %v1408 = vpack.c.bf16 %v1404, %v1404
        %v1409 = vpack.c.bf16 %v1405, %v1405
        %v1410 = vmul.f32 %v1394, 0.25
        %v1411 = vmul.f32 %v1395, 0.25
        %v1412 = vmul.f32 %v1396, 0.25
        %v1413 = vmul.f32 %v1397, 0.25
        %v1414 = vadd.f32 %v1398, %v1410
        %v1415 = vadd.f32 %v1399, %v1411
        %v1416 = vadd.f32 %v1400, %v1412
        %v1417 = vadd.f32 %v1401, %v1413
        %v1418 = vpack.c.bf16 %v1414, %v1414
        %v1419 = vpack.c.bf16 %v1415, %v1415
        %v1420 = vpack.c.bf16 %v1416, %v1416
        %v1421 = vpack.c.bf16 %v1417, %v1417
        %v1422 = vld [vmem:[%s3] sm:$0xf]
        %v1423 = vld [vmem:[%s3 + $0x4] sm:$0xf]
        %v1428 = vunpack.c.l.b16 %v1406
        %v1429 = vunpack.c.l.b16 %v1407
        %v1430 = vunpack.c.l.b16 %v1408
        %v1431 = vunpack.c.l.b16 %v1409
        %v1432 = vrot.slane %v1429, 7
        %v1433 = vsel %vm757, %v1432, %v1428
        %v1434 = vrot.slane %v1430, 6
        %v1435 = vsel %vm760, %v1434, %v1433
        %v1436 = vrot.slane %v1431, 5
        %v1437 = vsel %vm763, %v1436, %v1435
        %v1438 = vpack.c.b16 %v1437, %v1437
        %v1441 = vunpack.c.l.b16 %v1422
        %v1442 = vunpack.c.l.b16 %v1423
        %v1443 = vpack.c.b16 %v1442, %v1441
        %v1446 = vsel %vm772, %v1438, 0
        %1448 = vmatprep.subr.bf16.mxu0 0
        %1449 = vmatpush1.bf16.msra.mxu0 0
        %1450 = vmatprep.subr.bf16.mxu0 0
        %1451 = vmatpush1.bf16.msra.mxu0 0
        %1452 = vmatprep.subr.bf16.mxu0 0
        %1453 = vmatpush1.bf16.msra.mxu0 0
        %1454 = vmatprep.subr.bf16.mxu0 0
        %1455 = vmatpush1.bf16.msra.mxu0 0
        %1456 = vmatprep.subr.bf16.mxu0 0
        %1457 = vmatpush1.bf16.msra.mxu0 0
        %1458 = vmatprep.subr.bf16.mxu0 0
        %1459 = vmatpush1.bf16.msra.mxu0 0
        %1460 = vmatprep.subr.bf16.mxu0 0
        %1461 = vmatpush1.bf16.msra.mxu0 0
        %1462 = vmatprep.subr.bf16.mxu0 0
        %1463 = vmatpush1.bf16.msra.mxu0 %v1443
        %1464 = vmatprep.subr.bf16.mxu0 0
        %1465 = vmatpush2.bf16.msra.mxu0 0
        %1466 = vmatprep.subr.bf16.mxu0 0
        %1467 = vmatpush2.bf16.msra.mxu0 0
        %1468 = vmatprep.subr.bf16.mxu0 0
        %1469 = vmatpush2.bf16.msra.mxu0 0
        %1470 = vmatprep.subr.bf16.mxu0 0
        %1471 = vmatpush2.bf16.msra.mxu0 0
        %1472 = vmatprep.subr.bf16.mxu0 0
        %1473 = vmatpush2.bf16.msra.mxu0 0
        %1474 = vmatprep.subr.bf16.mxu0 0
        %1475 = vmatpush2.bf16.msra.mxu0 0
        %1476 = vmatprep.subr.bf16.mxu0 0
        %1477 = vmatpush2.bf16.msra.mxu0 0
        %1478 = vmatprep.subr.bf16.mxu0 0
        %1479 = vmatpush2.bf16.msra.mxu0 0
        %1480 = vmatprep.mubr.bf16.mxu0 0
        %1481 = vmatmul.mubr.bf16.gmra.mxu0 %v1446
        %v1482 = vpop.f32.mrf.mxu0
        %v1483 = vadd.f32 0.0, %v1482
        %v1484 = vpop.f32.mrf.mxu0
        %v1485 = vpop.f32.mrf.mxu0
        %v1486 = vpop.f32.mrf.mxu0
        %1487 = vdwg.mxu0
        %v1492 = vunpack.c.l.b16 %v1418
        %v1493 = vunpack.c.l.b16 %v1419
        %v1494 = vunpack.c.l.b16 %v1420
        %v1495 = vunpack.c.l.b16 %v1421
        %v1496 = vrot.slane %v1493, 7
        %v1497 = vsel %vm757, %v1496, %v1492
        %v1498 = vrot.slane %v1494, 6
        %v1499 = vsel %vm760, %v1498, %v1497
        %v1500 = vrot.slane %v1495, 5
        %v1501 = vsel %vm763, %v1500, %v1499
        %v1502 = vpack.c.b16 %v1501, %v1501
        %v1504 = vsel %vm772, %v1502, 0
        %1506 = vmatprep.subr.bf16.mxu0 0
        %1507 = vmatpush1.bf16.msra.mxu0 0
        %1508 = vmatprep.subr.bf16.mxu0 0
        %1509 = vmatpush1.bf16.msra.mxu0 0
        %1510 = vmatprep.subr.bf16.mxu0 0
        %1511 = vmatpush1.bf16.msra.mxu0 0
        %1512 = vmatprep.subr.bf16.mxu0 0
        %1513 = vmatpush1.bf16.msra.mxu0 0
        %1514 = vmatprep.subr.bf16.mxu0 0
        %1515 = vmatpush1.bf16.msra.mxu0 0
        %1516 = vmatprep.subr.bf16.mxu0 0
        %1517 = vmatpush1.bf16.msra.mxu0 0
        %1518 = vmatprep.subr.bf16.mxu0 0
        %1519 = vmatpush1.bf16.msra.mxu0 0
        %1520 = vmatprep.subr.bf16.mxu0 0
        %1521 = vmatpush1.bf16.msra.mxu0 %v1443
        %1522 = vmatprep.subr.bf16.mxu0 0
        %1523 = vmatpush2.bf16.msra.mxu0 0
        %1524 = vmatprep.subr.bf16.mxu0 0
        %1525 = vmatpush2.bf16.msra.mxu0 0
        %1526 = vmatprep.subr.bf16.mxu0 0
        %1527 = vmatpush2.bf16.msra.mxu0 0
        %1528 = vmatprep.subr.bf16.mxu0 0
        %1529 = vmatpush2.bf16.msra.mxu0 0
        %1530 = vmatprep.subr.bf16.mxu0 0
        %1531 = vmatpush2.bf16.msra.mxu0 0
        %1532 = vmatprep.subr.bf16.mxu0 0
        %1533 = vmatpush2.bf16.msra.mxu0 0
        %1534 = vmatprep.subr.bf16.mxu0 0
        %1535 = vmatpush2.bf16.msra.mxu0 0
        %1536 = vmatprep.subr.bf16.mxu0 0
        %1537 = vmatpush2.bf16.msra.mxu0 0
        %1538 = vmatprep.mubr.bf16.mxu0 0
        %1539 = vmatmul.mubr.bf16.gmra.mxu0 %v1504
        %v1540 = vpop.f32.mrf.mxu0
        %v1541 = vadd.f32 0.0, %v1540
        %v1542 = vpop.f32.mrf.mxu0
        %v1543 = vpop.f32.mrf.mxu0
        %v1544 = vpop.f32.mrf.mxu0
        %1545 = vdwg.mxu0
        %v1546 = vpack.c.bf16 %v1483, %v1483
        %v1549 = vunpack.c.l.s4 1966171168
        %v1550 = vunpack.c.0.s8 %v1549
        %v1551 = vlaneseq
        %v1552 = vshrl.u32 %v1551, 7
        %v1553 = vsub.s32 %v1550, %v1552
        %v1554 = vrot.slane %v1546, %v1553
        %v1555 = vcombine.high %v1554, %v1554
        %v1557 = vunpack.c.l.s4 1966171168
        %v1558 = vunpack.c.0.s8 %v1557
        %v1559 = vlaneseq
        %v1560 = vshrl.u32 %v1559, 7
        %v1561 = vsub.s32 %v1558, %v1560
        %v1562 = vrot.slane %v1554, %v1561
        %v1564 = vunpack.c.l.s4 1966171168
        %v1565 = vunpack.c.0.s8 %v1564
        %v1566 = vlaneseq
        %v1567 = vshrl.u32 %v1566, 7
        %v1568 = vsub.s32 %v1565, %v1567
        %v1569 = vrot.slane %v1555, %v1568
        %v1570 = vunpack.i.l.s16 %v1562
        %v1571 = vunpack.i.h.s16 %v1562
        %v1572 = vunpack.i.l.s16 %v1569
        %v1573 = vunpack.i.h.s16 %v1569
        %v1574 = vpack.i.b16 %v1570, %v1570
        %v1575 = vpack.i.b16 %v1571, %v1571
        %v1576 = vpack.i.b16 %v1572, %v1572
        %v1577 = vpack.i.b16 %v1573, %v1573
        %v1579 = vunpack.c.l.s4 286326784
        %v1580 = vunpack.c.0.s8 %v1579
        %v1581 = vlaneseq
        %v1582 = vshrl.u32 %v1581, 7
        %v1583 = vsub.s32 %v1580, %v1582
        %v1584 = vrot.slane %v1574, %v1583
        %v1586 = vunpack.c.l.s4 286326784
        %v1587 = vunpack.c.0.s8 %v1586
        %v1588 = vlaneseq
        %v1589 = vshrl.u32 %v1588, 7
        %v1590 = vsub.s32 %v1587, %v1589
        %v1591 = vrot.slane %v1575, %v1590
        %v1593 = vunpack.c.l.s4 286326784
        %v1594 = vunpack.c.0.s8 %v1593
        %v1595 = vlaneseq
        %v1596 = vshrl.u32 %v1595, 7
        %v1597 = vsub.s32 %v1594, %v1596
        %v1598 = vrot.slane %v1576, %v1597
        %v1600 = vunpack.c.l.s4 286326784
        %v1601 = vunpack.c.0.s8 %v1600
        %v1602 = vlaneseq
        %v1603 = vshrl.u32 %v1602, 7
        %v1604 = vsub.s32 %v1601, %v1603
        %v1605 = vrot.slane %v1577, %v1604
        %1606 = vrot.lane.b32.xlu0 %v1584, 1
        %v1607 = vpop.permute.xlu0 %1606
        %1608 = vrot.lane.b32.xlu0 %v1591, 1
        %v1609 = vpop.permute.xlu0 %1608
        %1610 = vrot.lane.b32.xlu0 %v1598, 1
        %v1611 = vpop.permute.xlu0 %1610
        %1612 = vrot.lane.b32.xlu0 %v1605, 1
        %v1613 = vpop.permute.xlu0 %1612
        %vm1618 = vcmask 264202
        %vm1619 = vsmask.f32 2304
        %vm1620 = vmand %vm1618, %vm1619
        %v1621 = vld [vmem:[#allocation2] sm:$0x4]
        %v1622 = vsel %vm1620, %v1607, %v1621
        %1623 = vst [vmem:[#allocation2] sm:$0x4] %v1622
        %v1624 = vld [vmem:[#allocation2 + $0x8] sm:$0x4]
        %v1625 = vsel %vm1620, %v1609, %v1624
        %1626 = vst [vmem:[#allocation2 + $0x8] sm:$0x4] %v1625
        %v1627 = vld [vmem:[#allocation2 + $0x10] sm:$0x4]
        %v1628 = vsel %vm1620, %v1611, %v1627
        %1629 = vst [vmem:[#allocation2 + $0x10] sm:$0x4] %v1628
        %v1630 = vld [vmem:[#allocation2 + $0x18] sm:$0x4]
        %v1631 = vsel %vm1620, %v1613, %v1630
        %1632 = vst [vmem:[#allocation2 + $0x18] sm:$0x4] %v1631
        %v1633 = vpack.c.bf16 %v1541, %v1541
        %v1636 = vunpack.c.l.s4 1966171168
        %v1637 = vunpack.c.0.s8 %v1636
        %v1638 = vlaneseq
        %v1639 = vshrl.u32 %v1638, 7
        %v1640 = vsub.s32 %v1637, %v1639
        %v1641 = vrot.slane %v1633, %v1640
        %v1642 = vcombine.high %v1641, %v1641
        %v1644 = vunpack.c.l.s4 1966171168
        %v1645 = vunpack.c.0.s8 %v1644
        %v1646 = vlaneseq
        %v1647 = vshrl.u32 %v1646, 7
        %v1648 = vsub.s32 %v1645, %v1647
        %v1649 = vrot.slane %v1641, %v1648
        %v1651 = vunpack.c.l.s4 1966171168
        %v1652 = vunpack.c.0.s8 %v1651
        %v1653 = vlaneseq
        %v1654 = vshrl.u32 %v1653, 7
        %v1655 = vsub.s32 %v1652, %v1654
        %v1656 = vrot.slane %v1642, %v1655
        %v1657 = vunpack.i.l.s16 %v1649
        %v1658 = vunpack.i.h.s16 %v1649
        %v1659 = vunpack.i.l.s16 %v1656
        %v1660 = vunpack.i.h.s16 %v1656
        %v1661 = vpack.i.b16 %v1657, %v1657
        %v1662 = vpack.i.b16 %v1658, %v1658
        %v1663 = vpack.i.b16 %v1659, %v1659
        %v1664 = vpack.i.b16 %v1660, %v1660
        %v1666 = vunpack.c.l.s4 286326784
        %v1667 = vunpack.c.0.s8 %v1666
        %v1668 = vlaneseq
        %v1669 = vshrl.u32 %v1668, 7
        %v1670 = vsub.s32 %v1667, %v1669
        %v1671 = vrot.slane %v1661, %v1670
        %v1673 = vunpack.c.l.s4 286326784
        %v1674 = vunpack.c.0.s8 %v1673
        %v1675 = vlaneseq
        %v1676 = vshrl.u32 %v1675, 7
        %v1677 = vsub.s32 %v1674, %v1676
        %v1678 = vrot.slane %v1662, %v1677
        %v1680 = vunpack.c.l.s4 286326784
        %v1681 = vunpack.c.0.s8 %v1680
        %v1682 = vlaneseq
        %v1683 = vshrl.u32 %v1682, 7
        %v1684 = vsub.s32 %v1681, %v1683
        %v1685 = vrot.slane %v1663, %v1684
        %v1687 = vunpack.c.l.s4 286326784
        %v1688 = vunpack.c.0.s8 %v1687
        %v1689 = vlaneseq
        %v1690 = vshrl.u32 %v1689, 7
        %v1691 = vsub.s32 %v1688, %v1690
        %v1692 = vrot.slane %v1664, %v1691
        %1693 = vrot.lane.b32.xlu0 %v1671, 1
        %v1694 = vpop.permute.xlu0 %1693
        %1695 = vrot.lane.b32.xlu0 %v1678, 1
        %v1696 = vpop.permute.xlu0 %1695
        %1697 = vrot.lane.b32.xlu0 %v1685, 1
        %v1698 = vpop.permute.xlu0 %1697
        %1699 = vrot.lane.b32.xlu0 %v1692, 1
        %v1700 = vpop.permute.xlu0 %1699
        %vm1705 = vsmask.f32 7946
        %vm1706 = vmand %vm1618, %vm1705
        %v1707 = vld [vmem:[#allocation2] sm:$0x4]
        %v1708 = vsel %vm1706, %v1694, %v1707
        %1709 = vst [vmem:[#allocation2] sm:$0x4] %v1708
        %v1710 = vld [vmem:[#allocation2 + $0x8] sm:$0x4]
        %v1711 = vsel %vm1706, %v1696, %v1710
        %1712 = vst [vmem:[#allocation2 + $0x8] sm:$0x4] %v1711
        %v1713 = vld [vmem:[#allocation2 + $0x10] sm:$0x4]
        %v1714 = vsel %vm1706, %v1698, %v1713
        %1715 = vst [vmem:[#allocation2 + $0x10] sm:$0x4] %v1714
        %v1716 = vld [vmem:[#allocation2 + $0x18] sm:$0x4]
        %v1717 = vsel %vm1706, %v1700, %v1716
        %1718 = vst [vmem:[#allocation2 + $0x18] sm:$0x4] %v1717
        %s1719 = sadd.s32 %s688, 3
        %p1720 = scmp.gt.s32.totalorder %s1719, 0
        %s1721 = scalar_select %p1720, %s1719, 0
        %p1722 = scmp.lt.s32.totalorder %s1721, 15
        %s1723 = scalar_select %p1722, %s1721, 15
        %s1724 = scalar_lea.vmem %s467, %s1723
        %v1725 = vld [vmem:[%s1724] sm:$0x1]
        %v1726 = vld [vmem:[%s1724 + $0x10] sm:$0x1]
        %v1727 = vld [vmem:[%s1724 + $0x20] sm:$0x1]
        %v1728 = vld [vmem:[%s1724 + $0x30] sm:$0x1]
        %v1729 = vmul.f32 %v1394, 0.75
        %v1730 = vmul.f32 %v1395, 0.75
        %v1731 = vmul.f32 %v1396, 0.75
        %v1732 = vmul.f32 %v1397, 0.75
        %v1733 = vadd.f32 %v1079, %v1729
        %v1734 = vadd.f32 %v1080, %v1730
        %v1735 = vadd.f32 %v1081, %v1731
        %v1736 = vadd.f32 %v1082, %v1732
        %v1737 = vpack.c.bf16 %v1733, %v1733
        %v1738 = vpack.c.bf16 %v1734, %v1734
        %v1739 = vpack.c.bf16 %v1735, %v1735
        %v1740 = vpack.c.bf16 %v1736, %v1736
        %v1741 = vmul.f32 %v1725, 0.25
        %v1742 = vmul.f32 %v1726, 0.25
        %v1743 = vmul.f32 %v1727, 0.25
        %v1744 = vmul.f32 %v1728, 0.25
        %v1745 = vadd.f32 %v1729, %v1741
        %v1746 = vadd.f32 %v1730, %v1742
        %v1747 = vadd.f32 %v1731, %v1743
        %v1748 = vadd.f32 %v1732, %v1744
        %v1749 = vpack.c.bf16 %v1745, %v1745
        %v1750 = vpack.c.bf16 %v1746, %v1746
        %v1751 = vpack.c.bf16 %v1747, %v1747
        %v1752 = vpack.c.bf16 %v1748, %v1748
        %v1753 = vld [vmem:[%s3] sm:$0xf]
        %v1754 = vld [vmem:[%s3 + $0x4] sm:$0xf]
        %v1759 = vunpack.c.l.b16 %v1737
        %v1760 = vunpack.c.l.b16 %v1738
        %v1761 = vunpack.c.l.b16 %v1739
        %v1762 = vunpack.c.l.b16 %v1740
        %v1763 = vrot.slane %v1760, 7
        %v1764 = vsel %vm757, %v1763, %v1759
        %v1765 = vrot.slane %v1761, 6
        %v1766 = vsel %vm760, %v1765, %v1764
        %v1767 = vrot.slane %v1762, 5
        %v1768 = vsel %vm763, %v1767, %v1766
        %v1769 = vpack.c.b16 %v1768, %v1768
        %v1772 = vunpack.c.l.b16 %v1753
        %v1773 = vunpack.c.l.b16 %v1754
        %v1774 = vpack.c.b16 %v1773, %v1772
        %v1777 = vsel %vm772, %v1769, 0
        %1779 = vmatprep.subr.bf16.mxu0 0
        %1780 = vmatpush1.bf16.msra.mxu0 0
        %1781 = vmatprep.subr.bf16.mxu0 0
        %1782 = vmatpush1.bf16.msra.mxu0 0
        %1783 = vmatprep.subr.bf16.mxu0 0
        %1784 = vmatpush1.bf16.msra.mxu0 0
        %1785 = vmatprep.subr.bf16.mxu0 0
        %1786 = vmatpush1.bf16.msra.mxu0 0
        %1787 = vmatprep.subr.bf16.mxu0 0
        %1788 = vmatpush1.bf16.msra.mxu0 0
        %1789 = vmatprep.subr.bf16.mxu0 0
        %1790 = vmatpush1.bf16.msra.mxu0 0
        %1791 = vmatprep.subr.bf16.mxu0 0
        %1792 = vmatpush1.bf16.msra.mxu0 0
        %1793 = vmatprep.subr.bf16.mxu0 0
        %1794 = vmatpush1.bf16.msra.mxu0 %v1774
        %1795 = vmatprep.subr.bf16.mxu0 0
        %1796 = vmatpush2.bf16.msra.mxu0 0
        %1797 = vmatprep.subr.bf16.mxu0 0
        %1798 = vmatpush2.bf16.msra.mxu0 0
        %1799 = vmatprep.subr.bf16.mxu0 0
        %1800 = vmatpush2.bf16.msra.mxu0 0
        %1801 = vmatprep.subr.bf16.mxu0 0
        %1802 = vmatpush2.bf16.msra.mxu0 0
        %1803 = vmatprep.subr.bf16.mxu0 0
        %1804 = vmatpush2.bf16.msra.mxu0 0
        %1805 = vmatprep.subr.bf16.mxu0 0
        %1806 = vmatpush2.bf16.msra.mxu0 0
        %1807 = vmatprep.subr.bf16.mxu0 0
        %1808 = vmatpush2.bf16.msra.mxu0 0
        %1809 = vmatprep.subr.bf16.mxu0 0
        %1810 = vmatpush2.bf16.msra.mxu0 0
        %1811 = vmatprep.mubr.bf16.mxu0 0
        %1812 = vmatmul.mubr.bf16.gmra.mxu0 %v1777
        %v1813 = vpop.f32.mrf.mxu0
        %v1814 = vadd.f32 0.0, %v1813
        %v1815 = vpop.f32.mrf.mxu0
        %v1816 = vpop.f32.mrf.mxu0
        %v1817 = vpop.f32.mrf.mxu0
        %1818 = vdwg.mxu0
        %v1823 = vunpack.c.l.b16 %v1749
        %v1824 = vunpack.c.l.b16 %v1750
        %v1825 = vunpack.c.l.b16 %v1751
        %v1826 = vunpack.c.l.b16 %v1752
        %v1827 = vrot.slane %v1824, 7
        %v1828 = vsel %vm757, %v1827, %v1823
        %v1829 = vrot.slane %v1825, 6
        %v1830 = vsel %vm760, %v1829, %v1828
        %v1831 = vrot.slane %v1826, 5
        %v1832 = vsel %vm763, %v1831, %v1830
        %v1833 = vpack.c.b16 %v1832, %v1832
        %v1835 = vsel %vm772, %v1833, 0
        %1837 = vmatprep.subr.bf16.mxu0 0
        %1838 = vmatpush1.bf16.msra.mxu0 0
        %1839 = vmatprep.subr.bf16.mxu0 0
        %1840 = vmatpush1.bf16.msra.mxu0 0
        %1841 = vmatprep.subr.bf16.mxu0 0
        %1842 = vmatpush1.bf16.msra.mxu0 0
        %1843 = vmatprep.subr.bf16.mxu0 0
        %1844 = vmatpush1.bf16.msra.mxu0 0
        %1845 = vmatprep.subr.bf16.mxu0 0
        %1846 = vmatpush1.bf16.msra.mxu0 0
        %1847 = vmatprep.subr.bf16.mxu0 0
        %1848 = vmatpush1.bf16.msra.mxu0 0
        %1849 = vmatprep.subr.bf16.mxu0 0
        %1850 = vmatpush1.bf16.msra.mxu0 0
        %1851 = vmatprep.subr.bf16.mxu0 0
        %1852 = vmatpush1.bf16.msra.mxu0 %v1774
        %1853 = vmatprep.subr.bf16.mxu0 0
        %1854 = vmatpush2.bf16.msra.mxu0 0
        %1855 = vmatprep.subr.bf16.mxu0 0
        %1856 = vmatpush2.bf16.msra.mxu0 0
        %1857 = vmatprep.subr.bf16.mxu0 0
        %1858 = vmatpush2.bf16.msra.mxu0 0
        %1859 = vmatprep.subr.bf16.mxu0 0
        %1860 = vmatpush2.bf16.msra.mxu0 0
        %1861 = vmatprep.subr.bf16.mxu0 0
        %1862 = vmatpush2.bf16.msra.mxu0 0
        %1863 = vmatprep.subr.bf16.mxu0 0
        %1864 = vmatpush2.bf16.msra.mxu0 0
        %1865 = vmatprep.subr.bf16.mxu0 0
        %1866 = vmatpush2.bf16.msra.mxu0 0
        %1867 = vmatprep.subr.bf16.mxu0 0
        %1868 = vmatpush2.bf16.msra.mxu0 0
        %1869 = vmatprep.mubr.bf16.mxu0 0
        %1870 = vmatmul.mubr.bf16.gmra.mxu0 %v1835
        %v1871 = vpop.f32.mrf.mxu0
        %v1872 = vadd.f32 0.0, %v1871
        %v1873 = vpop.f32.mrf.mxu0
        %v1874 = vpop.f32.mrf.mxu0
        %v1875 = vpop.f32.mrf.mxu0
        %1876 = vdwg.mxu0
        %v1877 = vpack.c.bf16 %v1814, %v1814
        %v1880 = vunpack.c.l.s4 1966171168
        %v1881 = vunpack.c.0.s8 %v1880
        %v1882 = vlaneseq
        %v1883 = vshrl.u32 %v1882, 7
        %v1884 = vsub.s32 %v1881, %v1883
        %v1885 = vrot.slane %v1877, %v1884
        %v1886 = vcombine.high %v1885, %v1885
        %v1888 = vunpack.c.l.s4 1966171168
        %v1889 = vunpack.c.0.s8 %v1888
        %v1890 = vlaneseq
        %v1891 = vshrl.u32 %v1890, 7
        %v1892 = vsub.s32 %v1889, %v1891
        %v1893 = vrot.slane %v1885, %v1892
        %v1895 = vunpack.c.l.s4 1966171168
        %v1896 = vunpack.c.0.s8 %v1895
        %v1897 = vlaneseq
        %v1898 = vshrl.u32 %v1897, 7
        %v1899 = vsub.s32 %v1896, %v1898
        %v1900 = vrot.slane %v1886, %v1899
        %v1901 = vunpack.i.l.s16 %v1893
        %v1902 = vunpack.i.h.s16 %v1893
        %v1903 = vunpack.i.l.s16 %v1900
        %v1904 = vunpack.i.h.s16 %v1900
        %v1905 = vpack.i.b16 %v1901, %v1901
        %v1906 = vpack.i.b16 %v1902, %v1902
        %v1907 = vpack.i.b16 %v1903, %v1903
        %v1908 = vpack.i.b16 %v1904, %v1904
        %v1910 = vunpack.c.l.s4 286326784
        %v1911 = vunpack.c.0.s8 %v1910
        %v1912 = vlaneseq
        %v1913 = vshrl.u32 %v1912, 7
        %v1914 = vsub.s32 %v1911, %v1913
        %v1915 = vrot.slane %v1905, %v1914
        %v1917 = vunpack.c.l.s4 286326784
        %v1918 = vunpack.c.0.s8 %v1917
        %v1919 = vlaneseq
        %v1920 = vshrl.u32 %v1919, 7
        %v1921 = vsub.s32 %v1918, %v1920
        %v1922 = vrot.slane %v1906, %v1921
        %v1924 = vunpack.c.l.s4 286326784
        %v1925 = vunpack.c.0.s8 %v1924
        %v1926 = vlaneseq
        %v1927 = vshrl.u32 %v1926, 7
        %v1928 = vsub.s32 %v1925, %v1927
        %v1929 = vrot.slane %v1907, %v1928
        %v1931 = vunpack.c.l.s4 286326784
        %v1932 = vunpack.c.0.s8 %v1931
        %v1933 = vlaneseq
        %v1934 = vshrl.u32 %v1933, 7
        %v1935 = vsub.s32 %v1932, %v1934
        %v1936 = vrot.slane %v1908, %v1935
        %1937 = vrot.lane.b32.xlu0 %v1915, 1
        %v1938 = vpop.permute.xlu0 %1937
        %1939 = vrot.lane.b32.xlu0 %v1922, 1
        %v1940 = vpop.permute.xlu0 %1939
        %1941 = vrot.lane.b32.xlu0 %v1929, 1
        %v1942 = vpop.permute.xlu0 %1941
        %1943 = vrot.lane.b32.xlu0 %v1936, 1
        %v1944 = vpop.permute.xlu0 %1943
        %vm1949 = vcmask 265227
        %vm1950 = vsmask.f32 3328
        %vm1951 = vmand %vm1949, %vm1950
        %v1952 = vld [vmem:[#allocation2] sm:$0x8]
        %v1953 = vsel %vm1951, %v1938, %v1952
        %1954 = vst [vmem:[#allocation2] sm:$0x8] %v1953
        %v1955 = vld [vmem:[#allocation2 + $0x8] sm:$0x8]
        %v1956 = vsel %vm1951, %v1940, %v1955
        %1957 = vst [vmem:[#allocation2 + $0x8] sm:$0x8] %v1956
        %v1958 = vld [vmem:[#allocation2 + $0x10] sm:$0x8]
        %v1959 = vsel %vm1951, %v1942, %v1958
        %1960 = vst [vmem:[#allocation2 + $0x10] sm:$0x8] %v1959
        %v1961 = vld [vmem:[#allocation2 + $0x18] sm:$0x8]
        %v1962 = vsel %vm1951, %v1944, %v1961
        %1963 = vst [vmem:[#allocation2 + $0x18] sm:$0x8] %v1962
        %v1964 = vpack.c.bf16 %v1872, %v1872
        %v1967 = vunpack.c.l.s4 1966171168
        %v1968 = vunpack.c.0.s8 %v1967
        %v1969 = vlaneseq
        %v1970 = vshrl.u32 %v1969, 7
        %v1971 = vsub.s32 %v1968, %v1970
        %v1972 = vrot.slane %v1964, %v1971
        %v1973 = vcombine.high %v1972, %v1972
        %v1975 = vunpack.c.l.s4 1966171168
        %v1976 = vunpack.c.0.s8 %v1975
        %v1977 = vlaneseq
        %v1978 = vshrl.u32 %v1977, 7
        %v1979 = vsub.s32 %v1976, %v1978
        %v1980 = vrot.slane %v1972, %v1979
        %v1982 = vunpack.c.l.s4 1966171168
        %v1983 = vunpack.c.0.s8 %v1982
        %v1984 = vlaneseq
        %v1985 = vshrl.u32 %v1984, 7
        %v1986 = vsub.s32 %v1983, %v1985
        %v1987 = vrot.slane %v1973, %v1986
        %v1988 = vunpack.i.l.s16 %v1980
        %v1989 = vunpack.i.h.s16 %v1980
        %v1990 = vunpack.i.l.s16 %v1987
        %v1991 = vunpack.i.h.s16 %v1987
        %v1992 = vpack.i.b16 %v1988, %v1988
        %v1993 = vpack.i.b16 %v1989, %v1989
        %v1994 = vpack.i.b16 %v1990, %v1990
        %v1995 = vpack.i.b16 %v1991, %v1991
        %v1997 = vunpack.c.l.s4 286326784
        %v1998 = vunpack.c.0.s8 %v1997
        %v1999 = vlaneseq
        %v2000 = vshrl.u32 %v1999, 7
        %v2001 = vsub.s32 %v1998, %v2000
        %v2002 = vrot.slane %v1992, %v2001
        %v2004 = vunpack.c.l.s4 286326784
        %v2005 = vunpack.c.0.s8 %v2004
        %v2006 = vlaneseq
        %v2007 = vshrl.u32 %v2006, 7
        %v2008 = vsub.s32 %v2005, %v2007
        %v2009 = vrot.slane %v1993, %v2008
        %v2011 = vunpack.c.l.s4 286326784
        %v2012 = vunpack.c.0.s8 %v2011
        %v2013 = vlaneseq
        %v2014 = vshrl.u32 %v2013, 7
        %v2015 = vsub.s32 %v2012, %v2014
        %v2016 = vrot.slane %v1994, %v2015
        %v2018 = vunpack.c.l.s4 286326784
        %v2019 = vunpack.c.0.s8 %v2018
        %v2020 = vlaneseq
        %v2021 = vshrl.u32 %v2020, 7
        %v2022 = vsub.s32 %v2019, %v2021
        %v2023 = vrot.slane %v1995, %v2022
        %2024 = vrot.lane.b32.xlu0 %v2002, 1
        %v2025 = vpop.permute.xlu0 %2024
        %2026 = vrot.lane.b32.xlu0 %v2009, 1
        %v2027 = vpop.permute.xlu0 %2026
        %2028 = vrot.lane.b32.xlu0 %v2016, 1
        %v2029 = vpop.permute.xlu0 %2028
        %2030 = vrot.lane.b32.xlu0 %v2023, 1
        %v2031 = vpop.permute.xlu0 %2030
        %vm2036 = vsmask.f32 7950
        %vm2037 = vmand %vm1949, %vm2036
        %v2038 = vld [vmem:[#allocation2] sm:$0x8]
        %v2039 = vsel %vm2037, %v2025, %v2038
        %2040 = vst [vmem:[#allocation2] sm:$0x8] %v2039
        %v2041 = vld [vmem:[#allocation2 + $0x8] sm:$0x8]
        %v2042 = vsel %vm2037, %v2027, %v2041
        %2043 = vst [vmem:[#allocation2 + $0x8] sm:$0x8] %v2042
        %v2044 = vld [vmem:[#allocation2 + $0x10] sm:$0x8]
        %v2045 = vsel %vm2037, %v2029, %v2044
        %2046 = vst [vmem:[#allocation2 + $0x10] sm:$0x8] %v2045
        %v2047 = vld [vmem:[#allocation2 + $0x18] sm:$0x8]
        %v2048 = vsel %vm2037, %v2031, %v2047
        %2049 = vst [vmem:[#allocation2 + $0x18] sm:$0x8] %v2048
        %s2050 = sadd.s32 %s688, 4
        %p2051 = scmp.gt.s32.totalorder %s2050, 0
        %s2052 = scalar_select %p2051, %s2050, 0
        %p2053 = scmp.lt.s32.totalorder %s2052, 15
        %s2054 = scalar_select %p2053, %s2052, 15
        %s2055 = scalar_lea.vmem %s467, %s2054
        %v2056 = vld [vmem:[%s2055] sm:$0x1]
        %v2057 = vld [vmem:[%s2055 + $0x10] sm:$0x1]
        %v2058 = vld [vmem:[%s2055 + $0x20] sm:$0x1]
        %v2059 = vld [vmem:[%s2055 + $0x30] sm:$0x1]
        %v2060 = vmul.f32 %v1725, 0.75
        %v2061 = vmul.f32 %v1726, 0.75
        %v2062 = vmul.f32 %v1727, 0.75
        %v2063 = vmul.f32 %v1728, 0.75
        %v2064 = vadd.f32 %v1410, %v2060
        %v2065 = vadd.f32 %v1411, %v2061
        %v2066 = vadd.f32 %v1412, %v2062
        %v2067 = vadd.f32 %v1413, %v2063
        %v2068 = vpack.c.bf16 %v2064, %v2064
        %v2069 = vpack.c.bf16 %v2065, %v2065
        %v2070 = vpack.c.bf16 %v2066, %v2066
        %v2071 = vpack.c.bf16 %v2067, %v2067
        %v2072 = vmul.f32 %v2056, 0.25
        %v2073 = vmul.f32 %v2057, 0.25
        %v2074 = vmul.f32 %v2058, 0.25
        %v2075 = vmul.f32 %v2059, 0.25
        %v2076 = vadd.f32 %v2060, %v2072
        %v2077 = vadd.f32 %v2061, %v2073
        %v2078 = vadd.f32 %v2062, %v2074
        %v2079 = vadd.f32 %v2063, %v2075
        %v2080 = vpack.c.bf16 %v2076, %v2076
        %v2081 = vpack.c.bf16 %v2077, %v2077
        %v2082 = vpack.c.bf16 %v2078, %v2078
        %v2083 = vpack.c.bf16 %v2079, %v2079
        %v2084 = vld [vmem:[%s3] sm:$0xf]
        %v2085 = vld [vmem:[%s3 + $0x4] sm:$0xf]
        %v2090 = vunpack.c.l.b16 %v2068
        %v2091 = vunpack.c.l.b16 %v2069
        %v2092 = vunpack.c.l.b16 %v2070
        %v2093 = vunpack.c.l.b16 %v2071
        %v2094 = vrot.slane %v2091, 7
        %v2095 = vsel %vm757, %v2094, %v2090
        %v2096 = vrot.slane %v2092, 6
        %v2097 = vsel %vm760, %v2096, %v2095
        %v2098 = vrot.slane %v2093, 5
        %v2099 = vsel %vm763, %v2098, %v2097
        %v2100 = vpack.c.b16 %v2099, %v2099
        %v2103 = vunpack.c.l.b16 %v2084
        %v2104 = vunpack.c.l.b16 %v2085
        %v2105 = vpack.c.b16 %v2104, %v2103
        %v2108 = vsel %vm772, %v2100, 0
        %2110 = vmatprep.subr.bf16.mxu0 0
        %2111 = vmatpush1.bf16.msra.mxu0 0
        %2112 = vmatprep.subr.bf16.mxu0 0
        %2113 = vmatpush1.bf16.msra.mxu0 0
        %2114 = vmatprep.subr.bf16.mxu0 0
        %2115 = vmatpush1.bf16.msra.mxu0 0
        %2116 = vmatprep.subr.bf16.mxu0 0
        %2117 = vmatpush1.bf16.msra.mxu0 0
        %2118 = vmatprep.subr.bf16.mxu0 0
        %2119 = vmatpush1.bf16.msra.mxu0 0
        %2120 = vmatprep.subr.bf16.mxu0 0
        %2121 = vmatpush1.bf16.msra.mxu0 0
        %2122 = vmatprep.subr.bf16.mxu0 0
        %2123 = vmatpush1.bf16.msra.mxu0 0
        %2124 = vmatprep.subr.bf16.mxu0 0
        %2125 = vmatpush1.bf16.msra.mxu0 %v2105
        %2126 = vmatprep.subr.bf16.mxu0 0
        %2127 = vmatpush2.bf16.msra.mxu0 0
        %2128 = vmatprep.subr.bf16.mxu0 0
        %2129 = vmatpush2.bf16.msra.mxu0 0
        %2130 = vmatprep.subr.bf16.mxu0 0
        %2131 = vmatpush2.bf16.msra.mxu0 0
        %2132 = vmatprep.subr.bf16.mxu0 0
        %2133 = vmatpush2.bf16.msra.mxu0 0
        %2134 = vmatprep.subr.bf16.mxu0 0
        %2135 = vmatpush2.bf16.msra.mxu0 0
        %2136 = vmatprep.subr.bf16.mxu0 0
        %2137 = vmatpush2.bf16.msra.mxu0 0
        %2138 = vmatprep.subr.bf16.mxu0 0
        %2139 = vmatpush2.bf16.msra.mxu0 0
        %2140 = vmatprep.subr.bf16.mxu0 0
        %2141 = vmatpush2.bf16.msra.mxu0 0
        %2142 = vmatprep.mubr.bf16.mxu0 0
        %2143 = vmatmul.mubr.bf16.gmra.mxu0 %v2108
        %v2144 = vpop.f32.mrf.mxu0
        %v2145 = vadd.f32 0.0, %v2144
        %v2146 = vpop.f32.mrf.mxu0
        %v2147 = vpop.f32.mrf.mxu0
        %v2148 = vpop.f32.mrf.mxu0
        %2149 = vdwg.mxu0
        %v2154 = vunpack.c.l.b16 %v2080
        %v2155 = vunpack.c.l.b16 %v2081
        %v2156 = vunpack.c.l.b16 %v2082
        %v2157 = vunpack.c.l.b16 %v2083
        %v2158 = vrot.slane %v2155, 7
        %v2159 = vsel %vm757, %v2158, %v2154
        %v2160 = vrot.slane %v2156, 6
        %v2161 = vsel %vm760, %v2160, %v2159
        %v2162 = vrot.slane %v2157, 5
        %v2163 = vsel %vm763, %v2162, %v2161
        %v2164 = vpack.c.b16 %v2163, %v2163
        %v2166 = vsel %vm772, %v2164, 0
        %2168 = vmatprep.subr.bf16.mxu0 0
        %2169 = vmatpush1.bf16.msra.mxu0 0
        %2170 = vmatprep.subr.bf16.mxu0 0
        %2171 = vmatpush1.bf16.msra.mxu0 0
        %2172 = vmatprep.subr.bf16.mxu0 0
        %2173 = vmatpush1.bf16.msra.mxu0 0
        %2174 = vmatprep.subr.bf16.mxu0 0
        %2175 = vmatpush1.bf16.msra.mxu0 0
        %2176 = vmatprep.subr.bf16.mxu0 0
        %2177 = vmatpush1.bf16.msra.mxu0 0
        %2178 = vmatprep.subr.bf16.mxu0 0
        %2179 = vmatpush1.bf16.msra.mxu0 0
        %2180 = vmatprep.subr.bf16.mxu0 0
        %2181 = vmatpush1.bf16.msra.mxu0 0
        %2182 = vmatprep.subr.bf16.mxu0 0
        %2183 = vmatpush1.bf16.msra.mxu0 %v2105
        %2184 = vmatprep.subr.bf16.mxu0 0
        %2185 = vmatpush2.bf16.msra.mxu0 0
        %2186 = vmatprep.subr.bf16.mxu0 0
        %2187 = vmatpush2.bf16.msra.mxu0 0
        %2188 = vmatprep.subr.bf16.mxu0 0
        %2189 = vmatpush2.bf16.msra.mxu0 0
        %2190 = vmatprep.subr.bf16.mxu0 0
        %2191 = vmatpush2.bf16.msra.mxu0 0
        %2192 = vmatprep.subr.bf16.mxu0 0
        %2193 = vmatpush2.bf16.msra.mxu0 0
        %2194 = vmatprep.subr.bf16.mxu0 0
        %2195 = vmatpush2.bf16.msra.mxu0 0
        %2196 = vmatprep.subr.bf16.mxu0 0
        %2197 = vmatpush2.bf16.msra.mxu0 0
        %2198 = vmatprep.subr.bf16.mxu0 0
        %2199 = vmatpush2.bf16.msra.mxu0 0
        %2200 = vmatprep.mubr.bf16.mxu0 0
        %2201 = vmatmul.mubr.bf16.gmra.mxu0 %v2166
        %v2202 = vpop.f32.mrf.mxu0
        %v2203 = vadd.f32 0.0, %v2202
        %v2204 = vpop.f32.mrf.mxu0
        %v2205 = vpop.f32.mrf.mxu0
        %v2206 = vpop.f32.mrf.mxu0
        %2207 = vdwg.mxu0
        %v2208 = vpack.c.bf16 %v2145, %v2145
        %v2211 = vunpack.c.l.s4 1966171168
        %v2212 = vunpack.c.0.s8 %v2211
        %v2213 = vlaneseq
        %v2214 = vshrl.u32 %v2213, 7
        %v2215 = vsub.s32 %v2212, %v2214
        %v2216 = vrot.slane %v2208, %v2215
        %v2217 = vcombine.high %v2216, %v2216
        %v2219 = vunpack.c.l.s4 1966171168
        %v2220 = vunpack.c.0.s8 %v2219
        %v2221 = vlaneseq
        %v2222 = vshrl.u32 %v2221, 7
        %v2223 = vsub.s32 %v2220, %v2222
        %v2224 = vrot.slane %v2216, %v2223
        %v2226 = vunpack.c.l.s4 1966171168
        %v2227 = vunpack.c.0.s8 %v2226
        %v2228 = vlaneseq
        %v2229 = vshrl.u32 %v2228, 7
        %v2230 = vsub.s32 %v2227, %v2229
        %v2231 = vrot.slane %v2217, %v2230
        %v2232 = vunpack.i.l.s16 %v2224
        %v2233 = vunpack.i.h.s16 %v2224
        %v2234 = vunpack.i.l.s16 %v2231
        %v2235 = vunpack.i.h.s16 %v2231
        %v2236 = vpack.i.b16 %v2232, %v2232
        %v2237 = vpack.i.b16 %v2233, %v2233
        %v2238 = vpack.i.b16 %v2234, %v2234
        %v2239 = vpack.i.b16 %v2235, %v2235
        %v2241 = vunpack.c.l.s4 286326784
        %v2242 = vunpack.c.0.s8 %v2241
        %v2243 = vlaneseq
        %v2244 = vshrl.u32 %v2243, 7
        %v2245 = vsub.s32 %v2242, %v2244
        %v2246 = vrot.slane %v2236, %v2245
        %v2248 = vunpack.c.l.s4 286326784
        %v2249 = vunpack.c.0.s8 %v2248
        %v2250 = vlaneseq
        %v2251 = vshrl.u32 %v2250, 7
        %v2252 = vsub.s32 %v2249, %v2251
        %v2253 = vrot.slane %v2237, %v2252
        %v2255 = vunpack.c.l.s4 286326784
        %v2256 = vunpack.c.0.s8 %v2255
        %v2257 = vlaneseq
        %v2258 = vshrl.u32 %v2257, 7
        %v2259 = vsub.s32 %v2256, %v2258
        %v2260 = vrot.slane %v2238, %v2259
        %v2262 = vunpack.c.l.s4 286326784
        %v2263 = vunpack.c.0.s8 %v2262
        %v2264 = vlaneseq
        %v2265 = vshrl.u32 %v2264, 7
        %v2266 = vsub.s32 %v2263, %v2265
        %v2267 = vrot.slane %v2239, %v2266
        %2268 = vrot.lane.b32.xlu0 %v2246, 1
        %v2269 = vpop.permute.xlu0 %2268
        %2270 = vrot.lane.b32.xlu0 %v2253, 1
        %v2271 = vpop.permute.xlu0 %2270
        %2272 = vrot.lane.b32.xlu0 %v2260, 1
        %v2273 = vpop.permute.xlu0 %2272
        %2274 = vrot.lane.b32.xlu0 %v2267, 1
        %v2275 = vpop.permute.xlu0 %2274
        %v2280 = vld [vmem:[#allocation2 + $0x4] sm:$0x1]
        %v2281 = vsel %vm954, %v2269, %v2280
        %2282 = vst [vmem:[#allocation2 + $0x4] sm:$0x1] %v2281
        %v2283 = vld [vmem:[#allocation2 + $0xc] sm:$0x1]
        %v2284 = vsel %vm954, %v2271, %v2283
        %2285 = vst [vmem:[#allocation2 + $0xc] sm:$0x1] %v2284
        %v2286 = vld [vmem:[#allocation2 + $0x14] sm:$0x1]
        %v2287 = vsel %vm954, %v2273, %v2286
        %2288 = vst [vmem:[#allocation2 + $0x14] sm:$0x1] %v2287
        %v2289 = vld [vmem:[#allocation2 + $0x1c] sm:$0x1]
        %v2290 = vsel %vm954, %v2275, %v2289
        %2291 = vst [vmem:[#allocation2 + $0x1c] sm:$0x1] %v2290
        %v2292 = vpack.c.bf16 %v2203, %v2203
        %v2295 = vunpack.c.l.s4 1966171168
        %v2296 = vunpack.c.0.s8 %v2295
        %v2297 = vlaneseq
        %v2298 = vshrl.u32 %v2297, 7
        %v2299 = vsub.s32 %v2296, %v2298
        %v2300 = vrot.slane %v2292, %v2299
        %v2301 = vcombine.high %v2300, %v2300
        %v2303 = vunpack.c.l.s4 1966171168
        %v2304 = vunpack.c.0.s8 %v2303
        %v2305 = vlaneseq
        %v2306 = vshrl.u32 %v2305, 7
        %v2307 = vsub.s32 %v2304, %v2306
        %v2308 = vrot.slane %v2300, %v2307
        %v2310 = vunpack.c.l.s4 1966171168
        %v2311 = vunpack.c.0.s8 %v2310
        %v2312 = vlaneseq
        %v2313 = vshrl.u32 %v2312, 7
        %v2314 = vsub.s32 %v2311, %v2313
        %v2315 = vrot.slane %v2301, %v2314
        %v2316 = vunpack.i.l.s16 %v2308
        %v2317 = vunpack.i.h.s16 %v2308
        %v2318 = vunpack.i.l.s16 %v2315
        %v2319 = vunpack.i.h.s16 %v2315
        %v2320 = vpack.i.b16 %v2316, %v2316
        %v2321 = vpack.i.b16 %v2317, %v2317
        %v2322 = vpack.i.b16 %v2318, %v2318
        %v2323 = vpack.i.b16 %v2319, %v2319
        %v2325 = vunpack.c.l.s4 286326784
        %v2326 = vunpack.c.0.s8 %v2325
        %v2327 = vlaneseq
        %v2328 = vshrl.u32 %v2327, 7
        %v2329 = vsub.s32 %v2326, %v2328
        %v2330 = vrot.slane %v2320, %v2329
        %v2332 = vunpack.c.l.s4 286326784
        %v2333 = vunpack.c.0.s8 %v2332
        %v2334 = vlaneseq
        %v2335 = vshrl.u32 %v2334, 7
        %v2336 = vsub.s32 %v2333, %v2335
        %v2337 = vrot.slane %v2321, %v2336
        %v2339 = vunpack.c.l.s4 286326784
        %v2340 = vunpack.c.0.s8 %v2339
        %v2341 = vlaneseq
        %v2342 = vshrl.u32 %v2341, 7
        %v2343 = vsub.s32 %v2340, %v2342
        %v2344 = vrot.slane %v2322, %v2343
        %v2346 = vunpack.c.l.s4 286326784
        %v2347 = vunpack.c.0.s8 %v2346
        %v2348 = vlaneseq
        %v2349 = vshrl.u32 %v2348, 7
        %v2350 = vsub.s32 %v2347, %v2349
        %v2351 = vrot.slane %v2323, %v2350
        %2352 = vrot.lane.b32.xlu0 %v2330, 1
        %v2353 = vpop.permute.xlu0 %2352
        %2354 = vrot.lane.b32.xlu0 %v2337, 1
        %v2355 = vpop.permute.xlu0 %2354
        %2356 = vrot.lane.b32.xlu0 %v2344, 1
        %v2357 = vpop.permute.xlu0 %2356
        %2358 = vrot.lane.b32.xlu0 %v2351, 1
        %v2359 = vpop.permute.xlu0 %2358
        %v2364 = vld [vmem:[#allocation2 + $0x4] sm:$0x1]
        %v2365 = vsel %vm1040, %v2353, %v2364
        %2366 = vst [vmem:[#allocation2 + $0x4] sm:$0x1] %v2365
        %v2367 = vld [vmem:[#allocation2 + $0xc] sm:$0x1]
        %v2368 = vsel %vm1040, %v2355, %v2367
        %2369 = vst [vmem:[#allocation2 + $0xc] sm:$0x1] %v2368
        %v2370 = vld [vmem:[#allocation2 + $0x14] sm:$0x1]
        %v2371 = vsel %vm1040, %v2357, %v2370
        %2372 = vst [vmem:[#allocation2 + $0x14] sm:$0x1] %v2371
        %v2373 = vld [vmem:[#allocation2 + $0x1c] sm:$0x1]
        %v2374 = vsel %vm1040, %v2359, %v2373
        %2375 = vst [vmem:[#allocation2 + $0x1c] sm:$0x1] %v2374
        %s2376 = sadd.s32 %s688, 5
        %p2377 = scmp.gt.s32.totalorder %s2376, 0
        %s2378 = scalar_select %p2377, %s2376, 0
        %p2379 = scmp.lt.s32.totalorder %s2378, 15
        %s2380 = scalar_select %p2379, %s2378, 15
        %s2381 = scalar_lea.vmem %s467, %s2380
        %v2382 = vld [vmem:[%s2381] sm:$0x1]
        %v2383 = vld [vmem:[%s2381 + $0x10] sm:$0x1]
        %v2384 = vld [vmem:[%s2381 + $0x20] sm:$0x1]
        %v2385 = vld [vmem:[%s2381 + $0x30] sm:$0x1]
        %v2386 = vmul.f32 %v2056, 0.75
        %v2387 = vmul.f32 %v2057, 0.75
        %v2388 = vmul.f32 %v2058, 0.75
        %v2389 = vmul.f32 %v2059, 0.75
        %v2390 = vadd.f32 %v1741, %v2386
        %v2391 = vadd.f32 %v1742, %v2387
        %v2392 = vadd.f32 %v1743, %v2388
        %v2393 = vadd.f32 %v1744, %v2389
        %v2394 = vpack.c.bf16 %v2390, %v2390
        %v2395 = vpack.c.bf16 %v2391, %v2391
        %v2396 = vpack.c.bf16 %v2392, %v2392
        %v2397 = vpack.c.bf16 %v2393, %v2393
        %v2398 = vmul.f32 %v2382, 0.25
        %v2399 = vmul.f32 %v2383, 0.25
        %v2400 = vmul.f32 %v2384, 0.25
        %v2401 = vmul.f32 %v2385, 0.25
        %v2402 = vadd.f32 %v2386, %v2398
        %v2403 = vadd.f32 %v2387, %v2399
        %v2404 = vadd.f32 %v2388, %v2400
        %v2405 = vadd.f32 %v2389, %v2401
        %v2406 = vpack.c.bf16 %v2402, %v2402
        %v2407 = vpack.c.bf16 %v2403, %v2403
        %v2408 = vpack.c.bf16 %v2404, %v2404
        %v2409 = vpack.c.bf16 %v2405, %v2405
        %v2410 = vld [vmem:[%s3] sm:$0xf]
        %v2411 = vld [vmem:[%s3 + $0x4] sm:$0xf]
        %v2416 = vunpack.c.l.b16 %v2394
        %v2417 = vunpack.c.l.b16 %v2395
        %v2418 = vunpack.c.l.b16 %v2396
        %v2419 = vunpack.c.l.b16 %v2397
        %v2420 = vrot.slane %v2417, 7
        %v2421 = vsel %vm757, %v2420, %v2416
        %v2422 = vrot.slane %v2418, 6
        %v2423 = vsel %vm760, %v2422, %v2421
        %v2424 = vrot.slane %v2419, 5
        %v2425 = vsel %vm763, %v2424, %v2423
        %v2426 = vpack.c.b16 %v2425, %v2425
        %v2429 = vunpack.c.l.b16 %v2410
        %v2430 = vunpack.c.l.b16 %v2411
        %v2431 = vpack.c.b16 %v2430, %v2429
        %v2434 = vsel %vm772, %v2426, 0
        %2436 = vmatprep.subr.bf16.mxu0 0
        %2437 = vmatpush1.bf16.msra.mxu0 0
        %2438 = vmatprep.subr.bf16.mxu0 0
        %2439 = vmatpush1.bf16.msra.mxu0 0
        %2440 = vmatprep.subr.bf16.mxu0 0
        %2441 = vmatpush1.bf16.msra.mxu0 0
        %2442 = vmatprep.subr.bf16.mxu0 0
        %2443 = vmatpush1.bf16.msra.mxu0 0
        %2444 = vmatprep.subr.bf16.mxu0 0
        %2445 = vmatpush1.bf16.msra.mxu0 0
        %2446 = vmatprep.subr.bf16.mxu0 0
        %2447 = vmatpush1.bf16.msra.mxu0 0
        %2448 = vmatprep.subr.bf16.mxu0 0
        %2449 = vmatpush1.bf16.msra.mxu0 0
        %2450 = vmatprep.subr.bf16.mxu0 0
        %2451 = vmatpush1.bf16.msra.mxu0 %v2431
        %2452 = vmatprep.subr.bf16.mxu0 0
        %2453 = vmatpush2.bf16.msra.mxu0 0
        %2454 = vmatprep.subr.bf16.mxu0 0
        %2455 = vmatpush2.bf16.msra.mxu0 0
        %2456 = vmatprep.subr.bf16.mxu0 0
        %2457 = vmatpush2.bf16.msra.mxu0 0
        %2458 = vmatprep.subr.bf16.mxu0 0
        %2459 = vmatpush2.bf16.msra.mxu0 0
        %2460 = vmatprep.subr.bf16.mxu0 0
        %2461 = vmatpush2.bf16.msra.mxu0 0
        %2462 = vmatprep.subr.bf16.mxu0 0
        %2463 = vmatpush2.bf16.msra.mxu0 0
        %2464 = vmatprep.subr.bf16.mxu0 0
        %2465 = vmatpush2.bf16.msra.mxu0 0
        %2466 = vmatprep.subr.bf16.mxu0 0
        %2467 = vmatpush2.bf16.msra.mxu0 0
        %2468 = vmatprep.mubr.bf16.mxu0 0
        %2469 = vmatmul.mubr.bf16.gmra.mxu0 %v2434
        %v2470 = vpop.f32.mrf.mxu0
        %v2471 = vadd.f32 0.0, %v2470
        %v2472 = vpop.f32.mrf.mxu0
        %v2473 = vpop.f32.mrf.mxu0
        %v2474 = vpop.f32.mrf.mxu0
        %2475 = vdwg.mxu0
        %v2480 = vunpack.c.l.b16 %v2406
        %v2481 = vunpack.c.l.b16 %v2407
        %v2482 = vunpack.c.l.b16 %v2408
        %v2483 = vunpack.c.l.b16 %v2409
        %v2484 = vrot.slane %v2481, 7
        %v2485 = vsel %vm757, %v2484, %v2480
        %v2486 = vrot.slane %v2482, 6
        %v2487 = vsel %vm760, %v2486, %v2485
        %v2488 = vrot.slane %v2483, 5
        %v2489 = vsel %vm763, %v2488, %v2487
        %v2490 = vpack.c.b16 %v2489, %v2489
        %v2492 = vsel %vm772, %v2490, 0
        %2494 = vmatprep.subr.bf16.mxu0 0
        %2495 = vmatpush1.bf16.msra.mxu0 0
        %2496 = vmatprep.subr.bf16.mxu0 0
        %2497 = vmatpush1.bf16.msra.mxu0 0
        %2498 = vmatprep.subr.bf16.mxu0 0
        %2499 = vmatpush1.bf16.msra.mxu0 0
        %2500 = vmatprep.subr.bf16.mxu0 0
        %2501 = vmatpush1.bf16.msra.mxu0 0
        %2502 = vmatprep.subr.bf16.mxu0 0
        %2503 = vmatpush1.bf16.msra.mxu0 0
        %2504 = vmatprep.subr.bf16.mxu0 0
        %2505 = vmatpush1.bf16.msra.mxu0 0
        %2506 = vmatprep.subr.bf16.mxu0 0
        %2507 = vmatpush1.bf16.msra.mxu0 0
        %2508 = vmatprep.subr.bf16.mxu0 0
        %2509 = vmatpush1.bf16.msra.mxu0 %v2431
        %2510 = vmatprep.subr.bf16.mxu0 0
        %2511 = vmatpush2.bf16.msra.mxu0 0
        %2512 = vmatprep.subr.bf16.mxu0 0
        %2513 = vmatpush2.bf16.msra.mxu0 0
        %2514 = vmatprep.subr.bf16.mxu0 0
        %2515 = vmatpush2.bf16.msra.mxu0 0
        %2516 = vmatprep.subr.bf16.mxu0 0
        %2517 = vmatpush2.bf16.msra.mxu0 0
        %2518 = vmatprep.subr.bf16.mxu0 0
        %2519 = vmatpush2.bf16.msra.mxu0 0
        %2520 = vmatprep.subr.bf16.mxu0 0
        %2521 = vmatpush2.bf16.msra.mxu0 0
        %2522 = vmatprep.subr.bf16.mxu0 0
        %2523 = vmatpush2.bf16.msra.mxu0 0
        %2524 = vmatprep.subr.bf16.mxu0 0
        %2525 = vmatpush2.bf16.msra.mxu0 0
        %2526 = vmatprep.mubr.bf16.mxu0 0
        %2527 = vmatmul.mubr.bf16.gmra.mxu0 %v2492
        %v2528 = vpop.f32.mrf.mxu0
        %v2529 = vadd.f32 0.0, %v2528
        %v2530 = vpop.f32.mrf.mxu0
        %v2531 = vpop.f32.mrf.mxu0
        %v2532 = vpop.f32.mrf.mxu0
        %2533 = vdwg.mxu0
        %p2534 = scmp.lt.s32.totalorder %s29, 3
        %s2535 = scalar_select %p2534, 1, 0
        %v2536 = vstv %s2535
        %vm2537 = vcmp.eq.s32.totalorder %v2536, 1
        %v2538 = vsel %vm2537, %v2471, 0.0
        %v2539 = vsel %vm2537, %v2529, 0.0
        %v2540 = vpack.c.bf16 %v2538, %v2538
        %v2543 = vunpack.c.l.s4 1966171168
        %v2544 = vunpack.c.0.s8 %v2543
        %v2545 = vlaneseq
        %v2546 = vshrl.u32 %v2545, 7
        %v2547 = vsub.s32 %v2544, %v2546
        %v2548 = vrot.slane %v2540, %v2547
        %v2549 = vcombine.high %v2548, %v2548
        %v2551 = vunpack.c.l.s4 1966171168
        %v2552 = vunpack.c.0.s8 %v2551
        %v2553 = vlaneseq
        %v2554 = vshrl.u32 %v2553, 7
        %v2555 = vsub.s32 %v2552, %v2554
        %v2556 = vrot.slane %v2548, %v2555
        %v2558 = vunpack.c.l.s4 1966171168
        %v2559 = vunpack.c.0.s8 %v2558
        %v2560 = vlaneseq
        %v2561 = vshrl.u32 %v2560, 7
        %v2562 = vsub.s32 %v2559, %v2561
        %v2563 = vrot.slane %v2549, %v2562
        %v2564 = vunpack.i.l.s16 %v2556
        %v2565 = vunpack.i.h.s16 %v2556
        %v2566 = vunpack.i.l.s16 %v2563
        %v2567 = vunpack.i.h.s16 %v2563
        %v2568 = vpack.i.b16 %v2564, %v2564
        %v2569 = vpack.i.b16 %v2565, %v2565
        %v2570 = vpack.i.b16 %v2566, %v2566
        %v2571 = vpack.i.b16 %v2567, %v2567
        %v2573 = vunpack.c.l.s4 286326784
        %v2574 = vunpack.c.0.s8 %v2573
        %v2575 = vlaneseq
        %v2576 = vshrl.u32 %v2575, 7
        %v2577 = vsub.s32 %v2574, %v2576
        %v2578 = vrot.slane %v2568, %v2577
        %v2580 = vunpack.c.l.s4 286326784
        %v2581 = vunpack.c.0.s8 %v2580
        %v2582 = vlaneseq
        %v2583 = vshrl.u32 %v2582, 7
        %v2584 = vsub.s32 %v2581, %v2583
        %v2585 = vrot.slane %v2569, %v2584
        %v2587 = vunpack.c.l.s4 286326784
        %v2588 = vunpack.c.0.s8 %v2587
        %v2589 = vlaneseq
        %v2590 = vshrl.u32 %v2589, 7
        %v2591 = vsub.s32 %v2588, %v2590
        %v2592 = vrot.slane %v2570, %v2591
        %v2594 = vunpack.c.l.s4 286326784
        %v2595 = vunpack.c.0.s8 %v2594
        %v2596 = vlaneseq
        %v2597 = vshrl.u32 %v2596, 7
        %v2598 = vsub.s32 %v2595, %v2597
        %v2599 = vrot.slane %v2571, %v2598
        %2600 = vrot.lane.b32.xlu0 %v2578, 1
        %v2601 = vpop.permute.xlu0 %2600
        %2602 = vrot.lane.b32.xlu0 %v2585, 1
        %v2603 = vpop.permute.xlu0 %2602
        %2604 = vrot.lane.b32.xlu0 %v2592, 1
        %v2605 = vpop.permute.xlu0 %2604
        %2606 = vrot.lane.b32.xlu0 %v2599, 1
        %v2607 = vpop.permute.xlu0 %2606
        %v2612 = vld [vmem:[#allocation2 + $0x4] sm:$0x2]
        %v2613 = vsel %vm1289, %v2601, %v2612
        %2614 = vst [vmem:[#allocation2 + $0x4] sm:$0x2] %v2613
        %v2615 = vld [vmem:[#allocation2 + $0xc] sm:$0x2]
        %v2616 = vsel %vm1289, %v2603, %v2615
        %2617 = vst [vmem:[#allocation2 + $0xc] sm:$0x2] %v2616
        %v2618 = vld [vmem:[#allocation2 + $0x14] sm:$0x2]
        %v2619 = vsel %vm1289, %v2605, %v2618
        %2620 = vst [vmem:[#allocation2 + $0x14] sm:$0x2] %v2619
        %v2621 = vld [vmem:[#allocation2 + $0x1c] sm:$0x2]
        %v2622 = vsel %vm1289, %v2607, %v2621
        %2623 = vst [vmem:[#allocation2 + $0x1c] sm:$0x2] %v2622
        %v2624 = vpack.c.bf16 %v2539, %v2539
        %v2627 = vunpack.c.l.s4 1966171168
        %v2628 = vunpack.c.0.s8 %v2627
        %v2629 = vlaneseq
        %v2630 = vshrl.u32 %v2629, 7
        %v2631 = vsub.s32 %v2628, %v2630
        %v2632 = vrot.slane %v2624, %v2631
        %v2633 = vcombine.high %v2632, %v2632
        %v2635 = vunpack.c.l.s4 1966171168
        %v2636 = vunpack.c.0.s8 %v2635
        %v2637 = vlaneseq
        %v2638 = vshrl.u32 %v2637, 7
        %v2639 = vsub.s32 %v2636, %v2638
        %v2640 = vrot.slane %v2632, %v2639
        %v2642 = vunpack.c.l.s4 1966171168
        %v2643 = vunpack.c.0.s8 %v2642
        %v2644 = vlaneseq
        %v2645 = vshrl.u32 %v2644, 7
        %v2646 = vsub.s32 %v2643, %v2645
        %v2647 = vrot.slane %v2633, %v2646
        %v2648 = vunpack.i.l.s16 %v2640
        %v2649 = vunpack.i.h.s16 %v2640
        %v2650 = vunpack.i.l.s16 %v2647
        %v2651 = vunpack.i.h.s16 %v2647
        %v2652 = vpack.i.b16 %v2648, %v2648
        %v2653 = vpack.i.b16 %v2649, %v2649
        %v2654 = vpack.i.b16 %v2650, %v2650
        %v2655 = vpack.i.b16 %v2651, %v2651
        %v2657 = vunpack.c.l.s4 286326784
        %v2658 = vunpack.c.0.s8 %v2657
        %v2659 = vlaneseq
        %v2660 = vshrl.u32 %v2659, 7
        %v2661 = vsub.s32 %v2658, %v2660
        %v2662 = vrot.slane %v2652, %v2661
        %v2664 = vunpack.c.l.s4 286326784
        %v2665 = vunpack.c.0.s8 %v2664
        %v2666 = vlaneseq
        %v2667 = vshrl.u32 %v2666, 7
        %v2668 = vsub.s32 %v2665, %v2667
        %v2669 = vrot.slane %v2653, %v2668
        %v2671 = vunpack.c.l.s4 286326784
        %v2672 = vunpack.c.0.s8 %v2671
        %v2673 = vlaneseq
        %v2674 = vshrl.u32 %v2673, 7
        %v2675 = vsub.s32 %v2672, %v2674
        %v2676 = vrot.slane %v2654, %v2675
        %v2678 = vunpack.c.l.s4 286326784
        %v2679 = vunpack.c.0.s8 %v2678
        %v2680 = vlaneseq
        %v2681 = vshrl.u32 %v2680, 7
        %v2682 = vsub.s32 %v2679, %v2681
        %v2683 = vrot.slane %v2655, %v2682
        %2684 = vrot.lane.b32.xlu0 %v2662, 1
        %v2685 = vpop.permute.xlu0 %2684
        %2686 = vrot.lane.b32.xlu0 %v2669, 1
        %v2687 = vpop.permute.xlu0 %2686
        %2688 = vrot.lane.b32.xlu0 %v2676, 1
        %v2689 = vpop.permute.xlu0 %2688
        %2690 = vrot.lane.b32.xlu0 %v2683, 1
        %v2691 = vpop.permute.xlu0 %2690
        %v2696 = vld [vmem:[#allocation2 + $0x4] sm:$0x2]
        %v2697 = vsel %vm1375, %v2685, %v2696
        %2698 = vst [vmem:[#allocation2 + $0x4] sm:$0x2] %v2697
        %v2699 = vld [vmem:[#allocation2 + $0xc] sm:$0x2]
        %v2700 = vsel %vm1375, %v2687, %v2699
        %2701 = vst [vmem:[#allocation2 + $0xc] sm:$0x2] %v2700
        %v2702 = vld [vmem:[#allocation2 + $0x14] sm:$0x2]
        %v2703 = vsel %vm1375, %v2689, %v2702
        %2704 = vst [vmem:[#allocation2 + $0x14] sm:$0x2] %v2703
        %v2705 = vld [vmem:[#allocation2 + $0x1c] sm:$0x2]
        %v2706 = vsel %vm1375, %v2691, %v2705
        %2707 = vst [vmem:[#allocation2 + $0x1c] sm:$0x2] %v2706
        %v2708 = vld [vmem:[%s5] sm:$0xff]
        %v2709 = vld [vmem:[%s6] sm:$0xff]
        %v2710 = vld [vmem:[#allocation2] sm:$0x1]
        %v2711 = vld [vmem:[#allocation2 + $0x8] sm:$0x1]
        %v2712 = vld [vmem:[#allocation2 + $0x10] sm:$0x1]
        %v2713 = vld [vmem:[#allocation2 + $0x18] sm:$0x1]
        %v2714 = vld [vmem:[#allocation2 + $0x20] sm:$0x1]
        %v2715 = vld [vmem:[#allocation2 + $0x28] sm:$0x1]
        %v2716 = vld [vmem:[#allocation2 + $0x30] sm:$0x1]
        %v2717 = vld [vmem:[#allocation2 + $0x38] sm:$0x1]
        %v2718 = vld [vmem:[#allocation2] sm:$0x2]
        %v2719 = vld [vmem:[#allocation2 + $0x8] sm:$0x2]
        %v2720 = vld [vmem:[#allocation2 + $0x10] sm:$0x2]
        %v2721 = vld [vmem:[#allocation2 + $0x18] sm:$0x2]
        %v2722 = vld [vmem:[#allocation2 + $0x20] sm:$0x2]
        %v2723 = vld [vmem:[#allocation2 + $0x28] sm:$0x2]
        %v2724 = vld [vmem:[#allocation2 + $0x30] sm:$0x2]
        %v2725 = vld [vmem:[#allocation2 + $0x38] sm:$0x2]
        %v2734 = vunpack.c.l.b16 %v2710
        %v2735 = vunpack.c.l.b16 %v2711
        %v2736 = vunpack.c.l.b16 %v2712
        %v2737 = vunpack.c.l.b16 %v2713
        %v2738 = vunpack.c.l.b16 %v2714
        %v2739 = vunpack.c.l.b16 %v2715
        %v2740 = vunpack.c.l.b16 %v2716
        %v2741 = vunpack.c.l.b16 %v2717
        %v2742 = vpack.c.b16 %v2734, %v2734
        %v2743 = vpack.c.b16 %v2735, %v2735
        %v2744 = vpack.c.b16 %v2736, %v2736
        %v2745 = vpack.c.b16 %v2737, %v2737
        %v2746 = vpack.c.b16 %v2738, %v2738
        %v2747 = vpack.c.b16 %v2739, %v2739
        %v2748 = vpack.c.b16 %v2740, %v2740
        %v2749 = vpack.c.b16 %v2741, %v2741
        %v2750 = vunpack.c.l.b16 %v2742
        %v2751 = vunpack.c.l.b16 %v2743
        %v2752 = vunpack.c.l.b16 %v2744
        %v2753 = vunpack.c.l.b16 %v2745
        %v2754 = vunpack.c.l.b16 %v2746
        %v2755 = vunpack.c.l.b16 %v2747
        %v2756 = vunpack.c.l.b16 %v2748
        %v2757 = vunpack.c.l.b16 %v2749
        %v2758 = vrot.slane %v2751, 7
        %v2759 = vsel %vm757, %v2758, %v2750
        %v2760 = vrot.slane %v2752, 6
        %v2761 = vsel %vm760, %v2760, %v2759
        %v2762 = vrot.slane %v2753, 5
        %v2763 = vsel %vm763, %v2762, %v2761
        %v2764 = vrot.slane %v2754, 4
        %vm2765 = vcmask 1044484
        %v2766 = vsel %vm2765, %v2764, %v2763
        %v2767 = vrot.slane %v2755, 3
        %vm2768 = vcmask 1045509
        %v2769 = vsel %vm2768, %v2767, %v2766
        %v2770 = vrot.slane %v2756, 2
        %vm2771 = vcmask 1046534
        %v2772 = vsel %vm2771, %v2770, %v2769
        %v2773 = vrot.slane %v2757, 1
        %vm2774 = vcmask 1047559
        %v2775 = vsel %vm2774, %v2773, %v2772
        %v2776 = vpack.c.b16 %v2775, %v2775
        %v2777 = vunpack.c.h.b16 %v2742
        %v2778 = vunpack.c.h.b16 %v2743
        %v2779 = vunpack.c.h.b16 %v2744
        %v2780 = vunpack.c.h.b16 %v2745
        %v2781 = vunpack.c.h.b16 %v2746
        %v2782 = vunpack.c.h.b16 %v2747
        %v2783 = vunpack.c.h.b16 %v2748
        %v2784 = vunpack.c.h.b16 %v2749
        %v2785 = vrot.slane %v2778, 7
        %v2786 = vsel %vm757, %v2785, %v2777
        %v2787 = vrot.slane %v2779, 6
        %v2788 = vsel %vm760, %v2787, %v2786
        %v2789 = vrot.slane %v2780, 5
        %v2790 = vsel %vm763, %v2789, %v2788
        %v2791 = vrot.slane %v2781, 4
        %v2792 = vsel %vm2765, %v2791, %v2790
        %v2793 = vrot.slane %v2782, 3
        %v2794 = vsel %vm2768, %v2793, %v2792
        %v2795 = vrot.slane %v2783, 2
        %v2796 = vsel %vm2771, %v2795, %v2794
        %v2797 = vrot.slane %v2784, 1
        %v2798 = vsel %vm2774, %v2797, %v2796
        %v2799 = vpack.c.b16 %v2798, %v2798
        %2800 = vrot.lane.b32.xlu0 %v2799, 127
        %v2801 = vpop.permute.xlu0 %2800
        %2802 = vrot.lane.b32.xlu0 %v2776, 126
        %v2803 = vpop.permute.xlu0 %2802
        %v2804 = vrot.slane %v2750, 1
        %v2805 = vsel %vm757, %v2751, %v2804
        %v2806 = vrot.slane %v2752, 7
        %v2807 = vsel %vm760, %v2806, %v2805
        %v2808 = vrot.slane %v2753, 6
        %v2809 = vsel %vm763, %v2808, %v2807
        %v2810 = vrot.slane %v2754, 5
        %v2811 = vsel %vm2765, %v2810, %v2809
        %v2812 = vrot.slane %v2755, 4
        %v2813 = vsel %vm2768, %v2812, %v2811
        %v2814 = vrot.slane %v2756, 3
        %v2815 = vsel %vm2771, %v2814, %v2813
        %v2816 = vrot.slane %v2757, 2
        %v2817 = vsel %vm2774, %v2816, %v2815
        %v2818 = vpack.c.b16 %v2817, %v2817
        %2819 = vrot.lane.b32.xlu0 %v2818, 127
        %v2820 = vpop.permute.xlu0 %2819
        %2821 = vrot.lane.b32.xlu0 %v2818, 126
        %v2822 = vpop.permute.xlu0 %2821
        %v2831 = vunpack.c.l.b16 %v2718
        %v2832 = vunpack.c.l.b16 %v2719
        %v2833 = vunpack.c.l.b16 %v2720
        %v2834 = vunpack.c.l.b16 %v2721
        %v2835 = vunpack.c.l.b16 %v2722
        %v2836 = vunpack.c.l.b16 %v2723
        %v2837 = vunpack.c.l.b16 %v2724
        %v2838 = vunpack.c.l.b16 %v2725
        %v2839 = vpack.c.b16 %v2831, %v2831
        %v2840 = vpack.c.b16 %v2832, %v2832
        %v2841 = vpack.c.b16 %v2833, %v2833
        %v2842 = vpack.c.b16 %v2834, %v2834
        %v2843 = vpack.c.b16 %v2835, %v2835
        %v2844 = vpack.c.b16 %v2836, %v2836
        %v2845 = vpack.c.b16 %v2837, %v2837
        %v2846 = vpack.c.b16 %v2838, %v2838
        %v2847 = vunpack.c.l.b16 %v2839
        %v2848 = vunpack.c.l.b16 %v2840
        %v2849 = vunpack.c.l.b16 %v2841
        %v2850 = vunpack.c.l.b16 %v2842
        %v2851 = vunpack.c.l.b16 %v2843
        %v2852 = vunpack.c.l.b16 %v2844
        %v2853 = vunpack.c.l.b16 %v2845
        %v2854 = vunpack.c.l.b16 %v2846
        %v2855 = vrot.slane %v2847, 2
        %v2856 = vrot.slane %v2848, 1
        %v2857 = vsel %vm757, %v2856, %v2855
        %v2858 = vsel %vm760, %v2849, %v2857
        %v2859 = vrot.slane %v2850, 7
        %v2860 = vsel %vm763, %v2859, %v2858
        %v2861 = vrot.slane %v2851, 6
        %v2862 = vsel %vm2765, %v2861, %v2860
        %v2863 = vrot.slane %v2852, 5
        %v2864 = vsel %vm2768, %v2863, %v2862
        %v2865 = vrot.slane %v2853, 4
        %v2866 = vsel %vm2771, %v2865, %v2864
        %v2867 = vrot.slane %v2854, 3
        %v2868 = vsel %vm2774, %v2867, %v2866
        %v2869 = vpack.c.b16 %v2868, %v2868
        %2870 = vrot.lane.b32.xlu0 %v2869, 127
        %v2871 = vpop.permute.xlu0 %2870
        %2872 = vrot.lane.b32.xlu0 %v2869, 126
        %v2873 = vpop.permute.xlu0 %2872
        %vm2874 = vcmask 1043456
        %v2877 = vsel %vm2874, %v2776, %v2801
        %v2881 = vsel %vm2874, %v2803, %v2818
        %v2885 = vsel %vm2874, %v2820, %v2822
        %v2889 = vsel %vm2874, %v2869, %v2871
        %v2891 = vld [vmem:[%s4] sm:$0xf]
        %vm2892 = vcmask 588800
        %v2894 = vsel %vm2892, %v2891, 0
        %v2897 = vsel %vm2874, %v2873, 0
        %2899 = vmatprep.subr.bf16.mxu0 0
        %2900 = vmatpush1.bf16.msra.mxu0 0
        %2901 = vmatprep.subr.bf16.mxu0 0
        %2902 = vmatpush1.bf16.msra.mxu0 0
        %2903 = vmatprep.subr.bf16.mxu0 0
        %2904 = vmatpush1.bf16.msra.mxu0 0
        %2905 = vmatprep.subr.bf16.mxu0 0
        %2906 = vmatpush1.bf16.msra.mxu0 %v2897
        %2907 = vmatprep.subr.bf16.mxu0 0
        %2908 = vmatpush1.bf16.msra.mxu0 %v2889
        %2909 = vmatprep.subr.bf16.mxu0 0
        %2910 = vmatpush1.bf16.msra.mxu0 %v2885
        %2911 = vmatprep.subr.bf16.mxu0 0
        %2912 = vmatpush1.bf16.msra.mxu0 %v2881
        %2913 = vmatprep.subr.bf16.mxu0 0
        %2914 = vmatpush1.bf16.msra.mxu0 %v2877
        %2915 = vmatprep.subr.bf16.mxu0 0
        %2916 = vmatpush2.bf16.msra.mxu0 0
        %2917 = vmatprep.subr.bf16.mxu0 0
        %2918 = vmatpush2.bf16.msra.mxu0 0
        %2919 = vmatprep.subr.bf16.mxu0 0
        %2920 = vmatpush2.bf16.msra.mxu0 0
        %2921 = vmatprep.subr.bf16.mxu0 0
        %2922 = vmatpush2.bf16.msra.mxu0 0
        %2923 = vmatprep.subr.bf16.mxu0 0
        %2924 = vmatpush2.bf16.msra.mxu0 0
        %2925 = vmatprep.subr.bf16.mxu0 0
        %2926 = vmatpush2.bf16.msra.mxu0 0
        %2927 = vmatprep.subr.bf16.mxu0 0
        %2928 = vmatpush2.bf16.msra.mxu0 0
        %2929 = vmatprep.subr.bf16.mxu0 0
        %2930 = vmatpush2.bf16.msra.mxu0 0
        %2931 = vmatprep.mubr.bf16.mxu0 0
        %2932 = vmatmul.mubr.bf16.gmra.mxu0 %v2894
        %v2933 = vpop.f32.mrf.mxu0
        %v2934 = vadd.f32 0.0, %v2933
        %v2935 = vpop.f32.mrf.mxu0
        %v2936 = vpop.f32.mrf.mxu0
        %v2937 = vpop.f32.mrf.mxu0
        %2938 = vdwg.mxu0
        %2940 = vset.pattern.permute.xlu0 0
        %2941 = vperm.xlu0 %2940, %v2708
        %v2942 = vpop.permute.xlu0 %2941
        %v2944 = vmul.f32 %v2934, %v2942
        %2946 = vset.pattern.permute.xlu0 0
        %2947 = vperm.xlu0 %2946, %v2709
        %v2948 = vpop.permute.xlu0 %2947
        %v2950 = vadd.f32 %v2944, %v2948
        %v2951 = vmax.f32 %v2950, 0.0
        %v2952 = vpack.c.bf16 %v2951, %v2951
        %v2955 = vunpack.c.l.s4 1966171168
        %v2956 = vunpack.c.0.s8 %v2955
        %v2957 = vlaneseq
        %v2958 = vshrl.u32 %v2957, 7
        %v2959 = vsub.s32 %v2956, %v2958
        %v2960 = vrot.slane %v2952, %v2959
        %v2961 = vcombine.high %v2960, %v2960
        %v2963 = vunpack.c.l.s4 1966171168
        %v2964 = vunpack.c.0.s8 %v2963
        %v2965 = vlaneseq
        %v2966 = vshrl.u32 %v2965, 7
        %v2967 = vsub.s32 %v2964, %v2966
        %v2968 = vrot.slane %v2960, %v2967
        %v2970 = vunpack.c.l.s4 1966171168
        %v2971 = vunpack.c.0.s8 %v2970
        %v2972 = vlaneseq
        %v2973 = vshrl.u32 %v2972, 7
        %v2974 = vsub.s32 %v2971, %v2973
        %v2975 = vrot.slane %v2961, %v2974
        %v2976 = vcombine.high %v2968, %v2968
        %v2977 = vcombine.high %v2975, %v2975
        %v2978 = vunpack.i.l.s16 %v2968
        %v2979 = vunpack.i.h.s16 %v2968
        %v2980 = vunpack.i.l.s16 %v2975
        %v2981 = vunpack.i.h.s16 %v2975
        %v2982 = vunpack.i.l.s16 %v2976
        %v2983 = vunpack.i.h.s16 %v2976
        %v2984 = vunpack.i.l.s16 %v2977
        %v2985 = vunpack.i.h.s16 %v2977
        %v2986 = vpack.i.b16 %v2978, %v2978
        %v2987 = vpack.i.b16 %v2979, %v2979
        %v2988 = vpack.i.b16 %v2980, %v2980
        %v2989 = vpack.i.b16 %v2981, %v2981
        %v2990 = vpack.i.b16 %v2982, %v2982
        %v2991 = vpack.i.b16 %v2983, %v2983
        %v2992 = vpack.i.b16 %v2984, %v2984
        %v2993 = vpack.i.b16 %v2985, %v2985
        %v2995 = vunpack.c.l.s4 286326784
        %v2996 = vunpack.c.0.s8 %v2995
        %v2997 = vlaneseq
        %v2998 = vshrl.u32 %v2997, 7
        %v2999 = vsub.s32 %v2996, %v2998
        %v3000 = vrot.slane %v2986, %v2999
        %v3002 = vunpack.c.l.s4 286326784
        %v3003 = vunpack.c.0.s8 %v3002
        %v3004 = vlaneseq
        %v3005 = vshrl.u32 %v3004, 7
        %v3006 = vsub.s32 %v3003, %v3005
        %v3007 = vrot.slane %v2987, %v3006
        %v3009 = vunpack.c.l.s4 286326784
        %v3010 = vunpack.c.0.s8 %v3009
        %v3011 = vlaneseq
        %v3012 = vshrl.u32 %v3011, 7
        %v3013 = vsub.s32 %v3010, %v3012
        %v3014 = vrot.slane %v2988, %v3013
        %v3016 = vunpack.c.l.s4 286326784
        %v3017 = vunpack.c.0.s8 %v3016
        %v3018 = vlaneseq
        %v3019 = vshrl.u32 %v3018, 7
        %v3020 = vsub.s32 %v3017, %v3019
        %v3021 = vrot.slane %v2989, %v3020
        %v3023 = vunpack.c.l.s4 286326784
        %v3024 = vunpack.c.0.s8 %v3023
        %v3025 = vlaneseq
        %v3026 = vshrl.u32 %v3025, 7
        %v3027 = vsub.s32 %v3024, %v3026
        %v3028 = vrot.slane %v2990, %v3027
        %v3030 = vunpack.c.l.s4 286326784
        %v3031 = vunpack.c.0.s8 %v3030
        %v3032 = vlaneseq
        %v3033 = vshrl.u32 %v3032, 7
        %v3034 = vsub.s32 %v3031, %v3033
        %v3035 = vrot.slane %v2991, %v3034
        %v3037 = vunpack.c.l.s4 286326784
        %v3038 = vunpack.c.0.s8 %v3037
        %v3039 = vlaneseq
        %v3040 = vshrl.u32 %v3039, 7
        %v3041 = vsub.s32 %v3038, %v3040
        %v3042 = vrot.slane %v2992, %v3041
        %v3044 = vunpack.c.l.s4 286326784
        %v3045 = vunpack.c.0.s8 %v3044
        %v3046 = vlaneseq
        %v3047 = vshrl.u32 %v3046, 7
        %v3048 = vsub.s32 %v3045, %v3047
        %v3049 = vrot.slane %v2993, %v3048
        %3050 = vrot.lane.b32.xlu0 %v3000, 1
        %v3051 = vpop.permute.xlu0 %3050
        %3052 = vrot.lane.b32.xlu0 %v3007, 1
        %v3053 = vpop.permute.xlu0 %3052
        %3054 = vrot.lane.b32.xlu0 %v3014, 1
        %v3055 = vpop.permute.xlu0 %3054
        %3056 = vrot.lane.b32.xlu0 %v3021, 1
        %v3057 = vpop.permute.xlu0 %3056
        %3058 = vrot.lane.b32.xlu0 %v3028, 1
        %v3059 = vpop.permute.xlu0 %3058
        %3060 = vrot.lane.b32.xlu0 %v3035, 1
        %v3061 = vpop.permute.xlu0 %3060
        %3062 = vrot.lane.b32.xlu0 %v3042, 1
        %v3063 = vpop.permute.xlu0 %3062
        %3064 = vrot.lane.b32.xlu0 %v3049, 1
        %v3065 = vpop.permute.xlu0 %3064
        %v3074 = vld [vmem:[#allocation3] sm:$0x1]
        %v3075 = vsel %vm954, %v3051, %v3074
        %3076 = vst [vmem:[#allocation3] sm:$0x1] %v3075
        %v3077 = vld [vmem:[#allocation3 + $0x8] sm:$0x1]
        %v3078 = vsel %vm954, %v3053, %v3077
        %3079 = vst [vmem:[#allocation3 + $0x8] sm:$0x1] %v3078
        %v3080 = vld [vmem:[#allocation3 + $0x10] sm:$0x1]
        %v3081 = vsel %vm954, %v3055, %v3080
        %3082 = vst [vmem:[#allocation3 + $0x10] sm:$0x1] %v3081
        %v3083 = vld [vmem:[#allocation3 + $0x18] sm:$0x1]
        %v3084 = vsel %vm954, %v3057, %v3083
        %3085 = vst [vmem:[#allocation3 + $0x18] sm:$0x1] %v3084
        %v3086 = vld [vmem:[#allocation3 + $0x20] sm:$0x1]
        %v3087 = vsel %vm954, %v3059, %v3086
        %3088 = vst [vmem:[#allocation3 + $0x20] sm:$0x1] %v3087
        %v3089 = vld [vmem:[#allocation3 + $0x28] sm:$0x1]
        %v3090 = vsel %vm954, %v3061, %v3089
        %3091 = vst [vmem:[#allocation3 + $0x28] sm:$0x1] %v3090
        %v3092 = vld [vmem:[#allocation3 + $0x30] sm:$0x1]
        %v3093 = vsel %vm954, %v3063, %v3092
        %3094 = vst [vmem:[#allocation3 + $0x30] sm:$0x1] %v3093
        %v3095 = vld [vmem:[#allocation3 + $0x38] sm:$0x1]
        %v3096 = vsel %vm954, %v3065, %v3095
        %3097 = vst [vmem:[#allocation3 + $0x38] sm:$0x1] %v3096
        %v3098 = vld [vmem:[#allocation2] sm:$0x1]
        %v3099 = vld [vmem:[#allocation2 + $0x8] sm:$0x1]
        %v3100 = vld [vmem:[#allocation2 + $0x10] sm:$0x1]
        %v3101 = vld [vmem:[#allocation2 + $0x18] sm:$0x1]
        %v3102 = vld [vmem:[#allocation2 + $0x20] sm:$0x1]
        %v3103 = vld [vmem:[#allocation2 + $0x28] sm:$0x1]
        %v3104 = vld [vmem:[#allocation2 + $0x30] sm:$0x1]
        %v3105 = vld [vmem:[#allocation2 + $0x38] sm:$0x1]
        %v3106 = vld [vmem:[#allocation2] sm:$0x2]
        %v3107 = vld [vmem:[#allocation2 + $0x8] sm:$0x2]
        %v3108 = vld [vmem:[#allocation2 + $0x10] sm:$0x2]
        %v3109 = vld [vmem:[#allocation2 + $0x18] sm:$0x2]
        %v3110 = vld [vmem:[#allocation2 + $0x20] sm:$0x2]
        %v3111 = vld [vmem:[#allocation2 + $0x28] sm:$0x2]
        %v3112 = vld [vmem:[#allocation2 + $0x30] sm:$0x2]
        %v3113 = vld [vmem:[#allocation2 + $0x38] sm:$0x2]
        %v3122 = vunpack.c.l.b16 %v3098
        %v3123 = vunpack.c.l.b16 %v3099
        %v3124 = vunpack.c.l.b16 %v3100
        %v3125 = vunpack.c.l.b16 %v3101
        %v3126 = vunpack.c.l.b16 %v3102
        %v3127 = vunpack.c.l.b16 %v3103
        %v3128 = vunpack.c.l.b16 %v3104
        %v3129 = vunpack.c.l.b16 %v3105
        %v3130 = vpack.c.b16 %v3122, %v3122
        %v3131 = vpack.c.b16 %v3123, %v3123
        %v3132 = vpack.c.b16 %v3124, %v3124
        %v3133 = vpack.c.b16 %v3125, %v3125
        %v3134 = vpack.c.b16 %v3126, %v3126
        %v3135 = vpack.c.b16 %v3127, %v3127
        %v3136 = vpack.c.b16 %v3128, %v3128
        %v3137 = vpack.c.b16 %v3129, %v3129
        %v3138 = vunpack.c.l.b16 %v3130
        %v3139 = vunpack.c.l.b16 %v3131
        %v3140 = vunpack.c.l.b16 %v3132
        %v3141 = vunpack.c.l.b16 %v3133
        %v3142 = vunpack.c.l.b16 %v3134
        %v3143 = vunpack.c.l.b16 %v3135
        %v3144 = vunpack.c.l.b16 %v3136
        %v3145 = vunpack.c.l.b16 %v3137
        %v3146 = vrot.slane %v3138, 1
        %v3147 = vsel %vm757, %v3139, %v3146
        %v3148 = vrot.slane %v3140, 7
        %v3149 = vsel %vm760, %v3148, %v3147
        %v3150 = vrot.slane %v3141, 6
        %v3151 = vsel %vm763, %v3150, %v3149
        %v3152 = vrot.slane %v3142, 5
        %v3153 = vsel %vm2765, %v3152, %v3151
        %v3154 = vrot.slane %v3143, 4
        %v3155 = vsel %vm2768, %v3154, %v3153
        %v3156 = vrot.slane %v3144, 3
        %v3157 = vsel %vm2771, %v3156, %v3155
        %v3158 = vrot.slane %v3145, 2
        %v3159 = vsel %vm2774, %v3158, %v3157
        %v3160 = vpack.c.b16 %v3159, %v3159
        %3161 = vrot.lane.b32.xlu0 %v3160, 127
        %v3162 = vpop.permute.xlu0 %3161
        %3163 = vrot.lane.b32.xlu0 %v3160, 126
        %v3164 = vpop.permute.xlu0 %3163
        %v3173 = vunpack.c.l.b16 %v3106
        %v3174 = vunpack.c.l.b16 %v3107
        %v3175 = vunpack.c.l.b16 %v3108
        %v3176 = vunpack.c.l.b16 %v3109
        %v3177 = vunpack.c.l.b16 %v3110
        %v3178 = vunpack.c.l.b16 %v3111
        %v3179 = vunpack.c.l.b16 %v3112
        %v3180 = vunpack.c.l.b16 %v3113
        %v3181 = vpack.c.b16 %v3173, %v3173
        %v3182 = vpack.c.b16 %v3174, %v3174
        %v3183 = vpack.c.b16 %v3175, %v3175
        %v3184 = vpack.c.b16 %v3176, %v3176
        %v3185 = vpack.c.b16 %v3177, %v3177
        %v3186 = vpack.c.b16 %v3178, %v3178
        %v3187 = vpack.c.b16 %v3179, %v3179
        %v3188 = vpack.c.b16 %v3180, %v3180
        %v3189 = vunpack.c.l.b16 %v3181
        %v3190 = vunpack.c.l.b16 %v3182
        %v3191 = vunpack.c.l.b16 %v3183
        %v3192 = vunpack.c.l.b16 %v3184
        %v3193 = vunpack.c.l.b16 %v3185
        %v3194 = vunpack.c.l.b16 %v3186
        %v3195 = vunpack.c.l.b16 %v3187
        %v3196 = vunpack.c.l.b16 %v3188
        %v3197 = vrot.slane %v3189, 2
        %v3198 = vrot.slane %v3190, 1
        %v3199 = vsel %vm757, %v3198, %v3197
        %v3200 = vsel %vm760, %v3191, %v3199
        %v3201 = vrot.slane %v3192, 7
        %v3202 = vsel %vm763, %v3201, %v3200
        %v3203 = vrot.slane %v3193, 6
        %v3204 = vsel %vm2765, %v3203, %v3202
        %v3205 = vrot.slane %v3194, 5
        %v3206 = vsel %vm2768, %v3205, %v3204
        %v3207 = vrot.slane %v3195, 4
        %v3208 = vsel %vm2771, %v3207, %v3206
        %v3209 = vrot.slane %v3196, 3
        %v3210 = vsel %vm2774, %v3209, %v3208
        %v3211 = vpack.c.b16 %v3210, %v3210
        %3212 = vrot.lane.b32.xlu0 %v3211, 127
        %v3213 = vpop.permute.xlu0 %3212
        %3214 = vrot.lane.b32.xlu0 %v3211, 126
        %v3215 = vpop.permute.xlu0 %3214
        %v3216 = vrot.slane %v3189, 3
        %v3217 = vrot.slane %v3190, 2
        %v3218 = vsel %vm757, %v3217, %v3216
        %v3219 = vrot.slane %v3191, 1
        %v3220 = vsel %vm760, %v3219, %v3218
        %v3221 = vsel %vm763, %v3192, %v3220
        %v3222 = vrot.slane %v3193, 7
        %v3223 = vsel %vm2765, %v3222, %v3221
        %v3224 = vrot.slane %v3194, 6
        %v3225 = vsel %vm2768, %v3224, %v3223
        %v3226 = vrot.slane %v3195, 5
        %v3227 = vsel %vm2771, %v3226, %v3225
        %v3228 = vrot.slane %v3196, 4
        %v3229 = vsel %vm2774, %v3228, %v3227
        %v3230 = vpack.c.b16 %v3229, %v3229
        %3231 = vrot.lane.b32.xlu0 %v3230, 127
        %v3232 = vpop.permute.xlu0 %3231
        %3233 = vrot.lane.b32.xlu0 %v3230, 126
        %v3234 = vpop.permute.xlu0 %3233
        %v3237 = vsel %vm2874, %v3160, %v3162
        %v3241 = vsel %vm2874, %v3164, %v3211
        %v3245 = vsel %vm2874, %v3213, %v3215
        %v3249 = vsel %vm2874, %v3230, %v3232
        %v3251 = vld [vmem:[%s4] sm:$0xf]
        %v3253 = vsel %vm2892, %v3251, 0
        %v3256 = vsel %vm2874, %v3234, 0
        %3258 = vmatprep.subr.bf16.mxu0 0
        %3259 = vmatpush1.bf16.msra.mxu0 0
        %3260 = vmatprep.subr.bf16.mxu0 0
        %3261 = vmatpush1.bf16.msra.mxu0 0
        %3262 = vmatprep.subr.bf16.mxu0 0
        %3263 = vmatpush1.bf16.msra.mxu0 0
        %3264 = vmatprep.subr.bf16.mxu0 0
        %3265 = vmatpush1.bf16.msra.mxu0 %v3256
        %3266 = vmatprep.subr.bf16.mxu0 0
        %3267 = vmatpush1.bf16.msra.mxu0 %v3249
        %3268 = vmatprep.subr.bf16.mxu0 0
        %3269 = vmatpush1.bf16.msra.mxu0 %v3245
        %3270 = vmatprep.subr.bf16.mxu0 0
        %3271 = vmatpush1.bf16.msra.mxu0 %v3241
        %3272 = vmatprep.subr.bf16.mxu0 0
        %3273 = vmatpush1.bf16.msra.mxu0 %v3237
        %3274 = vmatprep.subr.bf16.mxu0 0
        %3275 = vmatpush2.bf16.msra.mxu0 0
        %3276 = vmatprep.subr.bf16.mxu0 0
        %3277 = vmatpush2.bf16.msra.mxu0 0
        %3278 = vmatprep.subr.bf16.mxu0 0
        %3279 = vmatpush2.bf16.msra.mxu0 0
        %3280 = vmatprep.subr.bf16.mxu0 0
        %3281 = vmatpush2.bf16.msra.mxu0 0
        %3282 = vmatprep.subr.bf16.mxu0 0
        %3283 = vmatpush2.bf16.msra.mxu0 0
        %3284 = vmatprep.subr.bf16.mxu0 0
        %3285 = vmatpush2.bf16.msra.mxu0 0
        %3286 = vmatprep.subr.bf16.mxu0 0
        %3287 = vmatpush2.bf16.msra.mxu0 0
        %3288 = vmatprep.subr.bf16.mxu0 0
        %3289 = vmatpush2.bf16.msra.mxu0 0
        %3290 = vmatprep.mubr.bf16.mxu0 0
        %3291 = vmatmul.mubr.bf16.gmra.mxu0 %v3253
        %v3292 = vpop.f32.mrf.mxu0
        %v3293 = vadd.f32 0.0, %v3292
        %v3294 = vpop.f32.mrf.mxu0
        %v3295 = vpop.f32.mrf.mxu0
        %v3296 = vpop.f32.mrf.mxu0
        %3297 = vdwg.mxu0
        %v3298 = vmul.f32 %v3293, %v2942
        %v3299 = vadd.f32 %v3298, %v2948
        %v3300 = vmax.f32 %v3299, 0.0
        %v3301 = vpack.c.bf16 %v3300, %v3300
        %v3304 = vunpack.c.l.s4 1966171168
        %v3305 = vunpack.c.0.s8 %v3304
        %v3306 = vlaneseq
        %v3307 = vshrl.u32 %v3306, 7
        %v3308 = vsub.s32 %v3305, %v3307
        %v3309 = vrot.slane %v3301, %v3308
        %v3310 = vcombine.high %v3309, %v3309
        %v3312 = vunpack.c.l.s4 1966171168
        %v3313 = vunpack.c.0.s8 %v3312
        %v3314 = vlaneseq
        %v3315 = vshrl.u32 %v3314, 7
        %v3316 = vsub.s32 %v3313, %v3315
        %v3317 = vrot.slane %v3309, %v3316
        %v3319 = vunpack.c.l.s4 1966171168
        %v3320 = vunpack.c.0.s8 %v3319
        %v3321 = vlaneseq
        %v3322 = vshrl.u32 %v3321, 7
        %v3323 = vsub.s32 %v3320, %v3322
        %v3324 = vrot.slane %v3310, %v3323
        %v3325 = vcombine.high %v3317, %v3317
        %v3326 = vcombine.high %v3324, %v3324
        %v3327 = vunpack.i.l.s16 %v3317
        %v3328 = vunpack.i.h.s16 %v3317
        %v3329 = vunpack.i.l.s16 %v3324
        %v3330 = vunpack.i.h.s16 %v3324
        %v3331 = vunpack.i.l.s16 %v3325
        %v3332 = vunpack.i.h.s16 %v3325
        %v3333 = vunpack.i.l.s16 %v3326
        %v3334 = vunpack.i.h.s16 %v3326
        %v3335 = vpack.i.b16 %v3327, %v3327
        %v3336 = vpack.i.b16 %v3328, %v3328
        %v3337 = vpack.i.b16 %v3329, %v3329
        %v3338 = vpack.i.b16 %v3330, %v3330
        %v3339 = vpack.i.b16 %v3331, %v3331
        %v3340 = vpack.i.b16 %v3332, %v3332
        %v3341 = vpack.i.b16 %v3333, %v3333
        %v3342 = vpack.i.b16 %v3334, %v3334
        %v3344 = vunpack.c.l.s4 286326784
        %v3345 = vunpack.c.0.s8 %v3344
        %v3346 = vlaneseq
        %v3347 = vshrl.u32 %v3346, 7
        %v3348 = vsub.s32 %v3345, %v3347
        %v3349 = vrot.slane %v3335, %v3348
        %v3351 = vunpack.c.l.s4 286326784
        %v3352 = vunpack.c.0.s8 %v3351
        %v3353 = vlaneseq
        %v3354 = vshrl.u32 %v3353, 7
        %v3355 = vsub.s32 %v3352, %v3354
        %v3356 = vrot.slane %v3336, %v3355
        %v3358 = vunpack.c.l.s4 286326784
        %v3359 = vunpack.c.0.s8 %v3358
        %v3360 = vlaneseq
        %v3361 = vshrl.u32 %v3360, 7
        %v3362 = vsub.s32 %v3359, %v3361
        %v3363 = vrot.slane %v3337, %v3362
        %v3365 = vunpack.c.l.s4 286326784
        %v3366 = vunpack.c.0.s8 %v3365
        %v3367 = vlaneseq
        %v3368 = vshrl.u32 %v3367, 7
        %v3369 = vsub.s32 %v3366, %v3368
        %v3370 = vrot.slane %v3338, %v3369
        %v3372 = vunpack.c.l.s4 286326784
        %v3373 = vunpack.c.0.s8 %v3372
        %v3374 = vlaneseq
        %v3375 = vshrl.u32 %v3374, 7
        %v3376 = vsub.s32 %v3373, %v3375
        %v3377 = vrot.slane %v3339, %v3376
        %v3379 = vunpack.c.l.s4 286326784
        %v3380 = vunpack.c.0.s8 %v3379
        %v3381 = vlaneseq
        %v3382 = vshrl.u32 %v3381, 7
        %v3383 = vsub.s32 %v3380, %v3382
        %v3384 = vrot.slane %v3340, %v3383
        %v3386 = vunpack.c.l.s4 286326784
        %v3387 = vunpack.c.0.s8 %v3386
        %v3388 = vlaneseq
        %v3389 = vshrl.u32 %v3388, 7
        %v3390 = vsub.s32 %v3387, %v3389
        %v3391 = vrot.slane %v3341, %v3390
        %v3393 = vunpack.c.l.s4 286326784
        %v3394 = vunpack.c.0.s8 %v3393
        %v3395 = vlaneseq
        %v3396 = vshrl.u32 %v3395, 7
        %v3397 = vsub.s32 %v3394, %v3396
        %v3398 = vrot.slane %v3342, %v3397
        %3399 = vrot.lane.b32.xlu0 %v3349, 1
        %v3400 = vpop.permute.xlu0 %3399
        %3401 = vrot.lane.b32.xlu0 %v3356, 1
        %v3402 = vpop.permute.xlu0 %3401
        %3403 = vrot.lane.b32.xlu0 %v3363, 1
        %v3404 = vpop.permute.xlu0 %3403
        %3405 = vrot.lane.b32.xlu0 %v3370, 1
        %v3406 = vpop.permute.xlu0 %3405
        %3407 = vrot.lane.b32.xlu0 %v3377, 1
        %v3408 = vpop.permute.xlu0 %3407
        %3409 = vrot.lane.b32.xlu0 %v3384, 1
        %v3410 = vpop.permute.xlu0 %3409
        %3411 = vrot.lane.b32.xlu0 %v3391, 1
        %v3412 = vpop.permute.xlu0 %3411
        %3413 = vrot.lane.b32.xlu0 %v3398, 1
        %v3414 = vpop.permute.xlu0 %3413
        %v3423 = vld [vmem:[#allocation3] sm:$0x1]
        %v3424 = vsel %vm1040, %v3400, %v3423
        %3425 = vst [vmem:[#allocation3] sm:$0x1] %v3424
        %v3426 = vld [vmem:[#allocation3 + $0x8] sm:$0x1]
        %v3427 = vsel %vm1040, %v3402, %v3426
        %3428 = vst [vmem:[#allocation3 + $0x8] sm:$0x1] %v3427
        %v3429 = vld [vmem:[#allocation3 + $0x10] sm:$0x1]
        %v3430 = vsel %vm1040, %v3404, %v3429
        %3431 = vst [vmem:[#allocation3 + $0x10] sm:$0x1] %v3430
        %v3432 = vld [vmem:[#allocation3 + $0x18] sm:$0x1]
        %v3433 = vsel %vm1040, %v3406, %v3432
        %3434 = vst [vmem:[#allocation3 + $0x18] sm:$0x1] %v3433
        %v3435 = vld [vmem:[#allocation3 + $0x20] sm:$0x1]
        %v3436 = vsel %vm1040, %v3408, %v3435
        %3437 = vst [vmem:[#allocation3 + $0x20] sm:$0x1] %v3436
        %v3438 = vld [vmem:[#allocation3 + $0x28] sm:$0x1]
        %v3439 = vsel %vm1040, %v3410, %v3438
        %3440 = vst [vmem:[#allocation3 + $0x28] sm:$0x1] %v3439
        %v3441 = vld [vmem:[#allocation3 + $0x30] sm:$0x1]
        %v3442 = vsel %vm1040, %v3412, %v3441
        %3443 = vst [vmem:[#allocation3 + $0x30] sm:$0x1] %v3442
        %v3444 = vld [vmem:[#allocation3 + $0x38] sm:$0x1]
        %v3445 = vsel %vm1040, %v3414, %v3444
        %3446 = vst [vmem:[#allocation3 + $0x38] sm:$0x1] %v3445
        %v3447 = vld [vmem:[#allocation2] sm:$0x2]
        %v3448 = vld [vmem:[#allocation2 + $0x8] sm:$0x2]
        %v3449 = vld [vmem:[#allocation2 + $0x10] sm:$0x2]
        %v3450 = vld [vmem:[#allocation2 + $0x18] sm:$0x2]
        %v3451 = vld [vmem:[#allocation2 + $0x20] sm:$0x2]
        %v3452 = vld [vmem:[#allocation2 + $0x28] sm:$0x2]
        %v3453 = vld [vmem:[#allocation2 + $0x30] sm:$0x2]
        %v3454 = vld [vmem:[#allocation2 + $0x38] sm:$0x2]
        %v3455 = vld [vmem:[#allocation2] sm:$0x4]
        %v3456 = vld [vmem:[#allocation2 + $0x8] sm:$0x4]
        %v3457 = vld [vmem:[#allocation2 + $0x10] sm:$0x4]
        %v3458 = vld [vmem:[#allocation2 + $0x18] sm:$0x4]
        %v3459 = vld [vmem:[#allocation2 + $0x20] sm:$0x4]
        %v3460 = vld [vmem:[#allocation2 + $0x28] sm:$0x4]
        %v3461 = vld [vmem:[#allocation2 + $0x30] sm:$0x4]
        %v3462 = vld [vmem:[#allocation2 + $0x38] sm:$0x4]
        %v3471 = vunpack.c.l.b16 %v3447
        %v3472 = vunpack.c.l.b16 %v3448
        %v3473 = vunpack.c.l.b16 %v3449
        %v3474 = vunpack.c.l.b16 %v3450
        %v3475 = vunpack.c.l.b16 %v3451
        %v3476 = vunpack.c.l.b16 %v3452
        %v3477 = vunpack.c.l.b16 %v3453
        %v3478 = vunpack.c.l.b16 %v3454
        %v3479 = vpack.c.b16 %v3471, %v3471
        %v3480 = vpack.c.b16 %v3472, %v3472
        %v3481 = vpack.c.b16 %v3473, %v3473
        %v3482 = vpack.c.b16 %v3474, %v3474
        %v3483 = vpack.c.b16 %v3475, %v3475
        %v3484 = vpack.c.b16 %v3476, %v3476
        %v3485 = vpack.c.b16 %v3477, %v3477
        %v3486 = vpack.c.b16 %v3478, %v3478
        %v3487 = vunpack.c.l.b16 %v3479
        %v3488 = vunpack.c.l.b16 %v3480
        %v3489 = vunpack.c.l.b16 %v3481
        %v3490 = vunpack.c.l.b16 %v3482
        %v3491 = vunpack.c.l.b16 %v3483
        %v3492 = vunpack.c.l.b16 %v3484
        %v3493 = vunpack.c.l.b16 %v3485
        %v3494 = vunpack.c.l.b16 %v3486
        %v3495 = vrot.slane %v3487, 2
        %v3496 = vrot.slane %v3488, 1
        %v3497 = vsel %vm757, %v3496, %v3495
        %v3498 = vsel %vm760, %v3489, %v3497
        %v3499 = vrot.slane %v3490, 7
        %v3500 = vsel %vm763, %v3499, %v3498
        %v3501 = vrot.slane %v3491, 6
        %v3502 = vsel %vm2765, %v3501, %v3500
        %v3503 = vrot.slane %v3492, 5
        %v3504 = vsel %vm2768, %v3503, %v3502
        %v3505 = vrot.slane %v3493, 4
        %v3506 = vsel %vm2771, %v3505, %v3504
        %v3507 = vrot.slane %v3494, 3
        %v3508 = vsel %vm2774, %v3507, %v3506
        %v3509 = vpack.c.b16 %v3508, %v3508
        %3510 = vrot.lane.b32.xlu0 %v3509, 127
        %v3511 = vpop.permute.xlu0 %3510
        %3512 = vrot.lane.b32.xlu0 %v3509, 126
        %v3513 = vpop.permute.xlu0 %3512
        %v3514 = vrot.slane %v3487, 3
        %v3515 = vrot.slane %v3488, 2
        %v3516 = vsel %vm757, %v3515, %v3514
        %v3517 = vrot.slane %v3489, 1
        %v3518 = vsel %vm760, %v3517, %v3516
        %v3519 = vsel %vm763, %v3490, %v3518
        %v3520 = vrot.slane %v3491, 7
        %v3521 = vsel %vm2765, %v3520, %v3519
        %v3522 = vrot.slane %v3492, 6
        %v3523 = vsel %vm2768, %v3522, %v3521
        %v3524 = vrot.slane %v3493, 5
        %v3525 = vsel %vm2771, %v3524, %v3523
        %v3526 = vrot.slane %v3494, 4
        %v3527 = vsel %vm2774, %v3526, %v3525
        %v3528 = vpack.c.b16 %v3527, %v3527
        %3529 = vrot.lane.b32.xlu0 %v3528, 127
        %v3530 = vpop.permute.xlu0 %3529
        %3531 = vrot.lane.b32.xlu0 %v3528, 126
        %v3532 = vpop.permute.xlu0 %3531
        %v3541 = vunpack.c.l.b16 %v3455
        %v3542 = vunpack.c.l.b16 %v3456
        %v3543 = vunpack.c.l.b16 %v3457
        %v3544 = vunpack.c.l.b16 %v3458
        %v3545 = vunpack.c.l.b16 %v3459
        %v3546 = vunpack.c.l.b16 %v3460
        %v3547 = vunpack.c.l.b16 %v3461
        %v3548 = vunpack.c.l.b16 %v3462
        %v3549 = vpack.c.b16 %v3541, %v3541
        %v3550 = vpack.c.b16 %v3542, %v3542
        %v3551 = vpack.c.b16 %v3543, %v3543
        %v3552 = vpack.c.b16 %v3544, %v3544
        %v3553 = vpack.c.b16 %v3545, %v3545
        %v3554 = vpack.c.b16 %v3546, %v3546
        %v3555 = vpack.c.b16 %v3547, %v3547
        %v3556 = vpack.c.b16 %v3548, %v3548
        %v3557 = vunpack.c.l.b16 %v3549
        %v3558 = vunpack.c.l.b16 %v3550
        %v3559 = vunpack.c.l.b16 %v3551
        %v3560 = vunpack.c.l.b16 %v3552
        %v3561 = vunpack.c.l.b16 %v3553
        %v3562 = vunpack.c.l.b16 %v3554
        %v3563 = vunpack.c.l.b16 %v3555
        %v3564 = vunpack.c.l.b16 %v3556
        %v3565 = vrot.slane %v3557, 4
        %v3566 = vrot.slane %v3558, 3
        %v3567 = vsel %vm757, %v3566, %v3565
        %v3568 = vrot.slane %v3559, 2
        %v3569 = vsel %vm760, %v3568, %v3567
        %v3570 = vrot.slane %v3560, 1
        %v3571 = vsel %vm763, %v3570, %v3569
        %v3572 = vsel %vm2765, %v3561, %v3571
        %v3573 = vrot.slane %v3562, 7
        %v3574 = vsel %vm2768, %v3573, %v3572
        %v3575 = vrot.slane %v3563, 6
        %v3576 = vsel %vm2771, %v3575, %v3574
        %v3577 = vrot.slane %v3564, 5
        %v3578 = vsel %vm2774, %v3577, %v3576
        %v3579 = vpack.c.b16 %v3578, %v3578
        %3580 = vrot.lane.b32.xlu0 %v3579, 127
        %v3581 = vpop.permute.xlu0 %3580
        %3582 = vrot.lane.b32.xlu0 %v3579, 126
        %v3583 = vpop.permute.xlu0 %3582
        %v3586 = vsel %vm2874, %v3509, %v3511
        %v3590 = vsel %vm2874, %v3513, %v3528
        %v3594 = vsel %vm2874, %v3530, %v3532
        %v3598 = vsel %vm2874, %v3579, %v3581
        %v3600 = vld [vmem:[%s4] sm:$0xf]
        %v3602 = vsel %vm2892, %v3600, 0
        %v3605 = vsel %vm2874, %v3583, 0
        %3607 = vmatprep.subr.bf16.mxu0 0
        %3608 = vmatpush1.bf16.msra.mxu0 0
        %3609 = vmatprep.subr.bf16.mxu0 0
        %3610 = vmatpush1.bf16.msra.mxu0 0
        %3611 = vmatprep.subr.bf16.mxu0 0
        %3612 = vmatpush1.bf16.msra.mxu0 0
        %3613 = vmatprep.subr.bf16.mxu0 0
        %3614 = vmatpush1.bf16.msra.mxu0 %v3605
        %3615 = vmatprep.subr.bf16.mxu0 0
        %3616 = vmatpush1.bf16.msra.mxu0 %v3598
        %3617 = vmatprep.subr.bf16.mxu0 0
        %3618 = vmatpush1.bf16.msra.mxu0 %v3594
        %3619 = vmatprep.subr.bf16.mxu0 0
        %3620 = vmatpush1.bf16.msra.mxu0 %v3590
        %3621 = vmatprep.subr.bf16.mxu0 0
        %3622 = vmatpush1.bf16.msra.mxu0 %v3586
        %3623 = vmatprep.subr.bf16.mxu0 0
        %3624 = vmatpush2.bf16.msra.mxu0 0
        %3625 = vmatprep.subr.bf16.mxu0 0
        %3626 = vmatpush2.bf16.msra.mxu0 0
        %3627 = vmatprep.subr.bf16.mxu0 0
        %3628 = vmatpush2.bf16.msra.mxu0 0
        %3629 = vmatprep.subr.bf16.mxu0 0
        %3630 = vmatpush2.bf16.msra.mxu0 0
        %3631 = vmatprep.subr.bf16.mxu0 0
        %3632 = vmatpush2.bf16.msra.mxu0 0
        %3633 = vmatprep.subr.bf16.mxu0 0
        %3634 = vmatpush2.bf16.msra.mxu0 0
        %3635 = vmatprep.subr.bf16.mxu0 0
        %3636 = vmatpush2.bf16.msra.mxu0 0
        %3637 = vmatprep.subr.bf16.mxu0 0
        %3638 = vmatpush2.bf16.msra.mxu0 0
        %3639 = vmatprep.mubr.bf16.mxu0 0
        %3640 = vmatmul.mubr.bf16.gmra.mxu0 %v3602
        %v3641 = vpop.f32.mrf.mxu0
        %v3642 = vadd.f32 0.0, %v3641
        %v3643 = vpop.f32.mrf.mxu0
        %v3644 = vpop.f32.mrf.mxu0
        %v3645 = vpop.f32.mrf.mxu0
        %3646 = vdwg.mxu0
        %v3647 = vmul.f32 %v3642, %v2942
        %v3648 = vadd.f32 %v3647, %v2948
        %v3649 = vmax.f32 %v3648, 0.0
        %v3650 = vpack.c.bf16 %v3649, %v3649
        %v3653 = vunpack.c.l.s4 1966171168
        %v3654 = vunpack.c.0.s8 %v3653
        %v3655 = vlaneseq
        %v3656 = vshrl.u32 %v3655, 7
        %v3657 = vsub.s32 %v3654, %v3656
        %v3658 = vrot.slane %v3650, %v3657
        %v3659 = vcombine.high %v3658, %v3658
        %v3661 = vunpack.c.l.s4 1966171168
        %v3662 = vunpack.c.0.s8 %v3661
        %v3663 = vlaneseq
        %v3664 = vshrl.u32 %v3663, 7
        %v3665 = vsub.s32 %v3662, %v3664
        %v3666 = vrot.slane %v3658, %v3665
        %v3668 = vunpack.c.l.s4 1966171168
        %v3669 = vunpack.c.0.s8 %v3668
        %v3670 = vlaneseq
        %v3671 = vshrl.u32 %v3670, 7
        %v3672 = vsub.s32 %v3669, %v3671
        %v3673 = vrot.slane %v3659, %v3672
        %v3674 = vcombine.high %v3666, %v3666
        %v3675 = vcombine.high %v3673, %v3673
        %v3676 = vunpack.i.l.s16 %v3666
        %v3677 = vunpack.i.h.s16 %v3666
        %v3678 = vunpack.i.l.s16 %v3673
        %v3679 = vunpack.i.h.s16 %v3673
        %v3680 = vunpack.i.l.s16 %v3674
        %v3681 = vunpack.i.h.s16 %v3674
        %v3682 = vunpack.i.l.s16 %v3675
        %v3683 = vunpack.i.h.s16 %v3675
        %v3684 = vpack.i.b16 %v3676, %v3676
        %v3685 = vpack.i.b16 %v3677, %v3677
        %v3686 = vpack.i.b16 %v3678, %v3678
        %v3687 = vpack.i.b16 %v3679, %v3679
        %v3688 = vpack.i.b16 %v3680, %v3680
        %v3689 = vpack.i.b16 %v3681, %v3681
        %v3690 = vpack.i.b16 %v3682, %v3682
        %v3691 = vpack.i.b16 %v3683, %v3683
        %v3693 = vunpack.c.l.s4 286326784
        %v3694 = vunpack.c.0.s8 %v3693
        %v3695 = vlaneseq
        %v3696 = vshrl.u32 %v3695, 7
        %v3697 = vsub.s32 %v3694, %v3696
        %v3698 = vrot.slane %v3684, %v3697
        %v3700 = vunpack.c.l.s4 286326784
        %v3701 = vunpack.c.0.s8 %v3700
        %v3702 = vlaneseq
        %v3703 = vshrl.u32 %v3702, 7
        %v3704 = vsub.s32 %v3701, %v3703
        %v3705 = vrot.slane %v3685, %v3704
        %v3707 = vunpack.c.l.s4 286326784
        %v3708 = vunpack.c.0.s8 %v3707
        %v3709 = vlaneseq
        %v3710 = vshrl.u32 %v3709, 7
        %v3711 = vsub.s32 %v3708, %v3710
        %v3712 = vrot.slane %v3686, %v3711
        %v3714 = vunpack.c.l.s4 286326784
        %v3715 = vunpack.c.0.s8 %v3714
        %v3716 = vlaneseq
        %v3717 = vshrl.u32 %v3716, 7
        %v3718 = vsub.s32 %v3715, %v3717
        %v3719 = vrot.slane %v3687, %v3718
        %v3721 = vunpack.c.l.s4 286326784
        %v3722 = vunpack.c.0.s8 %v3721
        %v3723 = vlaneseq
        %v3724 = vshrl.u32 %v3723, 7
        %v3725 = vsub.s32 %v3722, %v3724
        %v3726 = vrot.slane %v3688, %v3725
        %v3728 = vunpack.c.l.s4 286326784
        %v3729 = vunpack.c.0.s8 %v3728
        %v3730 = vlaneseq
        %v3731 = vshrl.u32 %v3730, 7
        %v3732 = vsub.s32 %v3729, %v3731
        %v3733 = vrot.slane %v3689, %v3732
        %v3735 = vunpack.c.l.s4 286326784
        %v3736 = vunpack.c.0.s8 %v3735
        %v3737 = vlaneseq
        %v3738 = vshrl.u32 %v3737, 7
        %v3739 = vsub.s32 %v3736, %v3738
        %v3740 = vrot.slane %v3690, %v3739
        %v3742 = vunpack.c.l.s4 286326784
        %v3743 = vunpack.c.0.s8 %v3742
        %v3744 = vlaneseq
        %v3745 = vshrl.u32 %v3744, 7
        %v3746 = vsub.s32 %v3743, %v3745
        %v3747 = vrot.slane %v3691, %v3746
        %3748 = vrot.lane.b32.xlu0 %v3698, 1
        %v3749 = vpop.permute.xlu0 %3748
        %3750 = vrot.lane.b32.xlu0 %v3705, 1
        %v3751 = vpop.permute.xlu0 %3750
        %3752 = vrot.lane.b32.xlu0 %v3712, 1
        %v3753 = vpop.permute.xlu0 %3752
        %3754 = vrot.lane.b32.xlu0 %v3719, 1
        %v3755 = vpop.permute.xlu0 %3754
        %3756 = vrot.lane.b32.xlu0 %v3726, 1
        %v3757 = vpop.permute.xlu0 %3756
        %3758 = vrot.lane.b32.xlu0 %v3733, 1
        %v3759 = vpop.permute.xlu0 %3758
        %3760 = vrot.lane.b32.xlu0 %v3740, 1
        %v3761 = vpop.permute.xlu0 %3760
        %3762 = vrot.lane.b32.xlu0 %v3747, 1
        %v3763 = vpop.permute.xlu0 %3762
        %v3772 = vld [vmem:[#allocation3] sm:$0x2]
        %v3773 = vsel %vm1289, %v3749, %v3772
        %3774 = vst [vmem:[#allocation3] sm:$0x2] %v3773
        %v3775 = vld [vmem:[#allocation3 + $0x8] sm:$0x2]
        %v3776 = vsel %vm1289, %v3751, %v3775
        %3777 = vst [vmem:[#allocation3 + $0x8] sm:$0x2] %v3776
        %v3778 = vld [vmem:[#allocation3 + $0x10] sm:$0x2]
        %v3779 = vsel %vm1289, %v3753, %v3778
        %3780 = vst [vmem:[#allocation3 + $0x10] sm:$0x2] %v3779
        %v3781 = vld [vmem:[#allocation3 + $0x18] sm:$0x2]
        %v3782 = vsel %vm1289, %v3755, %v3781
        %3783 = vst [vmem:[#allocation3 + $0x18] sm:$0x2] %v3782
        %v3784 = vld [vmem:[#allocation3 + $0x20] sm:$0x2]
        %v3785 = vsel %vm1289, %v3757, %v3784
        %3786 = vst [vmem:[#allocation3 + $0x20] sm:$0x2] %v3785
        %v3787 = vld [vmem:[#allocation3 + $0x28] sm:$0x2]
        %v3788 = vsel %vm1289, %v3759, %v3787
        %3789 = vst [vmem:[#allocation3 + $0x28] sm:$0x2] %v3788
        %v3790 = vld [vmem:[#allocation3 + $0x30] sm:$0x2]
        %v3791 = vsel %vm1289, %v3761, %v3790
        %3792 = vst [vmem:[#allocation3 + $0x30] sm:$0x2] %v3791
        %v3793 = vld [vmem:[#allocation3 + $0x38] sm:$0x2]
        %v3794 = vsel %vm1289, %v3763, %v3793
        %3795 = vst [vmem:[#allocation3 + $0x38] sm:$0x2] %v3794
        %v3796 = vld [vmem:[#allocation2] sm:$0x2]
        %v3797 = vld [vmem:[#allocation2 + $0x8] sm:$0x2]
        %v3798 = vld [vmem:[#allocation2 + $0x10] sm:$0x2]
        %v3799 = vld [vmem:[#allocation2 + $0x18] sm:$0x2]
        %v3800 = vld [vmem:[#allocation2 + $0x20] sm:$0x2]
        %v3801 = vld [vmem:[#allocation2 + $0x28] sm:$0x2]
        %v3802 = vld [vmem:[#allocation2 + $0x30] sm:$0x2]
        %v3803 = vld [vmem:[#allocation2 + $0x38] sm:$0x2]
        %v3804 = vld [vmem:[#allocation2] sm:$0x4]
        %v3805 = vld [vmem:[#allocation2 + $0x8] sm:$0x4]
        %v3806 = vld [vmem:[#allocation2 + $0x10] sm:$0x4]
        %v3807 = vld [vmem:[#allocation2 + $0x18] sm:$0x4]
        %v3808 = vld [vmem:[#allocation2 + $0x20] sm:$0x4]
        %v3809 = vld [vmem:[#allocation2 + $0x28] sm:$0x4]
        %v3810 = vld [vmem:[#allocation2 + $0x30] sm:$0x4]
        %v3811 = vld [vmem:[#allocation2 + $0x38] sm:$0x4]
        %v3820 = vunpack.c.l.b16 %v3796
        %v3821 = vunpack.c.l.b16 %v3797
        %v3822 = vunpack.c.l.b16 %v3798
        %v3823 = vunpack.c.l.b16 %v3799
        %v3824 = vunpack.c.l.b16 %v3800
        %v3825 = vunpack.c.l.b16 %v3801
        %v3826 = vunpack.c.l.b16 %v3802
        %v3827 = vunpack.c.l.b16 %v3803
        %v3828 = vpack.c.b16 %v3820, %v3820
        %v3829 = vpack.c.b16 %v3821, %v3821
        %v3830 = vpack.c.b16 %v3822, %v3822
        %v3831 = vpack.c.b16 %v3823, %v3823
        %v3832 = vpack.c.b16 %v3824, %v3824
        %v3833 = vpack.c.b16 %v3825, %v3825
        %v3834 = vpack.c.b16 %v3826, %v3826
        %v3835 = vpack.c.b16 %v3827, %v3827
        %v3836 = vunpack.c.l.b16 %v3828
        %v3837 = vunpack.c.l.b16 %v3829
        %v3838 = vunpack.c.l.b16 %v3830
        %v3839 = vunpack.c.l.b16 %v3831
        %v3840 = vunpack.c.l.b16 %v3832
        %v3841 = vunpack.c.l.b16 %v3833
        %v3842 = vunpack.c.l.b16 %v3834
        %v3843 = vunpack.c.l.b16 %v3835
        %v3844 = vrot.slane %v3836, 3
        %v3845 = vrot.slane %v3837, 2
        %v3846 = vsel %vm757, %v3845, %v3844
        %v3847 = vrot.slane %v3838, 1
        %v3848 = vsel %vm760, %v3847, %v3846
        %v3849 = vsel %vm763, %v3839, %v3848
        %v3850 = vrot.slane %v3840, 7
        %v3851 = vsel %vm2765, %v3850, %v3849
        %v3852 = vrot.slane %v3841, 6
        %v3853 = vsel %vm2768, %v3852, %v3851
        %v3854 = vrot.slane %v3842, 5
        %v3855 = vsel %vm2771, %v3854, %v3853
        %v3856 = vrot.slane %v3843, 4
        %v3857 = vsel %vm2774, %v3856, %v3855
        %v3858 = vpack.c.b16 %v3857, %v3857
        %3859 = vrot.lane.b32.xlu0 %v3858, 127
        %v3860 = vpop.permute.xlu0 %3859
        %3861 = vrot.lane.b32.xlu0 %v3858, 126
        %v3862 = vpop.permute.xlu0 %3861
        %v3871 = vunpack.c.l.b16 %v3804
        %v3872 = vunpack.c.l.b16 %v3805
        %v3873 = vunpack.c.l.b16 %v3806
        %v3874 = vunpack.c.l.b16 %v3807
        %v3875 = vunpack.c.l.b16 %v3808
        %v3876 = vunpack.c.l.b16 %v3809
        %v3877 = vunpack.c.l.b16 %v3810
        %v3878 = vunpack.c.l.b16 %v3811
        %v3879 = vpack.c.b16 %v3871, %v3871
        %v3880 = vpack.c.b16 %v3872, %v3872
        %v3881 = vpack.c.b16 %v3873, %v3873
        %v3882 = vpack.c.b16 %v3874, %v3874
        %v3883 = vpack.c.b16 %v3875, %v3875
        %v3884 = vpack.c.b16 %v3876, %v3876
        %v3885 = vpack.c.b16 %v3877, %v3877
        %v3886 = vpack.c.b16 %v3878, %v3878
        %v3887 = vunpack.c.l.b16 %v3879
        %v3888 = vunpack.c.l.b16 %v3880
        %v3889 = vunpack.c.l.b16 %v3881
        %v3890 = vunpack.c.l.b16 %v3882
        %v3891 = vunpack.c.l.b16 %v3883
        %v3892 = vunpack.c.l.b16 %v3884
        %v3893 = vunpack.c.l.b16 %v3885
        %v3894 = vunpack.c.l.b16 %v3886
        %v3895 = vrot.slane %v3887, 4
        %v3896 = vrot.slane %v3888, 3
        %v3897 = vsel %vm757, %v3896, %v3895
        %v3898 = vrot.slane %v3889, 2
        %v3899 = vsel %vm760, %v3898, %v3897
        %v3900 = vrot.slane %v3890, 1
        %v3901 = vsel %vm763, %v3900, %v3899
        %v3902 = vsel %vm2765, %v3891, %v3901
        %v3903 = vrot.slane %v3892, 7
        %v3904 = vsel %vm2768, %v3903, %v3902
        %v3905 = vrot.slane %v3893, 6
        %v3906 = vsel %vm2771, %v3905, %v3904
        %v3907 = vrot.slane %v3894, 5
        %v3908 = vsel %vm2774, %v3907, %v3906
        %v3909 = vpack.c.b16 %v3908, %v3908
        %3910 = vrot.lane.b32.xlu0 %v3909, 127
        %v3911 = vpop.permute.xlu0 %3910
        %3912 = vrot.lane.b32.xlu0 %v3909, 126
        %v3913 = vpop.permute.xlu0 %3912
        %v3914 = vrot.slane %v3887, 5
        %v3915 = vrot.slane %v3888, 4
        %v3916 = vsel %vm757, %v3915, %v3914
        %v3917 = vrot.slane %v3889, 3
        %v3918 = vsel %vm760, %v3917, %v3916
        %v3919 = vrot.slane %v3890, 2
        %v3920 = vsel %vm763, %v3919, %v3918
        %v3921 = vrot.slane %v3891, 1
        %v3922 = vsel %vm2765, %v3921, %v3920
        %v3923 = vsel %vm2768, %v3892, %v3922
        %v3924 = vrot.slane %v3893, 7
        %v3925 = vsel %vm2771, %v3924, %v3923
        %v3926 = vrot.slane %v3894, 6
        %v3927 = vsel %vm2774, %v3926, %v3925
        %v3928 = vpack.c.b16 %v3927, %v3927
        %3929 = vrot.lane.b32.xlu0 %v3928, 127
        %v3930 = vpop.permute.xlu0 %3929
        %3931 = vrot.lane.b32.xlu0 %v3928, 126
        %v3932 = vpop.permute.xlu0 %3931
        %v3935 = vsel %vm2874, %v3858, %v3860
        %v3939 = vsel %vm2874, %v3862, %v3909
        %v3943 = vsel %vm2874, %v3911, %v3913
        %v3947 = vsel %vm2874, %v3928, %v3930
        %v3949 = vld [vmem:[%s4] sm:$0xf]
        %v3951 = vsel %vm2892, %v3949, 0
        %v3954 = vsel %vm2874, %v3932, 0
        %3956 = vmatprep.subr.bf16.mxu0 0
        %3957 = vmatpush1.bf16.msra.mxu0 0
        %3958 = vmatprep.subr.bf16.mxu0 0
        %3959 = vmatpush1.bf16.msra.mxu0 0
        %3960 = vmatprep.subr.bf16.mxu0 0
        %3961 = vmatpush1.bf16.msra.mxu0 0
        %3962 = vmatprep.subr.bf16.mxu0 0
        %3963 = vmatpush1.bf16.msra.mxu0 %v3954
        %3964 = vmatprep.subr.bf16.mxu0 0
        %3965 = vmatpush1.bf16.msra.mxu0 %v3947
        %3966 = vmatprep.subr.bf16.mxu0 0
        %3967 = vmatpush1.bf16.msra.mxu0 %v3943
        %3968 = vmatprep.subr.bf16.mxu0 0
        %3969 = vmatpush1.bf16.msra.mxu0 %v3939
        %3970 = vmatprep.subr.bf16.mxu0 0
        %3971 = vmatpush1.bf16.msra.mxu0 %v3935
        %3972 = vmatprep.subr.bf16.mxu0 0
        %3973 = vmatpush2.bf16.msra.mxu0 0
        %3974 = vmatprep.subr.bf16.mxu0 0
        %3975 = vmatpush2.bf16.msra.mxu0 0
        %3976 = vmatprep.subr.bf16.mxu0 0
        %3977 = vmatpush2.bf16.msra.mxu0 0
        %3978 = vmatprep.subr.bf16.mxu0 0
        %3979 = vmatpush2.bf16.msra.mxu0 0
        %3980 = vmatprep.subr.bf16.mxu0 0
        %3981 = vmatpush2.bf16.msra.mxu0 0
        %3982 = vmatprep.subr.bf16.mxu0 0
        %3983 = vmatpush2.bf16.msra.mxu0 0
        %3984 = vmatprep.subr.bf16.mxu0 0
        %3985 = vmatpush2.bf16.msra.mxu0 0
        %3986 = vmatprep.subr.bf16.mxu0 0
        %3987 = vmatpush2.bf16.msra.mxu0 0
        %3988 = vmatprep.mubr.bf16.mxu0 0
        %3989 = vmatmul.mubr.bf16.gmra.mxu0 %v3951
        %v3990 = vpop.f32.mrf.mxu0
        %v3991 = vadd.f32 0.0, %v3990
        %v3992 = vpop.f32.mrf.mxu0
        %v3993 = vpop.f32.mrf.mxu0
        %v3994 = vpop.f32.mrf.mxu0
        %3995 = vdwg.mxu0
        %v3996 = vmul.f32 %v3991, %v2942
        %v3997 = vadd.f32 %v3996, %v2948
        %v3998 = vmax.f32 %v3997, 0.0
        %v3999 = vpack.c.bf16 %v3998, %v3998
        %v4002 = vunpack.c.l.s4 1966171168
        %v4003 = vunpack.c.0.s8 %v4002
        %v4004 = vlaneseq
        %v4005 = vshrl.u32 %v4004, 7
        %v4006 = vsub.s32 %v4003, %v4005
        %v4007 = vrot.slane %v3999, %v4006
        %v4008 = vcombine.high %v4007, %v4007
        %v4010 = vunpack.c.l.s4 1966171168
        %v4011 = vunpack.c.0.s8 %v4010
        %v4012 = vlaneseq
        %v4013 = vshrl.u32 %v4012, 7
        %v4014 = vsub.s32 %v4011, %v4013
        %v4015 = vrot.slane %v4007, %v4014
        %v4017 = vunpack.c.l.s4 1966171168
        %v4018 = vunpack.c.0.s8 %v4017
        %v4019 = vlaneseq
        %v4020 = vshrl.u32 %v4019, 7
        %v4021 = vsub.s32 %v4018, %v4020
        %v4022 = vrot.slane %v4008, %v4021
        %v4023 = vcombine.high %v4015, %v4015
        %v4024 = vcombine.high %v4022, %v4022
        %v4025 = vunpack.i.l.s16 %v4015
        %v4026 = vunpack.i.h.s16 %v4015
        %v4027 = vunpack.i.l.s16 %v4022
        %v4028 = vunpack.i.h.s16 %v4022
        %v4029 = vunpack.i.l.s16 %v4023
        %v4030 = vunpack.i.h.s16 %v4023
        %v4031 = vunpack.i.l.s16 %v4024
        %v4032 = vunpack.i.h.s16 %v4024
        %v4033 = vpack.i.b16 %v4025, %v4025
        %v4034 = vpack.i.b16 %v4026, %v4026
        %v4035 = vpack.i.b16 %v4027, %v4027
        %v4036 = vpack.i.b16 %v4028, %v4028
        %v4037 = vpack.i.b16 %v4029, %v4029
        %v4038 = vpack.i.b16 %v4030, %v4030
        %v4039 = vpack.i.b16 %v4031, %v4031
        %v4040 = vpack.i.b16 %v4032, %v4032
        %v4042 = vunpack.c.l.s4 286326784
        %v4043 = vunpack.c.0.s8 %v4042
        %v4044 = vlaneseq
        %v4045 = vshrl.u32 %v4044, 7
        %v4046 = vsub.s32 %v4043, %v4045
        %v4047 = vrot.slane %v4033, %v4046
        %v4049 = vunpack.c.l.s4 286326784
        %v4050 = vunpack.c.0.s8 %v4049
        %v4051 = vlaneseq
        %v4052 = vshrl.u32 %v4051, 7
        %v4053 = vsub.s32 %v4050, %v4052
        %v4054 = vrot.slane %v4034, %v4053
        %v4056 = vunpack.c.l.s4 286326784
        %v4057 = vunpack.c.0.s8 %v4056
        %v4058 = vlaneseq
        %v4059 = vshrl.u32 %v4058, 7
        %v4060 = vsub.s32 %v4057, %v4059
        %v4061 = vrot.slane %v4035, %v4060
        %v4063 = vunpack.c.l.s4 286326784
        %v4064 = vunpack.c.0.s8 %v4063
        %v4065 = vlaneseq
        %v4066 = vshrl.u32 %v4065, 7
        %v4067 = vsub.s32 %v4064, %v4066
        %v4068 = vrot.slane %v4036, %v4067
        %v4070 = vunpack.c.l.s4 286326784
        %v4071 = vunpack.c.0.s8 %v4070
        %v4072 = vlaneseq
        %v4073 = vshrl.u32 %v4072, 7
        %v4074 = vsub.s32 %v4071, %v4073
        %v4075 = vrot.slane %v4037, %v4074
        %v4077 = vunpack.c.l.s4 286326784
        %v4078 = vunpack.c.0.s8 %v4077
        %v4079 = vlaneseq
        %v4080 = vshrl.u32 %v4079, 7
        %v4081 = vsub.s32 %v4078, %v4080
        %v4082 = vrot.slane %v4038, %v4081
        %v4084 = vunpack.c.l.s4 286326784
        %v4085 = vunpack.c.0.s8 %v4084
        %v4086 = vlaneseq
        %v4087 = vshrl.u32 %v4086, 7
        %v4088 = vsub.s32 %v4085, %v4087
        %v4089 = vrot.slane %v4039, %v4088
        %v4091 = vunpack.c.l.s4 286326784
        %v4092 = vunpack.c.0.s8 %v4091
        %v4093 = vlaneseq
        %v4094 = vshrl.u32 %v4093, 7
        %v4095 = vsub.s32 %v4092, %v4094
        %v4096 = vrot.slane %v4040, %v4095
        %4097 = vrot.lane.b32.xlu0 %v4047, 1
        %v4098 = vpop.permute.xlu0 %4097
        %4099 = vrot.lane.b32.xlu0 %v4054, 1
        %v4100 = vpop.permute.xlu0 %4099
        %4101 = vrot.lane.b32.xlu0 %v4061, 1
        %v4102 = vpop.permute.xlu0 %4101
        %4103 = vrot.lane.b32.xlu0 %v4068, 1
        %v4104 = vpop.permute.xlu0 %4103
        %4105 = vrot.lane.b32.xlu0 %v4075, 1
        %v4106 = vpop.permute.xlu0 %4105
        %4107 = vrot.lane.b32.xlu0 %v4082, 1
        %v4108 = vpop.permute.xlu0 %4107
        %4109 = vrot.lane.b32.xlu0 %v4089, 1
        %v4110 = vpop.permute.xlu0 %4109
        %4111 = vrot.lane.b32.xlu0 %v4096, 1
        %v4112 = vpop.permute.xlu0 %4111
        %v4121 = vld [vmem:[#allocation3] sm:$0x2]
        %v4122 = vsel %vm1375, %v4098, %v4121
        %4123 = vst [vmem:[#allocation3] sm:$0x2] %v4122
        %v4124 = vld [vmem:[#allocation3 + $0x8] sm:$0x2]
        %v4125 = vsel %vm1375, %v4100, %v4124
        %4126 = vst [vmem:[#allocation3 + $0x8] sm:$0x2] %v4125
        %v4127 = vld [vmem:[#allocation3 + $0x10] sm:$0x2]
        %v4128 = vsel %vm1375, %v4102, %v4127
        %4129 = vst [vmem:[#allocation3 + $0x10] sm:$0x2] %v4128
        %v4130 = vld [vmem:[#allocation3 + $0x18] sm:$0x2]
        %v4131 = vsel %vm1375, %v4104, %v4130
        %4132 = vst [vmem:[#allocation3 + $0x18] sm:$0x2] %v4131
        %v4133 = vld [vmem:[#allocation3 + $0x20] sm:$0x2]
        %v4134 = vsel %vm1375, %v4106, %v4133
        %4135 = vst [vmem:[#allocation3 + $0x20] sm:$0x2] %v4134
        %v4136 = vld [vmem:[#allocation3 + $0x28] sm:$0x2]
        %v4137 = vsel %vm1375, %v4108, %v4136
        %4138 = vst [vmem:[#allocation3 + $0x28] sm:$0x2] %v4137
        %v4139 = vld [vmem:[#allocation3 + $0x30] sm:$0x2]
        %v4140 = vsel %vm1375, %v4110, %v4139
        %4141 = vst [vmem:[#allocation3 + $0x30] sm:$0x2] %v4140
        %v4142 = vld [vmem:[#allocation3 + $0x38] sm:$0x2]
        %v4143 = vsel %vm1375, %v4112, %v4142
        %4144 = vst [vmem:[#allocation3 + $0x38] sm:$0x2] %v4143
        %v4145 = vld [vmem:[#allocation2] sm:$0x4]
        %v4146 = vld [vmem:[#allocation2 + $0x8] sm:$0x4]
        %v4147 = vld [vmem:[#allocation2 + $0x10] sm:$0x4]
        %v4148 = vld [vmem:[#allocation2 + $0x18] sm:$0x4]
        %v4149 = vld [vmem:[#allocation2 + $0x20] sm:$0x4]
        %v4150 = vld [vmem:[#allocation2 + $0x28] sm:$0x4]
        %v4151 = vld [vmem:[#allocation2 + $0x30] sm:$0x4]
        %v4152 = vld [vmem:[#allocation2 + $0x38] sm:$0x4]
        %v4153 = vld [vmem:[#allocation2] sm:$0x8]
        %v4154 = vld [vmem:[#allocation2 + $0x8] sm:$0x8]
        %v4155 = vld [vmem:[#allocation2 + $0x10] sm:$0x8]
        %v4156 = vld [vmem:[#allocation2 + $0x18] sm:$0x8]
        %v4157 = vld [vmem:[#allocation2 + $0x20] sm:$0x8]
        %v4158 = vld [vmem:[#allocation2 + $0x28] sm:$0x8]
        %v4159 = vld [vmem:[#allocation2 + $0x30] sm:$0x8]
        %v4160 = vld [vmem:[#allocation2 + $0x38] sm:$0x8]
        %v4169 = vunpack.c.l.b16 %v4145
        %v4170 = vunpack.c.l.b16 %v4146
        %v4171 = vunpack.c.l.b16 %v4147
        %v4172 = vunpack.c.l.b16 %v4148
        %v4173 = vunpack.c.l.b16 %v4149
        %v4174 = vunpack.c.l.b16 %v4150
        %v4175 = vunpack.c.l.b16 %v4151
        %v4176 = vunpack.c.l.b16 %v4152
        %v4177 = vpack.c.b16 %v4169, %v4169
        %v4178 = vpack.c.b16 %v4170, %v4170
        %v4179 = vpack.c.b16 %v4171, %v4171
        %v4180 = vpack.c.b16 %v4172, %v4172
        %v4181 = vpack.c.b16 %v4173, %v4173
        %v4182 = vpack.c.b16 %v4174, %v4174
        %v4183 = vpack.c.b16 %v4175, %v4175
        %v4184 = vpack.c.b16 %v4176, %v4176
        %v4185 = vunpack.c.l.b16 %v4177
        %v4186 = vunpack.c.l.b16 %v4178
        %v4187 = vunpack.c.l.b16 %v4179
        %v4188 = vunpack.c.l.b16 %v4180
        %v4189 = vunpack.c.l.b16 %v4181
        %v4190 = vunpack.c.l.b16 %v4182
        %v4191 = vunpack.c.l.b16 %v4183
        %v4192 = vunpack.c.l.b16 %v4184
        %v4193 = vrot.slane %v4185, 4
        %v4194 = vrot.slane %v4186, 3
        %v4195 = vsel %vm757, %v4194, %v4193
        %v4196 = vrot.slane %v4187, 2
        %v4197 = vsel %vm760, %v4196, %v4195
        %v4198 = vrot.slane %v4188, 1
        %v4199 = vsel %vm763, %v4198, %v4197
        %v4200 = vsel %vm2765, %v4189, %v4199
        %v4201 = vrot.slane %v4190, 7
        %v4202 = vsel %vm2768, %v4201, %v4200
        %v4203 = vrot.slane %v4191, 6
        %v4204 = vsel %vm2771, %v4203, %v4202
        %v4205 = vrot.slane %v4192, 5
        %v4206 = vsel %vm2774, %v4205, %v4204
        %v4207 = vpack.c.b16 %v4206, %v4206
        %4208 = vrot.lane.b32.xlu0 %v4207, 127
        %v4209 = vpop.permute.xlu0 %4208
        %4210 = vrot.lane.b32.xlu0 %v4207, 126
        %v4211 = vpop.permute.xlu0 %4210
        %v4212 = vrot.slane %v4185, 5
        %v4213 = vrot.slane %v4186, 4
        %v4214 = vsel %vm757, %v4213, %v4212
        %v4215 = vrot.slane %v4187, 3
        %v4216 = vsel %vm760, %v4215, %v4214
        %v4217 = vrot.slane %v4188, 2
        %v4218 = vsel %vm763, %v4217, %v4216
        %v4219 = vrot.slane %v4189, 1
        %v4220 = vsel %vm2765, %v4219, %v4218
        %v4221 = vsel %vm2768, %v4190, %v4220
        %v4222 = vrot.slane %v4191, 7
        %v4223 = vsel %vm2771, %v4222, %v4221
        %v4224 = vrot.slane %v4192, 6
        %v4225 = vsel %vm2774, %v4224, %v4223
        %v4226 = vpack.c.b16 %v4225, %v4225
        %4227 = vrot.lane.b32.xlu0 %v4226, 127
        %v4228 = vpop.permute.xlu0 %4227
        %4229 = vrot.lane.b32.xlu0 %v4226, 126
        %v4230 = vpop.permute.xlu0 %4229
        %v4239 = vunpack.c.l.b16 %v4153
        %v4240 = vunpack.c.l.b16 %v4154
        %v4241 = vunpack.c.l.b16 %v4155
        %v4242 = vunpack.c.l.b16 %v4156
        %v4243 = vunpack.c.l.b16 %v4157
        %v4244 = vunpack.c.l.b16 %v4158
        %v4245 = vunpack.c.l.b16 %v4159
        %v4246 = vunpack.c.l.b16 %v4160
        %v4247 = vpack.c.b16 %v4239, %v4239
        %v4248 = vpack.c.b16 %v4240, %v4240
        %v4249 = vpack.c.b16 %v4241, %v4241
        %v4250 = vpack.c.b16 %v4242, %v4242
        %v4251 = vpack.c.b16 %v4243, %v4243
        %v4252 = vpack.c.b16 %v4244, %v4244
        %v4253 = vpack.c.b16 %v4245, %v4245
        %v4254 = vpack.c.b16 %v4246, %v4246
        %v4255 = vunpack.c.l.b16 %v4247
        %v4256 = vunpack.c.l.b16 %v4248
        %v4257 = vunpack.c.l.b16 %v4249
        %v4258 = vunpack.c.l.b16 %v4250
        %v4259 = vunpack.c.l.b16 %v4251
        %v4260 = vunpack.c.l.b16 %v4252
        %v4261 = vunpack.c.l.b16 %v4253
        %v4262 = vunpack.c.l.b16 %v4254
        %v4263 = vrot.slane %v4255, 6
        %v4264 = vrot.slane %v4256, 5
        %v4265 = vsel %vm757, %v4264, %v4263
        %v4266 = vrot.slane %v4257, 4
        %v4267 = vsel %vm760, %v4266, %v4265
        %v4268 = vrot.slane %v4258, 3
        %v4269 = vsel %vm763, %v4268, %v4267
        %v4270 = vrot.slane %v4259, 2
        %v4271 = vsel %vm2765, %v4270, %v4269
        %v4272 = vrot.slane %v4260, 1
        %v4273 = vsel %vm2768, %v4272, %v4271
        %v4274 = vsel %vm2771, %v4261, %v4273
        %v4275 = vrot.slane %v4262, 7
        %v4276 = vsel %vm2774, %v4275, %v4274
        %v4277 = vpack.c.b16 %v4276, %v4276
        %4278 = vrot.lane.b32.xlu0 %v4277, 127
        %v4279 = vpop.permute.xlu0 %4278
        %4280 = vrot.lane.b32.xlu0 %v4277, 126
        %v4281 = vpop.permute.xlu0 %4280
        %v4284 = vsel %vm2874, %v4207, %v4209
        %v4288 = vsel %vm2874, %v4211, %v4226
        %v4292 = vsel %vm2874, %v4228, %v4230
        %v4296 = vsel %vm2874, %v4277, %v4279
        %v4298 = vld [vmem:[%s4] sm:$0xf]
        %v4300 = vsel %vm2892, %v4298, 0
        %v4303 = vsel %vm2874, %v4281, 0
        %4305 = vmatprep.subr.bf16.mxu0 0
        %4306 = vmatpush1.bf16.msra.mxu0 0
        %4307 = vmatprep.subr.bf16.mxu0 0
        %4308 = vmatpush1.bf16.msra.mxu0 0
        %4309 = vmatprep.subr.bf16.mxu0 0
        %4310 = vmatpush1.bf16.msra.mxu0 0
        %4311 = vmatprep.subr.bf16.mxu0 0
        %4312 = vmatpush1.bf16.msra.mxu0 %v4303
        %4313 = vmatprep.subr.bf16.mxu0 0
        %4314 = vmatpush1.bf16.msra.mxu0 %v4296
        %4315 = vmatprep.subr.bf16.mxu0 0
        %4316 = vmatpush1.bf16.msra.mxu0 %v4292
        %4317 = vmatprep.subr.bf16.mxu0 0
        %4318 = vmatpush1.bf16.msra.mxu0 %v4288
        %4319 = vmatprep.subr.bf16.mxu0 0
        %4320 = vmatpush1.bf16.msra.mxu0 %v4284
        %4321 = vmatprep.subr.bf16.mxu0 0
        %4322 = vmatpush2.bf16.msra.mxu0 0
        %4323 = vmatprep.subr.bf16.mxu0 0
        %4324 = vmatpush2.bf16.msra.mxu0 0
        %4325 = vmatprep.subr.bf16.mxu0 0
        %4326 = vmatpush2.bf16.msra.mxu0 0
        %4327 = vmatprep.subr.bf16.mxu0 0
        %4328 = vmatpush2.bf16.msra.mxu0 0
        %4329 = vmatprep.subr.bf16.mxu0 0
        %4330 = vmatpush2.bf16.msra.mxu0 0
        %4331 = vmatprep.subr.bf16.mxu0 0
        %4332 = vmatpush2.bf16.msra.mxu0 0
        %4333 = vmatprep.subr.bf16.mxu0 0
        %4334 = vmatpush2.bf16.msra.mxu0 0
        %4335 = vmatprep.subr.bf16.mxu0 0
        %4336 = vmatpush2.bf16.msra.mxu0 0
        %4337 = vmatprep.mubr.bf16.mxu0 0
        %4338 = vmatmul.mubr.bf16.gmra.mxu0 %v4300
        %v4339 = vpop.f32.mrf.mxu0
        %v4340 = vadd.f32 0.0, %v4339
        %v4341 = vpop.f32.mrf.mxu0
        %v4342 = vpop.f32.mrf.mxu0
        %v4343 = vpop.f32.mrf.mxu0
        %4344 = vdwg.mxu0
        %v4345 = vmul.f32 %v4340, %v2942
        %v4346 = vadd.f32 %v4345, %v2948
        %v4347 = vmax.f32 %v4346, 0.0
        %v4348 = vpack.c.bf16 %v4347, %v4347
        %v4351 = vunpack.c.l.s4 1966171168
        %v4352 = vunpack.c.0.s8 %v4351
        %v4353 = vlaneseq
        %v4354 = vshrl.u32 %v4353, 7
        %v4355 = vsub.s32 %v4352, %v4354
        %v4356 = vrot.slane %v4348, %v4355
        %v4357 = vcombine.high %v4356, %v4356
        %v4359 = vunpack.c.l.s4 1966171168
        %v4360 = vunpack.c.0.s8 %v4359
        %v4361 = vlaneseq
        %v4362 = vshrl.u32 %v4361, 7
        %v4363 = vsub.s32 %v4360, %v4362
        %v4364 = vrot.slane %v4356, %v4363
        %v4366 = vunpack.c.l.s4 1966171168
        %v4367 = vunpack.c.0.s8 %v4366
        %v4368 = vlaneseq
        %v4369 = vshrl.u32 %v4368, 7
        %v4370 = vsub.s32 %v4367, %v4369
        %v4371 = vrot.slane %v4357, %v4370
        %v4372 = vcombine.high %v4364, %v4364
        %v4373 = vcombine.high %v4371, %v4371
        %v4374 = vunpack.i.l.s16 %v4364
        %v4375 = vunpack.i.h.s16 %v4364
        %v4376 = vunpack.i.l.s16 %v4371
        %v4377 = vunpack.i.h.s16 %v4371
        %v4378 = vunpack.i.l.s16 %v4372
        %v4379 = vunpack.i.h.s16 %v4372
        %v4380 = vunpack.i.l.s16 %v4373
        %v4381 = vunpack.i.h.s16 %v4373
        %v4382 = vpack.i.b16 %v4374, %v4374
        %v4383 = vpack.i.b16 %v4375, %v4375
        %v4384 = vpack.i.b16 %v4376, %v4376
        %v4385 = vpack.i.b16 %v4377, %v4377
        %v4386 = vpack.i.b16 %v4378, %v4378
        %v4387 = vpack.i.b16 %v4379, %v4379
        %v4388 = vpack.i.b16 %v4380, %v4380
        %v4389 = vpack.i.b16 %v4381, %v4381
        %v4391 = vunpack.c.l.s4 286326784
        %v4392 = vunpack.c.0.s8 %v4391
        %v4393 = vlaneseq
        %v4394 = vshrl.u32 %v4393, 7
        %v4395 = vsub.s32 %v4392, %v4394
        %v4396 = vrot.slane %v4382, %v4395
        %v4398 = vunpack.c.l.s4 286326784
        %v4399 = vunpack.c.0.s8 %v4398
        %v4400 = vlaneseq
        %v4401 = vshrl.u32 %v4400, 7
        %v4402 = vsub.s32 %v4399, %v4401
        %v4403 = vrot.slane %v4383, %v4402
        %v4405 = vunpack.c.l.s4 286326784
        %v4406 = vunpack.c.0.s8 %v4405
        %v4407 = vlaneseq
        %v4408 = vshrl.u32 %v4407, 7
        %v4409 = vsub.s32 %v4406, %v4408
        %v4410 = vrot.slane %v4384, %v4409
        %v4412 = vunpack.c.l.s4 286326784
        %v4413 = vunpack.c.0.s8 %v4412
        %v4414 = vlaneseq
        %v4415 = vshrl.u32 %v4414, 7
        %v4416 = vsub.s32 %v4413, %v4415
        %v4417 = vrot.slane %v4385, %v4416
        %v4419 = vunpack.c.l.s4 286326784
        %v4420 = vunpack.c.0.s8 %v4419
        %v4421 = vlaneseq
        %v4422 = vshrl.u32 %v4421, 7
        %v4423 = vsub.s32 %v4420, %v4422
        %v4424 = vrot.slane %v4386, %v4423
        %v4426 = vunpack.c.l.s4 286326784
        %v4427 = vunpack.c.0.s8 %v4426
        %v4428 = vlaneseq
        %v4429 = vshrl.u32 %v4428, 7
        %v4430 = vsub.s32 %v4427, %v4429
        %v4431 = vrot.slane %v4387, %v4430
        %v4433 = vunpack.c.l.s4 286326784
        %v4434 = vunpack.c.0.s8 %v4433
        %v4435 = vlaneseq
        %v4436 = vshrl.u32 %v4435, 7
        %v4437 = vsub.s32 %v4434, %v4436
        %v4438 = vrot.slane %v4388, %v4437
        %v4440 = vunpack.c.l.s4 286326784
        %v4441 = vunpack.c.0.s8 %v4440
        %v4442 = vlaneseq
        %v4443 = vshrl.u32 %v4442, 7
        %v4444 = vsub.s32 %v4441, %v4443
        %v4445 = vrot.slane %v4389, %v4444
        %4446 = vrot.lane.b32.xlu0 %v4396, 1
        %v4447 = vpop.permute.xlu0 %4446
        %4448 = vrot.lane.b32.xlu0 %v4403, 1
        %v4449 = vpop.permute.xlu0 %4448
        %4450 = vrot.lane.b32.xlu0 %v4410, 1
        %v4451 = vpop.permute.xlu0 %4450
        %4452 = vrot.lane.b32.xlu0 %v4417, 1
        %v4453 = vpop.permute.xlu0 %4452
        %4454 = vrot.lane.b32.xlu0 %v4424, 1
        %v4455 = vpop.permute.xlu0 %4454
        %4456 = vrot.lane.b32.xlu0 %v4431, 1
        %v4457 = vpop.permute.xlu0 %4456
        %4458 = vrot.lane.b32.xlu0 %v4438, 1
        %v4459 = vpop.permute.xlu0 %4458
        %4460 = vrot.lane.b32.xlu0 %v4445, 1
        %v4461 = vpop.permute.xlu0 %4460
        %v4470 = vld [vmem:[#allocation3] sm:$0x4]
        %v4471 = vsel %vm1620, %v4447, %v4470
        %4472 = vst [vmem:[#allocation3] sm:$0x4] %v4471
        %v4473 = vld [vmem:[#allocation3 + $0x8] sm:$0x4]
        %v4474 = vsel %vm1620, %v4449, %v4473
        %4475 = vst [vmem:[#allocation3 + $0x8] sm:$0x4] %v4474
        %v4476 = vld [vmem:[#allocation3 + $0x10] sm:$0x4]
        %v4477 = vsel %vm1620, %v4451, %v4476
        %4478 = vst [vmem:[#allocation3 + $0x10] sm:$0x4] %v4477
        %v4479 = vld [vmem:[#allocation3 + $0x18] sm:$0x4]
        %v4480 = vsel %vm1620, %v4453, %v4479
        %4481 = vst [vmem:[#allocation3 + $0x18] sm:$0x4] %v4480
        %v4482 = vld [vmem:[#allocation3 + $0x20] sm:$0x4]
        %v4483 = vsel %vm1620, %v4455, %v4482
        %4484 = vst [vmem:[#allocation3 + $0x20] sm:$0x4] %v4483
        %v4485 = vld [vmem:[#allocation3 + $0x28] sm:$0x4]
        %v4486 = vsel %vm1620, %v4457, %v4485
        %4487 = vst [vmem:[#allocation3 + $0x28] sm:$0x4] %v4486
        %v4488 = vld [vmem:[#allocation3 + $0x30] sm:$0x4]
        %v4489 = vsel %vm1620, %v4459, %v4488
        %4490 = vst [vmem:[#allocation3 + $0x30] sm:$0x4] %v4489
        %v4491 = vld [vmem:[#allocation3 + $0x38] sm:$0x4]
        %v4492 = vsel %vm1620, %v4461, %v4491
        %4493 = vst [vmem:[#allocation3 + $0x38] sm:$0x4] %v4492
        %v4494 = vld [vmem:[#allocation2] sm:$0x4]
        %v4495 = vld [vmem:[#allocation2 + $0x8] sm:$0x4]
        %v4496 = vld [vmem:[#allocation2 + $0x10] sm:$0x4]
        %v4497 = vld [vmem:[#allocation2 + $0x18] sm:$0x4]
        %v4498 = vld [vmem:[#allocation2 + $0x20] sm:$0x4]
        %v4499 = vld [vmem:[#allocation2 + $0x28] sm:$0x4]
        %v4500 = vld [vmem:[#allocation2 + $0x30] sm:$0x4]
        %v4501 = vld [vmem:[#allocation2 + $0x38] sm:$0x4]
        %v4502 = vld [vmem:[#allocation2] sm:$0x8]
        %v4503 = vld [vmem:[#allocation2 + $0x8] sm:$0x8]
        %v4504 = vld [vmem:[#allocation2 + $0x10] sm:$0x8]
        %v4505 = vld [vmem:[#allocation2 + $0x18] sm:$0x8]
        %v4506 = vld [vmem:[#allocation2 + $0x20] sm:$0x8]
        %v4507 = vld [vmem:[#allocation2 + $0x28] sm:$0x8]
        %v4508 = vld [vmem:[#allocation2 + $0x30] sm:$0x8]
        %v4509 = vld [vmem:[#allocation2 + $0x38] sm:$0x8]
        %v4518 = vunpack.c.l.b16 %v4494
        %v4519 = vunpack.c.l.b16 %v4495
        %v4520 = vunpack.c.l.b16 %v4496
        %v4521 = vunpack.c.l.b16 %v4497
        %v4522 = vunpack.c.l.b16 %v4498
        %v4523 = vunpack.c.l.b16 %v4499
        %v4524 = vunpack.c.l.b16 %v4500
        %v4525 = vunpack.c.l.b16 %v4501
        %v4526 = vpack.c.b16 %v4518, %v4518
        %v4527 = vpack.c.b16 %v4519, %v4519
        %v4528 = vpack.c.b16 %v4520, %v4520
        %v4529 = vpack.c.b16 %v4521, %v4521
        %v4530 = vpack.c.b16 %v4522, %v4522
        %v4531 = vpack.c.b16 %v4523, %v4523
        %v4532 = vpack.c.b16 %v4524, %v4524
        %v4533 = vpack.c.b16 %v4525, %v4525
        %v4534 = vunpack.c.l.b16 %v4526
        %v4535 = vunpack.c.l.b16 %v4527
        %v4536 = vunpack.c.l.b16 %v4528
        %v4537 = vunpack.c.l.b16 %v4529
        %v4538 = vunpack.c.l.b16 %v4530
        %v4539 = vunpack.c.l.b16 %v4531
        %v4540 = vunpack.c.l.b16 %v4532
        %v4541 = vunpack.c.l.b16 %v4533
        %v4542 = vrot.slane %v4534, 5
        %v4543 = vrot.slane %v4535, 4
        %v4544 = vsel %vm757, %v4543, %v4542
        %v4545 = vrot.slane %v4536, 3
        %v4546 = vsel %vm760, %v4545, %v4544
        %v4547 = vrot.slane %v4537, 2
        %v4548 = vsel %vm763, %v4547, %v4546
        %v4549 = vrot.slane %v4538, 1
        %v4550 = vsel %vm2765, %v4549, %v4548
        %v4551 = vsel %vm2768, %v4539, %v4550
        %v4552 = vrot.slane %v4540, 7
        %v4553 = vsel %vm2771, %v4552, %v4551
        %v4554 = vrot.slane %v4541, 6
        %v4555 = vsel %vm2774, %v4554, %v4553
        %v4556 = vpack.c.b16 %v4555, %v4555
        %4557 = vrot.lane.b32.xlu0 %v4556, 127
        %v4558 = vpop.permute.xlu0 %4557
        %4559 = vrot.lane.b32.xlu0 %v4556, 126
        %v4560 = vpop.permute.xlu0 %4559
        %v4569 = vunpack.c.l.b16 %v4502
        %v4570 = vunpack.c.l.b16 %v4503
        %v4571 = vunpack.c.l.b16 %v4504
        %v4572 = vunpack.c.l.b16 %v4505
        %v4573 = vunpack.c.l.b16 %v4506
        %v4574 = vunpack.c.l.b16 %v4507
        %v4575 = vunpack.c.l.b16 %v4508
        %v4576 = vunpack.c.l.b16 %v4509
        %v4577 = vpack.c.b16 %v4569, %v4569
        %v4578 = vpack.c.b16 %v4570, %v4570
        %v4579 = vpack.c.b16 %v4571, %v4571
        %v4580 = vpack.c.b16 %v4572, %v4572
        %v4581 = vpack.c.b16 %v4573, %v4573
        %v4582 = vpack.c.b16 %v4574, %v4574
        %v4583 = vpack.c.b16 %v4575, %v4575
        %v4584 = vpack.c.b16 %v4576, %v4576
        %v4585 = vunpack.c.l.b16 %v4577
        %v4586 = vunpack.c.l.b16 %v4578
        %v4587 = vunpack.c.l.b16 %v4579
        %v4588 = vunpack.c.l.b16 %v4580
        %v4589 = vunpack.c.l.b16 %v4581
        %v4590 = vunpack.c.l.b16 %v4582
        %v4591 = vunpack.c.l.b16 %v4583
        %v4592 = vunpack.c.l.b16 %v4584
        %v4593 = vrot.slane %v4585, 6
        %v4594 = vrot.slane %v4586, 5
        %v4595 = vsel %vm757, %v4594, %v4593
        %v4596 = vrot.slane %v4587, 4
        %v4597 = vsel %vm760, %v4596, %v4595
        %v4598 = vrot.slane %v4588, 3
        %v4599 = vsel %vm763, %v4598, %v4597
        %v4600 = vrot.slane %v4589, 2
        %v4601 = vsel %vm2765, %v4600, %v4599
        %v4602 = vrot.slane %v4590, 1
        %v4603 = vsel %vm2768, %v4602, %v4601
        %v4604 = vsel %vm2771, %v4591, %v4603
        %v4605 = vrot.slane %v4592, 7
        %v4606 = vsel %vm2774, %v4605, %v4604
        %v4607 = vpack.c.b16 %v4606, %v4606
        %4608 = vrot.lane.b32.xlu0 %v4607, 127
        %v4609 = vpop.permute.xlu0 %4608
        %4610 = vrot.lane.b32.xlu0 %v4607, 126
        %v4611 = vpop.permute.xlu0 %4610
        %v4612 = vrot.slane %v4585, 7
        %v4613 = vrot.slane %v4586, 6
        %v4614 = vsel %vm757, %v4613, %v4612
        %v4615 = vrot.slane %v4587, 5
        %v4616 = vsel %vm760, %v4615, %v4614
        %v4617 = vrot.slane %v4588, 4
        %v4618 = vsel %vm763, %v4617, %v4616
        %v4619 = vrot.slane %v4589, 3
        %v4620 = vsel %vm2765, %v4619, %v4618
        %v4621 = vrot.slane %v4590, 2
        %v4622 = vsel %vm2768, %v4621, %v4620
        %v4623 = vrot.slane %v4591, 1
        %v4624 = vsel %vm2771, %v4623, %v4622
        %v4625 = vsel %vm2774, %v4592, %v4624
        %v4626 = vpack.c.b16 %v4625, %v4625
        %4627 = vrot.lane.b32.xlu0 %v4626, 127
        %v4628 = vpop.permute.xlu0 %4627
        %4629 = vrot.lane.b32.xlu0 %v4626, 126
        %v4630 = vpop.permute.xlu0 %4629
        %v4633 = vsel %vm2874, %v4556, %v4558
        %v4637 = vsel %vm2874, %v4560, %v4607
        %v4641 = vsel %vm2874, %v4609, %v4611
        %v4645 = vsel %vm2874, %v4626, %v4628
        %v4647 = vld [vmem:[%s4] sm:$0xf]
        %v4649 = vsel %vm2892, %v4647, 0
        %v4652 = vsel %vm2874, %v4630, 0
        %4654 = vmatprep.subr.bf16.mxu0 0
        %4655 = vmatpush1.bf16.msra.mxu0 0
        %4656 = vmatprep.subr.bf16.mxu0 0
        %4657 = vmatpush1.bf16.msra.mxu0 0
        %4658 = vmatprep.subr.bf16.mxu0 0
        %4659 = vmatpush1.bf16.msra.mxu0 0
        %4660 = vmatprep.subr.bf16.mxu0 0
        %4661 = vmatpush1.bf16.msra.mxu0 %v4652
        %4662 = vmatprep.subr.bf16.mxu0 0
        %4663 = vmatpush1.bf16.msra.mxu0 %v4645
        %4664 = vmatprep.subr.bf16.mxu0 0
        %4665 = vmatpush1.bf16.msra.mxu0 %v4641
        %4666 = vmatprep.subr.bf16.mxu0 0
        %4667 = vmatpush1.bf16.msra.mxu0 %v4637
        %4668 = vmatprep.subr.bf16.mxu0 0
        %4669 = vmatpush1.bf16.msra.mxu0 %v4633
        %4670 = vmatprep.subr.bf16.mxu0 0
        %4671 = vmatpush2.bf16.msra.mxu0 0
        %4672 = vmatprep.subr.bf16.mxu0 0
        %4673 = vmatpush2.bf16.msra.mxu0 0
        %4674 = vmatprep.subr.bf16.mxu0 0
        %4675 = vmatpush2.bf16.msra.mxu0 0
        %4676 = vmatprep.subr.bf16.mxu0 0
        %4677 = vmatpush2.bf16.msra.mxu0 0
        %4678 = vmatprep.subr.bf16.mxu0 0
        %4679 = vmatpush2.bf16.msra.mxu0 0
        %4680 = vmatprep.subr.bf16.mxu0 0
        %4681 = vmatpush2.bf16.msra.mxu0 0
        %4682 = vmatprep.subr.bf16.mxu0 0
        %4683 = vmatpush2.bf16.msra.mxu0 0
        %4684 = vmatprep.subr.bf16.mxu0 0
        %4685 = vmatpush2.bf16.msra.mxu0 0
        %4686 = vmatprep.mubr.bf16.mxu0 0
        %4687 = vmatmul.mubr.bf16.gmra.mxu0 %v4649
        %v4688 = vpop.f32.mrf.mxu0
        %v4689 = vadd.f32 0.0, %v4688
        %v4690 = vpop.f32.mrf.mxu0
        %v4691 = vpop.f32.mrf.mxu0
        %v4692 = vpop.f32.mrf.mxu0
        %4693 = vdwg.mxu0
        %v4694 = vmul.f32 %v4689, %v2942
        %v4695 = vadd.f32 %v4694, %v2948
        %v4696 = vmax.f32 %v4695, 0.0
        %v4697 = vpack.c.bf16 %v4696, %v4696
        %v4700 = vunpack.c.l.s4 1966171168
        %v4701 = vunpack.c.0.s8 %v4700
        %v4702 = vlaneseq
        %v4703 = vshrl.u32 %v4702, 7
        %v4704 = vsub.s32 %v4701, %v4703
        %v4705 = vrot.slane %v4697, %v4704
        %v4706 = vcombine.high %v4705, %v4705
        %v4708 = vunpack.c.l.s4 1966171168
        %v4709 = vunpack.c.0.s8 %v4708
        %v4710 = vlaneseq
        %v4711 = vshrl.u32 %v4710, 7
        %v4712 = vsub.s32 %v4709, %v4711
        %v4713 = vrot.slane %v4705, %v4712
        %v4715 = vunpack.c.l.s4 1966171168
        %v4716 = vunpack.c.0.s8 %v4715
        %v4717 = vlaneseq
        %v4718 = vshrl.u32 %v4717, 7
        %v4719 = vsub.s32 %v4716, %v4718
        %v4720 = vrot.slane %v4706, %v4719
        %v4721 = vcombine.high %v4713, %v4713
        %v4722 = vcombine.high %v4720, %v4720
        %v4723 = vunpack.i.l.s16 %v4713
        %v4724 = vunpack.i.h.s16 %v4713
        %v4725 = vunpack.i.l.s16 %v4720
        %v4726 = vunpack.i.h.s16 %v4720
        %v4727 = vunpack.i.l.s16 %v4721
        %v4728 = vunpack.i.h.s16 %v4721
        %v4729 = vunpack.i.l.s16 %v4722
        %v4730 = vunpack.i.h.s16 %v4722
        %v4731 = vpack.i.b16 %v4723, %v4723
        %v4732 = vpack.i.b16 %v4724, %v4724
        %v4733 = vpack.i.b16 %v4725, %v4725
        %v4734 = vpack.i.b16 %v4726, %v4726
        %v4735 = vpack.i.b16 %v4727, %v4727
        %v4736 = vpack.i.b16 %v4728, %v4728
        %v4737 = vpack.i.b16 %v4729, %v4729
        %v4738 = vpack.i.b16 %v4730, %v4730
        %v4740 = vunpack.c.l.s4 286326784
        %v4741 = vunpack.c.0.s8 %v4740
        %v4742 = vlaneseq
        %v4743 = vshrl.u32 %v4742, 7
        %v4744 = vsub.s32 %v4741, %v4743
        %v4745 = vrot.slane %v4731, %v4744
        %v4747 = vunpack.c.l.s4 286326784
        %v4748 = vunpack.c.0.s8 %v4747
        %v4749 = vlaneseq
        %v4750 = vshrl.u32 %v4749, 7
        %v4751 = vsub.s32 %v4748, %v4750
        %v4752 = vrot.slane %v4732, %v4751
        %v4754 = vunpack.c.l.s4 286326784
        %v4755 = vunpack.c.0.s8 %v4754
        %v4756 = vlaneseq
        %v4757 = vshrl.u32 %v4756, 7
        %v4758 = vsub.s32 %v4755, %v4757
        %v4759 = vrot.slane %v4733, %v4758
        %v4761 = vunpack.c.l.s4 286326784
        %v4762 = vunpack.c.0.s8 %v4761
        %v4763 = vlaneseq
        %v4764 = vshrl.u32 %v4763, 7
        %v4765 = vsub.s32 %v4762, %v4764
        %v4766 = vrot.slane %v4734, %v4765
        %v4768 = vunpack.c.l.s4 286326784
        %v4769 = vunpack.c.0.s8 %v4768
        %v4770 = vlaneseq
        %v4771 = vshrl.u32 %v4770, 7
        %v4772 = vsub.s32 %v4769, %v4771
        %v4773 = vrot.slane %v4735, %v4772
        %v4775 = vunpack.c.l.s4 286326784
        %v4776 = vunpack.c.0.s8 %v4775
        %v4777 = vlaneseq
        %v4778 = vshrl.u32 %v4777, 7
        %v4779 = vsub.s32 %v4776, %v4778
        %v4780 = vrot.slane %v4736, %v4779
        %v4782 = vunpack.c.l.s4 286326784
        %v4783 = vunpack.c.0.s8 %v4782
        %v4784 = vlaneseq
        %v4785 = vshrl.u32 %v4784, 7
        %v4786 = vsub.s32 %v4783, %v4785
        %v4787 = vrot.slane %v4737, %v4786
        %v4789 = vunpack.c.l.s4 286326784
        %v4790 = vunpack.c.0.s8 %v4789
        %v4791 = vlaneseq
        %v4792 = vshrl.u32 %v4791, 7
        %v4793 = vsub.s32 %v4790, %v4792
        %v4794 = vrot.slane %v4738, %v4793
        %4795 = vrot.lane.b32.xlu0 %v4745, 1
        %v4796 = vpop.permute.xlu0 %4795
        %4797 = vrot.lane.b32.xlu0 %v4752, 1
        %v4798 = vpop.permute.xlu0 %4797
        %4799 = vrot.lane.b32.xlu0 %v4759, 1
        %v4800 = vpop.permute.xlu0 %4799
        %4801 = vrot.lane.b32.xlu0 %v4766, 1
        %v4802 = vpop.permute.xlu0 %4801
        %4803 = vrot.lane.b32.xlu0 %v4773, 1
        %v4804 = vpop.permute.xlu0 %4803
        %4805 = vrot.lane.b32.xlu0 %v4780, 1
        %v4806 = vpop.permute.xlu0 %4805
        %4807 = vrot.lane.b32.xlu0 %v4787, 1
        %v4808 = vpop.permute.xlu0 %4807
        %4809 = vrot.lane.b32.xlu0 %v4794, 1
        %v4810 = vpop.permute.xlu0 %4809
        %v4819 = vld [vmem:[#allocation3] sm:$0x4]
        %v4820 = vsel %vm1706, %v4796, %v4819
        %4821 = vst [vmem:[#allocation3] sm:$0x4] %v4820
        %v4822 = vld [vmem:[#allocation3 + $0x8] sm:$0x4]
        %v4823 = vsel %vm1706, %v4798, %v4822
        %4824 = vst [vmem:[#allocation3 + $0x8] sm:$0x4] %v4823
        %v4825 = vld [vmem:[#allocation3 + $0x10] sm:$0x4]
        %v4826 = vsel %vm1706, %v4800, %v4825
        %4827 = vst [vmem:[#allocation3 + $0x10] sm:$0x4] %v4826
        %v4828 = vld [vmem:[#allocation3 + $0x18] sm:$0x4]
        %v4829 = vsel %vm1706, %v4802, %v4828
        %4830 = vst [vmem:[#allocation3 + $0x18] sm:$0x4] %v4829
        %v4831 = vld [vmem:[#allocation3 + $0x20] sm:$0x4]
        %v4832 = vsel %vm1706, %v4804, %v4831
        %4833 = vst [vmem:[#allocation3 + $0x20] sm:$0x4] %v4832
        %v4834 = vld [vmem:[#allocation3 + $0x28] sm:$0x4]
        %v4835 = vsel %vm1706, %v4806, %v4834
        %4836 = vst [vmem:[#allocation3 + $0x28] sm:$0x4] %v4835
        %v4837 = vld [vmem:[#allocation3 + $0x30] sm:$0x4]
        %v4838 = vsel %vm1706, %v4808, %v4837
        %4839 = vst [vmem:[#allocation3 + $0x30] sm:$0x4] %v4838
        %v4840 = vld [vmem:[#allocation3 + $0x38] sm:$0x4]
        %v4841 = vsel %vm1706, %v4810, %v4840
        %4842 = vst [vmem:[#allocation3 + $0x38] sm:$0x4] %v4841
        %v4843 = vld [vmem:[#allocation2] sm:$0x8]
        %v4844 = vld [vmem:[#allocation2 + $0x8] sm:$0x8]
        %v4845 = vld [vmem:[#allocation2 + $0x10] sm:$0x8]
        %v4846 = vld [vmem:[#allocation2 + $0x18] sm:$0x8]
        %v4847 = vld [vmem:[#allocation2 + $0x20] sm:$0x8]
        %v4848 = vld [vmem:[#allocation2 + $0x28] sm:$0x8]
        %v4849 = vld [vmem:[#allocation2 + $0x30] sm:$0x8]
        %v4850 = vld [vmem:[#allocation2 + $0x38] sm:$0x8]
        %v4851 = vld [vmem:[#allocation2 + $0x4] sm:$0x1]
        %v4852 = vld [vmem:[#allocation2 + $0xc] sm:$0x1]
        %v4853 = vld [vmem:[#allocation2 + $0x14] sm:$0x1]
        %v4854 = vld [vmem:[#allocation2 + $0x1c] sm:$0x1]
        %v4855 = vld [vmem:[#allocation2 + $0x24] sm:$0x1]
        %v4856 = vld [vmem:[#allocation2 + $0x2c] sm:$0x1]
        %v4857 = vld [vmem:[#allocation2 + $0x34] sm:$0x1]
        %v4858 = vld [vmem:[#allocation2 + $0x3c] sm:$0x1]
        %v4867 = vunpack.c.l.b16 %v4843
        %v4868 = vunpack.c.l.b16 %v4844
        %v4869 = vunpack.c.l.b16 %v4845
        %v4870 = vunpack.c.l.b16 %v4846
        %v4871 = vunpack.c.l.b16 %v4847
        %v4872 = vunpack.c.l.b16 %v4848
        %v4873 = vunpack.c.l.b16 %v4849
        %v4874 = vunpack.c.l.b16 %v4850
        %v4875 = vpack.c.b16 %v4867, %v4867
        %v4876 = vpack.c.b16 %v4868, %v4868
        %v4877 = vpack.c.b16 %v4869, %v4869
        %v4878 = vpack.c.b16 %v4870, %v4870
        %v4879 = vpack.c.b16 %v4871, %v4871
        %v4880 = vpack.c.b16 %v4872, %v4872
        %v4881 = vpack.c.b16 %v4873, %v4873
        %v4882 = vpack.c.b16 %v4874, %v4874
        %v4883 = vunpack.c.l.b16 %v4875
        %v4884 = vunpack.c.l.b16 %v4876
        %v4885 = vunpack.c.l.b16 %v4877
        %v4886 = vunpack.c.l.b16 %v4878
        %v4887 = vunpack.c.l.b16 %v4879
        %v4888 = vunpack.c.l.b16 %v4880
        %v4889 = vunpack.c.l.b16 %v4881
        %v4890 = vunpack.c.l.b16 %v4882
        %v4891 = vrot.slane %v4883, 6
        %v4892 = vrot.slane %v4884, 5
        %v4893 = vsel %vm757, %v4892, %v4891
        %v4894 = vrot.slane %v4885, 4
        %v4895 = vsel %vm760, %v4894, %v4893
        %v4896 = vrot.slane %v4886, 3
        %v4897 = vsel %vm763, %v4896, %v4895
        %v4898 = vrot.slane %v4887, 2
        %v4899 = vsel %vm2765, %v4898, %v4897
        %v4900 = vrot.slane %v4888, 1
        %v4901 = vsel %vm2768, %v4900, %v4899
        %v4902 = vsel %vm2771, %v4889, %v4901
        %v4903 = vrot.slane %v4890, 7
        %v4904 = vsel %vm2774, %v4903, %v4902
        %v4905 = vpack.c.b16 %v4904, %v4904
        %4906 = vrot.lane.b32.xlu0 %v4905, 127
        %v4907 = vpop.permute.xlu0 %4906
        %4908 = vrot.lane.b32.xlu0 %v4905, 126
        %v4909 = vpop.permute.xlu0 %4908
        %v4910 = vrot.slane %v4883, 7
        %v4911 = vrot.slane %v4884, 6
        %v4912 = vsel %vm757, %v4911, %v4910
        %v4913 = vrot.slane %v4885, 5
        %v4914 = vsel %vm760, %v4913, %v4912
        %v4915 = vrot.slane %v4886, 4
        %v4916 = vsel %vm763, %v4915, %v4914
        %v4917 = vrot.slane %v4887, 3
        %v4918 = vsel %vm2765, %v4917, %v4916
        %v4919 = vrot.slane %v4888, 2
        %v4920 = vsel %vm2768, %v4919, %v4918
        %v4921 = vrot.slane %v4889, 1
        %v4922 = vsel %vm2771, %v4921, %v4920
        %v4923 = vsel %vm2774, %v4890, %v4922
        %v4924 = vpack.c.b16 %v4923, %v4923
        %4925 = vrot.lane.b32.xlu0 %v4924, 127
        %v4926 = vpop.permute.xlu0 %4925
        %4927 = vrot.lane.b32.xlu0 %v4924, 126
        %v4928 = vpop.permute.xlu0 %4927
        %v4937 = vunpack.c.l.b16 %v4851
        %v4938 = vunpack.c.l.b16 %v4852
        %v4939 = vunpack.c.l.b16 %v4853
        %v4940 = vunpack.c.l.b16 %v4854
        %v4941 = vunpack.c.l.b16 %v4855
        %v4942 = vunpack.c.l.b16 %v4856
        %v4943 = vunpack.c.l.b16 %v4857
        %v4944 = vunpack.c.l.b16 %v4858
        %v4945 = vpack.c.b16 %v4937, %v4937
        %v4946 = vpack.c.b16 %v4938, %v4938
        %v4947 = vpack.c.b16 %v4939, %v4939
        %v4948 = vpack.c.b16 %v4940, %v4940
        %v4949 = vpack.c.b16 %v4941, %v4941
        %v4950 = vpack.c.b16 %v4942, %v4942
        %v4951 = vpack.c.b16 %v4943, %v4943
        %v4952 = vpack.c.b16 %v4944, %v4944
        %v4953 = vunpack.c.l.b16 %v4945
        %v4954 = vunpack.c.l.b16 %v4946
        %v4955 = vunpack.c.l.b16 %v4947
        %v4956 = vunpack.c.l.b16 %v4948
        %v4957 = vunpack.c.l.b16 %v4949
        %v4958 = vunpack.c.l.b16 %v4950
        %v4959 = vunpack.c.l.b16 %v4951
        %v4960 = vunpack.c.l.b16 %v4952
        %v4961 = vrot.slane %v4954, 7
        %v4962 = vsel %vm757, %v4961, %v4953
        %v4963 = vrot.slane %v4955, 6
        %v4964 = vsel %vm760, %v4963, %v4962
        %v4965 = vrot.slane %v4956, 5
        %v4966 = vsel %vm763, %v4965, %v4964
        %v4967 = vrot.slane %v4957, 4
        %v4968 = vsel %vm2765, %v4967, %v4966
        %v4969 = vrot.slane %v4958, 3
        %v4970 = vsel %vm2768, %v4969, %v4968
        %v4971 = vrot.slane %v4959, 2
        %v4972 = vsel %vm2771, %v4971, %v4970
        %v4973 = vrot.slane %v4960, 1
        %v4974 = vsel %vm2774, %v4973, %v4972
        %v4975 = vpack.c.b16 %v4974, %v4974
        %v4976 = vunpack.c.h.b16 %v4945
        %v4977 = vunpack.c.h.b16 %v4946
        %v4978 = vunpack.c.h.b16 %v4947
        %v4979 = vunpack.c.h.b16 %v4948
        %v4980 = vunpack.c.h.b16 %v4949
        %v4981 = vunpack.c.h.b16 %v4950
        %v4982 = vunpack.c.h.b16 %v4951
        %v4983 = vunpack.c.h.b16 %v4952
        %v4984 = vrot.slane %v4977, 7
        %v4985 = vsel %vm757, %v4984, %v4976
        %v4986 = vrot.slane %v4978, 6
        %v4987 = vsel %vm760, %v4986, %v4985
        %v4988 = vrot.slane %v4979, 5
        %v4989 = vsel %vm763, %v4988, %v4987
        %v4990 = vrot.slane %v4980, 4
        %v4991 = vsel %vm2765, %v4990, %v4989
        %v4992 = vrot.slane %v4981, 3
        %v4993 = vsel %vm2768, %v4992, %v4991
        %v4994 = vrot.slane %v4982, 2
        %v4995 = vsel %vm2771, %v4994, %v4993
        %v4996 = vrot.slane %v4983, 1
        %v4997 = vsel %vm2774, %v4996, %v4995
        %v4998 = vpack.c.b16 %v4997, %v4997
        %4999 = vrot.lane.b32.xlu0 %v4998, 127
        %v5000 = vpop.permute.xlu0 %4999
        %5001 = vrot.lane.b32.xlu0 %v4975, 126
        %v5002 = vpop.permute.xlu0 %5001
        %v5005 = vsel %vm2874, %v4905, %v4907
        %v5009 = vsel %vm2874, %v4909, %v4924
        %v5013 = vsel %vm2874, %v4926, %v4928
        %v5017 = vsel %vm2874, %v4975, %v5000
        %v5019 = vld [vmem:[%s4] sm:$0xf]
        %v5021 = vsel %vm2892, %v5019, 0
        %v5024 = vsel %vm2874, %v5002, 0
        %5026 = vmatprep.subr.bf16.mxu0 0
        %5027 = vmatpush1.bf16.msra.mxu0 0
        %5028 = vmatprep.subr.bf16.mxu0 0
        %5029 = vmatpush1.bf16.msra.mxu0 0
        %5030 = vmatprep.subr.bf16.mxu0 0
        %5031 = vmatpush1.bf16.msra.mxu0 0
        %5032 = vmatprep.subr.bf16.mxu0 0
        %5033 = vmatpush1.bf16.msra.mxu0 %v5024
        %5034 = vmatprep.subr.bf16.mxu0 0
        %5035 = vmatpush1.bf16.msra.mxu0 %v5017
        %5036 = vmatprep.subr.bf16.mxu0 0
        %5037 = vmatpush1.bf16.msra.mxu0 %v5013
        %5038 = vmatprep.subr.bf16.mxu0 0
        %5039 = vmatpush1.bf16.msra.mxu0 %v5009
        %5040 = vmatprep.subr.bf16.mxu0 0
        %5041 = vmatpush1.bf16.msra.mxu0 %v5005
        %5042 = vmatprep.subr.bf16.mxu0 0
        %5043 = vmatpush2.bf16.msra.mxu0 0
        %5044 = vmatprep.subr.bf16.mxu0 0
        %5045 = vmatpush2.bf16.msra.mxu0 0
        %5046 = vmatprep.subr.bf16.mxu0 0
        %5047 = vmatpush2.bf16.msra.mxu0 0
        %5048 = vmatprep.subr.bf16.mxu0 0
        %5049 = vmatpush2.bf16.msra.mxu0 0
        %5050 = vmatprep.subr.bf16.mxu0 0
        %5051 = vmatpush2.bf16.msra.mxu0 0
        %5052 = vmatprep.subr.bf16.mxu0 0
        %5053 = vmatpush2.bf16.msra.mxu0 0
        %5054 = vmatprep.subr.bf16.mxu0 0
        %5055 = vmatpush2.bf16.msra.mxu0 0
        %5056 = vmatprep.subr.bf16.mxu0 0
        %5057 = vmatpush2.bf16.msra.mxu0 0
        %5058 = vmatprep.mubr.bf16.mxu0 0
        %5059 = vmatmul.mubr.bf16.gmra.mxu0 %v5021
        %v5060 = vpop.f32.mrf.mxu0
        %v5061 = vadd.f32 0.0, %v5060
        %v5062 = vpop.f32.mrf.mxu0
        %v5063 = vpop.f32.mrf.mxu0
        %v5064 = vpop.f32.mrf.mxu0
        %5065 = vdwg.mxu0
        %v5066 = vmul.f32 %v5061, %v2942
        %v5067 = vadd.f32 %v5066, %v2948
        %v5068 = vmax.f32 %v5067, 0.0
        %v5069 = vpack.c.bf16 %v5068, %v5068
        %v5072 = vunpack.c.l.s4 1966171168
        %v5073 = vunpack.c.0.s8 %v5072
        %v5074 = vlaneseq
        %v5075 = vshrl.u32 %v5074, 7
        %v5076 = vsub.s32 %v5073, %v5075
        %v5077 = vrot.slane %v5069, %v5076
        %v5078 = vcombine.high %v5077, %v5077
        %v5080 = vunpack.c.l.s4 1966171168
        %v5081 = vunpack.c.0.s8 %v5080
        %v5082 = vlaneseq
        %v5083 = vshrl.u32 %v5082, 7
        %v5084 = vsub.s32 %v5081, %v5083
        %v5085 = vrot.slane %v5077, %v5084
        %v5087 = vunpack.c.l.s4 1966171168
        %v5088 = vunpack.c.0.s8 %v5087
        %v5089 = vlaneseq
        %v5090 = vshrl.u32 %v5089, 7
        %v5091 = vsub.s32 %v5088, %v5090
        %v5092 = vrot.slane %v5078, %v5091
        %v5093 = vcombine.high %v5085, %v5085
        %v5094 = vcombine.high %v5092, %v5092
        %v5095 = vunpack.i.l.s16 %v5085
        %v5096 = vunpack.i.h.s16 %v5085
        %v5097 = vunpack.i.l.s16 %v5092
        %v5098 = vunpack.i.h.s16 %v5092
        %v5099 = vunpack.i.l.s16 %v5093
        %v5100 = vunpack.i.h.s16 %v5093
        %v5101 = vunpack.i.l.s16 %v5094
        %v5102 = vunpack.i.h.s16 %v5094
        %v5103 = vpack.i.b16 %v5095, %v5095
        %v5104 = vpack.i.b16 %v5096, %v5096
        %v5105 = vpack.i.b16 %v5097, %v5097
        %v5106 = vpack.i.b16 %v5098, %v5098
        %v5107 = vpack.i.b16 %v5099, %v5099
        %v5108 = vpack.i.b16 %v5100, %v5100
        %v5109 = vpack.i.b16 %v5101, %v5101
        %v5110 = vpack.i.b16 %v5102, %v5102
        %v5112 = vunpack.c.l.s4 286326784
        %v5113 = vunpack.c.0.s8 %v5112
        %v5114 = vlaneseq
        %v5115 = vshrl.u32 %v5114, 7
        %v5116 = vsub.s32 %v5113, %v5115
        %v5117 = vrot.slane %v5103, %v5116
        %v5119 = vunpack.c.l.s4 286326784
        %v5120 = vunpack.c.0.s8 %v5119
        %v5121 = vlaneseq
        %v5122 = vshrl.u32 %v5121, 7
        %v5123 = vsub.s32 %v5120, %v5122
        %v5124 = vrot.slane %v5104, %v5123
        %v5126 = vunpack.c.l.s4 286326784
        %v5127 = vunpack.c.0.s8 %v5126
        %v5128 = vlaneseq
        %v5129 = vshrl.u32 %v5128, 7
        %v5130 = vsub.s32 %v5127, %v5129
        %v5131 = vrot.slane %v5105, %v5130
        %v5133 = vunpack.c.l.s4 286326784
        %v5134 = vunpack.c.0.s8 %v5133
        %v5135 = vlaneseq
        %v5136 = vshrl.u32 %v5135, 7
        %v5137 = vsub.s32 %v5134, %v5136
        %v5138 = vrot.slane %v5106, %v5137
        %v5140 = vunpack.c.l.s4 286326784
        %v5141 = vunpack.c.0.s8 %v5140
        %v5142 = vlaneseq
        %v5143 = vshrl.u32 %v5142, 7
        %v5144 = vsub.s32 %v5141, %v5143
        %v5145 = vrot.slane %v5107, %v5144
        %v5147 = vunpack.c.l.s4 286326784
        %v5148 = vunpack.c.0.s8 %v5147
        %v5149 = vlaneseq
        %v5150 = vshrl.u32 %v5149, 7
        %v5151 = vsub.s32 %v5148, %v5150
        %v5152 = vrot.slane %v5108, %v5151
        %v5154 = vunpack.c.l.s4 286326784
        %v5155 = vunpack.c.0.s8 %v5154
        %v5156 = vlaneseq
        %v5157 = vshrl.u32 %v5156, 7
        %v5158 = vsub.s32 %v5155, %v5157
        %v5159 = vrot.slane %v5109, %v5158
        %v5161 = vunpack.c.l.s4 286326784
        %v5162 = vunpack.c.0.s8 %v5161
        %v5163 = vlaneseq
        %v5164 = vshrl.u32 %v5163, 7
        %v5165 = vsub.s32 %v5162, %v5164
        %v5166 = vrot.slane %v5110, %v5165
        %5167 = vrot.lane.b32.xlu0 %v5117, 1
        %v5168 = vpop.permute.xlu0 %5167
        %5169 = vrot.lane.b32.xlu0 %v5124, 1
        %v5170 = vpop.permute.xlu0 %5169
        %5171 = vrot.lane.b32.xlu0 %v5131, 1
        %v5172 = vpop.permute.xlu0 %5171
        %5173 = vrot.lane.b32.xlu0 %v5138, 1
        %v5174 = vpop.permute.xlu0 %5173
        %5175 = vrot.lane.b32.xlu0 %v5145, 1
        %v5176 = vpop.permute.xlu0 %5175
        %5177 = vrot.lane.b32.xlu0 %v5152, 1
        %v5178 = vpop.permute.xlu0 %5177
        %5179 = vrot.lane.b32.xlu0 %v5159, 1
        %v5180 = vpop.permute.xlu0 %5179
        %5181 = vrot.lane.b32.xlu0 %v5166, 1
        %v5182 = vpop.permute.xlu0 %5181
        %v5191 = vld [vmem:[#allocation3] sm:$0x8]
        %v5192 = vsel %vm1951, %v5168, %v5191
        %5193 = vst [vmem:[#allocation3] sm:$0x8] %v5192
        %v5194 = vld [vmem:[#allocation3 + $0x8] sm:$0x8]
        %v5195 = vsel %vm1951, %v5170, %v5194
        %5196 = vst [vmem:[#allocation3 + $0x8] sm:$0x8] %v5195
        %v5197 = vld [vmem:[#allocation3 + $0x10] sm:$0x8]
        %v5198 = vsel %vm1951, %v5172, %v5197
        %5199 = vst [vmem:[#allocation3 + $0x10] sm:$0x8] %v5198
        %v5200 = vld [vmem:[#allocation3 + $0x18] sm:$0x8]
        %v5201 = vsel %vm1951, %v5174, %v5200
        %5202 = vst [vmem:[#allocation3 + $0x18] sm:$0x8] %v5201
        %v5203 = vld [vmem:[#allocation3 + $0x20] sm:$0x8]
        %v5204 = vsel %vm1951, %v5176, %v5203
        %5205 = vst [vmem:[#allocation3 + $0x20] sm:$0x8] %v5204
        %v5206 = vld [vmem:[#allocation3 + $0x28] sm:$0x8]
        %v5207 = vsel %vm1951, %v5178, %v5206
        %5208 = vst [vmem:[#allocation3 + $0x28] sm:$0x8] %v5207
        %v5209 = vld [vmem:[#allocation3 + $0x30] sm:$0x8]
        %v5210 = vsel %vm1951, %v5180, %v5209
        %5211 = vst [vmem:[#allocation3 + $0x30] sm:$0x8] %v5210
        %v5212 = vld [vmem:[#allocation3 + $0x38] sm:$0x8]
        %v5213 = vsel %vm1951, %v5182, %v5212
        %5214 = vst [vmem:[#allocation3 + $0x38] sm:$0x8] %v5213
        %v5215 = vld [vmem:[#allocation2] sm:$0x8]
        %v5216 = vld [vmem:[#allocation2 + $0x8] sm:$0x8]
        %v5217 = vld [vmem:[#allocation2 + $0x10] sm:$0x8]
        %v5218 = vld [vmem:[#allocation2 + $0x18] sm:$0x8]
        %v5219 = vld [vmem:[#allocation2 + $0x20] sm:$0x8]
        %v5220 = vld [vmem:[#allocation2 + $0x28] sm:$0x8]
        %v5221 = vld [vmem:[#allocation2 + $0x30] sm:$0x8]
        %v5222 = vld [vmem:[#allocation2 + $0x38] sm:$0x8]
        %v5223 = vld [vmem:[#allocation2 + $0x4] sm:$0x1]
        %v5224 = vld [vmem:[#allocation2 + $0xc] sm:$0x1]
        %v5225 = vld [vmem:[#allocation2 + $0x14] sm:$0x1]
        %v5226 = vld [vmem:[#allocation2 + $0x1c] sm:$0x1]
        %v5227 = vld [vmem:[#allocation2 + $0x24] sm:$0x1]
        %v5228 = vld [vmem:[#allocation2 + $0x2c] sm:$0x1]
        %v5229 = vld [vmem:[#allocation2 + $0x34] sm:$0x1]
        %v5230 = vld [vmem:[#allocation2 + $0x3c] sm:$0x1]
        %v5239 = vunpack.c.l.b16 %v5215
        %v5240 = vunpack.c.l.b16 %v5216
        %v5241 = vunpack.c.l.b16 %v5217
        %v5242 = vunpack.c.l.b16 %v5218
        %v5243 = vunpack.c.l.b16 %v5219
        %v5244 = vunpack.c.l.b16 %v5220
        %v5245 = vunpack.c.l.b16 %v5221
        %v5246 = vunpack.c.l.b16 %v5222
        %v5247 = vpack.c.b16 %v5239, %v5239
        %v5248 = vpack.c.b16 %v5240, %v5240
        %v5249 = vpack.c.b16 %v5241, %v5241
        %v5250 = vpack.c.b16 %v5242, %v5242
        %v5251 = vpack.c.b16 %v5243, %v5243
        %v5252 = vpack.c.b16 %v5244, %v5244
        %v5253 = vpack.c.b16 %v5245, %v5245
        %v5254 = vpack.c.b16 %v5246, %v5246
        %v5255 = vunpack.c.l.b16 %v5247
        %v5256 = vunpack.c.l.b16 %v5248
        %v5257 = vunpack.c.l.b16 %v5249
        %v5258 = vunpack.c.l.b16 %v5250
        %v5259 = vunpack.c.l.b16 %v5251
        %v5260 = vunpack.c.l.b16 %v5252
        %v5261 = vunpack.c.l.b16 %v5253
        %v5262 = vunpack.c.l.b16 %v5254
        %v5263 = vrot.slane %v5255, 7
        %v5264 = vrot.slane %v5256, 6
        %v5265 = vsel %vm757, %v5264, %v5263
        %v5266 = vrot.slane %v5257, 5
        %v5267 = vsel %vm760, %v5266, %v5265
        %v5268 = vrot.slane %v5258, 4
        %v5269 = vsel %vm763, %v5268, %v5267
        %v5270 = vrot.slane %v5259, 3
        %v5271 = vsel %vm2765, %v5270, %v5269
        %v5272 = vrot.slane %v5260, 2
        %v5273 = vsel %vm2768, %v5272, %v5271
        %v5274 = vrot.slane %v5261, 1
        %v5275 = vsel %vm2771, %v5274, %v5273
        %v5276 = vsel %vm2774, %v5262, %v5275
        %v5277 = vpack.c.b16 %v5276, %v5276
        %5278 = vrot.lane.b32.xlu0 %v5277, 127
        %v5279 = vpop.permute.xlu0 %5278
        %5280 = vrot.lane.b32.xlu0 %v5277, 126
        %v5281 = vpop.permute.xlu0 %5280
        %v5290 = vunpack.c.l.b16 %v5223
        %v5291 = vunpack.c.l.b16 %v5224
        %v5292 = vunpack.c.l.b16 %v5225
        %v5293 = vunpack.c.l.b16 %v5226
        %v5294 = vunpack.c.l.b16 %v5227
        %v5295 = vunpack.c.l.b16 %v5228
        %v5296 = vunpack.c.l.b16 %v5229
        %v5297 = vunpack.c.l.b16 %v5230
        %v5298 = vpack.c.b16 %v5290, %v5290
        %v5299 = vpack.c.b16 %v5291, %v5291
        %v5300 = vpack.c.b16 %v5292, %v5292
        %v5301 = vpack.c.b16 %v5293, %v5293
        %v5302 = vpack.c.b16 %v5294, %v5294
        %v5303 = vpack.c.b16 %v5295, %v5295
        %v5304 = vpack.c.b16 %v5296, %v5296
        %v5305 = vpack.c.b16 %v5297, %v5297
        %v5306 = vunpack.c.h.b16 %v5298
        %v5307 = vunpack.c.h.b16 %v5299
        %v5308 = vunpack.c.h.b16 %v5300
        %v5309 = vunpack.c.h.b16 %v5301
        %v5310 = vunpack.c.h.b16 %v5302
        %v5311 = vunpack.c.h.b16 %v5303
        %v5312 = vunpack.c.h.b16 %v5304
        %v5313 = vunpack.c.h.b16 %v5305
        %v5314 = vrot.slane %v5307, 7
        %v5315 = vsel %vm757, %v5314, %v5306
        %v5316 = vrot.slane %v5308, 6
        %v5317 = vsel %vm760, %v5316, %v5315
        %v5318 = vrot.slane %v5309, 5
        %v5319 = vsel %vm763, %v5318, %v5317
        %v5320 = vrot.slane %v5310, 4
        %v5321 = vsel %vm2765, %v5320, %v5319
        %v5322 = vrot.slane %v5311, 3
        %v5323 = vsel %vm2768, %v5322, %v5321
        %v5324 = vrot.slane %v5312, 2
        %v5325 = vsel %vm2771, %v5324, %v5323
        %v5326 = vrot.slane %v5313, 1
        %v5327 = vsel %vm2774, %v5326, %v5325
        %v5328 = vpack.c.b16 %v5327, %v5327
        %v5329 = vunpack.c.l.b16 %v5298
        %v5330 = vunpack.c.l.b16 %v5299
        %v5331 = vunpack.c.l.b16 %v5300
        %v5332 = vunpack.c.l.b16 %v5301
        %v5333 = vunpack.c.l.b16 %v5302
        %v5334 = vunpack.c.l.b16 %v5303
        %v5335 = vunpack.c.l.b16 %v5304
        %v5336 = vunpack.c.l.b16 %v5305
        %v5337 = vrot.slane %v5330, 7
        %v5338 = vsel %vm757, %v5337, %v5329
        %v5339 = vrot.slane %v5331, 6
        %v5340 = vsel %vm760, %v5339, %v5338
        %v5341 = vrot.slane %v5332, 5
        %v5342 = vsel %vm763, %v5341, %v5340
        %v5343 = vrot.slane %v5333, 4
        %v5344 = vsel %vm2765, %v5343, %v5342
        %v5345 = vrot.slane %v5334, 3
        %v5346 = vsel %vm2768, %v5345, %v5344
        %v5347 = vrot.slane %v5335, 2
        %v5348 = vsel %vm2771, %v5347, %v5346
        %v5349 = vrot.slane %v5336, 1
        %v5350 = vsel %vm2774, %v5349, %v5348
        %v5351 = vpack.c.b16 %v5350, %v5350
        %5352 = vrot.lane.b32.xlu0 %v5351, 127
        %v5353 = vpop.permute.xlu0 %5352
        %5354 = vrot.lane.b32.xlu0 %v5328, 126
        %v5355 = vpop.permute.xlu0 %5354
        %v5356 = vrot.slane %v5329, 1
        %v5357 = vsel %vm757, %v5330, %v5356
        %v5358 = vrot.slane %v5331, 7
        %v5359 = vsel %vm760, %v5358, %v5357
        %v5360 = vrot.slane %v5332, 6
        %v5361 = vsel %vm763, %v5360, %v5359
        %v5362 = vrot.slane %v5333, 5
        %v5363 = vsel %vm2765, %v5362, %v5361
        %v5364 = vrot.slane %v5334, 4
        %v5365 = vsel %vm2768, %v5364, %v5363
        %v5366 = vrot.slane %v5335, 3
        %v5367 = vsel %vm2771, %v5366, %v5365
        %v5368 = vrot.slane %v5336, 2
        %v5369 = vsel %vm2774, %v5368, %v5367
        %v5370 = vpack.c.b16 %v5369, %v5369
        %5371 = vrot.lane.b32.xlu0 %v5370, 127
        %v5372 = vpop.permute.xlu0 %5371
        %5373 = vrot.lane.b32.xlu0 %v5370, 126
        %v5374 = vpop.permute.xlu0 %5373
        %v5377 = vsel %vm2874, %v5277, %v5279
        %v5381 = vsel %vm2874, %v5281, %v5328
        %v5385 = vsel %vm2874, %v5353, %v5355
        %v5389 = vsel %vm2874, %v5370, %v5372
        %v5391 = vld [vmem:[%s4] sm:$0xf]
        %v5393 = vsel %vm2892, %v5391, 0
        %v5396 = vsel %vm2874, %v5374, 0
        %5398 = vmatprep.subr.bf16.mxu0 0
        %5399 = vmatpush1.bf16.msra.mxu0 0
        %5400 = vmatprep.subr.bf16.mxu0 0
        %5401 = vmatpush1.bf16.msra.mxu0 0
        %5402 = vmatprep.subr.bf16.mxu0 0
        %5403 = vmatpush1.bf16.msra.mxu0 0
        %5404 = vmatprep.subr.bf16.mxu0 0
        %5405 = vmatpush1.bf16.msra.mxu0 %v5396
        %5406 = vmatprep.subr.bf16.mxu0 0
        %5407 = vmatpush1.bf16.msra.mxu0 %v5389
        %5408 = vmatprep.subr.bf16.mxu0 0
        %5409 = vmatpush1.bf16.msra.mxu0 %v5385
        %5410 = vmatprep.subr.bf16.mxu0 0
        %5411 = vmatpush1.bf16.msra.mxu0 %v5381
        %5412 = vmatprep.subr.bf16.mxu0 0
        %5413 = vmatpush1.bf16.msra.mxu0 %v5377
        %5414 = vmatprep.subr.bf16.mxu0 0
        %5415 = vmatpush2.bf16.msra.mxu0 0
        %5416 = vmatprep.subr.bf16.mxu0 0
        %5417 = vmatpush2.bf16.msra.mxu0 0
        %5418 = vmatprep.subr.bf16.mxu0 0
        %5419 = vmatpush2.bf16.msra.mxu0 0
        %5420 = vmatprep.subr.bf16.mxu0 0
        %5421 = vmatpush2.bf16.msra.mxu0 0
        %5422 = vmatprep.subr.bf16.mxu0 0
        %5423 = vmatpush2.bf16.msra.mxu0 0
        %5424 = vmatprep.subr.bf16.mxu0 0
        %5425 = vmatpush2.bf16.msra.mxu0 0
        %5426 = vmatprep.subr.bf16.mxu0 0
        %5427 = vmatpush2.bf16.msra.mxu0 0
        %5428 = vmatprep.subr.bf16.mxu0 0
        %5429 = vmatpush2.bf16.msra.mxu0 0
        %5430 = vmatprep.mubr.bf16.mxu0 0
        %5431 = vmatmul.mubr.bf16.gmra.mxu0 %v5393
        %v5432 = vpop.f32.mrf.mxu0
        %v5433 = vadd.f32 0.0, %v5432
        %v5434 = vpop.f32.mrf.mxu0
        %v5435 = vpop.f32.mrf.mxu0
        %v5436 = vpop.f32.mrf.mxu0
        %5437 = vdwg.mxu0
        %v5438 = vmul.f32 %v5433, %v2942
        %v5439 = vadd.f32 %v5438, %v2948
        %v5440 = vmax.f32 %v5439, 0.0
        %v5441 = vpack.c.bf16 %v5440, %v5440
        %v5444 = vunpack.c.l.s4 1966171168
        %v5445 = vunpack.c.0.s8 %v5444
        %v5446 = vlaneseq
        %v5447 = vshrl.u32 %v5446, 7
        %v5448 = vsub.s32 %v5445, %v5447
        %v5449 = vrot.slane %v5441, %v5448
        %v5450 = vcombine.high %v5449, %v5449
        %v5452 = vunpack.c.l.s4 1966171168
        %v5453 = vunpack.c.0.s8 %v5452
        %v5454 = vlaneseq
        %v5455 = vshrl.u32 %v5454, 7
        %v5456 = vsub.s32 %v5453, %v5455
        %v5457 = vrot.slane %v5449, %v5456
        %v5459 = vunpack.c.l.s4 1966171168
        %v5460 = vunpack.c.0.s8 %v5459
        %v5461 = vlaneseq
        %v5462 = vshrl.u32 %v5461, 7
        %v5463 = vsub.s32 %v5460, %v5462
        %v5464 = vrot.slane %v5450, %v5463
        %v5465 = vcombine.high %v5457, %v5457
        %v5466 = vcombine.high %v5464, %v5464
        %v5467 = vunpack.i.l.s16 %v5457
        %v5468 = vunpack.i.h.s16 %v5457
        %v5469 = vunpack.i.l.s16 %v5464
        %v5470 = vunpack.i.h.s16 %v5464
        %v5471 = vunpack.i.l.s16 %v5465
        %v5472 = vunpack.i.h.s16 %v5465
        %v5473 = vunpack.i.l.s16 %v5466
        %v5474 = vunpack.i.h.s16 %v5466
        %v5475 = vpack.i.b16 %v5467, %v5467
        %v5476 = vpack.i.b16 %v5468, %v5468
        %v5477 = vpack.i.b16 %v5469, %v5469
        %v5478 = vpack.i.b16 %v5470, %v5470
        %v5479 = vpack.i.b16 %v5471, %v5471
        %v5480 = vpack.i.b16 %v5472, %v5472
        %v5481 = vpack.i.b16 %v5473, %v5473
        %v5482 = vpack.i.b16 %v5474, %v5474
        %v5484 = vunpack.c.l.s4 286326784
        %v5485 = vunpack.c.0.s8 %v5484
        %v5486 = vlaneseq
        %v5487 = vshrl.u32 %v5486, 7
        %v5488 = vsub.s32 %v5485, %v5487
        %v5489 = vrot.slane %v5475, %v5488
        %v5491 = vunpack.c.l.s4 286326784
        %v5492 = vunpack.c.0.s8 %v5491
        %v5493 = vlaneseq
        %v5494 = vshrl.u32 %v5493, 7
        %v5495 = vsub.s32 %v5492, %v5494
        %v5496 = vrot.slane %v5476, %v5495
        %v5498 = vunpack.c.l.s4 286326784
        %v5499 = vunpack.c.0.s8 %v5498
        %v5500 = vlaneseq
        %v5501 = vshrl.u32 %v5500, 7
        %v5502 = vsub.s32 %v5499, %v5501
        %v5503 = vrot.slane %v5477, %v5502
        %v5505 = vunpack.c.l.s4 286326784
        %v5506 = vunpack.c.0.s8 %v5505
        %v5507 = vlaneseq
        %v5508 = vshrl.u32 %v5507, 7
        %v5509 = vsub.s32 %v5506, %v5508
        %v5510 = vrot.slane %v5478, %v5509
        %v5512 = vunpack.c.l.s4 286326784
        %v5513 = vunpack.c.0.s8 %v5512
        %v5514 = vlaneseq
        %v5515 = vshrl.u32 %v5514, 7
        %v5516 = vsub.s32 %v5513, %v5515
        %v5517 = vrot.slane %v5479, %v5516
        %v5519 = vunpack.c.l.s4 286326784
        %v5520 = vunpack.c.0.s8 %v5519
        %v5521 = vlaneseq
        %v5522 = vshrl.u32 %v5521, 7
        %v5523 = vsub.s32 %v5520, %v5522
        %v5524 = vrot.slane %v5480, %v5523
        %v5526 = vunpack.c.l.s4 286326784
        %v5527 = vunpack.c.0.s8 %v5526
        %v5528 = vlaneseq
        %v5529 = vshrl.u32 %v5528, 7
        %v5530 = vsub.s32 %v5527, %v5529
        %v5531 = vrot.slane %v5481, %v5530
        %v5533 = vunpack.c.l.s4 286326784
        %v5534 = vunpack.c.0.s8 %v5533
        %v5535 = vlaneseq
        %v5536 = vshrl.u32 %v5535, 7
        %v5537 = vsub.s32 %v5534, %v5536
        %v5538 = vrot.slane %v5482, %v5537
        %5539 = vrot.lane.b32.xlu0 %v5489, 1
        %v5540 = vpop.permute.xlu0 %5539
        %5541 = vrot.lane.b32.xlu0 %v5496, 1
        %v5542 = vpop.permute.xlu0 %5541
        %5543 = vrot.lane.b32.xlu0 %v5503, 1
        %v5544 = vpop.permute.xlu0 %5543
        %5545 = vrot.lane.b32.xlu0 %v5510, 1
        %v5546 = vpop.permute.xlu0 %5545
        %5547 = vrot.lane.b32.xlu0 %v5517, 1
        %v5548 = vpop.permute.xlu0 %5547
        %5549 = vrot.lane.b32.xlu0 %v5524, 1
        %v5550 = vpop.permute.xlu0 %5549
        %5551 = vrot.lane.b32.xlu0 %v5531, 1
        %v5552 = vpop.permute.xlu0 %5551
        %5553 = vrot.lane.b32.xlu0 %v5538, 1
        %v5554 = vpop.permute.xlu0 %5553
        %v5563 = vld [vmem:[#allocation3] sm:$0x8]
        %v5564 = vsel %vm2037, %v5540, %v5563
        %5565 = vst [vmem:[#allocation3] sm:$0x8] %v5564
        %v5566 = vld [vmem:[#allocation3 + $0x8] sm:$0x8]
        %v5567 = vsel %vm2037, %v5542, %v5566
        %5568 = vst [vmem:[#allocation3 + $0x8] sm:$0x8] %v5567
        %v5569 = vld [vmem:[#allocation3 + $0x10] sm:$0x8]
        %v5570 = vsel %vm2037, %v5544, %v5569
        %5571 = vst [vmem:[#allocation3 + $0x10] sm:$0x8] %v5570
        %v5572 = vld [vmem:[#allocation3 + $0x18] sm:$0x8]
        %v5573 = vsel %vm2037, %v5546, %v5572
        %5574 = vst [vmem:[#allocation3 + $0x18] sm:$0x8] %v5573
        %v5575 = vld [vmem:[#allocation3 + $0x20] sm:$0x8]
        %v5576 = vsel %vm2037, %v5548, %v5575
        %5577 = vst [vmem:[#allocation3 + $0x20] sm:$0x8] %v5576
        %v5578 = vld [vmem:[#allocation3 + $0x28] sm:$0x8]
        %v5579 = vsel %vm2037, %v5550, %v5578
        %5580 = vst [vmem:[#allocation3 + $0x28] sm:$0x8] %v5579
        %v5581 = vld [vmem:[#allocation3 + $0x30] sm:$0x8]
        %v5582 = vsel %vm2037, %v5552, %v5581
        %5583 = vst [vmem:[#allocation3 + $0x30] sm:$0x8] %v5582
        %v5584 = vld [vmem:[#allocation3 + $0x38] sm:$0x8]
        %v5585 = vsel %vm2037, %v5554, %v5584
        %5586 = vst [vmem:[#allocation3 + $0x38] sm:$0x8] %v5585
        %v5587 = vld [vmem:[#allocation2 + $0x4] sm:$0x1]
        %v5588 = vld [vmem:[#allocation2 + $0xc] sm:$0x1]
        %v5589 = vld [vmem:[#allocation2 + $0x14] sm:$0x1]
        %v5590 = vld [vmem:[#allocation2 + $0x1c] sm:$0x1]
        %v5591 = vld [vmem:[#allocation2 + $0x24] sm:$0x1]
        %v5592 = vld [vmem:[#allocation2 + $0x2c] sm:$0x1]
        %v5593 = vld [vmem:[#allocation2 + $0x34] sm:$0x1]
        %v5594 = vld [vmem:[#allocation2 + $0x3c] sm:$0x1]
        %v5595 = vld [vmem:[#allocation2 + $0x4] sm:$0x2]
        %v5596 = vld [vmem:[#allocation2 + $0xc] sm:$0x2]
        %v5597 = vld [vmem:[#allocation2 + $0x14] sm:$0x2]
        %v5598 = vld [vmem:[#allocation2 + $0x1c] sm:$0x2]
        %v5599 = vld [vmem:[#allocation2 + $0x24] sm:$0x2]
        %v5600 = vld [vmem:[#allocation2 + $0x2c] sm:$0x2]
        %v5601 = vld [vmem:[#allocation2 + $0x34] sm:$0x2]
        %v5602 = vld [vmem:[#allocation2 + $0x3c] sm:$0x2]
        %v5611 = vunpack.c.l.b16 %v5587
        %v5612 = vunpack.c.l.b16 %v5588
        %v5613 = vunpack.c.l.b16 %v5589
        %v5614 = vunpack.c.l.b16 %v5590
        %v5615 = vunpack.c.l.b16 %v5591
        %v5616 = vunpack.c.l.b16 %v5592
        %v5617 = vunpack.c.l.b16 %v5593
        %v5618 = vunpack.c.l.b16 %v5594
        %v5619 = vpack.c.b16 %v5611, %v5611
        %v5620 = vpack.c.b16 %v5612, %v5612
        %v5621 = vpack.c.b16 %v5613, %v5613
        %v5622 = vpack.c.b16 %v5614, %v5614
        %v5623 = vpack.c.b16 %v5615, %v5615
        %v5624 = vpack.c.b16 %v5616, %v5616
        %v5625 = vpack.c.b16 %v5617, %v5617
        %v5626 = vpack.c.b16 %v5618, %v5618
        %v5627 = vunpack.c.l.b16 %v5619
        %v5628 = vunpack.c.l.b16 %v5620
        %v5629 = vunpack.c.l.b16 %v5621
        %v5630 = vunpack.c.l.b16 %v5622
        %v5631 = vunpack.c.l.b16 %v5623
        %v5632 = vunpack.c.l.b16 %v5624
        %v5633 = vunpack.c.l.b16 %v5625
        %v5634 = vunpack.c.l.b16 %v5626
        %v5635 = vrot.slane %v5628, 7
        %v5636 = vsel %vm757, %v5635, %v5627
        %v5637 = vrot.slane %v5629, 6
        %v5638 = vsel %vm760, %v5637, %v5636
        %v5639 = vrot.slane %v5630, 5
        %v5640 = vsel %vm763, %v5639, %v5638
        %v5641 = vrot.slane %v5631, 4
        %v5642 = vsel %vm2765, %v5641, %v5640
        %v5643 = vrot.slane %v5632, 3
        %v5644 = vsel %vm2768, %v5643, %v5642
        %v5645 = vrot.slane %v5633, 2
        %v5646 = vsel %vm2771, %v5645, %v5644
        %v5647 = vrot.slane %v5634, 1
        %v5648 = vsel %vm2774, %v5647, %v5646
        %v5649 = vpack.c.b16 %v5648, %v5648
        %v5650 = vunpack.c.h.b16 %v5619
        %v5651 = vunpack.c.h.b16 %v5620
        %v5652 = vunpack.c.h.b16 %v5621
        %v5653 = vunpack.c.h.b16 %v5622
        %v5654 = vunpack.c.h.b16 %v5623
        %v5655 = vunpack.c.h.b16 %v5624
        %v5656 = vunpack.c.h.b16 %v5625
        %v5657 = vunpack.c.h.b16 %v5626
        %v5658 = vrot.slane %v5651, 7
        %v5659 = vsel %vm757, %v5658, %v5650
        %v5660 = vrot.slane %v5652, 6
        %v5661 = vsel %vm760, %v5660, %v5659
        %v5662 = vrot.slane %v5653, 5
        %v5663 = vsel %vm763, %v5662, %v5661
        %v5664 = vrot.slane %v5654, 4
        %v5665 = vsel %vm2765, %v5664, %v5663
        %v5666 = vrot.slane %v5655, 3
        %v5667 = vsel %vm2768, %v5666, %v5665
        %v5668 = vrot.slane %v5656, 2
        %v5669 = vsel %vm2771, %v5668, %v5667
        %v5670 = vrot.slane %v5657, 1
        %v5671 = vsel %vm2774, %v5670, %v5669
        %v5672 = vpack.c.b16 %v5671, %v5671
        %5673 = vrot.lane.b32.xlu0 %v5672, 127
        %v5674 = vpop.permute.xlu0 %5673
        %5675 = vrot.lane.b32.xlu0 %v5649, 126
        %v5676 = vpop.permute.xlu0 %5675
        %v5677 = vrot.slane %v5627, 1
        %v5678 = vsel %vm757, %v5628, %v5677
        %v5679 = vrot.slane %v5629, 7
        %v5680 = vsel %vm760, %v5679, %v5678
        %v5681 = vrot.slane %v5630, 6
        %v5682 = vsel %vm763, %v5681, %v5680
        %v5683 = vrot.slane %v5631, 5
        %v5684 = vsel %vm2765, %v5683, %v5682
        %v5685 = vrot.slane %v5632, 4
        %v5686 = vsel %vm2768, %v5685, %v5684
        %v5687 = vrot.slane %v5633, 3
        %v5688 = vsel %vm2771, %v5687, %v5686
        %v5689 = vrot.slane %v5634, 2
        %v5690 = vsel %vm2774, %v5689, %v5688
        %v5691 = vpack.c.b16 %v5690, %v5690
        %5692 = vrot.lane.b32.xlu0 %v5691, 127
        %v5693 = vpop.permute.xlu0 %5692
        %5694 = vrot.lane.b32.xlu0 %v5691, 126
        %v5695 = vpop.permute.xlu0 %5694
        %v5704 = vunpack.c.l.b16 %v5595
        %v5705 = vunpack.c.l.b16 %v5596
        %v5706 = vunpack.c.l.b16 %v5597
        %v5707 = vunpack.c.l.b16 %v5598
        %v5708 = vunpack.c.l.b16 %v5599
        %v5709 = vunpack.c.l.b16 %v5600
        %v5710 = vunpack.c.l.b16 %v5601
        %v5711 = vunpack.c.l.b16 %v5602
        %v5712 = vpack.c.b16 %v5704, %v5704
        %v5713 = vpack.c.b16 %v5705, %v5705
        %v5714 = vpack.c.b16 %v5706, %v5706
        %v5715 = vpack.c.b16 %v5707, %v5707
        %v5716 = vpack.c.b16 %v5708, %v5708
        %v5717 = vpack.c.b16 %v5709, %v5709
        %v5718 = vpack.c.b16 %v5710, %v5710
        %v5719 = vpack.c.b16 %v5711, %v5711
        %v5720 = vunpack.c.l.b16 %v5712
        %v5721 = vunpack.c.l.b16 %v5713
        %v5722 = vunpack.c.l.b16 %v5714
        %v5723 = vunpack.c.l.b16 %v5715
        %v5724 = vunpack.c.l.b16 %v5716
        %v5725 = vunpack.c.l.b16 %v5717
        %v5726 = vunpack.c.l.b16 %v5718
        %v5727 = vunpack.c.l.b16 %v5719
        %v5728 = vrot.slane %v5720, 2
        %v5729 = vrot.slane %v5721, 1
        %v5730 = vsel %vm757, %v5729, %v5728
        %v5731 = vsel %vm760, %v5722, %v5730
        %v5732 = vrot.slane %v5723, 7
        %v5733 = vsel %vm763, %v5732, %v5731
        %v5734 = vrot.slane %v5724, 6
        %v5735 = vsel %vm2765, %v5734, %v5733
        %v5736 = vrot.slane %v5725, 5
        %v5737 = vsel %vm2768, %v5736, %v5735
        %v5738 = vrot.slane %v5726, 4
        %v5739 = vsel %vm2771, %v5738, %v5737
        %v5740 = vrot.slane %v5727, 3
        %v5741 = vsel %vm2774, %v5740, %v5739
        %v5742 = vpack.c.b16 %v5741, %v5741
        %5743 = vrot.lane.b32.xlu0 %v5742, 127
        %v5744 = vpop.permute.xlu0 %5743
        %5745 = vrot.lane.b32.xlu0 %v5742, 126
        %v5746 = vpop.permute.xlu0 %5745
        %v5749 = vsel %vm2874, %v5649, %v5674
        %v5753 = vsel %vm2874, %v5676, %v5691
        %v5757 = vsel %vm2874, %v5693, %v5695
        %v5761 = vsel %vm2874, %v5742, %v5744
        %v5763 = vld [vmem:[%s4] sm:$0xf]
        %v5765 = vsel %vm2892, %v5763, 0
        %v5768 = vsel %vm2874, %v5746, 0
        %5770 = vmatprep.subr.bf16.mxu0 0
        %5771 = vmatpush1.bf16.msra.mxu0 0
        %5772 = vmatprep.subr.bf16.mxu0 0
        %5773 = vmatpush1.bf16.msra.mxu0 0
        %5774 = vmatprep.subr.bf16.mxu0 0
        %5775 = vmatpush1.bf16.msra.mxu0 0
        %5776 = vmatprep.subr.bf16.mxu0 0
        %5777 = vmatpush1.bf16.msra.mxu0 %v5768
        %5778 = vmatprep.subr.bf16.mxu0 0
        %5779 = vmatpush1.bf16.msra.mxu0 %v5761
        %5780 = vmatprep.subr.bf16.mxu0 0
        %5781 = vmatpush1.bf16.msra.mxu0 %v5757
        %5782 = vmatprep.subr.bf16.mxu0 0
        %5783 = vmatpush1.bf16.msra.mxu0 %v5753
        %5784 = vmatprep.subr.bf16.mxu0 0
        %5785 = vmatpush1.bf16.msra.mxu0 %v5749
        %5786 = vmatprep.subr.bf16.mxu0 0
        %5787 = vmatpush2.bf16.msra.mxu0 0
        %5788 = vmatprep.subr.bf16.mxu0 0
        %5789 = vmatpush2.bf16.msra.mxu0 0
        %5790 = vmatprep.subr.bf16.mxu0 0
        %5791 = vmatpush2.bf16.msra.mxu0 0
        %5792 = vmatprep.subr.bf16.mxu0 0
        %5793 = vmatpush2.bf16.msra.mxu0 0
        %5794 = vmatprep.subr.bf16.mxu0 0
        %5795 = vmatpush2.bf16.msra.mxu0 0
        %5796 = vmatprep.subr.bf16.mxu0 0
        %5797 = vmatpush2.bf16.msra.mxu0 0
        %5798 = vmatprep.subr.bf16.mxu0 0
        %5799 = vmatpush2.bf16.msra.mxu0 0
        %5800 = vmatprep.subr.bf16.mxu0 0
        %5801 = vmatpush2.bf16.msra.mxu0 0
        %5802 = vmatprep.mubr.bf16.mxu0 0
        %5803 = vmatmul.mubr.bf16.gmra.mxu0 %v5765
        %v5804 = vpop.f32.mrf.mxu0
        %v5805 = vadd.f32 0.0, %v5804
        %v5806 = vpop.f32.mrf.mxu0
        %v5807 = vpop.f32.mrf.mxu0
        %v5808 = vpop.f32.mrf.mxu0
        %5809 = vdwg.mxu0
        %v5810 = vmul.f32 %v5805, %v2942
        %v5811 = vadd.f32 %v5810, %v2948
        %v5812 = vmax.f32 %v5811, 0.0
        %v5813 = vpack.c.bf16 %v5812, %v5812
        %v5816 = vunpack.c.l.s4 1966171168
        %v5817 = vunpack.c.0.s8 %v5816
        %v5818 = vlaneseq
        %v5819 = vshrl.u32 %v5818, 7
        %v5820 = vsub.s32 %v5817, %v5819
        %v5821 = vrot.slane %v5813, %v5820
        %v5822 = vcombine.high %v5821, %v5821
        %v5824 = vunpack.c.l.s4 1966171168
        %v5825 = vunpack.c.0.s8 %v5824
        %v5826 = vlaneseq
        %v5827 = vshrl.u32 %v5826, 7
        %v5828 = vsub.s32 %v5825, %v5827
        %v5829 = vrot.slane %v5821, %v5828
        %v5831 = vunpack.c.l.s4 1966171168
        %v5832 = vunpack.c.0.s8 %v5831
        %v5833 = vlaneseq
        %v5834 = vshrl.u32 %v5833, 7
        %v5835 = vsub.s32 %v5832, %v5834
        %v5836 = vrot.slane %v5822, %v5835
        %v5837 = vcombine.high %v5829, %v5829
        %v5838 = vcombine.high %v5836, %v5836
        %v5839 = vunpack.i.l.s16 %v5829
        %v5840 = vunpack.i.h.s16 %v5829
        %v5841 = vunpack.i.l.s16 %v5836
        %v5842 = vunpack.i.h.s16 %v5836
        %v5843 = vunpack.i.l.s16 %v5837
        %v5844 = vunpack.i.h.s16 %v5837
        %v5845 = vunpack.i.l.s16 %v5838
        %v5846 = vunpack.i.h.s16 %v5838
        %v5847 = vpack.i.b16 %v5839, %v5839
        %v5848 = vpack.i.b16 %v5840, %v5840
        %v5849 = vpack.i.b16 %v5841, %v5841
        %v5850 = vpack.i.b16 %v5842, %v5842
        %v5851 = vpack.i.b16 %v5843, %v5843
        %v5852 = vpack.i.b16 %v5844, %v5844
        %v5853 = vpack.i.b16 %v5845, %v5845
        %v5854 = vpack.i.b16 %v5846, %v5846
        %v5856 = vunpack.c.l.s4 286326784
        %v5857 = vunpack.c.0.s8 %v5856
        %v5858 = vlaneseq
        %v5859 = vshrl.u32 %v5858, 7
        %v5860 = vsub.s32 %v5857, %v5859
        %v5861 = vrot.slane %v5847, %v5860
        %v5863 = vunpack.c.l.s4 286326784
        %v5864 = vunpack.c.0.s8 %v5863
        %v5865 = vlaneseq
        %v5866 = vshrl.u32 %v5865, 7
        %v5867 = vsub.s32 %v5864, %v5866
        %v5868 = vrot.slane %v5848, %v5867
        %v5870 = vunpack.c.l.s4 286326784
        %v5871 = vunpack.c.0.s8 %v5870
        %v5872 = vlaneseq
        %v5873 = vshrl.u32 %v5872, 7
        %v5874 = vsub.s32 %v5871, %v5873
        %v5875 = vrot.slane %v5849, %v5874
        %v5877 = vunpack.c.l.s4 286326784
        %v5878 = vunpack.c.0.s8 %v5877
        %v5879 = vlaneseq
        %v5880 = vshrl.u32 %v5879, 7
        %v5881 = vsub.s32 %v5878, %v5880
        %v5882 = vrot.slane %v5850, %v5881
        %v5884 = vunpack.c.l.s4 286326784
        %v5885 = vunpack.c.0.s8 %v5884
        %v5886 = vlaneseq
        %v5887 = vshrl.u32 %v5886, 7
        %v5888 = vsub.s32 %v5885, %v5887
        %v5889 = vrot.slane %v5851, %v5888
        %v5891 = vunpack.c.l.s4 286326784
        %v5892 = vunpack.c.0.s8 %v5891
        %v5893 = vlaneseq
        %v5894 = vshrl.u32 %v5893, 7
        %v5895 = vsub.s32 %v5892, %v5894
        %v5896 = vrot.slane %v5852, %v5895
        %v5898 = vunpack.c.l.s4 286326784
        %v5899 = vunpack.c.0.s8 %v5898
        %v5900 = vlaneseq
        %v5901 = vshrl.u32 %v5900, 7
        %v5902 = vsub.s32 %v5899, %v5901
        %v5903 = vrot.slane %v5853, %v5902
        %v5905 = vunpack.c.l.s4 286326784
        %v5906 = vunpack.c.0.s8 %v5905
        %v5907 = vlaneseq
        %v5908 = vshrl.u32 %v5907, 7
        %v5909 = vsub.s32 %v5906, %v5908
        %v5910 = vrot.slane %v5854, %v5909
        %5911 = vrot.lane.b32.xlu0 %v5861, 1
        %v5912 = vpop.permute.xlu0 %5911
        %5913 = vrot.lane.b32.xlu0 %v5868, 1
        %v5914 = vpop.permute.xlu0 %5913
        %5915 = vrot.lane.b32.xlu0 %v5875, 1
        %v5916 = vpop.permute.xlu0 %5915
        %5917 = vrot.lane.b32.xlu0 %v5882, 1
        %v5918 = vpop.permute.xlu0 %5917
        %5919 = vrot.lane.b32.xlu0 %v5889, 1
        %v5920 = vpop.permute.xlu0 %5919
        %5921 = vrot.lane.b32.xlu0 %v5896, 1
        %v5922 = vpop.permute.xlu0 %5921
        %5923 = vrot.lane.b32.xlu0 %v5903, 1
        %v5924 = vpop.permute.xlu0 %5923
        %5925 = vrot.lane.b32.xlu0 %v5910, 1
        %v5926 = vpop.permute.xlu0 %5925
        %v5935 = vld [vmem:[#allocation3 + $0x4] sm:$0x1]
        %v5936 = vsel %vm954, %v5912, %v5935
        %5937 = vst [vmem:[#allocation3 + $0x4] sm:$0x1] %v5936
        %v5938 = vld [vmem:[#allocation3 + $0xc] sm:$0x1]
        %v5939 = vsel %vm954, %v5914, %v5938
        %5940 = vst [vmem:[#allocation3 + $0xc] sm:$0x1] %v5939
        %v5941 = vld [vmem:[#allocation3 + $0x14] sm:$0x1]
        %v5942 = vsel %vm954, %v5916, %v5941
        %5943 = vst [vmem:[#allocation3 + $0x14] sm:$0x1] %v5942
        %v5944 = vld [vmem:[#allocation3 + $0x1c] sm:$0x1]
        %v5945 = vsel %vm954, %v5918, %v5944
        %5946 = vst [vmem:[#allocation3 + $0x1c] sm:$0x1] %v5945
        %v5947 = vld [vmem:[#allocation3 + $0x24] sm:$0x1]
        %v5948 = vsel %vm954, %v5920, %v5947
        %5949 = vst [vmem:[#allocation3 + $0x24] sm:$0x1] %v5948
        %v5950 = vld [vmem:[#allocation3 + $0x2c] sm:$0x1]
        %v5951 = vsel %vm954, %v5922, %v5950
        %5952 = vst [vmem:[#allocation3 + $0x2c] sm:$0x1] %v5951
        %v5953 = vld [vmem:[#allocation3 + $0x34] sm:$0x1]
        %v5954 = vsel %vm954, %v5924, %v5953
        %5955 = vst [vmem:[#allocation3 + $0x34] sm:$0x1] %v5954
        %v5956 = vld [vmem:[#allocation3 + $0x3c] sm:$0x1]
        %v5957 = vsel %vm954, %v5926, %v5956
        %5958 = vst [vmem:[#allocation3 + $0x3c] sm:$0x1] %v5957
        %v5959 = vld [vmem:[#allocation2 + $0x4] sm:$0x1]
        %v5960 = vld [vmem:[#allocation2 + $0xc] sm:$0x1]
        %v5961 = vld [vmem:[#allocation2 + $0x14] sm:$0x1]
        %v5962 = vld [vmem:[#allocation2 + $0x1c] sm:$0x1]
        %v5963 = vld [vmem:[#allocation2 + $0x24] sm:$0x1]
        %v5964 = vld [vmem:[#allocation2 + $0x2c] sm:$0x1]
        %v5965 = vld [vmem:[#allocation2 + $0x34] sm:$0x1]
        %v5966 = vld [vmem:[#allocation2 + $0x3c] sm:$0x1]
        %v5967 = vld [vmem:[#allocation2 + $0x4] sm:$0x2]
        %v5968 = vld [vmem:[#allocation2 + $0xc] sm:$0x2]
        %v5969 = vld [vmem:[#allocation2 + $0x14] sm:$0x2]
        %v5970 = vld [vmem:[#allocation2 + $0x1c] sm:$0x2]
        %v5971 = vld [vmem:[#allocation2 + $0x24] sm:$0x2]
        %v5972 = vld [vmem:[#allocation2 + $0x2c] sm:$0x2]
        %v5973 = vld [vmem:[#allocation2 + $0x34] sm:$0x2]
        %v5974 = vld [vmem:[#allocation2 + $0x3c] sm:$0x2]
        %v5983 = vunpack.c.l.b16 %v5959
        %v5984 = vunpack.c.l.b16 %v5960
        %v5985 = vunpack.c.l.b16 %v5961
        %v5986 = vunpack.c.l.b16 %v5962
        %v5987 = vunpack.c.l.b16 %v5963
        %v5988 = vunpack.c.l.b16 %v5964
        %v5989 = vunpack.c.l.b16 %v5965
        %v5990 = vunpack.c.l.b16 %v5966
        %v5991 = vpack.c.b16 %v5983, %v5983
        %v5992 = vpack.c.b16 %v5984, %v5984
        %v5993 = vpack.c.b16 %v5985, %v5985
        %v5994 = vpack.c.b16 %v5986, %v5986
        %v5995 = vpack.c.b16 %v5987, %v5987
        %v5996 = vpack.c.b16 %v5988, %v5988
        %v5997 = vpack.c.b16 %v5989, %v5989
        %v5998 = vpack.c.b16 %v5990, %v5990
        %v5999 = vunpack.c.l.b16 %v5991
        %v6000 = vunpack.c.l.b16 %v5992
        %v6001 = vunpack.c.l.b16 %v5993
        %v6002 = vunpack.c.l.b16 %v5994
        %v6003 = vunpack.c.l.b16 %v5995
        %v6004 = vunpack.c.l.b16 %v5996
        %v6005 = vunpack.c.l.b16 %v5997
        %v6006 = vunpack.c.l.b16 %v5998
        %v6007 = vrot.slane %v5999, 1
        %v6008 = vsel %vm757, %v6000, %v6007
        %v6009 = vrot.slane %v6001, 7
        %v6010 = vsel %vm760, %v6009, %v6008
        %v6011 = vrot.slane %v6002, 6
        %v6012 = vsel %vm763, %v6011, %v6010
        %v6013 = vrot.slane %v6003, 5
        %v6014 = vsel %vm2765, %v6013, %v6012
        %v6015 = vrot.slane %v6004, 4
        %v6016 = vsel %vm2768, %v6015, %v6014
        %v6017 = vrot.slane %v6005, 3
        %v6018 = vsel %vm2771, %v6017, %v6016
        %v6019 = vrot.slane %v6006, 2
        %v6020 = vsel %vm2774, %v6019, %v6018
        %v6021 = vpack.c.b16 %v6020, %v6020
        %6022 = vrot.lane.b32.xlu0 %v6021, 127
        %v6023 = vpop.permute.xlu0 %6022
        %6024 = vrot.lane.b32.xlu0 %v6021, 126
        %v6025 = vpop.permute.xlu0 %6024
        %v6034 = vunpack.c.l.b16 %v5967
        %v6035 = vunpack.c.l.b16 %v5968
        %v6036 = vunpack.c.l.b16 %v5969
        %v6037 = vunpack.c.l.b16 %v5970
        %v6038 = vunpack.c.l.b16 %v5971
        %v6039 = vunpack.c.l.b16 %v5972
        %v6040 = vunpack.c.l.b16 %v5973
        %v6041 = vunpack.c.l.b16 %v5974
        %v6042 = vpack.c.b16 %v6034, %v6034
        %v6043 = vpack.c.b16 %v6035, %v6035
        %v6044 = vpack.c.b16 %v6036, %v6036
        %v6045 = vpack.c.b16 %v6037, %v6037
        %v6046 = vpack.c.b16 %v6038, %v6038
        %v6047 = vpack.c.b16 %v6039, %v6039
        %v6048 = vpack.c.b16 %v6040, %v6040
        %v6049 = vpack.c.b16 %v6041, %v6041
        %v6050 = vunpack.c.l.b16 %v6042
        %v6051 = vunpack.c.l.b16 %v6043
        %v6052 = vunpack.c.l.b16 %v6044
        %v6053 = vunpack.c.l.b16 %v6045
        %v6054 = vunpack.c.l.b16 %v6046
        %v6055 = vunpack.c.l.b16 %v6047
        %v6056 = vunpack.c.l.b16 %v6048
        %v6057 = vunpack.c.l.b16 %v6049
        %v6058 = vrot.slane %v6050, 2
        %v6059 = vrot.slane %v6051, 1
        %v6060 = vsel %vm757, %v6059, %v6058
        %v6061 = vsel %vm760, %v6052, %v6060
        %v6062 = vrot.slane %v6053, 7
        %v6063 = vsel %vm763, %v6062, %v6061
        %v6064 = vrot.slane %v6054, 6
        %v6065 = vsel %vm2765, %v6064, %v6063
        %v6066 = vrot.slane %v6055, 5
        %v6067 = vsel %vm2768, %v6066, %v6065
        %v6068 = vrot.slane %v6056, 4
        %v6069 = vsel %vm2771, %v6068, %v6067
        %v6070 = vrot.slane %v6057, 3
        %v6071 = vsel %vm2774, %v6070, %v6069
        %v6072 = vpack.c.b16 %v6071, %v6071
        %6073 = vrot.lane.b32.xlu0 %v6072, 127
        %v6074 = vpop.permute.xlu0 %6073
        %6075 = vrot.lane.b32.xlu0 %v6072, 126
        %v6076 = vpop.permute.xlu0 %6075
        %v6077 = vrot.slane %v6050, 3
        %v6078 = vrot.slane %v6051, 2
        %v6079 = vsel %vm757, %v6078, %v6077
        %v6080 = vrot.slane %v6052, 1
        %v6081 = vsel %vm760, %v6080, %v6079
        %v6082 = vsel %vm763, %v6053, %v6081
        %v6083 = vrot.slane %v6054, 7
        %v6084 = vsel %vm2765, %v6083, %v6082
        %v6085 = vrot.slane %v6055, 6
        %v6086 = vsel %vm2768, %v6085, %v6084
        %v6087 = vrot.slane %v6056, 5
        %v6088 = vsel %vm2771, %v6087, %v6086
        %v6089 = vrot.slane %v6057, 4
        %v6090 = vsel %vm2774, %v6089, %v6088
        %v6091 = vpack.c.b16 %v6090, %v6090
        %6092 = vrot.lane.b32.xlu0 %v6091, 127
        %v6093 = vpop.permute.xlu0 %6092
        %6094 = vrot.lane.b32.xlu0 %v6091, 126
        %v6095 = vpop.permute.xlu0 %6094
        %v6098 = vsel %vm2874, %v6021, %v6023
        %v6102 = vsel %vm2874, %v6025, %v6072
        %v6106 = vsel %vm2874, %v6074, %v6076
        %v6110 = vsel %vm2874, %v6091, %v6093
        %v6112 = vld [vmem:[%s4] sm:$0xf]
        %v6114 = vsel %vm2892, %v6112, 0
        %v6117 = vsel %vm2874, %v6095, 0
        %6119 = vmatprep.subr.bf16.mxu0 0
        %6120 = vmatpush1.bf16.msra.mxu0 0
        %6121 = vmatprep.subr.bf16.mxu0 0
        %6122 = vmatpush1.bf16.msra.mxu0 0
        %6123 = vmatprep.subr.bf16.mxu0 0
        %6124 = vmatpush1.bf16.msra.mxu0 0
        %6125 = vmatprep.subr.bf16.mxu0 0
        %6126 = vmatpush1.bf16.msra.mxu0 %v6117
        %6127 = vmatprep.subr.bf16.mxu0 0
        %6128 = vmatpush1.bf16.msra.mxu0 %v6110
        %6129 = vmatprep.subr.bf16.mxu0 0
        %6130 = vmatpush1.bf16.msra.mxu0 %v6106
        %6131 = vmatprep.subr.bf16.mxu0 0
        %6132 = vmatpush1.bf16.msra.mxu0 %v6102
        %6133 = vmatprep.subr.bf16.mxu0 0
        %6134 = vmatpush1.bf16.msra.mxu0 %v6098
        %6135 = vmatprep.subr.bf16.mxu0 0
        %6136 = vmatpush2.bf16.msra.mxu0 0
        %6137 = vmatprep.subr.bf16.mxu0 0
        %6138 = vmatpush2.bf16.msra.mxu0 0
        %6139 = vmatprep.subr.bf16.mxu0 0
        %6140 = vmatpush2.bf16.msra.mxu0 0
        %6141 = vmatprep.subr.bf16.mxu0 0
        %6142 = vmatpush2.bf16.msra.mxu0 0
        %6143 = vmatprep.subr.bf16.mxu0 0
        %6144 = vmatpush2.bf16.msra.mxu0 0
        %6145 = vmatprep.subr.bf16.mxu0 0
        %6146 = vmatpush2.bf16.msra.mxu0 0
        %6147 = vmatprep.subr.bf16.mxu0 0
        %6148 = vmatpush2.bf16.msra.mxu0 0
        %6149 = vmatprep.subr.bf16.mxu0 0
        %6150 = vmatpush2.bf16.msra.mxu0 0
        %6151 = vmatprep.mubr.bf16.mxu0 0
        %6152 = vmatmul.mubr.bf16.gmra.mxu0 %v6114
        %v6153 = vpop.f32.mrf.mxu0
        %v6154 = vadd.f32 0.0, %v6153
        %v6155 = vpop.f32.mrf.mxu0
        %v6156 = vpop.f32.mrf.mxu0
        %v6157 = vpop.f32.mrf.mxu0
        %6158 = vdwg.mxu0
        %v6159 = vmul.f32 %v6154, %v2942
        %v6160 = vadd.f32 %v6159, %v2948
        %v6161 = vmax.f32 %v6160, 0.0
        %v6162 = vpack.c.bf16 %v6161, %v6161
        %v6165 = vunpack.c.l.s4 1966171168
        %v6166 = vunpack.c.0.s8 %v6165
        %v6167 = vlaneseq
        %v6168 = vshrl.u32 %v6167, 7
        %v6169 = vsub.s32 %v6166, %v6168
        %v6170 = vrot.slane %v6162, %v6169
        %v6171 = vcombine.high %v6170, %v6170
        %v6173 = vunpack.c.l.s4 1966171168
        %v6174 = vunpack.c.0.s8 %v6173
        %v6175 = vlaneseq
        %v6176 = vshrl.u32 %v6175, 7
        %v6177 = vsub.s32 %v6174, %v6176
        %v6178 = vrot.slane %v6170, %v6177
        %v6180 = vunpack.c.l.s4 1966171168
        %v6181 = vunpack.c.0.s8 %v6180
        %v6182 = vlaneseq
        %v6183 = vshrl.u32 %v6182, 7
        %v6184 = vsub.s32 %v6181, %v6183
        %v6185 = vrot.slane %v6171, %v6184
        %v6186 = vcombine.high %v6178, %v6178
        %v6187 = vcombine.high %v6185, %v6185
        %v6188 = vunpack.i.l.s16 %v6178
        %v6189 = vunpack.i.h.s16 %v6178
        %v6190 = vunpack.i.l.s16 %v6185
        %v6191 = vunpack.i.h.s16 %v6185
        %v6192 = vunpack.i.l.s16 %v6186
        %v6193 = vunpack.i.h.s16 %v6186
        %v6194 = vunpack.i.l.s16 %v6187
        %v6195 = vunpack.i.h.s16 %v6187
        %v6196 = vpack.i.b16 %v6188, %v6188
        %v6197 = vpack.i.b16 %v6189, %v6189
        %v6198 = vpack.i.b16 %v6190, %v6190
        %v6199 = vpack.i.b16 %v6191, %v6191
        %v6200 = vpack.i.b16 %v6192, %v6192
        %v6201 = vpack.i.b16 %v6193, %v6193
        %v6202 = vpack.i.b16 %v6194, %v6194
        %v6203 = vpack.i.b16 %v6195, %v6195
        %v6205 = vunpack.c.l.s4 286326784
        %v6206 = vunpack.c.0.s8 %v6205
        %v6207 = vlaneseq
        %v6208 = vshrl.u32 %v6207, 7
        %v6209 = vsub.s32 %v6206, %v6208
        %v6210 = vrot.slane %v6196, %v6209
        %v6212 = vunpack.c.l.s4 286326784
        %v6213 = vunpack.c.0.s8 %v6212
        %v6214 = vlaneseq
        %v6215 = vshrl.u32 %v6214, 7
        %v6216 = vsub.s32 %v6213, %v6215
        %v6217 = vrot.slane %v6197, %v6216
        %v6219 = vunpack.c.l.s4 286326784
        %v6220 = vunpack.c.0.s8 %v6219
        %v6221 = vlaneseq
        %v6222 = vshrl.u32 %v6221, 7
        %v6223 = vsub.s32 %v6220, %v6222
        %v6224 = vrot.slane %v6198, %v6223
        %v6226 = vunpack.c.l.s4 286326784
        %v6227 = vunpack.c.0.s8 %v6226
        %v6228 = vlaneseq
        %v6229 = vshrl.u32 %v6228, 7
        %v6230 = vsub.s32 %v6227, %v6229
        %v6231 = vrot.slane %v6199, %v6230
        %v6233 = vunpack.c.l.s4 286326784
        %v6234 = vunpack.c.0.s8 %v6233
        %v6235 = vlaneseq
        %v6236 = vshrl.u32 %v6235, 7
        %v6237 = vsub.s32 %v6234, %v6236
        %v6238 = vrot.slane %v6200, %v6237
        %v6240 = vunpack.c.l.s4 286326784
        %v6241 = vunpack.c.0.s8 %v6240
        %v6242 = vlaneseq
        %v6243 = vshrl.u32 %v6242, 7
        %v6244 = vsub.s32 %v6241, %v6243
        %v6245 = vrot.slane %v6201, %v6244
        %v6247 = vunpack.c.l.s4 286326784
        %v6248 = vunpack.c.0.s8 %v6247
        %v6249 = vlaneseq
        %v6250 = vshrl.u32 %v6249, 7
        %v6251 = vsub.s32 %v6248, %v6250
        %v6252 = vrot.slane %v6202, %v6251
        %v6254 = vunpack.c.l.s4 286326784
        %v6255 = vunpack.c.0.s8 %v6254
        %v6256 = vlaneseq
        %v6257 = vshrl.u32 %v6256, 7
        %v6258 = vsub.s32 %v6255, %v6257
        %v6259 = vrot.slane %v6203, %v6258
        %6260 = vrot.lane.b32.xlu0 %v6210, 1
        %v6261 = vpop.permute.xlu0 %6260
        %6262 = vrot.lane.b32.xlu0 %v6217, 1
        %v6263 = vpop.permute.xlu0 %6262
        %6264 = vrot.lane.b32.xlu0 %v6224, 1
        %v6265 = vpop.permute.xlu0 %6264
        %6266 = vrot.lane.b32.xlu0 %v6231, 1
        %v6267 = vpop.permute.xlu0 %6266
        %6268 = vrot.lane.b32.xlu0 %v6238, 1
        %v6269 = vpop.permute.xlu0 %6268
        %6270 = vrot.lane.b32.xlu0 %v6245, 1
        %v6271 = vpop.permute.xlu0 %6270
        %6272 = vrot.lane.b32.xlu0 %v6252, 1
        %v6273 = vpop.permute.xlu0 %6272
        %6274 = vrot.lane.b32.xlu0 %v6259, 1
        %v6275 = vpop.permute.xlu0 %6274
        %v6284 = vld [vmem:[#allocation3 + $0x4] sm:$0x1]
        %v6285 = vsel %vm1040, %v6261, %v6284
        %6286 = vst [vmem:[#allocation3 + $0x4] sm:$0x1] %v6285
        %v6287 = vld [vmem:[#allocation3 + $0xc] sm:$0x1]
        %v6288 = vsel %vm1040, %v6263, %v6287
        %6289 = vst [vmem:[#allocation3 + $0xc] sm:$0x1] %v6288
        %v6290 = vld [vmem:[#allocation3 + $0x14] sm:$0x1]
        %v6291 = vsel %vm1040, %v6265, %v6290
        %6292 = vst [vmem:[#allocation3 + $0x14] sm:$0x1] %v6291
        %v6293 = vld [vmem:[#allocation3 + $0x1c] sm:$0x1]
        %v6294 = vsel %vm1040, %v6267, %v6293
        %6295 = vst [vmem:[#allocation3 + $0x1c] sm:$0x1] %v6294
        %v6296 = vld [vmem:[#allocation3 + $0x24] sm:$0x1]
        %v6297 = vsel %vm1040, %v6269, %v6296
        %6298 = vst [vmem:[#allocation3 + $0x24] sm:$0x1] %v6297
        %v6299 = vld [vmem:[#allocation3 + $0x2c] sm:$0x1]
        %v6300 = vsel %vm1040, %v6271, %v6299
        %6301 = vst [vmem:[#allocation3 + $0x2c] sm:$0x1] %v6300
        %v6302 = vld [vmem:[#allocation3 + $0x34] sm:$0x1]
        %v6303 = vsel %vm1040, %v6273, %v6302
        %6304 = vst [vmem:[#allocation3 + $0x34] sm:$0x1] %v6303
        %v6305 = vld [vmem:[#allocation3 + $0x3c] sm:$0x1]
        %v6306 = vsel %vm1040, %v6275, %v6305
        %6307 = vst [vmem:[#allocation3 + $0x3c] sm:$0x1] %v6306
        %p6308 = scmp.eq.s32.totalorder %s29, 0
        // Predicated region
        $region99: #{up_forward.1} parent=93 // pred_check
          %p6309 = pneg %p6308
        $region100: #{up_forward.1} parent=93 // pred_check_branch
          %6311 = sbr.rel (%p6309) target = $region102
        $region101: #{up_forward.1} parent=93 // pred_region
          %vm6312 = vcmask 270336
          %vm6313 = vmand %vm6312, %vm953
          %v6314 = vld [vmem:[#allocation3] sm:$0x1]
          %v6315 = vsel %vm6313, 0, %v6314
          %6316 = vst [vmem:[#allocation3] sm:$0x1] %v6315
          %v6317 = vld [vmem:[#allocation3 + $0x8] sm:$0x1]
          %v6318 = vsel %vm6313, 0, %v6317
          %6319 = vst [vmem:[#allocation3 + $0x8] sm:$0x1] %v6318
          %v6320 = vld [vmem:[#allocation3 + $0x10] sm:$0x1]
          %v6321 = vsel %vm6313, 0, %v6320
          %6322 = vst [vmem:[#allocation3 + $0x10] sm:$0x1] %v6321
          %v6323 = vld [vmem:[#allocation3 + $0x18] sm:$0x1]
          %v6324 = vsel %vm6313, 0, %v6323
          %6325 = vst [vmem:[#allocation3 + $0x18] sm:$0x1] %v6324
          %v6326 = vld [vmem:[#allocation3 + $0x20] sm:$0x1]
          %v6327 = vsel %vm6313, 0, %v6326
          %6328 = vst [vmem:[#allocation3 + $0x20] sm:$0x1] %v6327
          %v6329 = vld [vmem:[#allocation3 + $0x28] sm:$0x1]
          %v6330 = vsel %vm6313, 0, %v6329
          %6331 = vst [vmem:[#allocation3 + $0x28] sm:$0x1] %v6330
          %v6332 = vld [vmem:[#allocation3 + $0x30] sm:$0x1]
          %v6333 = vsel %vm6313, 0, %v6332
          %6334 = vst [vmem:[#allocation3 + $0x30] sm:$0x1] %v6333
          %v6335 = vld [vmem:[#allocation3 + $0x38] sm:$0x1]
          %v6336 = vsel %vm6313, 0, %v6335
          %6337 = vst [vmem:[#allocation3 + $0x38] sm:$0x1] %v6336
        $region102: #{up_forward.1} parent=93 // pred_fallthru
          _
        %p6338 = scmp.eq.s32.totalorder %s29, 3
        // Predicated region
        $region103: #{up_forward.1} parent=93 // pred_check
          %p6339 = pneg %p6338
        $region104: #{up_forward.1} parent=93 // pred_check_branch
          %6341 = sbr.rel (%p6339) target = $region106
        $region105: #{up_forward.1} parent=93 // pred_region
          %vm6342 = vcmask 270336
          %vm6343 = vmand %vm6342, %vm1039
          %v6344 = vld [vmem:[#allocation3 + $0x4] sm:$0x1]
          %v6345 = vsel %vm6343, 0, %v6344
          %6346 = vst [vmem:[#allocation3 + $0x4] sm:$0x1] %v6345
          %v6347 = vld [vmem:[#allocation3 + $0xc] sm:$0x1]
          %v6348 = vsel %vm6343, 0, %v6347
          %6349 = vst [vmem:[#allocation3 + $0xc] sm:$0x1] %v6348
          %v6350 = vld [vmem:[#allocation3 + $0x14] sm:$0x1]
          %v6351 = vsel %vm6343, 0, %v6350
          %6352 = vst [vmem:[#allocation3 + $0x14] sm:$0x1] %v6351
          %v6353 = vld [vmem:[#allocation3 + $0x1c] sm:$0x1]
          %v6354 = vsel %vm6343, 0, %v6353
          %6355 = vst [vmem:[#allocation3 + $0x1c] sm:$0x1] %v6354
          %v6356 = vld [vmem:[#allocation3 + $0x24] sm:$0x1]
          %v6357 = vsel %vm6343, 0, %v6356
          %6358 = vst [vmem:[#allocation3 + $0x24] sm:$0x1] %v6357
          %v6359 = vld [vmem:[#allocation3 + $0x2c] sm:$0x1]
          %v6360 = vsel %vm6343, 0, %v6359
          %6361 = vst [vmem:[#allocation3 + $0x2c] sm:$0x1] %v6360
          %v6362 = vld [vmem:[#allocation3 + $0x34] sm:$0x1]
          %v6363 = vsel %vm6343, 0, %v6362
          %6364 = vst [vmem:[#allocation3 + $0x34] sm:$0x1] %v6363
          %v6365 = vld [vmem:[#allocation3 + $0x3c] sm:$0x1]
          %v6366 = vsel %vm6343, 0, %v6365
          %6367 = vst [vmem:[#allocation3 + $0x3c] sm:$0x1] %v6366
        $region106: #{up_forward.1} parent=93 // pred_fallthru
          _
        %v6368 = vld [vmem:[%s8] sm:$0xff]
        %v6369 = vld [vmem:[%s9] sm:$0xff]
        %v6370 = vld [vmem:[#allocation3] sm:$0x1]
        %v6371 = vld [vmem:[#allocation3 + $0x8] sm:$0x1]
        %v6372 = vld [vmem:[#allocation3 + $0x10] sm:$0x1]
        %v6373 = vld [vmem:[#allocation3 + $0x18] sm:$0x1]
        %v6374 = vld [vmem:[#allocation3 + $0x20] sm:$0x1]
        %v6375 = vld [vmem:[#allocation3 + $0x28] sm:$0x1]
        %v6376 = vld [vmem:[#allocation3 + $0x30] sm:$0x1]
        %v6377 = vld [vmem:[#allocation3 + $0x38] sm:$0x1]
        %v6378 = vld [vmem:[#allocation3] sm:$0x2]
        %v6379 = vld [vmem:[#allocation3 + $0x8] sm:$0x2]
        %v6380 = vld [vmem:[#allocation3 + $0x10] sm:$0x2]
        %v6381 = vld [vmem:[#allocation3 + $0x18] sm:$0x2]
        %v6382 = vld [vmem:[#allocation3 + $0x20] sm:$0x2]
        %v6383 = vld [vmem:[#allocation3 + $0x28] sm:$0x2]
        %v6384 = vld [vmem:[#allocation3 + $0x30] sm:$0x2]
        %v6385 = vld [vmem:[#allocation3 + $0x38] sm:$0x2]
        %v6394 = vunpack.c.l.b16 %v6370
        %v6395 = vunpack.c.l.b16 %v6371
        %v6396 = vunpack.c.l.b16 %v6372
        %v6397 = vunpack.c.l.b16 %v6373
        %v6398 = vunpack.c.l.b16 %v6374
        %v6399 = vunpack.c.l.b16 %v6375
        %v6400 = vunpack.c.l.b16 %v6376
        %v6401 = vunpack.c.l.b16 %v6377
        %v6402 = vpack.c.b16 %v6394, %v6394
        %v6403 = vpack.c.b16 %v6395, %v6395
        %v6404 = vpack.c.b16 %v6396, %v6396
        %v6405 = vpack.c.b16 %v6397, %v6397
        %v6406 = vpack.c.b16 %v6398, %v6398
        %v6407 = vpack.c.b16 %v6399, %v6399
        %v6408 = vpack.c.b16 %v6400, %v6400
        %v6409 = vpack.c.b16 %v6401, %v6401
        %v6410 = vunpack.c.l.b16 %v6402
        %v6411 = vunpack.c.l.b16 %v6403
        %v6412 = vunpack.c.l.b16 %v6404
        %v6413 = vunpack.c.l.b16 %v6405
        %v6414 = vunpack.c.l.b16 %v6406
        %v6415 = vunpack.c.l.b16 %v6407
        %v6416 = vunpack.c.l.b16 %v6408
        %v6417 = vunpack.c.l.b16 %v6409
        %v6418 = vrot.slane %v6411, 7
        %v6419 = vsel %vm757, %v6418, %v6410
        %v6420 = vrot.slane %v6412, 6
        %v6421 = vsel %vm760, %v6420, %v6419
        %v6422 = vrot.slane %v6413, 5
        %v6423 = vsel %vm763, %v6422, %v6421
        %v6424 = vrot.slane %v6414, 4
        %v6425 = vsel %vm2765, %v6424, %v6423
        %v6426 = vrot.slane %v6415, 3
        %v6427 = vsel %vm2768, %v6426, %v6425
        %v6428 = vrot.slane %v6416, 2
        %v6429 = vsel %vm2771, %v6428, %v6427
        %v6430 = vrot.slane %v6417, 1
        %v6431 = vsel %vm2774, %v6430, %v6429
        %v6432 = vpack.c.b16 %v6431, %v6431
        %v6433 = vunpack.c.h.b16 %v6402
        %v6434 = vunpack.c.h.b16 %v6403
        %v6435 = vunpack.c.h.b16 %v6404
        %v6436 = vunpack.c.h.b16 %v6405
        %v6437 = vunpack.c.h.b16 %v6406
        %v6438 = vunpack.c.h.b16 %v6407
        %v6439 = vunpack.c.h.b16 %v6408
        %v6440 = vunpack.c.h.b16 %v6409
        %v6441 = vrot.slane %v6434, 7
        %v6442 = vsel %vm757, %v6441, %v6433
        %v6443 = vrot.slane %v6435, 6
        %v6444 = vsel %vm760, %v6443, %v6442
        %v6445 = vrot.slane %v6436, 5
        %v6446 = vsel %vm763, %v6445, %v6444
        %v6447 = vrot.slane %v6437, 4
        %v6448 = vsel %vm2765, %v6447, %v6446
        %v6449 = vrot.slane %v6438, 3
        %v6450 = vsel %vm2768, %v6449, %v6448
        %v6451 = vrot.slane %v6439, 2
        %v6452 = vsel %vm2771, %v6451, %v6450
        %v6453 = vrot.slane %v6440, 1
        %v6454 = vsel %vm2774, %v6453, %v6452
        %v6455 = vpack.c.b16 %v6454, %v6454
        %6456 = vrot.lane.b32.xlu0 %v6455, 127
        %v6457 = vpop.permute.xlu0 %6456
        %6458 = vrot.lane.b32.xlu0 %v6432, 126
        %v6459 = vpop.permute.xlu0 %6458
        %v6460 = vrot.slane %v6410, 1
        %v6461 = vsel %vm757, %v6411, %v6460
        %v6462 = vrot.slane %v6412, 7
        %v6463 = vsel %vm760, %v6462, %v6461
        %v6464 = vrot.slane %v6413, 6
        %v6465 = vsel %vm763, %v6464, %v6463
        %v6466 = vrot.slane %v6414, 5
        %v6467 = vsel %vm2765, %v6466, %v6465
        %v6468 = vrot.slane %v6415, 4
        %v6469 = vsel %vm2768, %v6468, %v6467
        %v6470 = vrot.slane %v6416, 3
        %v6471 = vsel %vm2771, %v6470, %v6469
        %v6472 = vrot.slane %v6417, 2
        %v6473 = vsel %vm2774, %v6472, %v6471
        %v6474 = vpack.c.b16 %v6473, %v6473
        %6475 = vrot.lane.b32.xlu0 %v6474, 127
        %v6476 = vpop.permute.xlu0 %6475
        %6477 = vrot.lane.b32.xlu0 %v6474, 126
        %v6478 = vpop.permute.xlu0 %6477
        %v6487 = vunpack.c.l.b16 %v6378
        %v6488 = vunpack.c.l.b16 %v6379
        %v6489 = vunpack.c.l.b16 %v6380
        %v6490 = vunpack.c.l.b16 %v6381
        %v6491 = vunpack.c.l.b16 %v6382
        %v6492 = vunpack.c.l.b16 %v6383
        %v6493 = vunpack.c.l.b16 %v6384
        %v6494 = vunpack.c.l.b16 %v6385
        %v6495 = vpack.c.b16 %v6487, %v6487
        %v6496 = vpack.c.b16 %v6488, %v6488
        %v6497 = vpack.c.b16 %v6489, %v6489
        %v6498 = vpack.c.b16 %v6490, %v6490
        %v6499 = vpack.c.b16 %v6491, %v6491
        %v6500 = vpack.c.b16 %v6492, %v6492
        %v6501 = vpack.c.b16 %v6493, %v6493
        %v6502 = vpack.c.b16 %v6494, %v6494
        %v6503 = vunpack.c.l.b16 %v6495
        %v6504 = vunpack.c.l.b16 %v6496
        %v6505 = vunpack.c.l.b16 %v6497
        %v6506 = vunpack.c.l.b16 %v6498
        %v6507 = vunpack.c.l.b16 %v6499
        %v6508 = vunpack.c.l.b16 %v6500
        %v6509 = vunpack.c.l.b16 %v6501
        %v6510 = vunpack.c.l.b16 %v6502
        %v6511 = vrot.slane %v6503, 2
        %v6512 = vrot.slane %v6504, 1
        %v6513 = vsel %vm757, %v6512, %v6511
        %v6514 = vsel %vm760, %v6505, %v6513
        %v6515 = vrot.slane %v6506, 7
        %v6516 = vsel %vm763, %v6515, %v6514
        %v6517 = vrot.slane %v6507, 6
        %v6518 = vsel %vm2765, %v6517, %v6516
        %v6519 = vrot.slane %v6508, 5
        %v6520 = vsel %vm2768, %v6519, %v6518
        %v6521 = vrot.slane %v6509, 4
        %v6522 = vsel %vm2771, %v6521, %v6520
        %v6523 = vrot.slane %v6510, 3
        %v6524 = vsel %vm2774, %v6523, %v6522
        %v6525 = vpack.c.b16 %v6524, %v6524
        %6526 = vrot.lane.b32.xlu0 %v6525, 127
        %v6527 = vpop.permute.xlu0 %6526
        %6528 = vrot.lane.b32.xlu0 %v6525, 126
        %v6529 = vpop.permute.xlu0 %6528
        %v6532 = vsel %vm2874, %v6432, %v6457
        %v6536 = vsel %vm2874, %v6459, %v6474
        %v6540 = vsel %vm2874, %v6476, %v6478
        %v6544 = vsel %vm2874, %v6525, %v6527
        %v6546 = vld [vmem:[%s7] sm:$0xf]
        %v6548 = vsel %vm2892, %v6546, 0
        %v6551 = vsel %vm2874, %v6529, 0
        %6553 = vmatprep.subr.bf16.mxu0 0
        %6554 = vmatpush1.bf16.msra.mxu0 0
        %6555 = vmatprep.subr.bf16.mxu0 0
        %6556 = vmatpush1.bf16.msra.mxu0 0
        %6557 = vmatprep.subr.bf16.mxu0 0
        %6558 = vmatpush1.bf16.msra.mxu0 0
        %6559 = vmatprep.subr.bf16.mxu0 0
        %6560 = vmatpush1.bf16.msra.mxu0 %v6551
        %6561 = vmatprep.subr.bf16.mxu0 0
        %6562 = vmatpush1.bf16.msra.mxu0 %v6544
        %6563 = vmatprep.subr.bf16.mxu0 0
        %6564 = vmatpush1.bf16.msra.mxu0 %v6540
        %6565 = vmatprep.subr.bf16.mxu0 0
        %6566 = vmatpush1.bf16.msra.mxu0 %v6536
        %6567 = vmatprep.subr.bf16.mxu0 0
        %6568 = vmatpush1.bf16.msra.mxu0 %v6532
        %6569 = vmatprep.subr.bf16.mxu0 0
        %6570 = vmatpush2.bf16.msra.mxu0 0
        %6571 = vmatprep.subr.bf16.mxu0 0
        %6572 = vmatpush2.bf16.msra.mxu0 0
        %6573 = vmatprep.subr.bf16.mxu0 0
        %6574 = vmatpush2.bf16.msra.mxu0 0
        %6575 = vmatprep.subr.bf16.mxu0 0
        %6576 = vmatpush2.bf16.msra.mxu0 0
        %6577 = vmatprep.subr.bf16.mxu0 0
        %6578 = vmatpush2.bf16.msra.mxu0 0
        %6579 = vmatprep.subr.bf16.mxu0 0
        %6580 = vmatpush2.bf16.msra.mxu0 0
        %6581 = vmatprep.subr.bf16.mxu0 0
        %6582 = vmatpush2.bf16.msra.mxu0 0
        %6583 = vmatprep.subr.bf16.mxu0 0
        %6584 = vmatpush2.bf16.msra.mxu0 0
        %6585 = vmatprep.mubr.bf16.mxu0 0
        %6586 = vmatmul.mubr.bf16.gmra.mxu0 %v6548
        %v6587 = vpop.f32.mrf.mxu0
        %v6588 = vadd.f32 0.0, %v6587
        %v6589 = vpop.f32.mrf.mxu0
        %v6590 = vpop.f32.mrf.mxu0
        %v6591 = vpop.f32.mrf.mxu0
        %6592 = vdwg.mxu0
        %6594 = vset.pattern.permute.xlu0 0
        %6595 = vperm.xlu0 %6594, %v6368
        %v6596 = vpop.permute.xlu0 %6595
        %v6598 = vmul.f32 %v6588, %v6596
        %6600 = vset.pattern.permute.xlu0 0
        %6601 = vperm.xlu0 %6600, %v6369
        %v6602 = vpop.permute.xlu0 %6601
        %v6604 = vadd.f32 %v6598, %v6602
        %v6605 = vmax.f32 %v6604, 0.0
        %v6607 = vcombine.high %v6605, %v6605
        %v6609 = vunpack.c.l.s4 1966171168
        %v6610 = vunpack.c.0.s8 %v6609
        %v6611 = vlaneseq
        %v6612 = vshrl.u32 %v6611, 7
        %v6613 = vsub.s32 %v6610, %v6612
        %v6614 = vrot.slane %v6605, %v6613
        %v6616 = vunpack.c.l.s4 1966171168
        %v6617 = vunpack.c.0.s8 %v6616
        %v6618 = vlaneseq
        %v6619 = vshrl.u32 %v6618, 7
        %v6620 = vsub.s32 %v6617, %v6619
        %v6621 = vrot.slane %v6607, %v6620
        %v6622 = vcombine.high %v6614, %v6614
        %v6623 = vcombine.high %v6621, %v6621
        %v6625 = vunpack.c.l.s4 1966171168
        %v6626 = vunpack.c.0.s8 %v6625
        %v6627 = vlaneseq
        %v6628 = vshrl.u32 %v6627, 7
        %v6629 = vsub.s32 %v6626, %v6628
        %v6630 = vrot.slane %v6614, %v6629
        %v6632 = vunpack.c.l.s4 1966171168
        %v6633 = vunpack.c.0.s8 %v6632
        %v6634 = vlaneseq
        %v6635 = vshrl.u32 %v6634, 7
        %v6636 = vsub.s32 %v6633, %v6635
        %v6637 = vrot.slane %v6621, %v6636
        %v6639 = vunpack.c.l.s4 1966171168
        %v6640 = vunpack.c.0.s8 %v6639
        %v6641 = vlaneseq
        %v6642 = vshrl.u32 %v6641, 7
        %v6643 = vsub.s32 %v6640, %v6642
        %v6644 = vrot.slane %v6622, %v6643
        %v6646 = vunpack.c.l.s4 1966171168
        %v6647 = vunpack.c.0.s8 %v6646
        %v6648 = vlaneseq
        %v6649 = vshrl.u32 %v6648, 7
        %v6650 = vsub.s32 %v6647, %v6649
        %v6651 = vrot.slane %v6623, %v6650
        %v6652 = vcombine.high %v6630, %v6630
        %v6653 = vcombine.high %v6637, %v6637
        %v6654 = vcombine.high %v6644, %v6644
        %v6655 = vcombine.high %v6651, %v6651
        %vm6664 = vcmask 253952
        %6665 = vst.msk [vmem:[%s462] sm:$0x1] %vm6664, %v6630
        %6666 = vst.msk [vmem:[%s462 + $0x8] sm:$0x1] %vm6664, %v6644
        %6667 = vst.msk [vmem:[%s462 + $0x10] sm:$0x1] %vm6664, %v6652
        %6668 = vst.msk [vmem:[%s462 + $0x18] sm:$0x1] %vm6664, %v6654
        %6669 = vst.msk [vmem:[%s462 + $0x20] sm:$0x1] %vm6664, %v6637
        %6670 = vst.msk [vmem:[%s462 + $0x28] sm:$0x1] %vm6664, %v6651
        %6671 = vst.msk [vmem:[%s462 + $0x30] sm:$0x1] %vm6664, %v6653
        %6672 = vst.msk [vmem:[%s462 + $0x38] sm:$0x1] %vm6664, %v6655
        %v6673 = vld [vmem:[#allocation3] sm:$0x1]
        %v6674 = vld [vmem:[#allocation3 + $0x8] sm:$0x1]
        %v6675 = vld [vmem:[#allocation3 + $0x10] sm:$0x1]
        %v6676 = vld [vmem:[#allocation3 + $0x18] sm:$0x1]
        %v6677 = vld [vmem:[#allocation3 + $0x20] sm:$0x1]
        %v6678 = vld [vmem:[#allocation3 + $0x28] sm:$0x1]
        %v6679 = vld [vmem:[#allocation3 + $0x30] sm:$0x1]
        %v6680 = vld [vmem:[#allocation3 + $0x38] sm:$0x1]
        %v6681 = vld [vmem:[#allocation3] sm:$0x2]
        %v6682 = vld [vmem:[#allocation3 + $0x8] sm:$0x2]
        %v6683 = vld [vmem:[#allocation3 + $0x10] sm:$0x2]
        %v6684 = vld [vmem:[#allocation3 + $0x18] sm:$0x2]
        %v6685 = vld [vmem:[#allocation3 + $0x20] sm:$0x2]
        %v6686 = vld [vmem:[#allocation3 + $0x28] sm:$0x2]
        %v6687 = vld [vmem:[#allocation3 + $0x30] sm:$0x2]
        %v6688 = vld [vmem:[#allocation3 + $0x38] sm:$0x2]
        %v6697 = vunpack.c.l.b16 %v6673
        %v6698 = vunpack.c.l.b16 %v6674
        %v6699 = vunpack.c.l.b16 %v6675
        %v6700 = vunpack.c.l.b16 %v6676
        %v6701 = vunpack.c.l.b16 %v6677
        %v6702 = vunpack.c.l.b16 %v6678
        %v6703 = vunpack.c.l.b16 %v6679
        %v6704 = vunpack.c.l.b16 %v6680
        %v6705 = vpack.c.b16 %v6697, %v6697
        %v6706 = vpack.c.b16 %v6698, %v6698
        %v6707 = vpack.c.b16 %v6699, %v6699
        %v6708 = vpack.c.b16 %v6700, %v6700
        %v6709 = vpack.c.b16 %v6701, %v6701
        %v6710 = vpack.c.b16 %v6702, %v6702
        %v6711 = vpack.c.b16 %v6703, %v6703
        %v6712 = vpack.c.b16 %v6704, %v6704
        %v6713 = vunpack.c.l.b16 %v6705
        %v6714 = vunpack.c.l.b16 %v6706
        %v6715 = vunpack.c.l.b16 %v6707
        %v6716 = vunpack.c.l.b16 %v6708
        %v6717 = vunpack.c.l.b16 %v6709
        %v6718 = vunpack.c.l.b16 %v6710
        %v6719 = vunpack.c.l.b16 %v6711
        %v6720 = vunpack.c.l.b16 %v6712
        %v6721 = vrot.slane %v6713, 1
        %v6722 = vsel %vm757, %v6714, %v6721
        %v6723 = vrot.slane %v6715, 7
        %v6724 = vsel %vm760, %v6723, %v6722
        %v6725 = vrot.slane %v6716, 6
        %v6726 = vsel %vm763, %v6725, %v6724
        %v6727 = vrot.slane %v6717, 5
        %v6728 = vsel %vm2765, %v6727, %v6726
        %v6729 = vrot.slane %v6718, 4
        %v6730 = vsel %vm2768, %v6729, %v6728
        %v6731 = vrot.slane %v6719, 3
        %v6732 = vsel %vm2771, %v6731, %v6730
        %v6733 = vrot.slane %v6720, 2
        %v6734 = vsel %vm2774, %v6733, %v6732
        %v6735 = vpack.c.b16 %v6734, %v6734
        %6736 = vrot.lane.b32.xlu0 %v6735, 127
        %v6737 = vpop.permute.xlu0 %6736
        %6738 = vrot.lane.b32.xlu0 %v6735, 126
        %v6739 = vpop.permute.xlu0 %6738
        %v6748 = vunpack.c.l.b16 %v6681
        %v6749 = vunpack.c.l.b16 %v6682
        %v6750 = vunpack.c.l.b16 %v6683
        %v6751 = vunpack.c.l.b16 %v6684
        %v6752 = vunpack.c.l.b16 %v6685
        %v6753 = vunpack.c.l.b16 %v6686
        %v6754 = vunpack.c.l.b16 %v6687
        %v6755 = vunpack.c.l.b16 %v6688
        %v6756 = vpack.c.b16 %v6748, %v6748
        %v6757 = vpack.c.b16 %v6749, %v6749
        %v6758 = vpack.c.b16 %v6750, %v6750
        %v6759 = vpack.c.b16 %v6751, %v6751
        %v6760 = vpack.c.b16 %v6752, %v6752
        %v6761 = vpack.c.b16 %v6753, %v6753
        %v6762 = vpack.c.b16 %v6754, %v6754
        %v6763 = vpack.c.b16 %v6755, %v6755
        %v6764 = vunpack.c.l.b16 %v6756
        %v6765 = vunpack.c.l.b16 %v6757
        %v6766 = vunpack.c.l.b16 %v6758
        %v6767 = vunpack.c.l.b16 %v6759
        %v6768 = vunpack.c.l.b16 %v6760
        %v6769 = vunpack.c.l.b16 %v6761
        %v6770 = vunpack.c.l.b16 %v6762
        %v6771 = vunpack.c.l.b16 %v6763
        %v6772 = vrot.slane %v6764, 2
        %v6773 = vrot.slane %v6765, 1
        %v6774 = vsel %vm757, %v6773, %v6772
        %v6775 = vsel %vm760, %v6766, %v6774
        %v6776 = vrot.slane %v6767, 7
        %v6777 = vsel %vm763, %v6776, %v6775
        %v6778 = vrot.slane %v6768, 6
        %v6779 = vsel %vm2765, %v6778, %v6777
        %v6780 = vrot.slane %v6769, 5
        %v6781 = vsel %vm2768, %v6780, %v6779
        %v6782 = vrot.slane %v6770, 4
        %v6783 = vsel %vm2771, %v6782, %v6781
        %v6784 = vrot.slane %v6771, 3
        %v6785 = vsel %vm2774, %v6784, %v6783
        %v6786 = vpack.c.b16 %v6785, %v6785
        %6787 = vrot.lane.b32.xlu0 %v6786, 127
        %v6788 = vpop.permute.xlu0 %6787
        %6789 = vrot.lane.b32.xlu0 %v6786, 126
        %v6790 = vpop.permute.xlu0 %6789
        %v6791 = vrot.slane %v6764, 3
        %v6792 = vrot.slane %v6765, 2
        %v6793 = vsel %vm757, %v6792, %v6791
        %v6794 = vrot.slane %v6766, 1
        %v6795 = vsel %vm760, %v6794, %v6793
        %v6796 = vsel %vm763, %v6767, %v6795
        %v6797 = vrot.slane %v6768, 7
        %v6798 = vsel %vm2765, %v6797, %v6796
        %v6799 = vrot.slane %v6769, 6
        %v6800 = vsel %vm2768, %v6799, %v6798
        %v6801 = vrot.slane %v6770, 5
        %v6802 = vsel %vm2771, %v6801, %v6800
        %v6803 = vrot.slane %v6771, 4
        %v6804 = vsel %vm2774, %v6803, %v6802
        %v6805 = vpack.c.b16 %v6804, %v6804
        %6806 = vrot.lane.b32.xlu0 %v6805, 127
        %v6807 = vpop.permute.xlu0 %6806
        %6808 = vrot.lane.b32.xlu0 %v6805, 126
        %v6809 = vpop.permute.xlu0 %6808
        %v6812 = vsel %vm2874, %v6735, %v6737
        %v6816 = vsel %vm2874, %v6739, %v6786
        %v6820 = vsel %vm2874, %v6788, %v6790
        %v6824 = vsel %vm2874, %v6805, %v6807
        %v6826 = vld [vmem:[%s7] sm:$0xf]
        %v6828 = vsel %vm2892, %v6826, 0
        %v6831 = vsel %vm2874, %v6809, 0
        %6833 = vmatprep.subr.bf16.mxu0 0
        %6834 = vmatpush1.bf16.msra.mxu0 0
        %6835 = vmatprep.subr.bf16.mxu0 0
        %6836 = vmatpush1.bf16.msra.mxu0 0
        %6837 = vmatprep.subr.bf16.mxu0 0
        %6838 = vmatpush1.bf16.msra.mxu0 0
        %6839 = vmatprep.subr.bf16.mxu0 0
        %6840 = vmatpush1.bf16.msra.mxu0 %v6831
        %6841 = vmatprep.subr.bf16.mxu0 0
        %6842 = vmatpush1.bf16.msra.mxu0 %v6824
        %6843 = vmatprep.subr.bf16.mxu0 0
        %6844 = vmatpush1.bf16.msra.mxu0 %v6820
        %6845 = vmatprep.subr.bf16.mxu0 0
        %6846 = vmatpush1.bf16.msra.mxu0 %v6816
        %6847 = vmatprep.subr.bf16.mxu0 0
        %6848 = vmatpush1.bf16.msra.mxu0 %v6812
        %6849 = vmatprep.subr.bf16.mxu0 0
        %6850 = vmatpush2.bf16.msra.mxu0 0
        %6851 = vmatprep.subr.bf16.mxu0 0
        %6852 = vmatpush2.bf16.msra.mxu0 0
        %6853 = vmatprep.subr.bf16.mxu0 0
        %6854 = vmatpush2.bf16.msra.mxu0 0
        %6855 = vmatprep.subr.bf16.mxu0 0
        %6856 = vmatpush2.bf16.msra.mxu0 0
        %6857 = vmatprep.subr.bf16.mxu0 0
        %6858 = vmatpush2.bf16.msra.mxu0 0
        %6859 = vmatprep.subr.bf16.mxu0 0
        %6860 = vmatpush2.bf16.msra.mxu0 0
        %6861 = vmatprep.subr.bf16.mxu0 0
        %6862 = vmatpush2.bf16.msra.mxu0 0
        %6863 = vmatprep.subr.bf16.mxu0 0
        %6864 = vmatpush2.bf16.msra.mxu0 0
        %6865 = vmatprep.mubr.bf16.mxu0 0
        %6866 = vmatmul.mubr.bf16.gmra.mxu0 %v6828
        %v6867 = vpop.f32.mrf.mxu0
        %v6868 = vadd.f32 0.0, %v6867
        %v6869 = vpop.f32.mrf.mxu0
        %v6870 = vpop.f32.mrf.mxu0
        %v6871 = vpop.f32.mrf.mxu0
        %6872 = vdwg.mxu0
        %v6873 = vmul.f32 %v6868, %v6596
        %v6874 = vadd.f32 %v6873, %v6602
        %v6875 = vmax.f32 %v6874, 0.0
        %v6877 = vcombine.high %v6875, %v6875
        %v6879 = vunpack.c.l.s4 1966171168
        %v6880 = vunpack.c.0.s8 %v6879
        %v6881 = vlaneseq
        %v6882 = vshrl.u32 %v6881, 7
        %v6883 = vsub.s32 %v6880, %v6882
        %v6884 = vrot.slane %v6875, %v6883
        %v6886 = vunpack.c.l.s4 1966171168
        %v6887 = vunpack.c.0.s8 %v6886
        %v6888 = vlaneseq
        %v6889 = vshrl.u32 %v6888, 7
        %v6890 = vsub.s32 %v6887, %v6889
        %v6891 = vrot.slane %v6877, %v6890
        %v6892 = vcombine.high %v6884, %v6884
        %v6893 = vcombine.high %v6891, %v6891
        %v6895 = vunpack.c.l.s4 1966171168
        %v6896 = vunpack.c.0.s8 %v6895
        %v6897 = vlaneseq
        %v6898 = vshrl.u32 %v6897, 7
        %v6899 = vsub.s32 %v6896, %v6898
        %v6900 = vrot.slane %v6884, %v6899
        %v6902 = vunpack.c.l.s4 1966171168
        %v6903 = vunpack.c.0.s8 %v6902
        %v6904 = vlaneseq
        %v6905 = vshrl.u32 %v6904, 7
        %v6906 = vsub.s32 %v6903, %v6905
        %v6907 = vrot.slane %v6891, %v6906
        %v6909 = vunpack.c.l.s4 1966171168
        %v6910 = vunpack.c.0.s8 %v6909
        %v6911 = vlaneseq
        %v6912 = vshrl.u32 %v6911, 7
        %v6913 = vsub.s32 %v6910, %v6912
        %v6914 = vrot.slane %v6892, %v6913
        %v6916 = vunpack.c.l.s4 1966171168
        %v6917 = vunpack.c.0.s8 %v6916
        %v6918 = vlaneseq
        %v6919 = vshrl.u32 %v6918, 7
        %v6920 = vsub.s32 %v6917, %v6919
        %v6921 = vrot.slane %v6893, %v6920
        %v6922 = vcombine.high %v6900, %v6900
        %v6923 = vcombine.high %v6907, %v6907
        %v6924 = vcombine.high %v6914, %v6914
        %v6925 = vcombine.high %v6921, %v6921
        %6934 = vst.msk [vmem:[%s462 + $0x1] sm:$0x1] %vm6664, %v6900
        %6935 = vst.msk [vmem:[%s462 + $0x9] sm:$0x1] %vm6664, %v6914
        %6936 = vst.msk [vmem:[%s462 + $0x11] sm:$0x1] %vm6664, %v6922
        %6937 = vst.msk [vmem:[%s462 + $0x19] sm:$0x1] %vm6664, %v6924
        %6938 = vst.msk [vmem:[%s462 + $0x21] sm:$0x1] %vm6664, %v6907
        %6939 = vst.msk [vmem:[%s462 + $0x29] sm:$0x1] %vm6664, %v6921
        %6940 = vst.msk [vmem:[%s462 + $0x31] sm:$0x1] %vm6664, %v6923
        %6941 = vst.msk [vmem:[%s462 + $0x39] sm:$0x1] %vm6664, %v6925
        %v6942 = vld [vmem:[#allocation3] sm:$0x2]
        %v6943 = vld [vmem:[#allocation3 + $0x8] sm:$0x2]
        %v6944 = vld [vmem:[#allocation3 + $0x10] sm:$0x2]
        %v6945 = vld [vmem:[#allocation3 + $0x18] sm:$0x2]
        %v6946 = vld [vmem:[#allocation3 + $0x20] sm:$0x2]
        %v6947 = vld [vmem:[#allocation3 + $0x28] sm:$0x2]
        %v6948 = vld [vmem:[#allocation3 + $0x30] sm:$0x2]
        %v6949 = vld [vmem:[#allocation3 + $0x38] sm:$0x2]
        %v6950 = vld [vmem:[#allocation3] sm:$0x4]
        %v6951 = vld [vmem:[#allocation3 + $0x8] sm:$0x4]
        %v6952 = vld [vmem:[#allocation3 + $0x10] sm:$0x4]
        %v6953 = vld [vmem:[#allocation3 + $0x18] sm:$0x4]
        %v6954 = vld [vmem:[#allocation3 + $0x20] sm:$0x4]
        %v6955 = vld [vmem:[#allocation3 + $0x28] sm:$0x4]
        %v6956 = vld [vmem:[#allocation3 + $0x30] sm:$0x4]
        %v6957 = vld [vmem:[#allocation3 + $0x38] sm:$0x4]
        %v6966 = vunpack.c.l.b16 %v6942
        %v6967 = vunpack.c.l.b16 %v6943
        %v6968 = vunpack.c.l.b16 %v6944
        %v6969 = vunpack.c.l.b16 %v6945
        %v6970 = vunpack.c.l.b16 %v6946
        %v6971 = vunpack.c.l.b16 %v6947
        %v6972 = vunpack.c.l.b16 %v6948
        %v6973 = vunpack.c.l.b16 %v6949
        %v6974 = vpack.c.b16 %v6966, %v6966
        %v6975 = vpack.c.b16 %v6967, %v6967
        %v6976 = vpack.c.b16 %v6968, %v6968
        %v6977 = vpack.c.b16 %v6969, %v6969
        %v6978 = vpack.c.b16 %v6970, %v6970
        %v6979 = vpack.c.b16 %v6971, %v6971
        %v6980 = vpack.c.b16 %v6972, %v6972
        %v6981 = vpack.c.b16 %v6973, %v6973
        %v6982 = vunpack.c.l.b16 %v6974
        %v6983 = vunpack.c.l.b16 %v6975
        %v6984 = vunpack.c.l.b16 %v6976
        %v6985 = vunpack.c.l.b16 %v6977
        %v6986 = vunpack.c.l.b16 %v6978
        %v6987 = vunpack.c.l.b16 %v6979
        %v6988 = vunpack.c.l.b16 %v6980
        %v6989 = vunpack.c.l.b16 %v6981
        %v6990 = vrot.slane %v6982, 2
        %v6991 = vrot.slane %v6983, 1
        %v6992 = vsel %vm757, %v6991, %v6990
        %v6993 = vsel %vm760, %v6984, %v6992
        %v6994 = vrot.slane %v6985, 7
        %v6995 = vsel %vm763, %v6994, %v6993
        %v6996 = vrot.slane %v6986, 6
        %v6997 = vsel %vm2765, %v6996, %v6995
        %v6998 = vrot.slane %v6987, 5
        %v6999 = vsel %vm2768, %v6998, %v6997
        %v7000 = vrot.slane %v6988, 4
        %v7001 = vsel %vm2771, %v7000, %v6999
        %v7002 = vrot.slane %v6989, 3
        %v7003 = vsel %vm2774, %v7002, %v7001
        %v7004 = vpack.c.b16 %v7003, %v7003
        %7005 = vrot.lane.b32.xlu0 %v7004, 127
        %v7006 = vpop.permute.xlu0 %7005
        %7007 = vrot.lane.b32.xlu0 %v7004, 126
        %v7008 = vpop.permute.xlu0 %7007
        %v7009 = vrot.slane %v6982, 3
        %v7010 = vrot.slane %v6983, 2
        %v7011 = vsel %vm757, %v7010, %v7009
        %v7012 = vrot.slane %v6984, 1
        %v7013 = vsel %vm760, %v7012, %v7011
        %v7014 = vsel %vm763, %v6985, %v7013
        %v7015 = vrot.slane %v6986, 7
        %v7016 = vsel %vm2765, %v7015, %v7014
        %v7017 = vrot.slane %v6987, 6
        %v7018 = vsel %vm2768, %v7017, %v7016
        %v7019 = vrot.slane %v6988, 5
        %v7020 = vsel %vm2771, %v7019, %v7018
        %v7021 = vrot.slane %v6989, 4
        %v7022 = vsel %vm2774, %v7021, %v7020
        %v7023 = vpack.c.b16 %v7022, %v7022
        %7024 = vrot.lane.b32.xlu0 %v7023, 127
        %v7025 = vpop.permute.xlu0 %7024
        %7026 = vrot.lane.b32.xlu0 %v7023, 126
        %v7027 = vpop.permute.xlu0 %7026
        %v7036 = vunpack.c.l.b16 %v6950
        %v7037 = vunpack.c.l.b16 %v6951
        %v7038 = vunpack.c.l.b16 %v6952
        %v7039 = vunpack.c.l.b16 %v6953
        %v7040 = vunpack.c.l.b16 %v6954
        %v7041 = vunpack.c.l.b16 %v6955
        %v7042 = vunpack.c.l.b16 %v6956
        %v7043 = vunpack.c.l.b16 %v6957
        %v7044 = vpack.c.b16 %v7036, %v7036
        %v7045 = vpack.c.b16 %v7037, %v7037
        %v7046 = vpack.c.b16 %v7038, %v7038
        %v7047 = vpack.c.b16 %v7039, %v7039
        %v7048 = vpack.c.b16 %v7040, %v7040
        %v7049 = vpack.c.b16 %v7041, %v7041
        %v7050 = vpack.c.b16 %v7042, %v7042
        %v7051 = vpack.c.b16 %v7043, %v7043
        %v7052 = vunpack.c.l.b16 %v7044
        %v7053 = vunpack.c.l.b16 %v7045
        %v7054 = vunpack.c.l.b16 %v7046
        %v7055 = vunpack.c.l.b16 %v7047
        %v7056 = vunpack.c.l.b16 %v7048
        %v7057 = vunpack.c.l.b16 %v7049
        %v7058 = vunpack.c.l.b16 %v7050
        %v7059 = vunpack.c.l.b16 %v7051
        %v7060 = vrot.slane %v7052, 4
        %v7061 = vrot.slane %v7053, 3
        %v7062 = vsel %vm757, %v7061, %v7060
        %v7063 = vrot.slane %v7054, 2
        %v7064 = vsel %vm760, %v7063, %v7062
        %v7065 = vrot.slane %v7055, 1
        %v7066 = vsel %vm763, %v7065, %v7064
        %v7067 = vsel %vm2765, %v7056, %v7066
        %v7068 = vrot.slane %v7057, 7
        %v7069 = vsel %vm2768, %v7068, %v7067
        %v7070 = vrot.slane %v7058, 6
        %v7071 = vsel %vm2771, %v7070, %v7069
        %v7072 = vrot.slane %v7059, 5
        %v7073 = vsel %vm2774, %v7072, %v7071
        %v7074 = vpack.c.b16 %v7073, %v7073
        %7075 = vrot.lane.b32.xlu0 %v7074, 127
        %v7076 = vpop.permute.xlu0 %7075
        %7077 = vrot.lane.b32.xlu0 %v7074, 126
        %v7078 = vpop.permute.xlu0 %7077
        %v7081 = vsel %vm2874, %v7004, %v7006
        %v7085 = vsel %vm2874, %v7008, %v7023
        %v7089 = vsel %vm2874, %v7025, %v7027
        %v7093 = vsel %vm2874, %v7074, %v7076
        %v7095 = vld [vmem:[%s7] sm:$0xf]
        %v7097 = vsel %vm2892, %v7095, 0
        %v7100 = vsel %vm2874, %v7078, 0
        %7102 = vmatprep.subr.bf16.mxu0 0
        %7103 = vmatpush1.bf16.msra.mxu0 0
        %7104 = vmatprep.subr.bf16.mxu0 0
        %7105 = vmatpush1.bf16.msra.mxu0 0
        %7106 = vmatprep.subr.bf16.mxu0 0
        %7107 = vmatpush1.bf16.msra.mxu0 0
        %7108 = vmatprep.subr.bf16.mxu0 0
        %7109 = vmatpush1.bf16.msra.mxu0 %v7100
        %7110 = vmatprep.subr.bf16.mxu0 0
        %7111 = vmatpush1.bf16.msra.mxu0 %v7093
        %7112 = vmatprep.subr.bf16.mxu0 0
        %7113 = vmatpush1.bf16.msra.mxu0 %v7089
        %7114 = vmatprep.subr.bf16.mxu0 0
        %7115 = vmatpush1.bf16.msra.mxu0 %v7085
        %7116 = vmatprep.subr.bf16.mxu0 0
        %7117 = vmatpush1.bf16.msra.mxu0 %v7081
        %7118 = vmatprep.subr.bf16.mxu0 0
        %7119 = vmatpush2.bf16.msra.mxu0 0
        %7120 = vmatprep.subr.bf16.mxu0 0
        %7121 = vmatpush2.bf16.msra.mxu0 0
        %7122 = vmatprep.subr.bf16.mxu0 0
        %7123 = vmatpush2.bf16.msra.mxu0 0
        %7124 = vmatprep.subr.bf16.mxu0 0
        %7125 = vmatpush2.bf16.msra.mxu0 0
        %7126 = vmatprep.subr.bf16.mxu0 0
        %7127 = vmatpush2.bf16.msra.mxu0 0
        %7128 = vmatprep.subr.bf16.mxu0 0
        %7129 = vmatpush2.bf16.msra.mxu0 0
        %7130 = vmatprep.subr.bf16.mxu0 0
        %7131 = vmatpush2.bf16.msra.mxu0 0
        %7132 = vmatprep.subr.bf16.mxu0 0
        %7133 = vmatpush2.bf16.msra.mxu0 0
        %7134 = vmatprep.mubr.bf16.mxu0 0
        %7135 = vmatmul.mubr.bf16.gmra.mxu0 %v7097
        %v7136 = vpop.f32.mrf.mxu0
        %v7137 = vadd.f32 0.0, %v7136
        %v7138 = vpop.f32.mrf.mxu0
        %v7139 = vpop.f32.mrf.mxu0
        %v7140 = vpop.f32.mrf.mxu0
        %7141 = vdwg.mxu0
        %v7142 = vmul.f32 %v7137, %v6596
        %v7143 = vadd.f32 %v7142, %v6602
        %v7144 = vmax.f32 %v7143, 0.0
        %v7146 = vcombine.high %v7144, %v7144
        %v7148 = vunpack.c.l.s4 1966171168
        %v7149 = vunpack.c.0.s8 %v7148
        %v7150 = vlaneseq
        %v7151 = vshrl.u32 %v7150, 7
        %v7152 = vsub.s32 %v7149, %v7151
        %v7153 = vrot.slane %v7144, %v7152
        %v7155 = vunpack.c.l.s4 1966171168
        %v7156 = vunpack.c.0.s8 %v7155
        %v7157 = vlaneseq
        %v7158 = vshrl.u32 %v7157, 7
        %v7159 = vsub.s32 %v7156, %v7158
        %v7160 = vrot.slane %v7146, %v7159
        %v7161 = vcombine.high %v7153, %v7153
        %v7162 = vcombine.high %v7160, %v7160
        %v7164 = vunpack.c.l.s4 1966171168
        %v7165 = vunpack.c.0.s8 %v7164
        %v7166 = vlaneseq
        %v7167 = vshrl.u32 %v7166, 7
        %v7168 = vsub.s32 %v7165, %v7167
        %v7169 = vrot.slane %v7153, %v7168
        %v7171 = vunpack.c.l.s4 1966171168
        %v7172 = vunpack.c.0.s8 %v7171
        %v7173 = vlaneseq
        %v7174 = vshrl.u32 %v7173, 7
        %v7175 = vsub.s32 %v7172, %v7174
        %v7176 = vrot.slane %v7160, %v7175
        %v7178 = vunpack.c.l.s4 1966171168
        %v7179 = vunpack.c.0.s8 %v7178
        %v7180 = vlaneseq
        %v7181 = vshrl.u32 %v7180, 7
        %v7182 = vsub.s32 %v7179, %v7181
        %v7183 = vrot.slane %v7161, %v7182
        %v7185 = vunpack.c.l.s4 1966171168
        %v7186 = vunpack.c.0.s8 %v7185
        %v7187 = vlaneseq
        %v7188 = vshrl.u32 %v7187, 7
        %v7189 = vsub.s32 %v7186, %v7188
        %v7190 = vrot.slane %v7162, %v7189
        %v7191 = vcombine.high %v7169, %v7169
        %v7192 = vcombine.high %v7176, %v7176
        %v7193 = vcombine.high %v7183, %v7183
        %v7194 = vcombine.high %v7190, %v7190
        %7203 = vst.msk [vmem:[%s462 + $0x2] sm:$0x1] %vm6664, %v7169
        %7204 = vst.msk [vmem:[%s462 + $0xa] sm:$0x1] %vm6664, %v7183
        %7205 = vst.msk [vmem:[%s462 + $0x12] sm:$0x1] %vm6664, %v7191
        %7206 = vst.msk [vmem:[%s462 + $0x1a] sm:$0x1] %vm6664, %v7193
        %7207 = vst.msk [vmem:[%s462 + $0x22] sm:$0x1] %vm6664, %v7176
        %7208 = vst.msk [vmem:[%s462 + $0x2a] sm:$0x1] %vm6664, %v7190
        %7209 = vst.msk [vmem:[%s462 + $0x32] sm:$0x1] %vm6664, %v7192
        %7210 = vst.msk [vmem:[%s462 + $0x3a] sm:$0x1] %vm6664, %v7194
        %v7211 = vld [vmem:[#allocation3] sm:$0x2]
        %v7212 = vld [vmem:[#allocation3 + $0x8] sm:$0x2]
        %v7213 = vld [vmem:[#allocation3 + $0x10] sm:$0x2]
        %v7214 = vld [vmem:[#allocation3 + $0x18] sm:$0x2]
        %v7215 = vld [vmem:[#allocation3 + $0x20] sm:$0x2]
        %v7216 = vld [vmem:[#allocation3 + $0x28] sm:$0x2]
        %v7217 = vld [vmem:[#allocation3 + $0x30] sm:$0x2]
        %v7218 = vld [vmem:[#allocation3 + $0x38] sm:$0x2]
        %v7219 = vld [vmem:[#allocation3] sm:$0x4]
        %v7220 = vld [vmem:[#allocation3 + $0x8] sm:$0x4]
        %v7221 = vld [vmem:[#allocation3 + $0x10] sm:$0x4]
        %v7222 = vld [vmem:[#allocation3 + $0x18] sm:$0x4]
        %v7223 = vld [vmem:[#allocation3 + $0x20] sm:$0x4]
        %v7224 = vld [vmem:[#allocation3 + $0x28] sm:$0x4]
        %v7225 = vld [vmem:[#allocation3 + $0x30] sm:$0x4]
        %v7226 = vld [vmem:[#allocation3 + $0x38] sm:$0x4]
        %v7235 = vunpack.c.l.b16 %v7211
        %v7236 = vunpack.c.l.b16 %v7212
        %v7237 = vunpack.c.l.b16 %v7213
        %v7238 = vunpack.c.l.b16 %v7214
        %v7239 = vunpack.c.l.b16 %v7215
        %v7240 = vunpack.c.l.b16 %v7216
        %v7241 = vunpack.c.l.b16 %v7217
        %v7242 = vunpack.c.l.b16 %v7218
        %v7243 = vpack.c.b16 %v7235, %v7235
        %v7244 = vpack.c.b16 %v7236, %v7236
        %v7245 = vpack.c.b16 %v7237, %v7237
        %v7246 = vpack.c.b16 %v7238, %v7238
        %v7247 = vpack.c.b16 %v7239, %v7239
        %v7248 = vpack.c.b16 %v7240, %v7240
        %v7249 = vpack.c.b16 %v7241, %v7241
        %v7250 = vpack.c.b16 %v7242, %v7242
        %v7251 = vunpack.c.l.b16 %v7243
        %v7252 = vunpack.c.l.b16 %v7244
        %v7253 = vunpack.c.l.b16 %v7245
        %v7254 = vunpack.c.l.b16 %v7246
        %v7255 = vunpack.c.l.b16 %v7247
        %v7256 = vunpack.c.l.b16 %v7248
        %v7257 = vunpack.c.l.b16 %v7249
        %v7258 = vunpack.c.l.b16 %v7250
        %v7259 = vrot.slane %v7251, 3
        %v7260 = vrot.slane %v7252, 2
        %v7261 = vsel %vm757, %v7260, %v7259
        %v7262 = vrot.slane %v7253, 1
        %v7263 = vsel %vm760, %v7262, %v7261
        %v7264 = vsel %vm763, %v7254, %v7263
        %v7265 = vrot.slane %v7255, 7
        %v7266 = vsel %vm2765, %v7265, %v7264
        %v7267 = vrot.slane %v7256, 6
        %v7268 = vsel %vm2768, %v7267, %v7266
        %v7269 = vrot.slane %v7257, 5
        %v7270 = vsel %vm2771, %v7269, %v7268
        %v7271 = vrot.slane %v7258, 4
        %v7272 = vsel %vm2774, %v7271, %v7270
        %v7273 = vpack.c.b16 %v7272, %v7272
        %7274 = vrot.lane.b32.xlu0 %v7273, 127
        %v7275 = vpop.permute.xlu0 %7274
        %7276 = vrot.lane.b32.xlu0 %v7273, 126
        %v7277 = vpop.permute.xlu0 %7276
        %v7286 = vunpack.c.l.b16 %v7219
        %v7287 = vunpack.c.l.b16 %v7220
        %v7288 = vunpack.c.l.b16 %v7221
        %v7289 = vunpack.c.l.b16 %v7222
        %v7290 = vunpack.c.l.b16 %v7223
        %v7291 = vunpack.c.l.b16 %v7224
        %v7292 = vunpack.c.l.b16 %v7225
        %v7293 = vunpack.c.l.b16 %v7226
        %v7294 = vpack.c.b16 %v7286, %v7286
        %v7295 = vpack.c.b16 %v7287, %v7287
        %v7296 = vpack.c.b16 %v7288, %v7288
        %v7297 = vpack.c.b16 %v7289, %v7289
        %v7298 = vpack.c.b16 %v7290, %v7290
        %v7299 = vpack.c.b16 %v7291, %v7291
        %v7300 = vpack.c.b16 %v7292, %v7292
        %v7301 = vpack.c.b16 %v7293, %v7293
        %v7302 = vunpack.c.l.b16 %v7294
        %v7303 = vunpack.c.l.b16 %v7295
        %v7304 = vunpack.c.l.b16 %v7296
        %v7305 = vunpack.c.l.b16 %v7297
        %v7306 = vunpack.c.l.b16 %v7298
        %v7307 = vunpack.c.l.b16 %v7299
        %v7308 = vunpack.c.l.b16 %v7300
        %v7309 = vunpack.c.l.b16 %v7301
        %v7310 = vrot.slane %v7302, 4
        %v7311 = vrot.slane %v7303, 3
        %v7312 = vsel %vm757, %v7311, %v7310
        %v7313 = vrot.slane %v7304, 2
        %v7314 = vsel %vm760, %v7313, %v7312
        %v7315 = vrot.slane %v7305, 1
        %v7316 = vsel %vm763, %v7315, %v7314
        %v7317 = vsel %vm2765, %v7306, %v7316
        %v7318 = vrot.slane %v7307, 7
        %v7319 = vsel %vm2768, %v7318, %v7317
        %v7320 = vrot.slane %v7308, 6
        %v7321 = vsel %vm2771, %v7320, %v7319
        %v7322 = vrot.slane %v7309, 5
        %v7323 = vsel %vm2774, %v7322, %v7321
        %v7324 = vpack.c.b16 %v7323, %v7323
        %7325 = vrot.lane.b32.xlu0 %v7324, 127
        %v7326 = vpop.permute.xlu0 %7325
        %7327 = vrot.lane.b32.xlu0 %v7324, 126
        %v7328 = vpop.permute.xlu0 %7327
        %v7329 = vrot.slane %v7302, 5
        %v7330 = vrot.slane %v7303, 4
        %v7331 = vsel %vm757, %v7330, %v7329
        %v7332 = vrot.slane %v7304, 3
        %v7333 = vsel %vm760, %v7332, %v7331
        %v7334 = vrot.slane %v7305, 2
        %v7335 = vsel %vm763, %v7334, %v7333
        %v7336 = vrot.slane %v7306, 1
        %v7337 = vsel %vm2765, %v7336, %v7335
        %v7338 = vsel %vm2768, %v7307, %v7337
        %v7339 = vrot.slane %v7308, 7
        %v7340 = vsel %vm2771, %v7339, %v7338
        %v7341 = vrot.slane %v7309, 6
        %v7342 = vsel %vm2774, %v7341, %v7340
        %v7343 = vpack.c.b16 %v7342, %v7342
        %7344 = vrot.lane.b32.xlu0 %v7343, 127
        %v7345 = vpop.permute.xlu0 %7344
        %7346 = vrot.lane.b32.xlu0 %v7343, 126
        %v7347 = vpop.permute.xlu0 %7346
        %v7350 = vsel %vm2874, %v7273, %v7275
        %v7354 = vsel %vm2874, %v7277, %v7324
        %v7358 = vsel %vm2874, %v7326, %v7328
        %v7362 = vsel %vm2874, %v7343, %v7345
        %v7364 = vld [vmem:[%s7] sm:$0xf]
        %v7366 = vsel %vm2892, %v7364, 0
        %v7369 = vsel %vm2874, %v7347, 0
        %7371 = vmatprep.subr.bf16.mxu0 0
        %7372 = vmatpush1.bf16.msra.mxu0 0
        %7373 = vmatprep.subr.bf16.mxu0 0
        %7374 = vmatpush1.bf16.msra.mxu0 0
        %7375 = vmatprep.subr.bf16.mxu0 0
        %7376 = vmatpush1.bf16.msra.mxu0 0
        %7377 = vmatprep.subr.bf16.mxu0 0
        %7378 = vmatpush1.bf16.msra.mxu0 %v7369
        %7379 = vmatprep.subr.bf16.mxu0 0
        %7380 = vmatpush1.bf16.msra.mxu0 %v7362
        %7381 = vmatprep.subr.bf16.mxu0 0
        %7382 = vmatpush1.bf16.msra.mxu0 %v7358
        %7383 = vmatprep.subr.bf16.mxu0 0
        %7384 = vmatpush1.bf16.msra.mxu0 %v7354
        %7385 = vmatprep.subr.bf16.mxu0 0
        %7386 = vmatpush1.bf16.msra.mxu0 %v7350
        %7387 = vmatprep.subr.bf16.mxu0 0
        %7388 = vmatpush2.bf16.msra.mxu0 0
        %7389 = vmatprep.subr.bf16.mxu0 0
        %7390 = vmatpush2.bf16.msra.mxu0 0
        %7391 = vmatprep.subr.bf16.mxu0 0
        %7392 = vmatpush2.bf16.msra.mxu0 0
        %7393 = vmatprep.subr.bf16.mxu0 0
        %7394 = vmatpush2.bf16.msra.mxu0 0
        %7395 = vmatprep.subr.bf16.mxu0 0
        %7396 = vmatpush2.bf16.msra.mxu0 0
        %7397 = vmatprep.subr.bf16.mxu0 0
        %7398 = vmatpush2.bf16.msra.mxu0 0
        %7399 = vmatprep.subr.bf16.mxu0 0
        %7400 = vmatpush2.bf16.msra.mxu0 0
        %7401 = vmatprep.subr.bf16.mxu0 0
        %7402 = vmatpush2.bf16.msra.mxu0 0
        %7403 = vmatprep.mubr.bf16.mxu0 0
        %7404 = vmatmul.mubr.bf16.gmra.mxu0 %v7366
        %v7405 = vpop.f32.mrf.mxu0
        %v7406 = vadd.f32 0.0, %v7405
        %v7407 = vpop.f32.mrf.mxu0
        %v7408 = vpop.f32.mrf.mxu0
        %v7409 = vpop.f32.mrf.mxu0
        %7410 = vdwg.mxu0
        %v7411 = vmul.f32 %v7406, %v6596
        %v7412 = vadd.f32 %v7411, %v6602
        %v7413 = vmax.f32 %v7412, 0.0
        %v7415 = vcombine.high %v7413, %v7413
        %v7417 = vunpack.c.l.s4 1966171168
        %v7418 = vunpack.c.0.s8 %v7417
        %v7419 = vlaneseq
        %v7420 = vshrl.u32 %v7419, 7
        %v7421 = vsub.s32 %v7418, %v7420
        %v7422 = vrot.slane %v7413, %v7421
        %v7424 = vunpack.c.l.s4 1966171168
        %v7425 = vunpack.c.0.s8 %v7424
        %v7426 = vlaneseq
        %v7427 = vshrl.u32 %v7426, 7
        %v7428 = vsub.s32 %v7425, %v7427
        %v7429 = vrot.slane %v7415, %v7428
        %v7430 = vcombine.high %v7422, %v7422
        %v7431 = vcombine.high %v7429, %v7429
        %v7433 = vunpack.c.l.s4 1966171168
        %v7434 = vunpack.c.0.s8 %v7433
        %v7435 = vlaneseq
        %v7436 = vshrl.u32 %v7435, 7
        %v7437 = vsub.s32 %v7434, %v7436
        %v7438 = vrot.slane %v7422, %v7437
        %v7440 = vunpack.c.l.s4 1966171168
        %v7441 = vunpack.c.0.s8 %v7440
        %v7442 = vlaneseq
        %v7443 = vshrl.u32 %v7442, 7
        %v7444 = vsub.s32 %v7441, %v7443
        %v7445 = vrot.slane %v7429, %v7444
        %v7447 = vunpack.c.l.s4 1966171168
        %v7448 = vunpack.c.0.s8 %v7447
        %v7449 = vlaneseq
        %v7450 = vshrl.u32 %v7449, 7
        %v7451 = vsub.s32 %v7448, %v7450
        %v7452 = vrot.slane %v7430, %v7451
        %v7454 = vunpack.c.l.s4 1966171168
        %v7455 = vunpack.c.0.s8 %v7454
        %v7456 = vlaneseq
        %v7457 = vshrl.u32 %v7456, 7
        %v7458 = vsub.s32 %v7455, %v7457
        %v7459 = vrot.slane %v7431, %v7458
        %v7460 = vcombine.high %v7438, %v7438
        %v7461 = vcombine.high %v7445, %v7445
        %v7462 = vcombine.high %v7452, %v7452
        %v7463 = vcombine.high %v7459, %v7459
        %7472 = vst.msk [vmem:[%s462 + $0x3] sm:$0x1] %vm6664, %v7438
        %7473 = vst.msk [vmem:[%s462 + $0xb] sm:$0x1] %vm6664, %v7452
        %7474 = vst.msk [vmem:[%s462 + $0x13] sm:$0x1] %vm6664, %v7460
        %7475 = vst.msk [vmem:[%s462 + $0x1b] sm:$0x1] %vm6664, %v7462
        %7476 = vst.msk [vmem:[%s462 + $0x23] sm:$0x1] %vm6664, %v7445
        %7477 = vst.msk [vmem:[%s462 + $0x2b] sm:$0x1] %vm6664, %v7459
        %7478 = vst.msk [vmem:[%s462 + $0x33] sm:$0x1] %vm6664, %v7461
        %7479 = vst.msk [vmem:[%s462 + $0x3b] sm:$0x1] %vm6664, %v7463
        %v7480 = vld [vmem:[#allocation3] sm:$0x4]
        %v7481 = vld [vmem:[#allocation3 + $0x8] sm:$0x4]
        %v7482 = vld [vmem:[#allocation3 + $0x10] sm:$0x4]
        %v7483 = vld [vmem:[#allocation3 + $0x18] sm:$0x4]
        %v7484 = vld [vmem:[#allocation3 + $0x20] sm:$0x4]
        %v7485 = vld [vmem:[#allocation3 + $0x28] sm:$0x4]
        %v7486 = vld [vmem:[#allocation3 + $0x30] sm:$0x4]
        %v7487 = vld [vmem:[#allocation3 + $0x38] sm:$0x4]
        %v7488 = vld [vmem:[#allocation3] sm:$0x8]
        %v7489 = vld [vmem:[#allocation3 + $0x8] sm:$0x8]
        %v7490 = vld [vmem:[#allocation3 + $0x10] sm:$0x8]
        %v7491 = vld [vmem:[#allocation3 + $0x18] sm:$0x8]
        %v7492 = vld [vmem:[#allocation3 + $0x20] sm:$0x8]
        %v7493 = vld [vmem:[#allocation3 + $0x28] sm:$0x8]
        %v7494 = vld [vmem:[#allocation3 + $0x30] sm:$0x8]
        %v7495 = vld [vmem:[#allocation3 + $0x38] sm:$0x8]
        %v7504 = vunpack.c.l.b16 %v7480
        %v7505 = vunpack.c.l.b16 %v7481
        %v7506 = vunpack.c.l.b16 %v7482
        %v7507 = vunpack.c.l.b16 %v7483
        %v7508 = vunpack.c.l.b16 %v7484
        %v7509 = vunpack.c.l.b16 %v7485
        %v7510 = vunpack.c.l.b16 %v7486
        %v7511 = vunpack.c.l.b16 %v7487
        %v7512 = vpack.c.b16 %v7504, %v7504
        %v7513 = vpack.c.b16 %v7505, %v7505
        %v7514 = vpack.c.b16 %v7506, %v7506
        %v7515 = vpack.c.b16 %v7507, %v7507
        %v7516 = vpack.c.b16 %v7508, %v7508
        %v7517 = vpack.c.b16 %v7509, %v7509
        %v7518 = vpack.c.b16 %v7510, %v7510
        %v7519 = vpack.c.b16 %v7511, %v7511
        %v7520 = vunpack.c.l.b16 %v7512
        %v7521 = vunpack.c.l.b16 %v7513
        %v7522 = vunpack.c.l.b16 %v7514
        %v7523 = vunpack.c.l.b16 %v7515
        %v7524 = vunpack.c.l.b16 %v7516
        %v7525 = vunpack.c.l.b16 %v7517
        %v7526 = vunpack.c.l.b16 %v7518
        %v7527 = vunpack.c.l.b16 %v7519
        %v7528 = vrot.slane %v7520, 4
        %v7529 = vrot.slane %v7521, 3
        %v7530 = vsel %vm757, %v7529, %v7528
        %v7531 = vrot.slane %v7522, 2
        %v7532 = vsel %vm760, %v7531, %v7530
        %v7533 = vrot.slane %v7523, 1
        %v7534 = vsel %vm763, %v7533, %v7532
        %v7535 = vsel %vm2765, %v7524, %v7534
        %v7536 = vrot.slane %v7525, 7
        %v7537 = vsel %vm2768, %v7536, %v7535
        %v7538 = vrot.slane %v7526, 6
        %v7539 = vsel %vm2771, %v7538, %v7537
        %v7540 = vrot.slane %v7527, 5
        %v7541 = vsel %vm2774, %v7540, %v7539
        %v7542 = vpack.c.b16 %v7541, %v7541
        %7543 = vrot.lane.b32.xlu0 %v7542, 127
        %v7544 = vpop.permute.xlu0 %7543
        %7545 = vrot.lane.b32.xlu0 %v7542, 126
        %v7546 = vpop.permute.xlu0 %7545
        %v7547 = vrot.slane %v7520, 5
        %v7548 = vrot.slane %v7521, 4
        %v7549 = vsel %vm757, %v7548, %v7547
        %v7550 = vrot.slane %v7522, 3
        %v7551 = vsel %vm760, %v7550, %v7549
        %v7552 = vrot.slane %v7523, 2
        %v7553 = vsel %vm763, %v7552, %v7551
        %v7554 = vrot.slane %v7524, 1
        %v7555 = vsel %vm2765, %v7554, %v7553
        %v7556 = vsel %vm2768, %v7525, %v7555
        %v7557 = vrot.slane %v7526, 7
        %v7558 = vsel %vm2771, %v7557, %v7556
        %v7559 = vrot.slane %v7527, 6
        %v7560 = vsel %vm2774, %v7559, %v7558
        %v7561 = vpack.c.b16 %v7560, %v7560
        %7562 = vrot.lane.b32.xlu0 %v7561, 127
        %v7563 = vpop.permute.xlu0 %7562
        %7564 = vrot.lane.b32.xlu0 %v7561, 126
        %v7565 = vpop.permute.xlu0 %7564
        %v7574 = vunpack.c.l.b16 %v7488
        %v7575 = vunpack.c.l.b16 %v7489
        %v7576 = vunpack.c.l.b16 %v7490
        %v7577 = vunpack.c.l.b16 %v7491
        %v7578 = vunpack.c.l.b16 %v7492
        %v7579 = vunpack.c.l.b16 %v7493
        %v7580 = vunpack.c.l.b16 %v7494
        %v7581 = vunpack.c.l.b16 %v7495
        %v7582 = vpack.c.b16 %v7574, %v7574
        %v7583 = vpack.c.b16 %v7575, %v7575
        %v7584 = vpack.c.b16 %v7576, %v7576
        %v7585 = vpack.c.b16 %v7577, %v7577
        %v7586 = vpack.c.b16 %v7578, %v7578
        %v7587 = vpack.c.b16 %v7579, %v7579
        %v7588 = vpack.c.b16 %v7580, %v7580
        %v7589 = vpack.c.b16 %v7581, %v7581
        %v7590 = vunpack.c.l.b16 %v7582
        %v7591 = vunpack.c.l.b16 %v7583
        %v7592 = vunpack.c.l.b16 %v7584
        %v7593 = vunpack.c.l.b16 %v7585
        %v7594 = vunpack.c.l.b16 %v7586
        %v7595 = vunpack.c.l.b16 %v7587
        %v7596 = vunpack.c.l.b16 %v7588
        %v7597 = vunpack.c.l.b16 %v7589
        %v7598 = vrot.slane %v7590, 6
        %v7599 = vrot.slane %v7591, 5
        %v7600 = vsel %vm757, %v7599, %v7598
        %v7601 = vrot.slane %v7592, 4
        %v7602 = vsel %vm760, %v7601, %v7600
        %v7603 = vrot.slane %v7593, 3
        %v7604 = vsel %vm763, %v7603, %v7602
        %v7605 = vrot.slane %v7594, 2
        %v7606 = vsel %vm2765, %v7605, %v7604
        %v7607 = vrot.slane %v7595, 1
        %v7608 = vsel %vm2768, %v7607, %v7606
        %v7609 = vsel %vm2771, %v7596, %v7608
        %v7610 = vrot.slane %v7597, 7
        %v7611 = vsel %vm2774, %v7610, %v7609
        %v7612 = vpack.c.b16 %v7611, %v7611
        %7613 = vrot.lane.b32.xlu0 %v7612, 127
        %v7614 = vpop.permute.xlu0 %7613
        %7615 = vrot.lane.b32.xlu0 %v7612, 126
        %v7616 = vpop.permute.xlu0 %7615
        %v7619 = vsel %vm2874, %v7542, %v7544
        %v7623 = vsel %vm2874, %v7546, %v7561
        %v7627 = vsel %vm2874, %v7563, %v7565
        %v7631 = vsel %vm2874, %v7612, %v7614
        %v7633 = vld [vmem:[%s7] sm:$0xf]
        %v7635 = vsel %vm2892, %v7633, 0
        %v7638 = vsel %vm2874, %v7616, 0
        %7640 = vmatprep.subr.bf16.mxu0 0
        %7641 = vmatpush1.bf16.msra.mxu0 0
        %7642 = vmatprep.subr.bf16.mxu0 0
        %7643 = vmatpush1.bf16.msra.mxu0 0
        %7644 = vmatprep.subr.bf16.mxu0 0
        %7645 = vmatpush1.bf16.msra.mxu0 0
        %7646 = vmatprep.subr.bf16.mxu0 0
        %7647 = vmatpush1.bf16.msra.mxu0 %v7638
        %7648 = vmatprep.subr.bf16.mxu0 0
        %7649 = vmatpush1.bf16.msra.mxu0 %v7631
        %7650 = vmatprep.subr.bf16.mxu0 0
        %7651 = vmatpush1.bf16.msra.mxu0 %v7627
        %7652 = vmatprep.subr.bf16.mxu0 0
        %7653 = vmatpush1.bf16.msra.mxu0 %v7623
        %7654 = vmatprep.subr.bf16.mxu0 0
        %7655 = vmatpush1.bf16.msra.mxu0 %v7619
        %7656 = vmatprep.subr.bf16.mxu0 0
        %7657 = vmatpush2.bf16.msra.mxu0 0
        %7658 = vmatprep.subr.bf16.mxu0 0
        %7659 = vmatpush2.bf16.msra.mxu0 0
        %7660 = vmatprep.subr.bf16.mxu0 0
        %7661 = vmatpush2.bf16.msra.mxu0 0
        %7662 = vmatprep.subr.bf16.mxu0 0
        %7663 = vmatpush2.bf16.msra.mxu0 0
        %7664 = vmatprep.subr.bf16.mxu0 0
        %7665 = vmatpush2.bf16.msra.mxu0 0
        %7666 = vmatprep.subr.bf16.mxu0 0
        %7667 = vmatpush2.bf16.msra.mxu0 0
        %7668 = vmatprep.subr.bf16.mxu0 0
        %7669 = vmatpush2.bf16.msra.mxu0 0
        %7670 = vmatprep.subr.bf16.mxu0 0
        %7671 = vmatpush2.bf16.msra.mxu0 0
        %7672 = vmatprep.mubr.bf16.mxu0 0
        %7673 = vmatmul.mubr.bf16.gmra.mxu0 %v7635
        %v7674 = vpop.f32.mrf.mxu0
        %v7675 = vadd.f32 0.0, %v7674
        %v7676 = vpop.f32.mrf.mxu0
        %v7677 = vpop.f32.mrf.mxu0
        %v7678 = vpop.f32.mrf.mxu0
        %7679 = vdwg.mxu0
        %v7680 = vmul.f32 %v7675, %v6596
        %v7681 = vadd.f32 %v7680, %v6602
        %v7682 = vmax.f32 %v7681, 0.0
        %v7684 = vcombine.high %v7682, %v7682
        %v7686 = vunpack.c.l.s4 1966171168
        %v7687 = vunpack.c.0.s8 %v7686
        %v7688 = vlaneseq
        %v7689 = vshrl.u32 %v7688, 7
        %v7690 = vsub.s32 %v7687, %v7689
        %v7691 = vrot.slane %v7682, %v7690
        %v7693 = vunpack.c.l.s4 1966171168
        %v7694 = vunpack.c.0.s8 %v7693
        %v7695 = vlaneseq
        %v7696 = vshrl.u32 %v7695, 7
        %v7697 = vsub.s32 %v7694, %v7696
        %v7698 = vrot.slane %v7684, %v7697
        %v7699 = vcombine.high %v7691, %v7691
        %v7700 = vcombine.high %v7698, %v7698
        %v7702 = vunpack.c.l.s4 1966171168
        %v7703 = vunpack.c.0.s8 %v7702
        %v7704 = vlaneseq
        %v7705 = vshrl.u32 %v7704, 7
        %v7706 = vsub.s32 %v7703, %v7705
        %v7707 = vrot.slane %v7691, %v7706
        %v7709 = vunpack.c.l.s4 1966171168
        %v7710 = vunpack.c.0.s8 %v7709
        %v7711 = vlaneseq
        %v7712 = vshrl.u32 %v7711, 7
        %v7713 = vsub.s32 %v7710, %v7712
        %v7714 = vrot.slane %v7698, %v7713
        %v7716 = vunpack.c.l.s4 1966171168
        %v7717 = vunpack.c.0.s8 %v7716
        %v7718 = vlaneseq
        %v7719 = vshrl.u32 %v7718, 7
        %v7720 = vsub.s32 %v7717, %v7719
        %v7721 = vrot.slane %v7699, %v7720
        %v7723 = vunpack.c.l.s4 1966171168
        %v7724 = vunpack.c.0.s8 %v7723
        %v7725 = vlaneseq
        %v7726 = vshrl.u32 %v7725, 7
        %v7727 = vsub.s32 %v7724, %v7726
        %v7728 = vrot.slane %v7700, %v7727
        %v7729 = vcombine.high %v7707, %v7707
        %v7730 = vcombine.high %v7714, %v7714
        %v7731 = vcombine.high %v7721, %v7721
        %v7732 = vcombine.high %v7728, %v7728
        %7741 = vst.msk [vmem:[%s462 + $0x4] sm:$0x1] %vm6664, %v7707
        %7742 = vst.msk [vmem:[%s462 + $0xc] sm:$0x1] %vm6664, %v7721
        %7743 = vst.msk [vmem:[%s462 + $0x14] sm:$0x1] %vm6664, %v7729
        %7744 = vst.msk [vmem:[%s462 + $0x1c] sm:$0x1] %vm6664, %v7731
        %7745 = vst.msk [vmem:[%s462 + $0x24] sm:$0x1] %vm6664, %v7714
        %7746 = vst.msk [vmem:[%s462 + $0x2c] sm:$0x1] %vm6664, %v7728
        %7747 = vst.msk [vmem:[%s462 + $0x34] sm:$0x1] %vm6664, %v7730
        %7748 = vst.msk [vmem:[%s462 + $0x3c] sm:$0x1] %vm6664, %v7732
        %v7749 = vld [vmem:[#allocation3] sm:$0x4]
        %v7750 = vld [vmem:[#allocation3 + $0x8] sm:$0x4]
        %v7751 = vld [vmem:[#allocation3 + $0x10] sm:$0x4]
        %v7752 = vld [vmem:[#allocation3 + $0x18] sm:$0x4]
        %v7753 = vld [vmem:[#allocation3 + $0x20] sm:$0x4]
        %v7754 = vld [vmem:[#allocation3 + $0x28] sm:$0x4]
        %v7755 = vld [vmem:[#allocation3 + $0x30] sm:$0x4]
        %v7756 = vld [vmem:[#allocation3 + $0x38] sm:$0x4]
        %v7757 = vld [vmem:[#allocation3] sm:$0x8]
        %v7758 = vld [vmem:[#allocation3 + $0x8] sm:$0x8]
        %v7759 = vld [vmem:[#allocation3 + $0x10] sm:$0x8]
        %v7760 = vld [vmem:[#allocation3 + $0x18] sm:$0x8]
        %v7761 = vld [vmem:[#allocation3 + $0x20] sm:$0x8]
        %v7762 = vld [vmem:[#allocation3 + $0x28] sm:$0x8]
        %v7763 = vld [vmem:[#allocation3 + $0x30] sm:$0x8]
        %v7764 = vld [vmem:[#allocation3 + $0x38] sm:$0x8]
        %v7773 = vunpack.c.l.b16 %v7749
        %v7774 = vunpack.c.l.b16 %v7750
        %v7775 = vunpack.c.l.b16 %v7751
        %v7776 = vunpack.c.l.b16 %v7752
        %v7777 = vunpack.c.l.b16 %v7753
        %v7778 = vunpack.c.l.b16 %v7754
        %v7779 = vunpack.c.l.b16 %v7755
        %v7780 = vunpack.c.l.b16 %v7756
        %v7781 = vpack.c.b16 %v7773, %v7773
        %v7782 = vpack.c.b16 %v7774, %v7774
        %v7783 = vpack.c.b16 %v7775, %v7775
        %v7784 = vpack.c.b16 %v7776, %v7776
        %v7785 = vpack.c.b16 %v7777, %v7777
        %v7786 = vpack.c.b16 %v7778, %v7778
        %v7787 = vpack.c.b16 %v7779, %v7779
        %v7788 = vpack.c.b16 %v7780, %v7780
        %v7789 = vunpack.c.l.b16 %v7781
        %v7790 = vunpack.c.l.b16 %v7782
        %v7791 = vunpack.c.l.b16 %v7783
        %v7792 = vunpack.c.l.b16 %v7784
        %v7793 = vunpack.c.l.b16 %v7785
        %v7794 = vunpack.c.l.b16 %v7786
        %v7795 = vunpack.c.l.b16 %v7787
        %v7796 = vunpack.c.l.b16 %v7788
        %v7797 = vrot.slane %v7789, 5
        %v7798 = vrot.slane %v7790, 4
        %v7799 = vsel %vm757, %v7798, %v7797
        %v7800 = vrot.slane %v7791, 3
        %v7801 = vsel %vm760, %v7800, %v7799
        %v7802 = vrot.slane %v7792, 2
        %v7803 = vsel %vm763, %v7802, %v7801
        %v7804 = vrot.slane %v7793, 1
        %v7805 = vsel %vm2765, %v7804, %v7803
        %v7806 = vsel %vm2768, %v7794, %v7805
        %v7807 = vrot.slane %v7795, 7
        %v7808 = vsel %vm2771, %v7807, %v7806
        %v7809 = vrot.slane %v7796, 6
        %v7810 = vsel %vm2774, %v7809, %v7808
        %v7811 = vpack.c.b16 %v7810, %v7810
        %7812 = vrot.lane.b32.xlu0 %v7811, 127
        %v7813 = vpop.permute.xlu0 %7812
        %7814 = vrot.lane.b32.xlu0 %v7811, 126
        %v7815 = vpop.permute.xlu0 %7814
        %v7824 = vunpack.c.l.b16 %v7757
        %v7825 = vunpack.c.l.b16 %v7758
        %v7826 = vunpack.c.l.b16 %v7759
        %v7827 = vunpack.c.l.b16 %v7760
        %v7828 = vunpack.c.l.b16 %v7761
        %v7829 = vunpack.c.l.b16 %v7762
        %v7830 = vunpack.c.l.b16 %v7763
        %v7831 = vunpack.c.l.b16 %v7764
        %v7832 = vpack.c.b16 %v7824, %v7824
        %v7833 = vpack.c.b16 %v7825, %v7825
        %v7834 = vpack.c.b16 %v7826, %v7826
        %v7835 = vpack.c.b16 %v7827, %v7827
        %v7836 = vpack.c.b16 %v7828, %v7828
        %v7837 = vpack.c.b16 %v7829, %v7829
        %v7838 = vpack.c.b16 %v7830, %v7830
        %v7839 = vpack.c.b16 %v7831, %v7831
        %v7840 = vunpack.c.l.b16 %v7832
        %v7841 = vunpack.c.l.b16 %v7833
        %v7842 = vunpack.c.l.b16 %v7834
        %v7843 = vunpack.c.l.b16 %v7835
        %v7844 = vunpack.c.l.b16 %v7836
        %v7845 = vunpack.c.l.b16 %v7837
        %v7846 = vunpack.c.l.b16 %v7838
        %v7847 = vunpack.c.l.b16 %v7839
        %v7848 = vrot.slane %v7840, 6
        %v7849 = vrot.slane %v7841, 5
        %v7850 = vsel %vm757, %v7849, %v7848
        %v7851 = vrot.slane %v7842, 4
        %v7852 = vsel %vm760, %v7851, %v7850
        %v7853 = vrot.slane %v7843, 3
        %v7854 = vsel %vm763, %v7853, %v7852
        %v7855 = vrot.slane %v7844, 2
        %v7856 = vsel %vm2765, %v7855, %v7854
        %v7857 = vrot.slane %v7845, 1
        %v7858 = vsel %vm2768, %v7857, %v7856
        %v7859 = vsel %vm2771, %v7846, %v7858
        %v7860 = vrot.slane %v7847, 7
        %v7861 = vsel %vm2774, %v7860, %v7859
        %v7862 = vpack.c.b16 %v7861, %v7861
        %7863 = vrot.lane.b32.xlu0 %v7862, 127
        %v7864 = vpop.permute.xlu0 %7863
        %7865 = vrot.lane.b32.xlu0 %v7862, 126
        %v7866 = vpop.permute.xlu0 %7865
        %v7867 = vrot.slane %v7840, 7
        %v7868 = vrot.slane %v7841, 6
        %v7869 = vsel %vm757, %v7868, %v7867
        %v7870 = vrot.slane %v7842, 5
        %v7871 = vsel %vm760, %v7870, %v7869
        %v7872 = vrot.slane %v7843, 4
        %v7873 = vsel %vm763, %v7872, %v7871
        %v7874 = vrot.slane %v7844, 3
        %v7875 = vsel %vm2765, %v7874, %v7873
        %v7876 = vrot.slane %v7845, 2
        %v7877 = vsel %vm2768, %v7876, %v7875
        %v7878 = vrot.slane %v7846, 1
        %v7879 = vsel %vm2771, %v7878, %v7877
        %v7880 = vsel %vm2774, %v7847, %v7879
        %v7881 = vpack.c.b16 %v7880, %v7880
        %7882 = vrot.lane.b32.xlu0 %v7881, 127
        %v7883 = vpop.permute.xlu0 %7882
        %7884 = vrot.lane.b32.xlu0 %v7881, 126
        %v7885 = vpop.permute.xlu0 %7884
        %v7888 = vsel %vm2874, %v7811, %v7813
        %v7892 = vsel %vm2874, %v7815, %v7862
        %v7896 = vsel %vm2874, %v7864, %v7866
        %v7900 = vsel %vm2874, %v7881, %v7883
        %v7902 = vld [vmem:[%s7] sm:$0xf]
        %v7904 = vsel %vm2892, %v7902, 0
        %v7907 = vsel %vm2874, %v7885, 0
        %7909 = vmatprep.subr.bf16.mxu0 0
        %7910 = vmatpush1.bf16.msra.mxu0 0
        %7911 = vmatprep.subr.bf16.mxu0 0
        %7912 = vmatpush1.bf16.msra.mxu0 0
        %7913 = vmatprep.subr.bf16.mxu0 0
        %7914 = vmatpush1.bf16.msra.mxu0 0
        %7915 = vmatprep.subr.bf16.mxu0 0
        %7916 = vmatpush1.bf16.msra.mxu0 %v7907
        %7917 = vmatprep.subr.bf16.mxu0 0
        %7918 = vmatpush1.bf16.msra.mxu0 %v7900
        %7919 = vmatprep.subr.bf16.mxu0 0
        %7920 = vmatpush1.bf16.msra.mxu0 %v7896
        %7921 = vmatprep.subr.bf16.mxu0 0
        %7922 = vmatpush1.bf16.msra.mxu0 %v7892
        %7923 = vmatprep.subr.bf16.mxu0 0
        %7924 = vmatpush1.bf16.msra.mxu0 %v7888
        %7925 = vmatprep.subr.bf16.mxu0 0
        %7926 = vmatpush2.bf16.msra.mxu0 0
        %7927 = vmatprep.subr.bf16.mxu0 0
        %7928 = vmatpush2.bf16.msra.mxu0 0
        %7929 = vmatprep.subr.bf16.mxu0 0
        %7930 = vmatpush2.bf16.msra.mxu0 0
        %7931 = vmatprep.subr.bf16.mxu0 0
        %7932 = vmatpush2.bf16.msra.mxu0 0
        %7933 = vmatprep.subr.bf16.mxu0 0
        %7934 = vmatpush2.bf16.msra.mxu0 0
        %7935 = vmatprep.subr.bf16.mxu0 0
        %7936 = vmatpush2.bf16.msra.mxu0 0
        %7937 = vmatprep.subr.bf16.mxu0 0
        %7938 = vmatpush2.bf16.msra.mxu0 0
        %7939 = vmatprep.subr.bf16.mxu0 0
        %7940 = vmatpush2.bf16.msra.mxu0 0
        %7941 = vmatprep.mubr.bf16.mxu0 0
        %7942 = vmatmul.mubr.bf16.gmra.mxu0 %v7904
        %v7943 = vpop.f32.mrf.mxu0
        %v7944 = vadd.f32 0.0, %v7943
        %v7945 = vpop.f32.mrf.mxu0
        %v7946 = vpop.f32.mrf.mxu0
        %v7947 = vpop.f32.mrf.mxu0
        %7948 = vdwg.mxu0
        %v7949 = vmul.f32 %v7944, %v6596
        %v7950 = vadd.f32 %v7949, %v6602
        %v7951 = vmax.f32 %v7950, 0.0
        %v7953 = vcombine.high %v7951, %v7951
        %v7955 = vunpack.c.l.s4 1966171168
        %v7956 = vunpack.c.0.s8 %v7955
        %v7957 = vlaneseq
        %v7958 = vshrl.u32 %v7957, 7
        %v7959 = vsub.s32 %v7956, %v7958
        %v7960 = vrot.slane %v7951, %v7959
        %v7962 = vunpack.c.l.s4 1966171168
        %v7963 = vunpack.c.0.s8 %v7962
        %v7964 = vlaneseq
        %v7965 = vshrl.u32 %v7964, 7
        %v7966 = vsub.s32 %v7963, %v7965
        %v7967 = vrot.slane %v7953, %v7966
        %v7968 = vcombine.high %v7960, %v7960
        %v7969 = vcombine.high %v7967, %v7967
        %v7971 = vunpack.c.l.s4 1966171168
        %v7972 = vunpack.c.0.s8 %v7971
        %v7973 = vlaneseq
        %v7974 = vshrl.u32 %v7973, 7
        %v7975 = vsub.s32 %v7972, %v7974
        %v7976 = vrot.slane %v7960, %v7975
        %v7978 = vunpack.c.l.s4 1966171168
        %v7979 = vunpack.c.0.s8 %v7978
        %v7980 = vlaneseq
        %v7981 = vshrl.u32 %v7980, 7
        %v7982 = vsub.s32 %v7979, %v7981
        %v7983 = vrot.slane %v7967, %v7982
        %v7985 = vunpack.c.l.s4 1966171168
        %v7986 = vunpack.c.0.s8 %v7985
        %v7987 = vlaneseq
        %v7988 = vshrl.u32 %v7987, 7
        %v7989 = vsub.s32 %v7986, %v7988
        %v7990 = vrot.slane %v7968, %v7989
        %v7992 = vunpack.c.l.s4 1966171168
        %v7993 = vunpack.c.0.s8 %v7992
        %v7994 = vlaneseq
        %v7995 = vshrl.u32 %v7994, 7
        %v7996 = vsub.s32 %v7993, %v7995
        %v7997 = vrot.slane %v7969, %v7996
        %v7998 = vcombine.high %v7976, %v7976
        %v7999 = vcombine.high %v7983, %v7983
        %v8000 = vcombine.high %v7990, %v7990
        %v8001 = vcombine.high %v7997, %v7997
        %8010 = vst.msk [vmem:[%s462 + $0x5] sm:$0x1] %vm6664, %v7976
        %8011 = vst.msk [vmem:[%s462 + $0xd] sm:$0x1] %vm6664, %v7990
        %8012 = vst.msk [vmem:[%s462 + $0x15] sm:$0x1] %vm6664, %v7998
        %8013 = vst.msk [vmem:[%s462 + $0x1d] sm:$0x1] %vm6664, %v8000
        %8014 = vst.msk [vmem:[%s462 + $0x25] sm:$0x1] %vm6664, %v7983
        %8015 = vst.msk [vmem:[%s462 + $0x2d] sm:$0x1] %vm6664, %v7997
        %8016 = vst.msk [vmem:[%s462 + $0x35] sm:$0x1] %vm6664, %v7999
        %8017 = vst.msk [vmem:[%s462 + $0x3d] sm:$0x1] %vm6664, %v8001
        %v8018 = vld [vmem:[#allocation3] sm:$0x8]
        %v8019 = vld [vmem:[#allocation3 + $0x8] sm:$0x8]
        %v8020 = vld [vmem:[#allocation3 + $0x10] sm:$0x8]
        %v8021 = vld [vmem:[#allocation3 + $0x18] sm:$0x8]
        %v8022 = vld [vmem:[#allocation3 + $0x20] sm:$0x8]
        %v8023 = vld [vmem:[#allocation3 + $0x28] sm:$0x8]
        %v8024 = vld [vmem:[#allocation3 + $0x30] sm:$0x8]
        %v8025 = vld [vmem:[#allocation3 + $0x38] sm:$0x8]
        %v8026 = vld [vmem:[#allocation3 + $0x4] sm:$0x1]
        %v8027 = vld [vmem:[#allocation3 + $0xc] sm:$0x1]
        %v8028 = vld [vmem:[#allocation3 + $0x14] sm:$0x1]
        %v8029 = vld [vmem:[#allocation3 + $0x1c] sm:$0x1]
        %v8030 = vld [vmem:[#allocation3 + $0x24] sm:$0x1]
        %v8031 = vld [vmem:[#allocation3 + $0x2c] sm:$0x1]
        %v8032 = vld [vmem:[#allocation3 + $0x34] sm:$0x1]
        %v8033 = vld [vmem:[#allocation3 + $0x3c] sm:$0x1]
        %v8042 = vunpack.c.l.b16 %v8018
        %v8043 = vunpack.c.l.b16 %v8019
        %v8044 = vunpack.c.l.b16 %v8020
        %v8045 = vunpack.c.l.b16 %v8021
        %v8046 = vunpack.c.l.b16 %v8022
        %v8047 = vunpack.c.l.b16 %v8023
        %v8048 = vunpack.c.l.b16 %v8024
        %v8049 = vunpack.c.l.b16 %v8025
        %v8050 = vpack.c.b16 %v8042, %v8042
        %v8051 = vpack.c.b16 %v8043, %v8043
        %v8052 = vpack.c.b16 %v8044, %v8044
        %v8053 = vpack.c.b16 %v8045, %v8045
        %v8054 = vpack.c.b16 %v8046, %v8046
        %v8055 = vpack.c.b16 %v8047, %v8047
        %v8056 = vpack.c.b16 %v8048, %v8048
        %v8057 = vpack.c.b16 %v8049, %v8049
        %v8058 = vunpack.c.l.b16 %v8050
        %v8059 = vunpack.c.l.b16 %v8051
        %v8060 = vunpack.c.l.b16 %v8052
        %v8061 = vunpack.c.l.b16 %v8053
        %v8062 = vunpack.c.l.b16 %v8054
        %v8063 = vunpack.c.l.b16 %v8055
        %v8064 = vunpack.c.l.b16 %v8056
        %v8065 = vunpack.c.l.b16 %v8057
        %v8066 = vrot.slane %v8058, 6
        %v8067 = vrot.slane %v8059, 5
        %v8068 = vsel %vm757, %v8067, %v8066
        %v8069 = vrot.slane %v8060, 4
        %v8070 = vsel %vm760, %v8069, %v8068
        %v8071 = vrot.slane %v8061, 3
        %v8072 = vsel %vm763, %v8071, %v8070
        %v8073 = vrot.slane %v8062, 2
        %v8074 = vsel %vm2765, %v8073, %v8072
        %v8075 = vrot.slane %v8063, 1
        %v8076 = vsel %vm2768, %v8075, %v8074
        %v8077 = vsel %vm2771, %v8064, %v8076
        %v8078 = vrot.slane %v8065, 7
        %v8079 = vsel %vm2774, %v8078, %v8077
        %v8080 = vpack.c.b16 %v8079, %v8079
        %8081 = vrot.lane.b32.xlu0 %v8080, 127
        %v8082 = vpop.permute.xlu0 %8081
        %8083 = vrot.lane.b32.xlu0 %v8080, 126
        %v8084 = vpop.permute.xlu0 %8083
        %v8085 = vrot.slane %v8058, 7
        %v8086 = vrot.slane %v8059, 6
        %v8087 = vsel %vm757, %v8086, %v8085
        %v8088 = vrot.slane %v8060, 5
        %v8089 = vsel %vm760, %v8088, %v8087
        %v8090 = vrot.slane %v8061, 4
        %v8091 = vsel %vm763, %v8090, %v8089
        %v8092 = vrot.slane %v8062, 3
        %v8093 = vsel %vm2765, %v8092, %v8091
        %v8094 = vrot.slane %v8063, 2
        %v8095 = vsel %vm2768, %v8094, %v8093
        %v8096 = vrot.slane %v8064, 1
        %v8097 = vsel %vm2771, %v8096, %v8095
        %v8098 = vsel %vm2774, %v8065, %v8097
        %v8099 = vpack.c.b16 %v8098, %v8098
        %8100 = vrot.lane.b32.xlu0 %v8099, 127
        %v8101 = vpop.permute.xlu0 %8100
        %8102 = vrot.lane.b32.xlu0 %v8099, 126
        %v8103 = vpop.permute.xlu0 %8102
        %v8112 = vunpack.c.l.b16 %v8026
        %v8113 = vunpack.c.l.b16 %v8027
        %v8114 = vunpack.c.l.b16 %v8028
        %v8115 = vunpack.c.l.b16 %v8029
        %v8116 = vunpack.c.l.b16 %v8030
        %v8117 = vunpack.c.l.b16 %v8031
        %v8118 = vunpack.c.l.b16 %v8032
        %v8119 = vunpack.c.l.b16 %v8033
        %v8120 = vpack.c.b16 %v8112, %v8112
        %v8121 = vpack.c.b16 %v8113, %v8113
        %v8122 = vpack.c.b16 %v8114, %v8114
        %v8123 = vpack.c.b16 %v8115, %v8115
        %v8124 = vpack.c.b16 %v8116, %v8116
        %v8125 = vpack.c.b16 %v8117, %v8117
        %v8126 = vpack.c.b16 %v8118, %v8118
        %v8127 = vpack.c.b16 %v8119, %v8119
        %v8128 = vunpack.c.l.b16 %v8120
        %v8129 = vunpack.c.l.b16 %v8121
        %v8130 = vunpack.c.l.b16 %v8122
        %v8131 = vunpack.c.l.b16 %v8123
        %v8132 = vunpack.c.l.b16 %v8124
        %v8133 = vunpack.c.l.b16 %v8125
        %v8134 = vunpack.c.l.b16 %v8126
        %v8135 = vunpack.c.l.b16 %v8127
        %v8136 = vrot.slane %v8129, 7
        %v8137 = vsel %vm757, %v8136, %v8128
        %v8138 = vrot.slane %v8130, 6
        %v8139 = vsel %vm760, %v8138, %v8137
        %v8140 = vrot.slane %v8131, 5
        %v8141 = vsel %vm763, %v8140, %v8139
        %v8142 = vrot.slane %v8132, 4
        %v8143 = vsel %vm2765, %v8142, %v8141
        %v8144 = vrot.slane %v8133, 3
        %v8145 = vsel %vm2768, %v8144, %v8143
        %v8146 = vrot.slane %v8134, 2
        %v8147 = vsel %vm2771, %v8146, %v8145
        %v8148 = vrot.slane %v8135, 1
        %v8149 = vsel %vm2774, %v8148, %v8147
        %v8150 = vpack.c.b16 %v8149, %v8149
        %v8151 = vunpack.c.h.b16 %v8120
        %v8152 = vunpack.c.h.b16 %v8121
        %v8153 = vunpack.c.h.b16 %v8122
        %v8154 = vunpack.c.h.b16 %v8123
        %v8155 = vunpack.c.h.b16 %v8124
        %v8156 = vunpack.c.h.b16 %v8125
        %v8157 = vunpack.c.h.b16 %v8126
        %v8158 = vunpack.c.h.b16 %v8127
        %v8159 = vrot.slane %v8152, 7
        %v8160 = vsel %vm757, %v8159, %v8151
        %v8161 = vrot.slane %v8153, 6
        %v8162 = vsel %vm760, %v8161, %v8160
        %v8163 = vrot.slane %v8154, 5
        %v8164 = vsel %vm763, %v8163, %v8162
        %v8165 = vrot.slane %v8155, 4
        %v8166 = vsel %vm2765, %v8165, %v8164
        %v8167 = vrot.slane %v8156, 3
        %v8168 = vsel %vm2768, %v8167, %v8166
        %v8169 = vrot.slane %v8157, 2
        %v8170 = vsel %vm2771, %v8169, %v8168
        %v8171 = vrot.slane %v8158, 1
        %v8172 = vsel %vm2774, %v8171, %v8170
        %v8173 = vpack.c.b16 %v8172, %v8172
        %8174 = vrot.lane.b32.xlu0 %v8173, 127
        %v8175 = vpop.permute.xlu0 %8174
        %8176 = vrot.lane.b32.xlu0 %v8150, 126
        %v8177 = vpop.permute.xlu0 %8176
        %v8180 = vsel %vm2874, %v8080, %v8082
        %v8184 = vsel %vm2874, %v8084, %v8099
        %v8188 = vsel %vm2874, %v8101, %v8103
        %v8192 = vsel %vm2874, %v8150, %v8175
        %v8194 = vld [vmem:[%s7] sm:$0xf]
        %v8196 = vsel %vm2892, %v8194, 0
        %v8199 = vsel %vm2874, %v8177, 0
        %8201 = vmatprep.subr.bf16.mxu0 0
        %8202 = vmatpush1.bf16.msra.mxu0 0
        %8203 = vmatprep.subr.bf16.mxu0 0
        %8204 = vmatpush1.bf16.msra.mxu0 0
        %8205 = vmatprep.subr.bf16.mxu0 0
        %8206 = vmatpush1.bf16.msra.mxu0 0
        %8207 = vmatprep.subr.bf16.mxu0 0
        %8208 = vmatpush1.bf16.msra.mxu0 %v8199
        %8209 = vmatprep.subr.bf16.mxu0 0
        %8210 = vmatpush1.bf16.msra.mxu0 %v8192
        %8211 = vmatprep.subr.bf16.mxu0 0
        %8212 = vmatpush1.bf16.msra.mxu0 %v8188
        %8213 = vmatprep.subr.bf16.mxu0 0
        %8214 = vmatpush1.bf16.msra.mxu0 %v8184
        %8215 = vmatprep.subr.bf16.mxu0 0
        %8216 = vmatpush1.bf16.msra.mxu0 %v8180
        %8217 = vmatprep.subr.bf16.mxu0 0
        %8218 = vmatpush2.bf16.msra.mxu0 0
        %8219 = vmatprep.subr.bf16.mxu0 0
        %8220 = vmatpush2.bf16.msra.mxu0 0
        %8221 = vmatprep.subr.bf16.mxu0 0
        %8222 = vmatpush2.bf16.msra.mxu0 0
        %8223 = vmatprep.subr.bf16.mxu0 0
        %8224 = vmatpush2.bf16.msra.mxu0 0
        %8225 = vmatprep.subr.bf16.mxu0 0
        %8226 = vmatpush2.bf16.msra.mxu0 0
        %8227 = vmatprep.subr.bf16.mxu0 0
        %8228 = vmatpush2.bf16.msra.mxu0 0
        %8229 = vmatprep.subr.bf16.mxu0 0
        %8230 = vmatpush2.bf16.msra.mxu0 0
        %8231 = vmatprep.subr.bf16.mxu0 0
        %8232 = vmatpush2.bf16.msra.mxu0 0
        %8233 = vmatprep.mubr.bf16.mxu0 0
        %8234 = vmatmul.mubr.bf16.gmra.mxu0 %v8196
        %v8235 = vpop.f32.mrf.mxu0
        %v8236 = vadd.f32 0.0, %v8235
        %v8237 = vpop.f32.mrf.mxu0
        %v8238 = vpop.f32.mrf.mxu0
        %v8239 = vpop.f32.mrf.mxu0
        %8240 = vdwg.mxu0
        %v8241 = vmul.f32 %v8236, %v6596
        %v8242 = vadd.f32 %v8241, %v6602
        %v8243 = vmax.f32 %v8242, 0.0
        %v8245 = vcombine.high %v8243, %v8243
        %v8247 = vunpack.c.l.s4 1966171168
        %v8248 = vunpack.c.0.s8 %v8247
        %v8249 = vlaneseq
        %v8250 = vshrl.u32 %v8249, 7
        %v8251 = vsub.s32 %v8248, %v8250
        %v8252 = vrot.slane %v8243, %v8251
        %v8254 = vunpack.c.l.s4 1966171168
        %v8255 = vunpack.c.0.s8 %v8254
        %v8256 = vlaneseq
        %v8257 = vshrl.u32 %v8256, 7
        %v8258 = vsub.s32 %v8255, %v8257
        %v8259 = vrot.slane %v8245, %v8258
        %v8260 = vcombine.high %v8252, %v8252
        %v8261 = vcombine.high %v8259, %v8259
        %v8263 = vunpack.c.l.s4 1966171168
        %v8264 = vunpack.c.0.s8 %v8263
        %v8265 = vlaneseq
        %v8266 = vshrl.u32 %v8265, 7
        %v8267 = vsub.s32 %v8264, %v8266
        %v8268 = vrot.slane %v8252, %v8267
        %v8270 = vunpack.c.l.s4 1966171168
        %v8271 = vunpack.c.0.s8 %v8270
        %v8272 = vlaneseq
        %v8273 = vshrl.u32 %v8272, 7
        %v8274 = vsub.s32 %v8271, %v8273
        %v8275 = vrot.slane %v8259, %v8274
        %v8277 = vunpack.c.l.s4 1966171168
        %v8278 = vunpack.c.0.s8 %v8277
        %v8279 = vlaneseq
        %v8280 = vshrl.u32 %v8279, 7
        %v8281 = vsub.s32 %v8278, %v8280
        %v8282 = vrot.slane %v8260, %v8281
        %v8284 = vunpack.c.l.s4 1966171168
        %v8285 = vunpack.c.0.s8 %v8284
        %v8286 = vlaneseq
        %v8287 = vshrl.u32 %v8286, 7
        %v8288 = vsub.s32 %v8285, %v8287
        %v8289 = vrot.slane %v8261, %v8288
        %v8290 = vcombine.high %v8268, %v8268
        %v8291 = vcombine.high %v8275, %v8275
        %v8292 = vcombine.high %v8282, %v8282
        %v8293 = vcombine.high %v8289, %v8289
        %8302 = vst.msk [vmem:[%s462 + $0x6] sm:$0x1] %vm6664, %v8268
        %8303 = vst.msk [vmem:[%s462 + $0xe] sm:$0x1] %vm6664, %v8282
        %8304 = vst.msk [vmem:[%s462 + $0x16] sm:$0x1] %vm6664, %v8290
        %8305 = vst.msk [vmem:[%s462 + $0x1e] sm:$0x1] %vm6664, %v8292
        %8306 = vst.msk [vmem:[%s462 + $0x26] sm:$0x1] %vm6664, %v8275
        %8307 = vst.msk [vmem:[%s462 + $0x2e] sm:$0x1] %vm6664, %v8289
        %8308 = vst.msk [vmem:[%s462 + $0x36] sm:$0x1] %vm6664, %v8291
        %8309 = vst.msk [vmem:[%s462 + $0x3e] sm:$0x1] %vm6664, %v8293
        %v8310 = vld [vmem:[#allocation3] sm:$0x8]
        %v8311 = vld [vmem:[#allocation3 + $0x8] sm:$0x8]
        %v8312 = vld [vmem:[#allocation3 + $0x10] sm:$0x8]
        %v8313 = vld [vmem:[#allocation3 + $0x18] sm:$0x8]
        %v8314 = vld [vmem:[#allocation3 + $0x20] sm:$0x8]
        %v8315 = vld [vmem:[#allocation3 + $0x28] sm:$0x8]
        %v8316 = vld [vmem:[#allocation3 + $0x30] sm:$0x8]
        %v8317 = vld [vmem:[#allocation3 + $0x38] sm:$0x8]
        %v8318 = vld [vmem:[#allocation3 + $0x4] sm:$0x1]
        %v8319 = vld [vmem:[#allocation3 + $0xc] sm:$0x1]
        %v8320 = vld [vmem:[#allocation3 + $0x14] sm:$0x1]
        %v8321 = vld [vmem:[#allocation3 + $0x1c] sm:$0x1]
        %v8322 = vld [vmem:[#allocation3 + $0x24] sm:$0x1]
        %v8323 = vld [vmem:[#allocation3 + $0x2c] sm:$0x1]
        %v8324 = vld [vmem:[#allocation3 + $0x34] sm:$0x1]
        %v8325 = vld [vmem:[#allocation3 + $0x3c] sm:$0x1]
        %v8334 = vunpack.c.l.b16 %v8310
        %v8335 = vunpack.c.l.b16 %v8311
        %v8336 = vunpack.c.l.b16 %v8312
        %v8337 = vunpack.c.l.b16 %v8313
        %v8338 = vunpack.c.l.b16 %v8314
        %v8339 = vunpack.c.l.b16 %v8315
        %v8340 = vunpack.c.l.b16 %v8316
        %v8341 = vunpack.c.l.b16 %v8317
        %v8342 = vpack.c.b16 %v8334, %v8334
        %v8343 = vpack.c.b16 %v8335, %v8335
        %v8344 = vpack.c.b16 %v8336, %v8336
        %v8345 = vpack.c.b16 %v8337, %v8337
        %v8346 = vpack.c.b16 %v8338, %v8338
        %v8347 = vpack.c.b16 %v8339, %v8339
        %v8348 = vpack.c.b16 %v8340, %v8340
        %v8349 = vpack.c.b16 %v8341, %v8341
        %v8350 = vunpack.c.l.b16 %v8342
        %v8351 = vunpack.c.l.b16 %v8343
        %v8352 = vunpack.c.l.b16 %v8344
        %v8353 = vunpack.c.l.b16 %v8345
        %v8354 = vunpack.c.l.b16 %v8346
        %v8355 = vunpack.c.l.b16 %v8347
        %v8356 = vunpack.c.l.b16 %v8348
        %v8357 = vunpack.c.l.b16 %v8349
        %v8358 = vrot.slane %v8350, 7
        %v8359 = vrot.slane %v8351, 6
        %v8360 = vsel %vm757, %v8359, %v8358
        %v8361 = vrot.slane %v8352, 5
        %v8362 = vsel %vm760, %v8361, %v8360
        %v8363 = vrot.slane %v8353, 4
        %v8364 = vsel %vm763, %v8363, %v8362
        %v8365 = vrot.slane %v8354, 3
        %v8366 = vsel %vm2765, %v8365, %v8364
        %v8367 = vrot.slane %v8355, 2
        %v8368 = vsel %vm2768, %v8367, %v8366
        %v8369 = vrot.slane %v8356, 1
        %v8370 = vsel %vm2771, %v8369, %v8368
        %v8371 = vsel %vm2774, %v8357, %v8370
        %v8372 = vpack.c.b16 %v8371, %v8371
        %8373 = vrot.lane.b32.xlu0 %v8372, 127
        %v8374 = vpop.permute.xlu0 %8373
        %8375 = vrot.lane.b32.xlu0 %v8372, 126
        %v8376 = vpop.permute.xlu0 %8375
        %v8385 = vunpack.c.l.b16 %v8318
        %v8386 = vunpack.c.l.b16 %v8319
        %v8387 = vunpack.c.l.b16 %v8320
        %v8388 = vunpack.c.l.b16 %v8321
        %v8389 = vunpack.c.l.b16 %v8322
        %v8390 = vunpack.c.l.b16 %v8323
        %v8391 = vunpack.c.l.b16 %v8324
        %v8392 = vunpack.c.l.b16 %v8325
        %v8393 = vpack.c.b16 %v8385, %v8385
        %v8394 = vpack.c.b16 %v8386, %v8386
        %v8395 = vpack.c.b16 %v8387, %v8387
        %v8396 = vpack.c.b16 %v8388, %v8388
        %v8397 = vpack.c.b16 %v8389, %v8389
        %v8398 = vpack.c.b16 %v8390, %v8390
        %v8399 = vpack.c.b16 %v8391, %v8391
        %v8400 = vpack.c.b16 %v8392, %v8392
        %v8401 = vunpack.c.h.b16 %v8393
        %v8402 = vunpack.c.h.b16 %v8394
        %v8403 = vunpack.c.h.b16 %v8395
        %v8404 = vunpack.c.h.b16 %v8396
        %v8405 = vunpack.c.h.b16 %v8397
        %v8406 = vunpack.c.h.b16 %v8398
        %v8407 = vunpack.c.h.b16 %v8399
        %v8408 = vunpack.c.h.b16 %v8400
        %v8409 = vrot.slane %v8402, 7
        %v8410 = vsel %vm757, %v8409, %v8401
        %v8411 = vrot.slane %v8403, 6
        %v8412 = vsel %vm760, %v8411, %v8410
        %v8413 = vrot.slane %v8404, 5
        %v8414 = vsel %vm763, %v8413, %v8412
        %v8415 = vrot.slane %v8405, 4
        %v8416 = vsel %vm2765, %v8415, %v8414
        %v8417 = vrot.slane %v8406, 3
        %v8418 = vsel %vm2768, %v8417, %v8416
        %v8419 = vrot.slane %v8407, 2
        %v8420 = vsel %vm2771, %v8419, %v8418
        %v8421 = vrot.slane %v8408, 1
        %v8422 = vsel %vm2774, %v8421, %v8420
        %v8423 = vpack.c.b16 %v8422, %v8422
        %v8424 = vunpack.c.l.b16 %v8393
        %v8425 = vunpack.c.l.b16 %v8394
        %v8426 = vunpack.c.l.b16 %v8395
        %v8427 = vunpack.c.l.b16 %v8396
        %v8428 = vunpack.c.l.b16 %v8397
        %v8429 = vunpack.c.l.b16 %v8398
        %v8430 = vunpack.c.l.b16 %v8399
        %v8431 = vunpack.c.l.b16 %v8400
        %v8432 = vrot.slane %v8425, 7
        %v8433 = vsel %vm757, %v8432, %v8424
        %v8434 = vrot.slane %v8426, 6
        %v8435 = vsel %vm760, %v8434, %v8433
        %v8436 = vrot.slane %v8427, 5
        %v8437 = vsel %vm763, %v8436, %v8435
        %v8438 = vrot.slane %v8428, 4
        %v8439 = vsel %vm2765, %v8438, %v8437
        %v8440 = vrot.slane %v8429, 3
        %v8441 = vsel %vm2768, %v8440, %v8439
        %v8442 = vrot.slane %v8430, 2
        %v8443 = vsel %vm2771, %v8442, %v8441
        %v8444 = vrot.slane %v8431, 1
        %v8445 = vsel %vm2774, %v8444, %v8443
        %v8446 = vpack.c.b16 %v8445, %v8445
        %8447 = vrot.lane.b32.xlu0 %v8446, 127
        %v8448 = vpop.permute.xlu0 %8447
        %8449 = vrot.lane.b32.xlu0 %v8423, 126
        %v8450 = vpop.permute.xlu0 %8449
        %v8451 = vrot.slane %v8424, 1
        %v8452 = vsel %vm757, %v8425, %v8451
        %v8453 = vrot.slane %v8426, 7
        %v8454 = vsel %vm760, %v8453, %v8452
        %v8455 = vrot.slane %v8427, 6
        %v8456 = vsel %vm763, %v8455, %v8454
        %v8457 = vrot.slane %v8428, 5
        %v8458 = vsel %vm2765, %v8457, %v8456
        %v8459 = vrot.slane %v8429, 4
        %v8460 = vsel %vm2768, %v8459, %v8458
        %v8461 = vrot.slane %v8430, 3
        %v8462 = vsel %vm2771, %v8461, %v8460
        %v8463 = vrot.slane %v8431, 2
        %v8464 = vsel %vm2774, %v8463, %v8462
        %v8465 = vpack.c.b16 %v8464, %v8464
        %8466 = vrot.lane.b32.xlu0 %v8465, 127
        %v8467 = vpop.permute.xlu0 %8466
        %8468 = vrot.lane.b32.xlu0 %v8465, 126
        %v8469 = vpop.permute.xlu0 %8468
        %v8472 = vsel %vm2874, %v8372, %v8374
        %v8476 = vsel %vm2874, %v8376, %v8423
        %v8480 = vsel %vm2874, %v8448, %v8450
        %v8484 = vsel %vm2874, %v8465, %v8467
        %v8486 = vld [vmem:[%s7] sm:$0xf]
        %v8488 = vsel %vm2892, %v8486, 0
        %v8491 = vsel %vm2874, %v8469, 0
        %8493 = vmatprep.subr.bf16.mxu0 0
        %8494 = vmatpush1.bf16.msra.mxu0 0
        %8495 = vmatprep.subr.bf16.mxu0 0
        %8496 = vmatpush1.bf16.msra.mxu0 0
        %8497 = vmatprep.subr.bf16.mxu0 0
        %8498 = vmatpush1.bf16.msra.mxu0 0
        %8499 = vmatprep.subr.bf16.mxu0 0
        %8500 = vmatpush1.bf16.msra.mxu0 %v8491
        %8501 = vmatprep.subr.bf16.mxu0 0
        %8502 = vmatpush1.bf16.msra.mxu0 %v8484
        %8503 = vmatprep.subr.bf16.mxu0 0
        %8504 = vmatpush1.bf16.msra.mxu0 %v8480
        %8505 = vmatprep.subr.bf16.mxu0 0
        %8506 = vmatpush1.bf16.msra.mxu0 %v8476
        %8507 = vmatprep.subr.bf16.mxu0 0
        %8508 = vmatpush1.bf16.msra.mxu0 %v8472
        %8509 = vmatprep.subr.bf16.mxu0 0
        %8510 = vmatpush2.bf16.msra.mxu0 0
        %8511 = vmatprep.subr.bf16.mxu0 0
        %8512 = vmatpush2.bf16.msra.mxu0 0
        %8513 = vmatprep.subr.bf16.mxu0 0
        %8514 = vmatpush2.bf16.msra.mxu0 0
        %8515 = vmatprep.subr.bf16.mxu0 0
        %8516 = vmatpush2.bf16.msra.mxu0 0
        %8517 = vmatprep.subr.bf16.mxu0 0
        %8518 = vmatpush2.bf16.msra.mxu0 0
        %8519 = vmatprep.subr.bf16.mxu0 0
        %8520 = vmatpush2.bf16.msra.mxu0 0
        %8521 = vmatprep.subr.bf16.mxu0 0
        %8522 = vmatpush2.bf16.msra.mxu0 0
        %8523 = vmatprep.subr.bf16.mxu0 0
        %8524 = vmatpush2.bf16.msra.mxu0 0
        %8525 = vmatprep.mubr.bf16.mxu0 0
        %8526 = vmatmul.mubr.bf16.gmra.mxu0 %v8488
        %v8527 = vpop.f32.mrf.mxu0
        %v8528 = vadd.f32 0.0, %v8527
        %v8529 = vpop.f32.mrf.mxu0
        %v8530 = vpop.f32.mrf.mxu0
        %v8531 = vpop.f32.mrf.mxu0
        %8532 = vdwg.mxu0
        %v8533 = vmul.f32 %v8528, %v6596
        %v8534 = vadd.f32 %v8533, %v6602
        %v8535 = vmax.f32 %v8534, 0.0
        %v8537 = vcombine.high %v8535, %v8535
        %v8539 = vunpack.c.l.s4 1966171168
        %v8540 = vunpack.c.0.s8 %v8539
        %v8541 = vlaneseq
        %v8542 = vshrl.u32 %v8541, 7
        %v8543 = vsub.s32 %v8540, %v8542
        %v8544 = vrot.slane %v8535, %v8543
        %v8546 = vunpack.c.l.s4 1966171168
        %v8547 = vunpack.c.0.s8 %v8546
        %v8548 = vlaneseq
        %v8549 = vshrl.u32 %v8548, 7
        %v8550 = vsub.s32 %v8547, %v8549
        %v8551 = vrot.slane %v8537, %v8550
        %v8552 = vcombine.high %v8544, %v8544
        %v8553 = vcombine.high %v8551, %v8551
        %v8555 = vunpack.c.l.s4 1966171168
        %v8556 = vunpack.c.0.s8 %v8555
        %v8557 = vlaneseq
        %v8558 = vshrl.u32 %v8557, 7
        %v8559 = vsub.s32 %v8556, %v8558
        %v8560 = vrot.slane %v8544, %v8559
        %v8562 = vunpack.c.l.s4 1966171168
        %v8563 = vunpack.c.0.s8 %v8562
        %v8564 = vlaneseq
        %v8565 = vshrl.u32 %v8564, 7
        %v8566 = vsub.s32 %v8563, %v8565
        %v8567 = vrot.slane %v8551, %v8566
        %v8569 = vunpack.c.l.s4 1966171168
        %v8570 = vunpack.c.0.s8 %v8569
        %v8571 = vlaneseq
        %v8572 = vshrl.u32 %v8571, 7
        %v8573 = vsub.s32 %v8570, %v8572
        %v8574 = vrot.slane %v8552, %v8573
        %v8576 = vunpack.c.l.s4 1966171168
        %v8577 = vunpack.c.0.s8 %v8576
        %v8578 = vlaneseq
        %v8579 = vshrl.u32 %v8578, 7
        %v8580 = vsub.s32 %v8577, %v8579
        %v8581 = vrot.slane %v8553, %v8580
        %v8582 = vcombine.high %v8560, %v8560
        %v8583 = vcombine.high %v8567, %v8567
        %v8584 = vcombine.high %v8574, %v8574
        %v8585 = vcombine.high %v8581, %v8581
        %8594 = vst.msk [vmem:[%s462 + $0x7] sm:$0x1] %vm6664, %v8560
        %8595 = vst.msk [vmem:[%s462 + $0xf] sm:$0x1] %vm6664, %v8574
        %8596 = vst.msk [vmem:[%s462 + $0x17] sm:$0x1] %vm6664, %v8582
        %8597 = vst.msk [vmem:[%s462 + $0x1f] sm:$0x1] %vm6664, %v8584
        %8598 = vst.msk [vmem:[%s462 + $0x27] sm:$0x1] %vm6664, %v8567
        %8599 = vst.msk [vmem:[%s462 + $0x2f] sm:$0x1] %vm6664, %v8581
        %8600 = vst.msk [vmem:[%s462 + $0x37] sm:$0x1] %vm6664, %v8583
        %8601 = vst.msk [vmem:[%s462 + $0x3f] sm:$0x1] %vm6664, %v8585
        %s8602 = sand.u32 %s275, 1
        %s8603 = scalar_lea.sflag [#allocation6], %s8602
        %s8604 = sand.u32 %s275, 1
        %s8605 = smul.addr %s8604, 64
        %s8606 = scalar_lea.vmem [#allocation5], %s8605
        // Predicated region
        $region107: #{up_forward.1} parent=93 // pred_check
          %p8607 = pneg %p285
        $region108: #{up_forward.1} parent=93 // pred_check_branch
          %8609 = sbr.rel (%p8607) target = $region110
        $region109: #{up_forward.1} parent=93 // pred_region
          %s8611 = ssub.s32 1024, 1024
          %8612 = vsyncadd %s8603, %s8611
          %s8613 = smul.addr %s28, 32
          %s8614 = sadd.s32 %s29, %s8613
          %s8615 = smul.addr %s8614, 128
          %s8616 = scalar_lea.hbm %s10, %s8615
          %s8617 = sshll.u32 %s8606, 4
          %s8618 = int_to_ptr.vmem [resolvable:$true] %s8617
          %8623 = dma.vmem_to_hbm [thread:$0]  %s8618, 1024, %s8616, %s8603, 128, 512, 8
        $region110: #{up_forward.1} parent=93 // pred_fallthru
          _
      $region94: #{up_forward.1} parent=5 // pred_fallthru
        _
      %p8624 = scmp.le.s32.totalorder 2, %s19
      // Predicated region
      $region111: #{up_forward.1} parent=5 // pred_check
        %p8625 = pneg %p8624
      $region112: #{up_forward.1} parent=5 // pred_check_branch
        %8627 = sbr.rel (%p8625) target = $region114
      $region113: #{up_forward.1} parent=5 // pred_region
        %s8628 = ssub.s32 %s19, 2
        // Predicated region
        $region115: #{up_forward.1} parent=113 // pred_check
          %p8629 = pneg %p291
        $region116: #{up_forward.1} parent=113 // pred_check_branch
          %8631 = sbr.rel (%p8629) target = $region118
        $region117: #{up_forward.1} parent=113 // pred_region
          %s8632 = sand.u32 %s276, 1
          %s8633 = scalar_lea.sflag [#allocation6], %s8632
          %s8634 = sand.u32 %s276, 1
          %s8635 = smul.addr %s8634, 64
          %s8636 = scalar_lea.vmem [#allocation5], %s8635
          %8637 = dma.done %s8633, 1024
        $region118: #{up_forward.1} parent=113 // pred_fallthru
          _
      $region114: #{up_forward.1} parent=5 // pred_fallthru
        _
    $region6: #{up_forward.1} parent=1 // loop_footer
      %s23 = sadd.s32 1, %s19
    $region7: #{up_forward.1} parent=1 // loop_footer_branch
      %18 = sbr.rel target = $region3
    $region8: #{up_forward.1} parent=1 // loop_exit
      _
    %8638 = vsyncpa [#allocation6], 1
    %s8639 = scalar_lea.sflag [#allocation6], 1
    %8640 = vsyncpa %s8639, 1

</llo_original>
